<compile_context>
chip_gen: v5e
topology: v5e:2x2
jax: 0.10.0
libtpu: 0.0.40
codegen_flags: <defaults>
</compile_context>

<pallas_src>
import functools

import jax
import jax.numpy as jnp
import numpy as np
from jax.experimental import pallas as pl
from jax.experimental.pallas import tpu as pltpu

EPS = 1e-5
HEAD_PAD = 16        # policy(8) + value(4) head channels padded to 16 -> W*16 = 128 lanes
VAL_OUT_PAD = 128    # winrate output padded to a full 128-lane slab


# ----------------------------------------------------------------------------
# Parameters (deterministic, synthetic, matching the torch module's init)
# ----------------------------------------------------------------------------
def _conv_block_params(key, cin, cout, k):
    kw, kb, kg, kbe, km, kv = jax.random.split(key, 6)
    fan_out = cout * k * k                               # kaiming_normal_, fan_out, relu
    w = jax.random.normal(kw, (k, k, cin, cout), jnp.float32) * np.sqrt(2.0 / fan_out)
    b = 0.1 * jax.random.normal(kb, (cout,), jnp.float32)
    gamma = 1.0 + 0.1 * jax.random.normal(kg, (cout,), jnp.float32)
    beta = 0.1 * jax.random.normal(kbe, (cout,), jnp.float32)
    mean = 0.1 * jax.random.normal(km, (cout,), jnp.float32)
    var = jax.random.uniform(kv, (cout,), jnp.float32, 0.5, 1.5)
    return dict(w=w, b=b, gamma=gamma, beta=beta, mean=mean, var=var)


def _fold_bn(p):
    s = p['gamma'] / jnp.sqrt(p['var'] + EPS)
    w_eff = p['w'] * s                                   # scale per output channel
    shift = (p['b'] - p['mean']) * s + p['beta']
    return w_eff, shift


def _fc_params(key, cin, cout):
    kw, kb = jax.random.split(key)
    bound = 1.0 / np.sqrt(cin)
    w = jax.random.uniform(kw, (cout, cin), jnp.float32, -bound, bound)  # torch (out, in)
    b = jax.random.uniform(kb, (cout,), jnp.float32, -bound, bound)
    return dict(w=w, b=b)


def init_network_params(key, board_size, input_channels, block_size, filter_size,
                        policy_channels=8, value_channels=4, value_layers=256):
    spatial = board_size ** 2
    keys = list(jax.random.split(key, 1 + 2 * block_size + 2 + 3))
    params = {}
    params['input_conv'] = _conv_block_params(keys.pop(0), input_channels, filter_size, 3)
    blocks = []
    for _ in range(block_size):
        blocks.append(dict(
            conv1=_conv_block_params(keys.pop(0), filter_size, filter_size, 3),
            conv2=_conv_block_params(keys.pop(0), filter_size, filter_size, 3),
        ))
    params['blocks'] = blocks
    params['policy_conv'] = _conv_block_params(keys.pop(0), filter_size, policy_channels, 1)
    params['value_conv'] = _conv_block_params(keys.pop(0), filter_size, value_channels, 1)
    params['policy_fc'] = _fc_params(keys.pop(0), policy_channels * spatial, spatial + 1)
    params['value_fc'] = _fc_params(keys.pop(0), value_channels * spatial, value_layers)
    params['winrate_fc'] = _fc_params(keys.pop(0), value_layers, 1)
    return params


# ----------------------------------------------------------------------------
# One-time parameter prep: fold BN, build block-Toeplitz conv matrices and
# permutation-folded, lane-padded head FC weights (done once, outside forward).
# ----------------------------------------------------------------------------
def prepare_kernel_params(params, board_size):
    H = W = board_size
    C = params['input_conv']['w'].shape[-1]              # filter_size
    L = W * C

    def banded(w_eff):                                    # (3,3,C,C) -> (3, L, L)
        mats = []
        for dy in range(3):
            m = sum(jnp.einsum('io,cd->icod',
                               jnp.eye(W, k=1 - dx, dtype=jnp.float32),
                               w_eff[dy, dx]).reshape(L, L)
                    for dx in range(3))
            mats.append(m)
        return jnp.stack(mats)

    conv_mats, conv_shifts = [], []
    w0, t0 = _fold_bn(params['input_conv'])
    w0 = jnp.pad(w0, ((0, 0), (0, 0), (0, C - w0.shape[2]), (0, 0)))  # pad Cin -> C
    conv_mats.append(banded(w0))
    conv_shifts.append(jnp.tile(t0, W))
    for blk in params['blocks']:
        for name in ('conv1', 'conv2'):
            w, t = _fold_bn(blk[name])
            conv_mats.append(banded(w))
            conv_shifts.append(jnp.tile(t, W))
    wconv = jnp.stack(conv_mats).astype(jnp.bfloat16)          # (n_layers, 3, L, L)
    shifts = jnp.stack(conv_shifts)[:, None, :]                # (n_layers, 1, L) f32

    # fused + lane-padded policy(8)/value(4) 1x1 convs -> head width W*16 = 128 lanes
    wp1, tp1 = _fold_bn(params['policy_conv'])
    wv1, tv1 = _fold_bn(params['value_conv'])
    n_pol_c, n_val_c = wp1.shape[-1], wv1.shape[-1]
    whead = jnp.zeros((C, HEAD_PAD), jnp.float32)
    whead = whead.at[:, :n_pol_c].set(wp1.reshape(C, n_pol_c))
    whead = whead.at[:, n_pol_c:n_pol_c + n_val_c].set(wv1.reshape(C, n_val_c))
    bdhead = jnp.einsum('xz,cd->xczd', jnp.eye(W, dtype=jnp.float32), whead)
    bdhead = bdhead.reshape(L, W * HEAD_PAD).astype(jnp.bfloat16)     # (L, 128)
    hshift = jnp.zeros((HEAD_PAD,), jnp.float32)
    hshift = hshift.at[:n_pol_c].set(tp1).at[n_pol_c:n_pol_c + n_val_c].set(tv1)
    headshift = jnp.tile(hshift, W)[None, :]                          # (1, 128)

    # head FC weights, permuted so they consume the in-kernel layout directly;
    # policy occupies a lane-aligned slot, value hidden follows.
    pol_out = params['policy_fc']['w'].shape[0]
    val_hidden = params['value_fc']['w'].shape[0]
    pol_slot = ((pol_out + 127) // 128) * 128
    wp = params['policy_fc']['w'].reshape(pol_out, n_pol_c, H, W)
    wv = params['value_fc']['w'].reshape(val_hidden, n_val_c, H, W)
    wp = jnp.transpose(wp, (2, 3, 1, 0))                       # (H, W, n_pol_c, pol_out)
    wv = jnp.transpose(wv, (2, 3, 1, 0))                       # (H, W, n_val_c, val_hidden)
    wpv = jnp.zeros((H, W, HEAD_PAD, pol_slot + val_hidden), jnp.float32)
    wpv = wpv.at[:, :, :n_pol_c, :pol_out].set(wp)
    wpv = wpv.at[:, :, n_pol_c:n_pol_c + n_val_c, pol_slot:].set(wv)
    wpv = wpv.reshape(H, W * HEAD_PAD, pol_slot + val_hidden).astype(jnp.bfloat16)

    pvb = jnp.zeros((1, pol_slot + val_hidden), jnp.float32)
    pvb = pvb.at[0, :pol_out].set(params['policy_fc']['b'])
    pvb = pvb.at[0, pol_slot:].set(params['value_fc']['b'])

    # winrate FC padded to a 128-lane output slab (lane-dense store)
    ww = jnp.zeros((val_hidden, VAL_OUT_PAD), jnp.float32)
    ww = ww.at[:, 0].set(params['winrate_fc']['w'][0])
    bw = jnp.zeros((1, VAL_OUT_PAD), jnp.float32)
    bw = bw.at[0, 0].set(params['winrate_fc']['b'][0])

    arrays = dict(wconv=wconv, shifts=shifts, bdhead=bdhead, headshift=headshift,
                  wpv=wpv, pvb=pvb, ww=ww, bw=bw)
    meta = dict(H=H, W=W, C=C, block_size=len(params['blocks']),
                pol_out=pol_out, pol_slot=pol_slot, val_hidden=val_hidden)
    return arrays, meta


# ----------------------------------------------------------------------------
# Fully-fused forward kernel (one batch tile of NT samples per grid step)
# ----------------------------------------------------------------------------
def _make_network_kernel(NT, H, L, kinds, pol_slot, val_hidden):
    f32, bf16 = jnp.float32, jnp.bfloat16
    RT = NT * H                                           # rows per tile

    def kernel(x0_ref, wconv_ref, shifts_ref, bdhead_ref, headshift_ref,
               wpv_ref, pvb_ref, ww_ref, bw_ref, pol_ref, val_ref):
        a = x0_ref[...]                                   # (RT, L) bf16, stays resident
        zblk = jnp.zeros((NT, L), bf16)                   # hoisted once
        ident = None
        for li, kind in enumerate(kinds):                 # static unroll over layers
            if kind == 'res1':
                ident = a                                 # block input (identity)
            # vertical (dy) conv taps: zero-padded sublane slab shifts (VPU work),
            # replacing the old O(R^2) 0/1 shift matmuls on the MXU.
            a_dn = jnp.concatenate([zblk, a[:RT - NT, :]], axis=0)   # row <- y-1 (0 at y=0)
            a_up = jnp.concatenate([a[NT:, :], zblk], axis=0)        # row <- y+1 (0 at y=H-1)
            acc = jnp.dot(a_dn, wconv_ref[li, 0], preferred_element_type=f32)
            acc = acc + jnp.dot(a, wconv_ref[li, 1], preferred_element_type=f32)
            acc = acc + jnp.dot(a_up, wconv_ref[li, 2], preferred_element_type=f32)
            acc = acc + shifts_ref[li]                    # folded BN bias
            if kind == 'res2':
                acc = acc + ident                         # residual add
            a = jnp.maximum(acc, 0.0).astype(bf16)        # single bf16 cast per layer

        # fused, lane-dense (128-lane) policy + value 1x1 conv (+BN+ReLU)
        head = jnp.dot(a, bdhead_ref[...], preferred_element_type=f32)
        head = jnp.maximum(head + headshift_ref[...], 0.0)
        hb = head.astype(bf16)                            # (RT, 128)

        # policy / value FCs: torch (C,H,W) flatten order is folded into wpv.
        # H sublane-aligned matmuls, two independent partial accumulators.
        acc_e = jnp.dot(hb[0 * NT:1 * NT, :], wpv_ref[0], preferred_element_type=f32)
        acc_o = jnp.dot(hb[1 * NT:2 * NT, :], wpv_ref[1], preferred_element_type=f32)
        for y in range(2, H):
            part = jnp.dot(hb[y * NT:(y + 1) * NT, :], wpv_ref[y],
                           preferred_element_type=f32)
            if y % 2 == 0:
                acc_e = acc_e + part
            else:
                acc_o = acc_o + part
        acc = acc_e + acc_o + pvb_ref[...]                # (NT, pol_slot + val_hidden)

        # lane-dense padded outputs; sliced to (N, 65)/(N, 1) in the wrapper
        pol_ref[...] = acc[:, :pol_slot]
        valh = jnp.maximum(acc[:, pol_slot:], 0.0)
        val_ref[...] = jnp.tanh(jnp.dot(valh, ww_ref[...], preferred_element_type=f32)
                                + bw_ref[...])

    return kernel


def network_forward(arrays, planes_nchw, *, meta, tile_n=16):
    H, W, C = meta['H'], meta['W'], meta['C']
    pol_slot, val_hidden = meta['pol_slot'], meta['val_hidden']
    N, cin = planes_nchw.shape[0], planes_nchw.shape[1]
    NT = tile_n                                           # samples per grid step
    T = -(-N // NT)                                       # number of batch tiles
    Np = T * NT
    L = W * C
    RT = NT * H

    # layout: row = tile*(NT*H) + board_row*NT + sample_in_tile ; lane = col*C + chan
    x = jnp.transpose(planes_nchw, (0, 2, 3, 1))                  # (N, H, W, Cin)
    x = jnp.pad(x, ((0, Np - N), (0, 0), (0, 0), (0, C - cin)))   # pad batch + Cin->C
    x = x.reshape(T, NT, H, W, C).transpose(0, 2, 1, 3, 4)        # (T, H, NT, W, C)
    x0 = x.reshape(T * RT, L).astype(jnp.bfloat16)

    kinds = ['input'] + ['res1', 'res2'] * meta['block_size']
    kernel = _make_network_kernel(NT, H, L, kinds, pol_slot, val_hidden)

    def full_spec(arr):                                   # weights: constant block per step
        nd = arr.ndim
        return pl.BlockSpec(arr.shape, lambda t, _nd=nd: (0,) * _nd)

    pol_pad, val_pad = pl.pallas_call(
        kernel,
        grid=(T,),
        out_shape=(jax.ShapeDtypeStruct((Np, pol_slot), jnp.float32),
                   jax.ShapeDtypeStruct((Np, VAL_OUT_PAD), jnp.float32)),
        in_specs=[pl.BlockSpec((RT, L), lambda t: (t, 0)),        # batch tile of activations
                  full_spec(arrays['wconv']), full_spec(arrays['shifts']),
                  full_spec(arrays['bdhead']), full_spec(arrays['headshift']),
                  full_spec(arrays['wpv']), full_spec(arrays['pvb']),
                  full_spec(arrays['ww']), full_spec(arrays['bw'])],
        out_specs=(pl.BlockSpec((NT, pol_slot), lambda t: (t, 0)),
                   pl.BlockSpec((NT, VAL_OUT_PAD), lambda t: (t, 0))),
        compiler_params=pltpu.CompilerParams(
            dimension_semantics=("parallel",),            # batch tiles -> both v7x cores
            vmem_limit_bytes=32 * 1024 * 1024),
    )(x0, arrays['wconv'], arrays['shifts'], arrays['bdhead'], arrays['headshift'],
      arrays['wpv'], arrays['pvb'], arrays['ww'], arrays['bw'])

    return pol_pad[:N, :meta['pol_out']], val_pad[:N, :1]


# ----------------------------------------------------------------------------
# Pure-JAX reference (for correctness checking)
# ----------------------------------------------------------------------------
def _conv_bn_ref(x, p, k, relu):
    y = jax.lax.conv_general_dilated(
        x, p['w'], (1, 1), 'SAME' if k == 3 else 'VALID',
        dimension_numbers=('NHWC', 'HWIO', 'NHWC'))
    y = y + p['b']
    y = (y - p['mean']) / jnp.sqrt(p['var'] + EPS) * p['gamma'] + p['beta']
    return jnp.maximum(y, 0.0) if relu else y


def network_forward_ref(params, planes_nchw):
    x = jnp.transpose(planes_nchw, (0, 2, 3, 1))
    x = _conv_bn_ref(x, params['input_conv'], 3, True)
    for blk in params['blocks']:
        y = _conv_bn_ref(x, blk['conv1'], 3, True)
        y = _conv_bn_ref(y, blk['conv2'], 3, False)
        x = jnp.maximum(y + x, 0.0)
    N = x.shape[0]
    pol = _conv_bn_ref(x, params['policy_conv'], 1, True)
    pol = jnp.transpose(pol, (0, 3, 1, 2)).reshape(N, -1)
    pol = pol @ params['policy_fc']['w'].T + params['policy_fc']['b']
    val = _conv_bn_ref(x, params['value_conv'], 1, True)
    val = jnp.transpose(val, (0, 3, 1, 2)).reshape(N, -1)
    val = jnp.maximum(val @ params['value_fc']['w'].T + params['value_fc']['b'], 0.0)
    val = jnp.tanh(val @ params['winrate_fc']['w'].T + params['winrate_fc']['b'])
    return pol, val


# ----------------------------------------------------------------------------
if __name__ == "__main__":
    board_size = 8         # spatial = 64
    input_channels = 4
    block_size = 2
    filter_size = 32
    batch = 32             # 2 tiles of 16 samples -> M = 128 rows/tile fills the MXU

    key = jax.random.PRNGKey(0)
    pkey, xkey = jax.random.split(key)
    params = init_network_params(pkey, board_size, input_channels, block_size, filter_size)
    planes = jax.random.normal(
        xkey, (batch, input_channels, board_size, board_size), jnp.float32)

    arrays, meta = prepare_kernel_params(params, board_size)
    fwd = jax.jit(functools.partial(network_forward, meta=meta))
    pol, val = fwd(arrays, planes)
    jax.block_until_ready((pol, val))

    # Correctness check against a pure-JAX f32 reference (kernel uses bf16
    # matmul operands with f32 accumulation -> slightly looser tolerance).
    pol_ref, val_ref = network_forward_ref(params, planes)
    np.testing.assert_allclose(np.asarray(pol), np.asarray(pol_ref), rtol=2e-2, atol=2e-2)
    np.testing.assert_allclose(np.asarray(val), np.asarray(val_ref), rtol=2e-2, atol=2e-2)

    assert pol.shape == (batch, board_size * board_size + 1)
    assert val.shape == (batch, 1)
    print("KERNEL_OK")
</pallas_src>

<mosaic_0001>
module attributes {stable_mosaic.version = 11 : i64} {
  func.func @kernel(%arg0: i32, %arg1: memref<128x256xbf16, #tpu.memory_space<vmem>>, %arg2: memref<5x3x256x256xbf16, #tpu.memory_space<vmem>>, %arg3: memref<5x1x256xf32, #tpu.memory_space<vmem>>, %arg4: memref<256x128xbf16, #tpu.memory_space<vmem>>, %arg5: memref<1x128xf32, #tpu.memory_space<vmem>>, %arg6: memref<8x128x384xbf16, #tpu.memory_space<vmem>>, %arg7: memref<1x384xf32, #tpu.memory_space<vmem>>, %arg8: memref<256x128xf32, #tpu.memory_space<vmem>>, %arg9: memref<1x128xf32, #tpu.memory_space<vmem>>, %arg10: memref<16x128xf32, #tpu.memory_space<vmem>>, %arg11: memref<16x128xf32, #tpu.memory_space<vmem>>) attributes {dimension_semantics = [#tpu.dimension_semantics<parallel>], iteration_bounds = array<i64: 2>, scalar_prefetch = 0 : i64, scratch_operands = 0 : i64, tpu.core_type = #tpu.core_type<tc>, window_params = [{transform_indices = @transform_0, window_bounds = array<i64: 128, 256>}, {pipeline_mode = #tpu.pipeline_mode<synchronous>, transform_indices = @transform_1, window_bounds = array<i64: 5, 3, 256, 256>}, {pipeline_mode = #tpu.pipeline_mode<synchronous>, transform_indices = @transform_2, window_bounds = array<i64: 5, 1, 256>}, {pipeline_mode = #tpu.pipeline_mode<synchronous>, transform_indices = @transform_3, window_bounds = array<i64: 256, 128>}, {pipeline_mode = #tpu.pipeline_mode<synchronous>, transform_indices = @transform_4, window_bounds = array<i64: 1, 128>}, {pipeline_mode = #tpu.pipeline_mode<synchronous>, transform_indices = @transform_5, window_bounds = array<i64: 8, 128, 384>}, {pipeline_mode = #tpu.pipeline_mode<synchronous>, transform_indices = @transform_6, window_bounds = array<i64: 1, 384>}, {pipeline_mode = #tpu.pipeline_mode<synchronous>, transform_indices = @transform_7, window_bounds = array<i64: 256, 128>}, {pipeline_mode = #tpu.pipeline_mode<synchronous>, transform_indices = @transform_8, window_bounds = array<i64: 1, 128>}, {transform_indices = @transform_9, window_bounds = array<i64: 16, 128>}, {transform_indices = @transform_10, window_bounds = array<i64: 16, 128>}]} {
    %c0 = arith.constant 0 : index
    %c0_0 = arith.constant 0 : index
    %0 = vector.load %arg1[%c0, %c0_0] : memref<128x256xbf16, #tpu.memory_space<vmem>>, vector<128x256xbf16>
    %cst = arith.constant 0.000000e+00 : bf16
    %1 = vector.broadcast %cst : bf16 to vector<16x256xbf16>
    %2 = vector.extract_strided_slice %0 {offsets = [0, 0], sizes = [112, 256], strides = [1, 1]} : vector<128x256xbf16> to vector<112x256xbf16>
    %3 = tpu.concatenate %1, %2 in 0 : vector<16x256xbf16>, vector<112x256xbf16> -> vector<128x256xbf16>
    %4 = vector.extract_strided_slice %0 {offsets = [16, 0], sizes = [112, 256], strides = [1, 1]} : vector<128x256xbf16> to vector<112x256xbf16>
    %5 = tpu.concatenate %4, %1 in 0 : vector<112x256xbf16>, vector<16x256xbf16> -> vector<128x256xbf16>
    %c0_1 = arith.constant 0 : index
    %c0_2 = arith.constant 0 : index
    %c0_3 = arith.constant 0 : index
    %c0_4 = arith.constant 0 : index
    %6 = vector.load %arg2[%c0_1, %c0_2, %c0_3, %c0_4] : memref<5x3x256x256xbf16, #tpu.memory_space<vmem>>, vector<1x1x256x256xbf16>
    %7 = vector.shape_cast %6 : vector<1x1x256x256xbf16> to vector<256x256xbf16>
    %cst_5 = arith.constant dense<0.000000e+00> : vector<128x256xf32>
    %8 = tpu.matmul %3, %7, %cst_5 {dimension_numbers = #tpu.dot_dimension_numbers<[1], [0], [0], [1], [0, 0, 1, 1], [], []>} : vector<128x256xbf16>, vector<256x256xbf16>, vector<128x256xf32> -> vector<128x256xf32>
    %c0_6 = arith.constant 0 : index
    %c1 = arith.constant 1 : index
    %c0_7 = arith.constant 0 : index
    %c0_8 = arith.constant 0 : index
    %9 = vector.load %arg2[%c0_6, %c1, %c0_7, %c0_8] : memref<5x3x256x256xbf16, #tpu.memory_space<vmem>>, vector<1x1x256x256xbf16>
    %10 = vector.shape_cast %9 : vector<1x1x256x256xbf16> to vector<256x256xbf16>
    %cst_9 = arith.constant dense<0.000000e+00> : vector<128x256xf32>
    %11 = tpu.matmul %0, %10, %cst_9 {dimension_numbers = #tpu.dot_dimension_numbers<[1], [0], [0], [1], [0, 0, 1, 1], [], []>} : vector<128x256xbf16>, vector<256x256xbf16>, vector<128x256xf32> -> vector<128x256xf32>
    %12 = arith.addf %8, %11 : vector<128x256xf32>
    %c0_10 = arith.constant 0 : index
    %c2 = arith.constant 2 : index
    %c0_11 = arith.constant 0 : index
    %c0_12 = arith.constant 0 : index
    %13 = vector.load %arg2[%c0_10, %c2, %c0_11, %c0_12] : memref<5x3x256x256xbf16, #tpu.memory_space<vmem>>, vector<1x1x256x256xbf16>
    %14 = vector.shape_cast %13 : vector<1x1x256x256xbf16> to vector<256x256xbf16>
    %cst_13 = arith.constant dense<0.000000e+00> : vector<128x256xf32>
    %15 = tpu.matmul %5, %14, %cst_13 {dimension_numbers = #tpu.dot_dimension_numbers<[1], [0], [0], [1], [0, 0, 1, 1], [], []>} : vector<128x256xbf16>, vector<256x256xbf16>, vector<128x256xf32> -> vector<128x256xf32>
    %16 = arith.addf %12, %15 : vector<128x256xf32>
    %c0_14 = arith.constant 0 : index
    %c0_15 = arith.constant 0 : index
    %c0_16 = arith.constant 0 : index
    %17 = vector.load %arg3[%c0_14, %c0_15, %c0_16] : memref<5x1x256xf32, #tpu.memory_space<vmem>>, vector<1x1x256xf32>
    %18 = vector.shape_cast %17 : vector<1x1x256xf32> to vector<1x256xf32>
    %19 = vector.broadcast %18 : vector<1x256xf32> to vector<128x256xf32>
    %20 = arith.addf %16, %19 : vector<128x256xf32>
    %cst_17 = arith.constant 0.000000e+00 : f32
    %21 = vector.broadcast %cst_17 : f32 to vector<128x256xf32>
    %22 = arith.maximumf %20, %21 : vector<128x256xf32>
    %23 = arith.truncf %22 : vector<128x256xf32> to vector<128x256xbf16>
    %24 = vector.extract_strided_slice %23 {offsets = [0, 0], sizes = [112, 256], strides = [1, 1]} : vector<128x256xbf16> to vector<112x256xbf16>
    %25 = tpu.concatenate %1, %24 in 0 : vector<16x256xbf16>, vector<112x256xbf16> -> vector<128x256xbf16>
    %26 = vector.extract_strided_slice %23 {offsets = [16, 0], sizes = [112, 256], strides = [1, 1]} : vector<128x256xbf16> to vector<112x256xbf16>
    %27 = tpu.concatenate %26, %1 in 0 : vector<112x256xbf16>, vector<16x256xbf16> -> vector<128x256xbf16>
    %c1_18 = arith.constant 1 : index
    %c0_19 = arith.constant 0 : index
    %c0_20 = arith.constant 0 : index
    %c0_21 = arith.constant 0 : index
    %28 = vector.load %arg2[%c1_18, %c0_19, %c0_20, %c0_21] : memref<5x3x256x256xbf16, #tpu.memory_space<vmem>>, vector<1x1x256x256xbf16>
    %29 = vector.shape_cast %28 : vector<1x1x256x256xbf16> to vector<256x256xbf16>
    %cst_22 = arith.constant dense<0.000000e+00> : vector<128x256xf32>
    %30 = tpu.matmul %25, %29, %cst_22 {dimension_numbers = #tpu.dot_dimension_numbers<[1], [0], [0], [1], [0, 0, 1, 1], [], []>} : vector<128x256xbf16>, vector<256x256xbf16>, vector<128x256xf32> -> vector<128x256xf32>
    %c1_23 = arith.constant 1 : index
    %c1_24 = arith.constant 1 : index
    %c0_25 = arith.constant 0 : index
    %c0_26 = arith.constant 0 : index
    %31 = vector.load %arg2[%c1_23, %c1_24, %c0_25, %c0_26] : memref<5x3x256x256xbf16, #tpu.memory_space<vmem>>, vector<1x1x256x256xbf16>
    %32 = vector.shape_cast %31 : vector<1x1x256x256xbf16> to vector<256x256xbf16>
    %cst_27 = arith.constant dense<0.000000e+00> : vector<128x256xf32>
    %33 = tpu.matmul %23, %32, %cst_27 {dimension_numbers = #tpu.dot_dimension_numbers<[1], [0], [0], [1], [0, 0, 1, 1], [], []>} : vector<128x256xbf16>, vector<256x256xbf16>, vector<128x256xf32> -> vector<128x256xf32>
    %34 = arith.addf %30, %33 : vector<128x256xf32>
    %c1_28 = arith.constant 1 : index
    %c2_29 = arith.constant 2 : index
    %c0_30 = arith.constant 0 : index
    %c0_31 = arith.constant 0 : index
    %35 = vector.load %arg2[%c1_28, %c2_29, %c0_30, %c0_31] : memref<5x3x256x256xbf16, #tpu.memory_space<vmem>>, vector<1x1x256x256xbf16>
    %36 = vector.shape_cast %35 : vector<1x1x256x256xbf16> to vector<256x256xbf16>
    %cst_32 = arith.constant dense<0.000000e+00> : vector<128x256xf32>
    %37 = tpu.matmul %27, %36, %cst_32 {dimension_numbers = #tpu.dot_dimension_numbers<[1], [0], [0], [1], [0, 0, 1, 1], [], []>} : vector<128x256xbf16>, vector<256x256xbf16>, vector<128x256xf32> -> vector<128x256xf32>
    %38 = arith.addf %34, %37 : vector<128x256xf32>
    %c1_33 = arith.constant 1 : index
    %c0_34 = arith.constant 0 : index
    %c0_35 = arith.constant 0 : index
    %39 = vector.load %arg3[%c1_33, %c0_34, %c0_35] : memref<5x1x256xf32, #tpu.memory_space<vmem>>, vector<1x1x256xf32>
    %40 = vector.shape_cast %39 : vector<1x1x256xf32> to vector<1x256xf32>
    %41 = vector.broadcast %40 : vector<1x256xf32> to vector<128x256xf32>
    %42 = arith.addf %38, %41 : vector<128x256xf32>
    %cst_36 = arith.constant 0.000000e+00 : f32
    %43 = vector.broadcast %cst_36 : f32 to vector<128x256xf32>
    %44 = arith.maximumf %42, %43 : vector<128x256xf32>
    %45 = arith.truncf %44 : vector<128x256xf32> to vector<128x256xbf16>
    %46 = vector.extract_strided_slice %45 {offsets = [0, 0], sizes = [112, 256], strides = [1, 1]} : vector<128x256xbf16> to vector<112x256xbf16>
    %47 = tpu.concatenate %1, %46 in 0 : vector<16x256xbf16>, vector<112x256xbf16> -> vector<128x256xbf16>
    %48 = vector.extract_strided_slice %45 {offsets = [16, 0], sizes = [112, 256], strides = [1, 1]} : vector<128x256xbf16> to vector<112x256xbf16>
    %49 = tpu.concatenate %48, %1 in 0 : vector<112x256xbf16>, vector<16x256xbf16> -> vector<128x256xbf16>
    %c2_37 = arith.constant 2 : index
    %c0_38 = arith.constant 0 : index
    %c0_39 = arith.constant 0 : index
    %c0_40 = arith.constant 0 : index
    %50 = vector.load %arg2[%c2_37, %c0_38, %c0_39, %c0_40] : memref<5x3x256x256xbf16, #tpu.memory_space<vmem>>, vector<1x1x256x256xbf16>
    %51 = vector.shape_cast %50 : vector<1x1x256x256xbf16> to vector<256x256xbf16>
    %cst_41 = arith.constant dense<0.000000e+00> : vector<128x256xf32>
    %52 = tpu.matmul %47, %51, %cst_41 {dimension_numbers = #tpu.dot_dimension_numbers<[1], [0], [0], [1], [0, 0, 1, 1], [], []>} : vector<128x256xbf16>, vector<256x256xbf16>, vector<128x256xf32> -> vector<128x256xf32>
    %c2_42 = arith.constant 2 : index
    %c1_43 = arith.constant 1 : index
    %c0_44 = arith.constant 0 : index
    %c0_45 = arith.constant 0 : index
    %53 = vector.load %arg2[%c2_42, %c1_43, %c0_44, %c0_45] : memref<5x3x256x256xbf16, #tpu.memory_space<vmem>>, vector<1x1x256x256xbf16>
    %54 = vector.shape_cast %53 : vector<1x1x256x256xbf16> to vector<256x256xbf16>
    %cst_46 = arith.constant dense<0.000000e+00> : vector<128x256xf32>
    %55 = tpu.matmul %45, %54, %cst_46 {dimension_numbers = #tpu.dot_dimension_numbers<[1], [0], [0], [1], [0, 0, 1, 1], [], []>} : vector<128x256xbf16>, vector<256x256xbf16>, vector<128x256xf32> -> vector<128x256xf32>
    %56 = arith.addf %52, %55 : vector<128x256xf32>
    %c2_47 = arith.constant 2 : index
    %c2_48 = arith.constant 2 : index
    %c0_49 = arith.constant 0 : index
    %c0_50 = arith.constant 0 : index
    %57 = vector.load %arg2[%c2_47, %c2_48, %c0_49, %c0_50] : memref<5x3x256x256xbf16, #tpu.memory_space<vmem>>, vector<1x1x256x256xbf16>
    %58 = vector.shape_cast %57 : vector<1x1x256x256xbf16> to vector<256x256xbf16>
    %cst_51 = arith.constant dense<0.000000e+00> : vector<128x256xf32>
    %59 = tpu.matmul %49, %58, %cst_51 {dimension_numbers = #tpu.dot_dimension_numbers<[1], [0], [0], [1], [0, 0, 1, 1], [], []>} : vector<128x256xbf16>, vector<256x256xbf16>, vector<128x256xf32> -> vector<128x256xf32>
    %60 = arith.addf %56, %59 : vector<128x256xf32>
    %c2_52 = arith.constant 2 : index
    %c0_53 = arith.constant 0 : index
    %c0_54 = arith.constant 0 : index
    %61 = vector.load %arg3[%c2_52, %c0_53, %c0_54] : memref<5x1x256xf32, #tpu.memory_space<vmem>>, vector<1x1x256xf32>
    %62 = vector.shape_cast %61 : vector<1x1x256xf32> to vector<1x256xf32>
    %63 = vector.broadcast %62 : vector<1x256xf32> to vector<128x256xf32>
    %64 = arith.addf %60, %63 : vector<128x256xf32>
    %65 = arith.extf %23 : vector<128x256xbf16> to vector<128x256xf32>
    %66 = arith.addf %64, %65 : vector<128x256xf32>
    %cst_55 = arith.constant 0.000000e+00 : f32
    %67 = vector.broadcast %cst_55 : f32 to vector<128x256xf32>
    %68 = arith.maximumf %66, %67 : vector<128x256xf32>
    %69 = arith.truncf %68 : vector<128x256xf32> to vector<128x256xbf16>
    %70 = vector.extract_strided_slice %69 {offsets = [0, 0], sizes = [112, 256], strides = [1, 1]} : vector<128x256xbf16> to vector<112x256xbf16>
    %71 = tpu.concatenate %1, %70 in 0 : vector<16x256xbf16>, vector<112x256xbf16> -> vector<128x256xbf16>
    %72 = vector.extract_strided_slice %69 {offsets = [16, 0], sizes = [112, 256], strides = [1, 1]} : vector<128x256xbf16> to vector<112x256xbf16>
    %73 = tpu.concatenate %72, %1 in 0 : vector<112x256xbf16>, vector<16x256xbf16> -> vector<128x256xbf16>
    %c3 = arith.constant 3 : index
    %c0_56 = arith.constant 0 : index
    %c0_57 = arith.constant 0 : index
    %c0_58 = arith.constant 0 : index
    %74 = vector.load %arg2[%c3, %c0_56, %c0_57, %c0_58] : memref<5x3x256x256xbf16, #tpu.memory_space<vmem>>, vector<1x1x256x256xbf16>
    %75 = vector.shape_cast %74 : vector<1x1x256x256xbf16> to vector<256x256xbf16>
    %cst_59 = arith.constant dense<0.000000e+00> : vector<128x256xf32>
    %76 = tpu.matmul %71, %75, %cst_59 {dimension_numbers = #tpu.dot_dimension_numbers<[1], [0], [0], [1], [0, 0, 1, 1], [], []>} : vector<128x256xbf16>, vector<256x256xbf16>, vector<128x256xf32> -> vector<128x256xf32>
    %c3_60 = arith.constant 3 : index
    %c1_61 = arith.constant 1 : index
    %c0_62 = arith.constant 0 : index
    %c0_63 = arith.constant 0 : index
    %77 = vector.load %arg2[%c3_60, %c1_61, %c0_62, %c0_63] : memref<5x3x256x256xbf16, #tpu.memory_space<vmem>>, vector<1x1x256x256xbf16>
    %78 = vector.shape_cast %77 : vector<1x1x256x256xbf16> to vector<256x256xbf16>
    %cst_64 = arith.constant dense<0.000000e+00> : vector<128x256xf32>
    %79 = tpu.matmul %69, %78, %cst_64 {dimension_numbers = #tpu.dot_dimension_numbers<[1], [0], [0], [1], [0, 0, 1, 1], [], []>} : vector<128x256xbf16>, vector<256x256xbf16>, vector<128x256xf32> -> vector<128x256xf32>
    %80 = arith.addf %76, %79 : vector<128x256xf32>
    %c3_65 = arith.constant 3 : index
    %c2_66 = arith.constant 2 : index
    %c0_67 = arith.constant 0 : index
    %c0_68 = arith.constant 0 : index
    %81 = vector.load %arg2[%c3_65, %c2_66, %c0_67, %c0_68] : memref<5x3x256x256xbf16, #tpu.memory_space<vmem>>, vector<1x1x256x256xbf16>
    %82 = vector.shape_cast %81 : vector<1x1x256x256xbf16> to vector<256x256xbf16>
    %cst_69 = arith.constant dense<0.000000e+00> : vector<128x256xf32>
    %83 = tpu.matmul %73, %82, %cst_69 {dimension_numbers = #tpu.dot_dimension_numbers<[1], [0], [0], [1], [0, 0, 1, 1], [], []>} : vector<128x256xbf16>, vector<256x256xbf16>, vector<128x256xf32> -> vector<128x256xf32>
    %84 = arith.addf %80, %83 : vector<128x256xf32>
    %c3_70 = arith.constant 3 : index
    %c0_71 = arith.constant 0 : index
    %c0_72 = arith.constant 0 : index
    %85 = vector.load %arg3[%c3_70, %c0_71, %c0_72] : memref<5x1x256xf32, #tpu.memory_space<vmem>>, vector<1x1x256xf32>
    %86 = vector.shape_cast %85 : vector<1x1x256xf32> to vector<1x256xf32>
    %87 = vector.broadcast %86 : vector<1x256xf32> to vector<128x256xf32>
    %88 = arith.addf %84, %87 : vector<128x256xf32>
    %cst_73 = arith.constant 0.000000e+00 : f32
    %89 = vector.broadcast %cst_73 : f32 to vector<128x256xf32>
    %90 = arith.maximumf %88, %89 : vector<128x256xf32>
    %91 = arith.truncf %90 : vector<128x256xf32> to vector<128x256xbf16>
    %92 = vector.extract_strided_slice %91 {offsets = [0, 0], sizes = [112, 256], strides = [1, 1]} : vector<128x256xbf16> to vector<112x256xbf16>
    %93 = tpu.concatenate %1, %92 in 0 : vector<16x256xbf16>, vector<112x256xbf16> -> vector<128x256xbf16>
    %94 = vector.extract_strided_slice %91 {offsets = [16, 0], sizes = [112, 256], strides = [1, 1]} : vector<128x256xbf16> to vector<112x256xbf16>
    %95 = tpu.concatenate %94, %1 in 0 : vector<112x256xbf16>, vector<16x256xbf16> -> vector<128x256xbf16>
    %c4 = arith.constant 4 : index
    %c0_74 = arith.constant 0 : index
    %c0_75 = arith.constant 0 : index
    %c0_76 = arith.constant 0 : index
    %96 = vector.load %arg2[%c4, %c0_74, %c0_75, %c0_76] : memref<5x3x256x256xbf16, #tpu.memory_space<vmem>>, vector<1x1x256x256xbf16>
    %97 = vector.shape_cast %96 : vector<1x1x256x256xbf16> to vector<256x256xbf16>
    %cst_77 = arith.constant dense<0.000000e+00> : vector<128x256xf32>
    %98 = tpu.matmul %93, %97, %cst_77 {dimension_numbers = #tpu.dot_dimension_numbers<[1], [0], [0], [1], [0, 0, 1, 1], [], []>} : vector<128x256xbf16>, vector<256x256xbf16>, vector<128x256xf32> -> vector<128x256xf32>
    %c4_78 = arith.constant 4 : index
    %c1_79 = arith.constant 1 : index
    %c0_80 = arith.constant 0 : index
    %c0_81 = arith.constant 0 : index
    %99 = vector.load %arg2[%c4_78, %c1_79, %c0_80, %c0_81] : memref<5x3x256x256xbf16, #tpu.memory_space<vmem>>, vector<1x1x256x256xbf16>
    %100 = vector.shape_cast %99 : vector<1x1x256x256xbf16> to vector<256x256xbf16>
    %cst_82 = arith.constant dense<0.000000e+00> : vector<128x256xf32>
    %101 = tpu.matmul %91, %100, %cst_82 {dimension_numbers = #tpu.dot_dimension_numbers<[1], [0], [0], [1], [0, 0, 1, 1], [], []>} : vector<128x256xbf16>, vector<256x256xbf16>, vector<128x256xf32> -> vector<128x256xf32>
    %102 = arith.addf %98, %101 : vector<128x256xf32>
    %c4_83 = arith.constant 4 : index
    %c2_84 = arith.constant 2 : index
    %c0_85 = arith.constant 0 : index
    %c0_86 = arith.constant 0 : index
    %103 = vector.load %arg2[%c4_83, %c2_84, %c0_85, %c0_86] : memref<5x3x256x256xbf16, #tpu.memory_space<vmem>>, vector<1x1x256x256xbf16>
    %104 = vector.shape_cast %103 : vector<1x1x256x256xbf16> to vector<256x256xbf16>
    %cst_87 = arith.constant dense<0.000000e+00> : vector<128x256xf32>
    %105 = tpu.matmul %95, %104, %cst_87 {dimension_numbers = #tpu.dot_dimension_numbers<[1], [0], [0], [1], [0, 0, 1, 1], [], []>} : vector<128x256xbf16>, vector<256x256xbf16>, vector<128x256xf32> -> vector<128x256xf32>
    %106 = arith.addf %102, %105 : vector<128x256xf32>
    %c4_88 = arith.constant 4 : index
    %c0_89 = arith.constant 0 : index
    %c0_90 = arith.constant 0 : index
    %107 = vector.load %arg3[%c4_88, %c0_89, %c0_90] : memref<5x1x256xf32, #tpu.memory_space<vmem>>, vector<1x1x256xf32>
    %108 = vector.shape_cast %107 : vector<1x1x256xf32> to vector<1x256xf32>
    %109 = vector.broadcast %108 : vector<1x256xf32> to vector<128x256xf32>
    %110 = arith.addf %106, %109 : vector<128x256xf32>
    %111 = arith.extf %69 : vector<128x256xbf16> to vector<128x256xf32>
    %112 = arith.addf %110, %111 : vector<128x256xf32>
    %cst_91 = arith.constant 0.000000e+00 : f32
    %113 = vector.broadcast %cst_91 : f32 to vector<128x256xf32>
    %114 = arith.maximumf %112, %113 : vector<128x256xf32>
    %115 = arith.truncf %114 : vector<128x256xf32> to vector<128x256xbf16>
    %c0_92 = arith.constant 0 : index
    %c0_93 = arith.constant 0 : index
    %116 = vector.load %arg4[%c0_92, %c0_93] : memref<256x128xbf16, #tpu.memory_space<vmem>>, vector<256x128xbf16>
    %cst_94 = arith.constant dense<0.000000e+00> : vector<128x128xf32>
    %117 = tpu.matmul %115, %116, %cst_94 {dimension_numbers = #tpu.dot_dimension_numbers<[1], [0], [0], [1], [0, 0, 1, 1], [], []>} : vector<128x256xbf16>, vector<256x128xbf16>, vector<128x128xf32> -> vector<128x128xf32>
    %c0_95 = arith.constant 0 : index
    %c0_96 = arith.constant 0 : index
    %118 = vector.load %arg5[%c0_95, %c0_96] : memref<1x128xf32, #tpu.memory_space<vmem>>, vector<1x128xf32>
    %119 = vector.broadcast %118 : vector<1x128xf32> to vector<128x128xf32>
    %120 = arith.addf %117, %119 : vector<128x128xf32>
    %cst_97 = arith.constant 0.000000e+00 : f32
    %121 = vector.broadcast %cst_97 : f32 to vector<128x128xf32>
    %122 = arith.maximumf %120, %121 : vector<128x128xf32>
    %123 = arith.truncf %122 : vector<128x128xf32> to vector<128x128xbf16>
    %124 = vector.extract_strided_slice %123 {offsets = [0, 0], sizes = [16, 128], strides = [1, 1]} : vector<128x128xbf16> to vector<16x128xbf16>
    %c0_98 = arith.constant 0 : index
    %c0_99 = arith.constant 0 : index
    %c0_100 = arith.constant 0 : index
    %125 = vector.load %arg6[%c0_98, %c0_99, %c0_100] : memref<8x128x384xbf16, #tpu.memory_space<vmem>>, vector<1x128x384xbf16>
    %126 = vector.shape_cast %125 : vector<1x128x384xbf16> to vector<128x384xbf16>
    %cst_101 = arith.constant dense<0.000000e+00> : vector<16x384xf32>
    %127 = tpu.matmul %124, %126, %cst_101 {dimension_numbers = #tpu.dot_dimension_numbers<[1], [0], [0], [1], [0, 0, 1, 1], [], []>} : vector<16x128xbf16>, vector<128x384xbf16>, vector<16x384xf32> -> vector<16x384xf32>
    %128 = vector.extract_strided_slice %123 {offsets = [16, 0], sizes = [16, 128], strides = [1, 1]} : vector<128x128xbf16> to vector<16x128xbf16>
    %c1_102 = arith.constant 1 : index
    %c0_103 = arith.constant 0 : index
    %c0_104 = arith.constant 0 : index
    %129 = vector.load %arg6[%c1_102, %c0_103, %c0_104] : memref<8x128x384xbf16, #tpu.memory_space<vmem>>, vector<1x128x384xbf16>
    %130 = vector.shape_cast %129 : vector<1x128x384xbf16> to vector<128x384xbf16>
    %cst_105 = arith.constant dense<0.000000e+00> : vector<16x384xf32>
    %131 = tpu.matmul %128, %130, %cst_105 {dimension_numbers = #tpu.dot_dimension_numbers<[1], [0], [0], [1], [0, 0, 1, 1], [], []>} : vector<16x128xbf16>, vector<128x384xbf16>, vector<16x384xf32> -> vector<16x384xf32>
    %132 = vector.extract_strided_slice %123 {offsets = [32, 0], sizes = [16, 128], strides = [1, 1]} : vector<128x128xbf16> to vector<16x128xbf16>
    %c2_106 = arith.constant 2 : index
    %c0_107 = arith.constant 0 : index
    %c0_108 = arith.constant 0 : index
    %133 = vector.load %arg6[%c2_106, %c0_107, %c0_108] : memref<8x128x384xbf16, #tpu.memory_space<vmem>>, vector<1x128x384xbf16>
    %134 = vector.shape_cast %133 : vector<1x128x384xbf16> to vector<128x384xbf16>
    %cst_109 = arith.constant dense<0.000000e+00> : vector<16x384xf32>
    %135 = tpu.matmul %132, %134, %cst_109 {dimension_numbers = #tpu.dot_dimension_numbers<[1], [0], [0], [1], [0, 0, 1, 1], [], []>} : vector<16x128xbf16>, vector<128x384xbf16>, vector<16x384xf32> -> vector<16x384xf32>
    %136 = arith.addf %127, %135 : vector<16x384xf32>
    %137 = vector.extract_strided_slice %123 {offsets = [48, 0], sizes = [16, 128], strides = [1, 1]} : vector<128x128xbf16> to vector<16x128xbf16>
    %c3_110 = arith.constant 3 : index
    %c0_111 = arith.constant 0 : index
    %c0_112 = arith.constant 0 : index
    %138 = vector.load %arg6[%c3_110, %c0_111, %c0_112] : memref<8x128x384xbf16, #tpu.memory_space<vmem>>, vector<1x128x384xbf16>
    %139 = vector.shape_cast %138 : vector<1x128x384xbf16> to vector<128x384xbf16>
    %cst_113 = arith.constant dense<0.000000e+00> : vector<16x384xf32>
    %140 = tpu.matmul %137, %139, %cst_113 {dimension_numbers = #tpu.dot_dimension_numbers<[1], [0], [0], [1], [0, 0, 1, 1], [], []>} : vector<16x128xbf16>, vector<128x384xbf16>, vector<16x384xf32> -> vector<16x384xf32>
    %141 = arith.addf %131, %140 : vector<16x384xf32>
    %142 = vector.extract_strided_slice %123 {offsets = [64, 0], sizes = [16, 128], strides = [1, 1]} : vector<128x128xbf16> to vector<16x128xbf16>
    %c4_114 = arith.constant 4 : index
    %c0_115 = arith.constant 0 : index
    %c0_116 = arith.constant 0 : index
    %143 = vector.load %arg6[%c4_114, %c0_115, %c0_116] : memref<8x128x384xbf16, #tpu.memory_space<vmem>>, vector<1x128x384xbf16>
    %144 = vector.shape_cast %143 : vector<1x128x384xbf16> to vector<128x384xbf16>
    %cst_117 = arith.constant dense<0.000000e+00> : vector<16x384xf32>
    %145 = tpu.matmul %142, %144, %cst_117 {dimension_numbers = #tpu.dot_dimension_numbers<[1], [0], [0], [1], [0, 0, 1, 1], [], []>} : vector<16x128xbf16>, vector<128x384xbf16>, vector<16x384xf32> -> vector<16x384xf32>
    %146 = arith.addf %136, %145 : vector<16x384xf32>
    %147 = vector.extract_strided_slice %123 {offsets = [80, 0], sizes = [16, 128], strides = [1, 1]} : vector<128x128xbf16> to vector<16x128xbf16>
    %c5 = arith.constant 5 : index
    %c0_118 = arith.constant 0 : index
    %c0_119 = arith.constant 0 : index
    %148 = vector.load %arg6[%c5, %c0_118, %c0_119] : memref<8x128x384xbf16, #tpu.memory_space<vmem>>, vector<1x128x384xbf16>
    %149 = vector.shape_cast %148 : vector<1x128x384xbf16> to vector<128x384xbf16>
    %cst_120 = arith.constant dense<0.000000e+00> : vector<16x384xf32>
    %150 = tpu.matmul %147, %149, %cst_120 {dimension_numbers = #tpu.dot_dimension_numbers<[1], [0], [0], [1], [0, 0, 1, 1], [], []>} : vector<16x128xbf16>, vector<128x384xbf16>, vector<16x384xf32> -> vector<16x384xf32>
    %151 = arith.addf %141, %150 : vector<16x384xf32>
    %152 = vector.extract_strided_slice %123 {offsets = [96, 0], sizes = [16, 128], strides = [1, 1]} : vector<128x128xbf16> to vector<16x128xbf16>
    %c6 = arith.constant 6 : index
    %c0_121 = arith.constant 0 : index
    %c0_122 = arith.constant 0 : index
    %153 = vector.load %arg6[%c6, %c0_121, %c0_122] : memref<8x128x384xbf16, #tpu.memory_space<vmem>>, vector<1x128x384xbf16>
    %154 = vector.shape_cast %153 : vector<1x128x384xbf16> to vector<128x384xbf16>
    %cst_123 = arith.constant dense<0.000000e+00> : vector<16x384xf32>
    %155 = tpu.matmul %152, %154, %cst_123 {dimension_numbers = #tpu.dot_dimension_numbers<[1], [0], [0], [1], [0, 0, 1, 1], [], []>} : vector<16x128xbf16>, vector<128x384xbf16>, vector<16x384xf32> -> vector<16x384xf32>
    %156 = arith.addf %146, %155 : vector<16x384xf32>
    %157 = vector.extract_strided_slice %123 {offsets = [112, 0], sizes = [16, 128], strides = [1, 1]} : vector<128x128xbf16> to vector<16x128xbf16>
    %c7 = arith.constant 7 : index
    %c0_124 = arith.constant 0 : index
    %c0_125 = arith.constant 0 : index
    %158 = vector.load %arg6[%c7, %c0_124, %c0_125] : memref<8x128x384xbf16, #tpu.memory_space<vmem>>, vector<1x128x384xbf16>
    %159 = vector.shape_cast %158 : vector<1x128x384xbf16> to vector<128x384xbf16>
    %cst_126 = arith.constant dense<0.000000e+00> : vector<16x384xf32>
    %160 = tpu.matmul %157, %159, %cst_126 {dimension_numbers = #tpu.dot_dimension_numbers<[1], [0], [0], [1], [0, 0, 1, 1], [], []>} : vector<16x128xbf16>, vector<128x384xbf16>, vector<16x384xf32> -> vector<16x384xf32>
    %161 = arith.addf %151, %160 : vector<16x384xf32>
    %162 = arith.addf %156, %161 : vector<16x384xf32>
    %c0_127 = arith.constant 0 : index
    %c0_128 = arith.constant 0 : index
    %163 = vector.load %arg7[%c0_127, %c0_128] : memref<1x384xf32, #tpu.memory_space<vmem>>, vector<1x384xf32>
    %164 = vector.broadcast %163 : vector<1x384xf32> to vector<16x384xf32>
    %165 = arith.addf %162, %164 : vector<16x384xf32>
    %166 = vector.extract_strided_slice %165 {offsets = [0, 0], sizes = [16, 128], strides = [1, 1]} : vector<16x384xf32> to vector<16x128xf32>
    %c0_129 = arith.constant 0 : index
    %c0_130 = arith.constant 0 : index
    %167 = vector.load %arg10[%c0_129, %c0_130] : memref<16x128xf32, #tpu.memory_space<vmem>>, vector<16x128xf32>
    tpu.vector_store %arg10[%c0_129, %c0_130], %166 {strides = array<i32>} : memref<16x128xf32, #tpu.memory_space<vmem>>, vector<16x128xf32>,
    %168 = vector.extract_strided_slice %165 {offsets = [0, 128], sizes = [16, 256], strides = [1, 1]} : vector<16x384xf32> to vector<16x256xf32>
    %cst_131 = arith.constant 0.000000e+00 : f32
    %169 = vector.broadcast %cst_131 : f32 to vector<16x256xf32>
    %170 = arith.maximumf %168, %169 : vector<16x256xf32>
    %c0_132 = arith.constant 0 : index
    %c0_133 = arith.constant 0 : index
    %171 = vector.load %arg8[%c0_132, %c0_133] : memref<256x128xf32, #tpu.memory_space<vmem>>, vector<256x128xf32>
    %cst_134 = arith.constant dense<0.000000e+00> : vector<16x128xf32>
    %172 = tpu.matmul %170, %171, %cst_134 {dimension_numbers = #tpu.dot_dimension_numbers<[1], [0], [0], [1], [0, 0, 1, 1], [], []>} : vector<16x256xf32>, vector<256x128xf32>, vector<16x128xf32> -> vector<16x128xf32>
    %c0_135 = arith.constant 0 : index
    %c0_136 = arith.constant 0 : index
    %173 = vector.load %arg9[%c0_135, %c0_136] : memref<1x128xf32, #tpu.memory_space<vmem>>, vector<1x128xf32>
    %174 = vector.broadcast %173 : vector<1x128xf32> to vector<16x128xf32>
    %175 = arith.addf %172, %174 : vector<16x128xf32>
    %176 = math.tanh %175 : vector<16x128xf32>
    %c0_137 = arith.constant 0 : index
    %c0_138 = arith.constant 0 : index
    %177 = vector.load %arg11[%c0_137, %c0_138] : memref<16x128xf32, #tpu.memory_space<vmem>>, vector<16x128xf32>
    tpu.vector_store %arg11[%c0_137, %c0_138], %176 {strides = array<i32>} : memref<16x128xf32, #tpu.memory_space<vmem>>, vector<16x128xf32>,
    return
  }
  func.func @transform_0(%arg0: i32) -> (i32, i32) {
    %c0_i32 = arith.constant 0 : i32
    %c0_i32_0 = arith.constant 0 : i32
    return %arg0, %c0_i32 : i32, i32
  }
  func.func @transform_1(%arg0: i32) -> (i32, i32, i32, i32) {
    %c0_i32 = arith.constant 0 : i32
    %c0_i32_0 = arith.constant 0 : i32
    %c0_i32_1 = arith.constant 0 : i32
    %c0_i32_2 = arith.constant 0 : i32
    %c0_i32_3 = arith.constant 0 : i32
    return %c0_i32, %c0_i32_0, %c0_i32_1, %c0_i32_2 : i32, i32, i32, i32
  }
  func.func @transform_2(%arg0: i32) -> (i32, i32, i32) {
    %c0_i32 = arith.constant 0 : i32
    %c0_i32_0 = arith.constant 0 : i32
    %c0_i32_1 = arith.constant 0 : i32
    %c0_i32_2 = arith.constant 0 : i32
    return %c0_i32, %c0_i32_0, %c0_i32_1 : i32, i32, i32
  }
  func.func @transform_3(%arg0: i32) -> (i32, i32) {
    %c0_i32 = arith.constant 0 : i32
    %c0_i32_0 = arith.constant 0 : i32
    %c0_i32_1 = arith.constant 0 : i32
    return %c0_i32, %c0_i32_0 : i32, i32
  }
  func.func @transform_4(%arg0: i32) -> (i32, i32) {
    %c0_i32 = arith.constant 0 : i32
    %c0_i32_0 = arith.constant 0 : i32
    %c0_i32_1 = arith.constant 0 : i32
    return %c0_i32, %c0_i32_0 : i32, i32
  }
  func.func @transform_5(%arg0: i32) -> (i32, i32, i32) {
    %c0_i32 = arith.constant 0 : i32
    %c0_i32_0 = arith.constant 0 : i32
    %c0_i32_1 = arith.constant 0 : i32
    %c0_i32_2 = arith.constant 0 : i32
    return %c0_i32, %c0_i32_0, %c0_i32_1 : i32, i32, i32
  }
  func.func @transform_6(%arg0: i32) -> (i32, i32) {
    %c0_i32 = arith.constant 0 : i32
    %c0_i32_0 = arith.constant 0 : i32
    %c0_i32_1 = arith.constant 0 : i32
    return %c0_i32, %c0_i32_0 : i32, i32
  }
  func.func @transform_7(%arg0: i32) -> (i32, i32) {
    %c0_i32 = arith.constant 0 : i32
    %c0_i32_0 = arith.constant 0 : i32
    %c0_i32_1 = arith.constant 0 : i32
    return %c0_i32, %c0_i32_0 : i32, i32
  }
  func.func @transform_8(%arg0: i32) -> (i32, i32) {
    %c0_i32 = arith.constant 0 : i32
    %c0_i32_0 = arith.constant 0 : i32
    %c0_i32_1 = arith.constant 0 : i32
    return %c0_i32, %c0_i32_0 : i32, i32
  }
  func.func @transform_9(%arg0: i32) -> (i32, i32) {
    %c0_i32 = arith.constant 0 : i32
    %c0_i32_0 = arith.constant 0 : i32
    return %arg0, %c0_i32 : i32, i32
  }
  func.func @transform_10(%arg0: i32) -> (i32, i32) {
    %c0_i32 = arith.constant 0 : i32
    %c0_i32_0 = arith.constant 0 : i32
    return %arg0, %c0_i32 : i32, i32
  }
}

</mosaic_0001>

<llo_original>
// kernel: network_forward.1
$region0: #{network_forward.1}
  #allocation0 [shape = 'u32[]', space=smem, size = 0x4, offset = 0x4, fixed_abs, tag = 'smem constant byte address 0x4 - core index']
  #allocation1 [shape = 'u32[72,128]{1,0:T(1,128)}', space=vmem, size = 0x9000, scoped, tag = 'internal scratch']
  %s0 = inlined_call_operand.vmem [shape: bf16[256,256], index: 0, kind: input, shape index: {}]
  %s1 = inlined_call_operand.vmem [shape: bf16[5,3,256,256], index: 1, kind: input, shape index: {}]
  %s2 = inlined_call_operand.vmem [shape: f32[5,1,256], index: 2, kind: input, shape index: {}]
  %s3 = inlined_call_operand.vmem [shape: bf16[256,128], index: 3, kind: input, shape index: {}]
  %s4 = inlined_call_operand.vmem [shape: f32[1,128], index: 4, kind: input, shape index: {}]
  %s5 = inlined_call_operand.vmem [shape: bf16[8,128,384], index: 5, kind: input, shape index: {}]
  %s6 = inlined_call_operand.vmem [shape: f32[1,384], index: 6, kind: input, shape index: {}]
  %s7 = inlined_call_operand.vmem [shape: f32[256,128], index: 7, kind: input, shape index: {}]
  %s8 = inlined_call_operand.vmem [shape: f32[1,128], index: 8, kind: input, shape index: {}]
  %s9 = inlined_call_operand.hbm [shape: f32[32,128], index: 9, kind: output, shape index: {0}]
  %s10 = inlined_call_operand.vmem [shape: f32[32,128], index: 10, kind: output, shape index: {1}]
  %11 = xla_tuple %s9, %s10
  %s12 = sld [smem:[#allocation0]]
  $region77: #{network_forward.1} parent=0
    _
  %s14 = ssub.s32 1, %s12
  %s15 = scalar_select 0, %s14, %s12
  $region1: #{network_forward.1} parent=0
    #allocation2 [shape = 'u8[16384]{0}', space=vmem, size = 0x4000, scoped, tag = 'output window, operand 0']
    #allocation3 [shape = 's32[2]{0}', space=sflag, size = 0x8, scoped, tag = 'scoped memory for network_forward.1']
    %16 = vsyncpa [#allocation3], 0
    %s17 = scalar_lea.sflag [#allocation3], 1
    %18 = vsyncpa %s17, 0
    loop: start=0, step=1, limit=4
    $region2: #{network_forward.1} parent=1 // loop_pre_header
      _
    $region3: #{network_forward.1} parent=1 // loop_header
      %s20 = sphi 0, %s24
      %p21 = scmp.ge.s32.totalorder %s20, 4
      %s30 = sphi 0, %s32
      %s33 = sphi 0, %s30
      %s34 = sphi 0, %s33
      %s50 = sphi 0, %s34
      %s54 = sphi 0, %s54
      %s56 = sphi 0, %s54
      %s57 = sphi 0, %s56
      %s71 = sphi 0, %s57
      %s75 = sphi 0, %s75
      %s77 = sphi 0, %s75
      %s78 = sphi 0, %s77
      %s92 = sphi 0, %s78
      %s96 = sphi 0, %s96
      %s98 = sphi 0, %s96
      %s99 = sphi 0, %s98
      %s113 = sphi 0, %s99
      %s117 = sphi 0, %s117
      %s119 = sphi 0, %s117
      %s120 = sphi 0, %s119
      %s134 = sphi 0, %s120
      %s138 = sphi 0, %s138
      %s140 = sphi 0, %s138
      %s141 = sphi 0, %s140
      %s155 = sphi 0, %s141
      %s159 = sphi 0, %s159
      %s161 = sphi 0, %s159
      %s162 = sphi 0, %s161
      %s176 = sphi 0, %s162
      %s180 = sphi 0, %s180
      %s182 = sphi 0, %s180
      %s183 = sphi 0, %s182
      %s197 = sphi 0, %s183
      %s201 = sphi 0, %s201
      %s203 = sphi 0, %s201
      %s204 = sphi 0, %s203
      %s218 = sphi 0, %s204
      %s224 = sphi 0, %s226
      %s227 = sphi 0, %s224
      %s228 = sphi 0, %s227
      %s244 = sphi 0, %s228
      %s250 = sphi 0, %s252
      %s253 = sphi 0, %s250
      %s254 = sphi 0, %s253
      %s270 = sphi 0, %s254
    $region4: #{network_forward.1} parent=1 // loop_header_branch
      %23 = sbr.rel (%p21) target = $region8
    $region5: #{network_forward.1} parent=1 // loop_body
      %s25 = ssub.s32 %s20, 1
      %s26 = ssub.s32 %s20, 2
      %s27 = sadd.s32 %s20, 1
      %s28 = ssub.s32 %s20, %s27
      %p29 = scmp.eq.s32.totalorder %s28, 0
      %s31 = sadd.s32 %s30, 1
      %s32 = scalar_select %p29, %s30, %s31
      %p35 = pneg %p29
      %p36 = scmp.eq.s32.totalorder %s20, 1
      %p37 = por %p35, %p36
      %p38 = scmp.ne.s32.totalorder %s30, %s33
      %p39 = scmp.eq.s32.totalorder %s20, 0
      %p40 = por %p38, %p39
      %p41 = scmp.ne.s32.totalorder %s30, %s33
      %p42 = scmp.eq.s32.totalorder %s25, 1
      %p43 = por %p41, %p42
      %p44 = scmp.ne.s32.totalorder %s33, %s34
      %p45 = scmp.eq.s32.totalorder %s25, 0
      %p46 = por %p44, %p45
      %p47 = scmp.ne.s32.totalorder %s33, %s34
      %p48 = scmp.eq.s32.totalorder %s26, 1
      %p49 = por %p47, %p48
      %p51 = scmp.ne.s32.totalorder %s34, %s50
      %p52 = scmp.eq.s32.totalorder %s26, 0
      %p53 = por %p51, %p52
      %s55 = sadd.s32 %s54, 1
      %p58 = scmp.eq.s32.totalorder %s20, 1
      %p59 = scmp.ne.s32.totalorder %s54, %s56
      %p60 = scmp.eq.s32.totalorder %s20, 0
      %p61 = por %p59, %p60
      %p62 = scmp.ne.s32.totalorder %s54, %s56
      %p63 = scmp.eq.s32.totalorder %s25, 1
      %p64 = por %p62, %p63
      %p65 = scmp.ne.s32.totalorder %s56, %s57
      %p66 = scmp.eq.s32.totalorder %s25, 0
      %p67 = por %p65, %p66
      %p68 = scmp.ne.s32.totalorder %s56, %s57
      %p69 = scmp.eq.s32.totalorder %s26, 1
      %p70 = por %p68, %p69
      %p72 = scmp.ne.s32.totalorder %s57, %s71
      %p73 = scmp.eq.s32.totalorder %s26, 0
      %p74 = por %p72, %p73
      %s76 = sadd.s32 %s75, 1
      %p79 = scmp.eq.s32.totalorder %s20, 1
      %p80 = scmp.ne.s32.totalorder %s75, %s77
      %p81 = scmp.eq.s32.totalorder %s20, 0
      %p82 = por %p80, %p81
      %p83 = scmp.ne.s32.totalorder %s75, %s77
      %p84 = scmp.eq.s32.totalorder %s25, 1
      %p85 = por %p83, %p84
      %p86 = scmp.ne.s32.totalorder %s77, %s78
      %p87 = scmp.eq.s32.totalorder %s25, 0
      %p88 = por %p86, %p87
      %p89 = scmp.ne.s32.totalorder %s77, %s78
      %p90 = scmp.eq.s32.totalorder %s26, 1
      %p91 = por %p89, %p90
      %p93 = scmp.ne.s32.totalorder %s78, %s92
      %p94 = scmp.eq.s32.totalorder %s26, 0
      %p95 = por %p93, %p94
      %s97 = sadd.s32 %s96, 1
      %p100 = scmp.eq.s32.totalorder %s20, 1
      %p101 = scmp.ne.s32.totalorder %s96, %s98
      %p102 = scmp.eq.s32.totalorder %s20, 0
      %p103 = por %p101, %p102
      %p104 = scmp.ne.s32.totalorder %s96, %s98
      %p105 = scmp.eq.s32.totalorder %s25, 1
      %p106 = por %p104, %p105
      %p107 = scmp.ne.s32.totalorder %s98, %s99
      %p108 = scmp.eq.s32.totalorder %s25, 0
      %p109 = por %p107, %p108
      %p110 = scmp.ne.s32.totalorder %s98, %s99
      %p111 = scmp.eq.s32.totalorder %s26, 1
      %p112 = por %p110, %p111
      %p114 = scmp.ne.s32.totalorder %s99, %s113
      %p115 = scmp.eq.s32.totalorder %s26, 0
      %p116 = por %p114, %p115
      %s118 = sadd.s32 %s117, 1
      %p121 = scmp.eq.s32.totalorder %s20, 1
      %p122 = scmp.ne.s32.totalorder %s117, %s119
      %p123 = scmp.eq.s32.totalorder %s20, 0
      %p124 = por %p122, %p123
      %p125 = scmp.ne.s32.totalorder %s117, %s119
      %p126 = scmp.eq.s32.totalorder %s25, 1
      %p127 = por %p125, %p126
      %p128 = scmp.ne.s32.totalorder %s119, %s120
      %p129 = scmp.eq.s32.totalorder %s25, 0
      %p130 = por %p128, %p129
      %p131 = scmp.ne.s32.totalorder %s119, %s120
      %p132 = scmp.eq.s32.totalorder %s26, 1
      %p133 = por %p131, %p132
      %p135 = scmp.ne.s32.totalorder %s120, %s134
      %p136 = scmp.eq.s32.totalorder %s26, 0
      %p137 = por %p135, %p136
      %s139 = sadd.s32 %s138, 1
      %p142 = scmp.eq.s32.totalorder %s20, 1
      %p143 = scmp.ne.s32.totalorder %s138, %s140
      %p144 = scmp.eq.s32.totalorder %s20, 0
      %p145 = por %p143, %p144
      %p146 = scmp.ne.s32.totalorder %s138, %s140
      %p147 = scmp.eq.s32.totalorder %s25, 1
      %p148 = por %p146, %p147
      %p149 = scmp.ne.s32.totalorder %s140, %s141
      %p150 = scmp.eq.s32.totalorder %s25, 0
      %p151 = por %p149, %p150
      %p152 = scmp.ne.s32.totalorder %s140, %s141
      %p153 = scmp.eq.s32.totalorder %s26, 1
      %p154 = por %p152, %p153
      %p156 = scmp.ne.s32.totalorder %s141, %s155
      %p157 = scmp.eq.s32.totalorder %s26, 0
      %p158 = por %p156, %p157
      %s160 = sadd.s32 %s159, 1
      %p163 = scmp.eq.s32.totalorder %s20, 1
      %p164 = scmp.ne.s32.totalorder %s159, %s161
      %p165 = scmp.eq.s32.totalorder %s20, 0
      %p166 = por %p164, %p165
      %p167 = scmp.ne.s32.totalorder %s159, %s161
      %p168 = scmp.eq.s32.totalorder %s25, 1
      %p169 = por %p167, %p168
      %p170 = scmp.ne.s32.totalorder %s161, %s162
      %p171 = scmp.eq.s32.totalorder %s25, 0
      %p172 = por %p170, %p171
      %p173 = scmp.ne.s32.totalorder %s161, %s162
      %p174 = scmp.eq.s32.totalorder %s26, 1
      %p175 = por %p173, %p174
      %p177 = scmp.ne.s32.totalorder %s162, %s176
      %p178 = scmp.eq.s32.totalorder %s26, 0
      %p179 = por %p177, %p178
      %s181 = sadd.s32 %s180, 1
      %p184 = scmp.eq.s32.totalorder %s20, 1
      %p185 = scmp.ne.s32.totalorder %s180, %s182
      %p186 = scmp.eq.s32.totalorder %s20, 0
      %p187 = por %p185, %p186
      %p188 = scmp.ne.s32.totalorder %s180, %s182
      %p189 = scmp.eq.s32.totalorder %s25, 1
      %p190 = por %p188, %p189
      %p191 = scmp.ne.s32.totalorder %s182, %s183
      %p192 = scmp.eq.s32.totalorder %s25, 0
      %p193 = por %p191, %p192
      %p194 = scmp.ne.s32.totalorder %s182, %s183
      %p195 = scmp.eq.s32.totalorder %s26, 1
      %p196 = por %p194, %p195
      %p198 = scmp.ne.s32.totalorder %s183, %s197
      %p199 = scmp.eq.s32.totalorder %s26, 0
      %p200 = por %p198, %p199
      %s202 = sadd.s32 %s201, 1
      %p205 = scmp.eq.s32.totalorder %s20, 1
      %p206 = scmp.ne.s32.totalorder %s201, %s203
      %p207 = scmp.eq.s32.totalorder %s20, 0
      %p208 = por %p206, %p207
      %p209 = scmp.ne.s32.totalorder %s201, %s203
      %p210 = scmp.eq.s32.totalorder %s25, 1
      %p211 = por %p209, %p210
      %p212 = scmp.ne.s32.totalorder %s203, %s204
      %p213 = scmp.eq.s32.totalorder %s25, 0
      %p214 = por %p212, %p213
      %p215 = scmp.ne.s32.totalorder %s203, %s204
      %p216 = scmp.eq.s32.totalorder %s26, 1
      %p217 = por %p215, %p216
      %p219 = scmp.ne.s32.totalorder %s204, %s218
      %p220 = scmp.eq.s32.totalorder %s26, 0
      %p221 = por %p219, %p220
      %s222 = ssub.s32 %s20, %s27
      %p223 = scmp.eq.s32.totalorder %s222, 0
      %s225 = sadd.s32 %s224, 1
      %s226 = scalar_select %p223, %s224, %s225
      %p229 = pneg %p223
      %p230 = scmp.eq.s32.totalorder %s20, 1
      %p231 = por %p229, %p230
      %p232 = scmp.ne.s32.totalorder %s224, %s227
      %p233 = scmp.eq.s32.totalorder %s20, 0
      %p234 = por %p232, %p233
      %p235 = scmp.ne.s32.totalorder %s224, %s227
      %p236 = scmp.eq.s32.totalorder %s25, 1
      %p237 = por %p235, %p236
      %p238 = scmp.ne.s32.totalorder %s227, %s228
      %p239 = scmp.eq.s32.totalorder %s25, 0
      %p240 = por %p238, %p239
      %p241 = scmp.ne.s32.totalorder %s227, %s228
      %p242 = scmp.eq.s32.totalorder %s26, 1
      %p243 = por %p241, %p242
      %p245 = scmp.ne.s32.totalorder %s228, %s244
      %p246 = scmp.eq.s32.totalorder %s26, 0
      %p247 = por %p245, %p246
      %s248 = ssub.s32 %s20, %s27
      %p249 = scmp.eq.s32.totalorder %s248, 0
      %s251 = sadd.s32 %s250, 1
      %s252 = scalar_select %p249, %s250, %s251
      %p255 = pneg %p249
      %p256 = scmp.eq.s32.totalorder %s20, 1
      %p257 = por %p255, %p256
      %p258 = scmp.ne.s32.totalorder %s250, %s253
      %p259 = scmp.eq.s32.totalorder %s20, 0
      %p260 = por %p258, %p259
      %p261 = scmp.ne.s32.totalorder %s250, %s253
      %p262 = scmp.eq.s32.totalorder %s25, 1
      %p263 = por %p261, %p262
      %p264 = scmp.ne.s32.totalorder %s253, %s254
      %p265 = scmp.eq.s32.totalorder %s25, 0
      %p266 = por %p264, %p265
      %p267 = scmp.ne.s32.totalorder %s253, %s254
      %p268 = scmp.eq.s32.totalorder %s26, 1
      %p269 = por %p267, %p268
      %p271 = scmp.ne.s32.totalorder %s254, %s270
      %p272 = scmp.eq.s32.totalorder %s26, 0
      %p273 = por %p271, %p272
      %p274 = scmp.le.s32.totalorder 1, %s20
      %p275 = scmp.lt.s32.totalorder %s20, 3
      %p276 = pnand %p274, %p275
      %p277 = pneg %p276
      // Predicated region
      $region9: #{network_forward.1} parent=5 // pred_check
        _
      $region10: #{network_forward.1} parent=5 // pred_check_branch
        %279 = sbr.rel (%p276) target = $region12
      $region11: #{network_forward.1} parent=5 // pred_region
        %s280 = ssub.s32 %s20, 1
        // Predicated region
        $region13: #{network_forward.1} parent=11 // pred_check
          %p281 = pneg %p67
        $region14: #{network_forward.1} parent=11 // pred_check_branch
          %283 = sbr.rel (%p281) target = $region16
        $region15: #{network_forward.1} parent=11 // pred_region
          _
        $region16: #{network_forward.1} parent=11 // pred_fallthru
          _
        // Predicated region
        $region17: #{network_forward.1} parent=11 // pred_check
          %p284 = pneg %p88
        $region18: #{network_forward.1} parent=11 // pred_check_branch
          %286 = sbr.rel (%p284) target = $region20
        $region19: #{network_forward.1} parent=11 // pred_region
          _
        $region20: #{network_forward.1} parent=11 // pred_fallthru
          _
        // Predicated region
        $region21: #{network_forward.1} parent=11 // pred_check
          %p287 = pneg %p109
        $region22: #{network_forward.1} parent=11 // pred_check_branch
          %289 = sbr.rel (%p287) target = $region24
        $region23: #{network_forward.1} parent=11 // pred_region
          _
        $region24: #{network_forward.1} parent=11 // pred_fallthru
          _
        // Predicated region
        $region25: #{network_forward.1} parent=11 // pred_check
          %p290 = pneg %p130
        $region26: #{network_forward.1} parent=11 // pred_check_branch
          %292 = sbr.rel (%p290) target = $region28
        $region27: #{network_forward.1} parent=11 // pred_region
          _
        $region28: #{network_forward.1} parent=11 // pred_fallthru
          _
        // Predicated region
        $region29: #{network_forward.1} parent=11 // pred_check
          %p293 = pneg %p151
        $region30: #{network_forward.1} parent=11 // pred_check_branch
          %295 = sbr.rel (%p293) target = $region32
        $region31: #{network_forward.1} parent=11 // pred_region
          _
        $region32: #{network_forward.1} parent=11 // pred_fallthru
          _
        // Predicated region
        $region33: #{network_forward.1} parent=11 // pred_check
          %p296 = pneg %p172
        $region34: #{network_forward.1} parent=11 // pred_check_branch
          %298 = sbr.rel (%p296) target = $region36
        $region35: #{network_forward.1} parent=11 // pred_region
          _
        $region36: #{network_forward.1} parent=11 // pred_fallthru
          _
        // Predicated region
        $region37: #{network_forward.1} parent=11 // pred_check
          %p299 = pneg %p193
        $region38: #{network_forward.1} parent=11 // pred_check_branch
          %301 = sbr.rel (%p299) target = $region40
        $region39: #{network_forward.1} parent=11 // pred_region
          _
        $region40: #{network_forward.1} parent=11 // pred_fallthru
          _
        // Predicated region
        $region41: #{network_forward.1} parent=11 // pred_check
          %p302 = pneg %p214
        $region42: #{network_forward.1} parent=11 // pred_check_branch
          %304 = sbr.rel (%p302) target = $region44
        $region43: #{network_forward.1} parent=11 // pred_region
          _
        $region44: #{network_forward.1} parent=11 // pred_fallthru
          _
      $region12: #{network_forward.1} parent=5 // pred_fallthru
        _
      %p305 = scmp.lt.s32.totalorder %s20, 2
      // Predicated region
      $region45: #{network_forward.1} parent=5 // pred_check
        %p306 = pneg %p305
      $region46: #{network_forward.1} parent=5 // pred_check_branch
        %308 = sbr.rel (%p306) target = $region48
      $region47: #{network_forward.1} parent=5 // pred_region
        // Predicated region
        $region49: #{network_forward.1} parent=47 // pred_check
          %p309 = pneg %p40
        $region50: #{network_forward.1} parent=47 // pred_check_branch
          %311 = sbr.rel (%p309) target = $region52
        $region51: #{network_forward.1} parent=47 // pred_region
          %s312 = smul.u32 16, %s20
          %p313 = scmp.lt.s32.totalorder %s312, 31
          %s314 = scalar_select %p313, %s312, 31
          %s315 = smul.addr %s314, 2
          %s316 = smul.addr %s315, 4
          %s317 = scalar_lea.vmem %s0, %s316
          %s318 = smul.u32 16, %s20
        $region52: #{network_forward.1} parent=47 // pred_fallthru
          _
      $region48: #{network_forward.1} parent=5 // pred_fallthru
        _
      %p319 = scmp.le.s32.totalorder 1, %s20
      %p320 = scmp.lt.s32.totalorder %s20, 3
      %p321 = pnand %p319, %p320
      %p322 = pneg %p321
      // Predicated region
      $region53: #{network_forward.1} parent=5 // pred_check
        _
      $region54: #{network_forward.1} parent=5 // pred_check_branch
        %324 = sbr.rel (%p321) target = $region56
      $region55: #{network_forward.1} parent=5 // pred_region
        %s325 = ssub.s32 %s20, 1
        %s326 = smul.u32 16, %s25
        %p327 = scmp.lt.s32.totalorder %s326, 31
        %s328 = scalar_select %p327, %s326, 31
        %s329 = smul.addr %s328, 2
        %s330 = smul.addr %s329, 4
        %s331 = scalar_lea.vmem %s0, %s330
        %p332 = pneg %p46
        %p333 = pneg %p43
        %p334 = pneg %p67
        %p335 = pneg %p64
        %p336 = pneg %p88
        %p337 = pneg %p85
        %p338 = pneg %p109
        %p339 = pneg %p106
        %p340 = pneg %p130
        %p341 = pneg %p127
        %p342 = pneg %p151
        %p343 = pneg %p148
        %p344 = pneg %p172
        %p345 = pneg %p169
        %p346 = pneg %p193
        %p347 = pneg %p190
        %p348 = pneg %p214
        %p349 = pneg %p211
        %p350 = pneg %p240
        %p351 = pneg %p237
        %s352 = sand.u32 %s227, 1
        %s353 = scalar_lea.sflag [#allocation3], %s352
        %s354 = sand.u32 %s227, 1
        %s355 = smul.addr %s354, 16
        %s356 = scalar_lea.vmem [#allocation2], %s355
        %p357 = pneg %p266
        %p358 = pneg %p263
        %s359 = smul.u32 2, %s25
        %p360 = scmp.lt.s32.totalorder %s359, 3
        %s361 = scalar_select %p360, %s359, 3
        %s362 = smul.addr %s361, 8
        %s363 = scalar_lea.vmem %s10, %s362
        %s364 = smul.u32 16, %s25
        %p365 = scmp.lt.s32.totalorder %s364, 31
        %s366 = scalar_select %p365, %s364, 31
        %s367 = smul.addr %s366, 2
        %s368 = smul.addr %s367, 4
        %s369 = scalar_lea.vmem %s0, %s368
        %s370 = smul.u32 16, %s25
        %s371 = smul.u32 2, %s25
        %s372 = smul.u32 2, %s25
        %p373 = scmp.lt.s32.totalorder %s372, 3
        %s374 = scalar_select %p373, %s372, 3
        %s375 = smul.addr %s374, 8
        %s376 = scalar_lea.vmem %s10, %s375
        %s377 = smul.u32 2, %s25
        %v379 = vld [vmem:[%s369] sm:$0xff]
        %v380 = vld [vmem:[%s369 + $0x8] sm:$0xff]
        %v381 = vld [vmem:[%s369 + $0x10] sm:$0xff]
        %v382 = vld [vmem:[%s369 + $0x18] sm:$0xff]
        %v383 = vld [vmem:[%s369 + $0x20] sm:$0xff]
        %v384 = vld [vmem:[%s369 + $0x28] sm:$0xff]
        %v385 = vld [vmem:[%s369 + $0x30] sm:$0xff]
        %v386 = vld [vmem:[%s369 + $0x38] sm:$0xff]
        %v387 = vld [vmem:[%s369 + $0x40] sm:$0xff]
        %v388 = vld [vmem:[%s369 + $0x48] sm:$0xff]
        %v389 = vld [vmem:[%s369 + $0x50] sm:$0xff]
        %v390 = vld [vmem:[%s369 + $0x58] sm:$0xff]
        %v391 = vld [vmem:[%s369 + $0x60] sm:$0xff]
        %v392 = vld [vmem:[%s369 + $0x68] sm:$0xff]
        %v393 = vld [vmem:[%s369 + $0x70] sm:$0xff]
        %v394 = vld [vmem:[%s369 + $0x78] sm:$0xff]
        %v409 = vunpack.c.l.b16 %v379
        %v410 = vunpack.c.h.b16 %v379
        %v411 = vunpack.c.l.b16 %v380
        %v412 = vunpack.c.h.b16 %v380
        %v413 = vunpack.c.l.b16 %v381
        %v414 = vunpack.c.h.b16 %v381
        %v415 = vunpack.c.l.b16 %v382
        %v416 = vunpack.c.h.b16 %v382
        %v417 = vunpack.c.l.b16 %v383
        %v418 = vunpack.c.h.b16 %v383
        %v419 = vunpack.c.l.b16 %v384
        %v420 = vunpack.c.h.b16 %v384
        %v421 = vunpack.c.l.b16 %v385
        %v422 = vunpack.c.h.b16 %v385
        %v423 = vunpack.c.l.b16 %v386
        %v424 = vunpack.c.h.b16 %v386
        %v425 = vunpack.c.l.b16 %v387
        %v426 = vunpack.c.h.b16 %v387
        %v427 = vunpack.c.l.b16 %v388
        %v428 = vunpack.c.h.b16 %v388
        %v429 = vunpack.c.l.b16 %v389
        %v430 = vunpack.c.h.b16 %v389
        %v431 = vunpack.c.l.b16 %v390
        %v432 = vunpack.c.h.b16 %v390
        %v433 = vunpack.c.l.b16 %v391
        %v434 = vunpack.c.h.b16 %v391
        %v435 = vunpack.c.l.b16 %v392
        %v436 = vunpack.c.h.b16 %v392
        %v437 = vpack.c.b16 %v411, %v409
        %v438 = vpack.c.b16 %v412, %v410
        %v439 = vpack.c.b16 %v415, %v413
        %v440 = vpack.c.b16 %v416, %v414
        %v441 = vpack.c.b16 %v419, %v417
        %v442 = vpack.c.b16 %v420, %v418
        %v443 = vpack.c.b16 %v423, %v421
        %v444 = vpack.c.b16 %v424, %v422
        %v445 = vpack.c.b16 %v427, %v425
        %v446 = vpack.c.b16 %v428, %v426
        %v447 = vpack.c.b16 %v431, %v429
        %v448 = vpack.c.b16 %v432, %v430
        %v449 = vpack.c.b16 %v435, %v433
        %v450 = vpack.c.b16 %v436, %v434
        %v467 = vunpack.c.l.b16 %v393
        %v468 = vunpack.c.h.b16 %v393
        %v469 = vunpack.c.l.b16 %v394
        %v470 = vunpack.c.h.b16 %v394
        %v471 = vpack.c.b16 %v469, %v467
        %v472 = vpack.c.b16 %v470, %v468
        %v475 = vld [vmem:[%s1] sm:$0xff]
        %v476 = vld [vmem:[%s1 + $0x8] sm:$0xff]
        %v477 = vld [vmem:[%s1 + $0x10] sm:$0xff]
        %v478 = vld [vmem:[%s1 + $0x18] sm:$0xff]
        %v479 = vld [vmem:[%s1 + $0x20] sm:$0xff]
        %v480 = vld [vmem:[%s1 + $0x28] sm:$0xff]
        %v481 = vld [vmem:[%s1 + $0x30] sm:$0xff]
        %v482 = vld [vmem:[%s1 + $0x38] sm:$0xff]
        %v483 = vld [vmem:[%s1 + $0x40] sm:$0xff]
        %v484 = vld [vmem:[%s1 + $0x48] sm:$0xff]
        %v485 = vld [vmem:[%s1 + $0x50] sm:$0xff]
        %v486 = vld [vmem:[%s1 + $0x58] sm:$0xff]
        %v487 = vld [vmem:[%s1 + $0x60] sm:$0xff]
        %v488 = vld [vmem:[%s1 + $0x68] sm:$0xff]
        %v489 = vld [vmem:[%s1 + $0x70] sm:$0xff]
        %v490 = vld [vmem:[%s1 + $0x78] sm:$0xff]
        %v491 = vld [vmem:[%s1 + $0x80] sm:$0xff]
        %v492 = vld [vmem:[%s1 + $0x88] sm:$0xff]
        %v493 = vld [vmem:[%s1 + $0x90] sm:$0xff]
        %v494 = vld [vmem:[%s1 + $0x98] sm:$0xff]
        %v495 = vld [vmem:[%s1 + $0xa0] sm:$0xff]
        %v496 = vld [vmem:[%s1 + $0xa8] sm:$0xff]
        %v497 = vld [vmem:[%s1 + $0xb0] sm:$0xff]
        %v498 = vld [vmem:[%s1 + $0xb8] sm:$0xff]
        %v499 = vld [vmem:[%s1 + $0xc0] sm:$0xff]
        %v500 = vld [vmem:[%s1 + $0xc8] sm:$0xff]
        %v501 = vld [vmem:[%s1 + $0xd0] sm:$0xff]
        %v502 = vld [vmem:[%s1 + $0xd8] sm:$0xff]
        %v503 = vld [vmem:[%s1 + $0xe0] sm:$0xff]
        %v504 = vld [vmem:[%s1 + $0xe8] sm:$0xff]
        %v505 = vld [vmem:[%s1 + $0xf0] sm:$0xff]
        %v506 = vld [vmem:[%s1 + $0xf8] sm:$0xff]
        %s507 = scalar_lea.vmem %s1, 256
        %v508 = vld [vmem:[%s507] sm:$0xff]
        %v509 = vld [vmem:[%s507 + $0x8] sm:$0xff]
        %v510 = vld [vmem:[%s507 + $0x10] sm:$0xff]
        %v511 = vld [vmem:[%s507 + $0x18] sm:$0xff]
        %v512 = vld [vmem:[%s507 + $0x20] sm:$0xff]
        %v513 = vld [vmem:[%s507 + $0x28] sm:$0xff]
        %v514 = vld [vmem:[%s507 + $0x30] sm:$0xff]
        %v515 = vld [vmem:[%s507 + $0x38] sm:$0xff]
        %v516 = vld [vmem:[%s507 + $0x40] sm:$0xff]
        %v517 = vld [vmem:[%s507 + $0x48] sm:$0xff]
        %v518 = vld [vmem:[%s507 + $0x50] sm:$0xff]
        %v519 = vld [vmem:[%s507 + $0x58] sm:$0xff]
        %v520 = vld [vmem:[%s507 + $0x60] sm:$0xff]
        %v521 = vld [vmem:[%s507 + $0x68] sm:$0xff]
        %v522 = vld [vmem:[%s507 + $0x70] sm:$0xff]
        %v523 = vld [vmem:[%s507 + $0x78] sm:$0xff]
        %v524 = vld [vmem:[%s507 + $0x80] sm:$0xff]
        %v525 = vld [vmem:[%s507 + $0x88] sm:$0xff]
        %v526 = vld [vmem:[%s507 + $0x90] sm:$0xff]
        %v527 = vld [vmem:[%s507 + $0x98] sm:$0xff]
        %v528 = vld [vmem:[%s507 + $0xa0] sm:$0xff]
        %v529 = vld [vmem:[%s507 + $0xa8] sm:$0xff]
        %v530 = vld [vmem:[%s507 + $0xb0] sm:$0xff]
        %v531 = vld [vmem:[%s507 + $0xb8] sm:$0xff]
        %v532 = vld [vmem:[%s507 + $0xc0] sm:$0xff]
        %v533 = vld [vmem:[%s507 + $0xc8] sm:$0xff]
        %v534 = vld [vmem:[%s507 + $0xd0] sm:$0xff]
        %v535 = vld [vmem:[%s507 + $0xd8] sm:$0xff]
        %v536 = vld [vmem:[%s507 + $0xe0] sm:$0xff]
        %v537 = vld [vmem:[%s507 + $0xe8] sm:$0xff]
        %v538 = vld [vmem:[%s507 + $0xf0] sm:$0xff]
        %v539 = vld [vmem:[%s507 + $0xf8] sm:$0xff]
        %v572 = vunpack.c.l.b16 %v508
        %v573 = vunpack.c.h.b16 %v508
        %v574 = vunpack.c.l.b16 %v509
        %v575 = vunpack.c.h.b16 %v509
        %v576 = vunpack.c.l.b16 %v510
        %v577 = vunpack.c.h.b16 %v510
        %v578 = vunpack.c.l.b16 %v511
        %v579 = vunpack.c.h.b16 %v511
        %v580 = vunpack.c.l.b16 %v512
        %v581 = vunpack.c.h.b16 %v512
        %v582 = vunpack.c.l.b16 %v513
        %v583 = vunpack.c.h.b16 %v513
        %v584 = vunpack.c.l.b16 %v514
        %v585 = vunpack.c.h.b16 %v514
        %v586 = vunpack.c.l.b16 %v515
        %v587 = vunpack.c.h.b16 %v515
        %v588 = vunpack.c.l.b16 %v516
        %v589 = vunpack.c.h.b16 %v516
        %v590 = vunpack.c.l.b16 %v517
        %v591 = vunpack.c.h.b16 %v517
        %v592 = vunpack.c.l.b16 %v518
        %v593 = vunpack.c.h.b16 %v518
        %v594 = vunpack.c.l.b16 %v519
        %v595 = vunpack.c.h.b16 %v519
        %v596 = vunpack.c.l.b16 %v520
        %v597 = vunpack.c.h.b16 %v520
        %v598 = vunpack.c.l.b16 %v521
        %v599 = vunpack.c.h.b16 %v521
        %v600 = vunpack.c.l.b16 %v522
        %v601 = vunpack.c.h.b16 %v522
        %v602 = vunpack.c.l.b16 %v523
        %v603 = vunpack.c.h.b16 %v523
        %v604 = vunpack.c.l.b16 %v524
        %v605 = vunpack.c.h.b16 %v524
        %v606 = vunpack.c.l.b16 %v525
        %v607 = vunpack.c.h.b16 %v525
        %v608 = vunpack.c.l.b16 %v526
        %v609 = vunpack.c.h.b16 %v526
        %v610 = vunpack.c.l.b16 %v527
        %v611 = vunpack.c.h.b16 %v527
        %v612 = vunpack.c.l.b16 %v528
        %v613 = vunpack.c.h.b16 %v528
        %v614 = vunpack.c.l.b16 %v529
        %v615 = vunpack.c.h.b16 %v529
        %v616 = vunpack.c.l.b16 %v530
        %v617 = vunpack.c.h.b16 %v530
        %v618 = vunpack.c.l.b16 %v531
        %v619 = vunpack.c.h.b16 %v531
        %v620 = vunpack.c.l.b16 %v532
        %v621 = vunpack.c.h.b16 %v532
        %v622 = vunpack.c.l.b16 %v533
        %v623 = vunpack.c.h.b16 %v533
        %v624 = vunpack.c.l.b16 %v534
        %v625 = vunpack.c.h.b16 %v534
        %v626 = vunpack.c.l.b16 %v535
        %v627 = vunpack.c.h.b16 %v535
        %v628 = vunpack.c.l.b16 %v536
        %v629 = vunpack.c.h.b16 %v536
        %v630 = vunpack.c.l.b16 %v537
        %v631 = vunpack.c.h.b16 %v537
        %v632 = vunpack.c.l.b16 %v538
        %v633 = vunpack.c.h.b16 %v538
        %v634 = vunpack.c.l.b16 %v539
        %v635 = vunpack.c.h.b16 %v539
        %v636 = vpack.c.b16 %v574, %v572
        %v637 = vpack.c.b16 %v575, %v573
        %v638 = vpack.c.b16 %v578, %v576
        %v639 = vpack.c.b16 %v579, %v577
        %v640 = vpack.c.b16 %v582, %v580
        %v641 = vpack.c.b16 %v583, %v581
        %v642 = vpack.c.b16 %v586, %v584
        %v643 = vpack.c.b16 %v587, %v585
        %v644 = vpack.c.b16 %v590, %v588
        %v645 = vpack.c.b16 %v591, %v589
        %v646 = vpack.c.b16 %v594, %v592
        %v647 = vpack.c.b16 %v595, %v593
        %v648 = vpack.c.b16 %v598, %v596
        %v649 = vpack.c.b16 %v599, %v597
        %v650 = vpack.c.b16 %v602, %v600
        %v651 = vpack.c.b16 %v603, %v601
        %v652 = vpack.c.b16 %v606, %v604
        %v653 = vpack.c.b16 %v607, %v605
        %v654 = vpack.c.b16 %v610, %v608
        %v655 = vpack.c.b16 %v611, %v609
        %v656 = vpack.c.b16 %v614, %v612
        %v657 = vpack.c.b16 %v615, %v613
        %v658 = vpack.c.b16 %v618, %v616
        %v659 = vpack.c.b16 %v619, %v617
        %v660 = vpack.c.b16 %v622, %v620
        %v661 = vpack.c.b16 %v623, %v621
        %v662 = vpack.c.b16 %v626, %v624
        %v663 = vpack.c.b16 %v627, %v625
        %v664 = vpack.c.b16 %v630, %v628
        %v665 = vpack.c.b16 %v631, %v629
        %v666 = vpack.c.b16 %v634, %v632
        %v667 = vpack.c.b16 %v635, %v633
        %700 = vmatpush.bf16.msra.mxu0 %v650
        %701 = vmatpush.bf16.msra.mxu0 %v648
        %702 = vmatpush.bf16.msra.mxu0 %v646
        %703 = vmatpush.bf16.msra.mxu0 %v644
        %704 = vmatpush.bf16.msra.mxu0 %v642
        %705 = vmatpush.bf16.msra.mxu0 %v640
        %706 = vmatpush.bf16.msra.mxu0 %v638
        %707 = vmatpush.bf16.msra.mxu0 %v636
        %708 = vmatmul.bf16.gmra.mxu0 %v437
        %v709 = vpop.f32.mrf.mxu0
        %v710 = vadd.f32 0.0, %v709
        %v711 = vpop.f32.mrf.mxu0
        %v712 = vadd.f32 0.0, %v711
        %713 = vmatmul.bf16.gmra.mxu0 %v439
        %v714 = vpop.f32.mrf.mxu0
        %v715 = vadd.f32 0.0, %v714
        %v716 = vpop.f32.mrf.mxu0
        %v717 = vadd.f32 0.0, %v716
        %718 = vmatmul.bf16.gmra.mxu0 %v441
        %v719 = vpop.f32.mrf.mxu0
        %v720 = vadd.f32 0.0, %v719
        %v721 = vpop.f32.mrf.mxu0
        %v722 = vadd.f32 0.0, %v721
        %723 = vmatmul.bf16.gmra.mxu0 %v443
        %v724 = vpop.f32.mrf.mxu0
        %v725 = vadd.f32 0.0, %v724
        %v726 = vpop.f32.mrf.mxu0
        %v727 = vadd.f32 0.0, %v726
        %728 = vmatmul.bf16.gmra.mxu0 %v445
        %v729 = vpop.f32.mrf.mxu0
        %v730 = vadd.f32 0.0, %v729
        %v731 = vpop.f32.mrf.mxu0
        %v732 = vadd.f32 0.0, %v731
        %733 = vmatmul.bf16.gmra.mxu0 %v447
        %v734 = vpop.f32.mrf.mxu0
        %v735 = vadd.f32 0.0, %v734
        %v736 = vpop.f32.mrf.mxu0
        %v737 = vadd.f32 0.0, %v736
        %738 = vmatmul.bf16.gmra.mxu0 %v449
        %v739 = vpop.f32.mrf.mxu0
        %v740 = vadd.f32 0.0, %v739
        %v741 = vpop.f32.mrf.mxu0
        %v742 = vadd.f32 0.0, %v741
        %743 = vmatmul.bf16.gmra.mxu0 %v471
        %v744 = vpop.f32.mrf.mxu0
        %v745 = vadd.f32 0.0, %v744
        %v746 = vpop.f32.mrf.mxu0
        %v747 = vadd.f32 0.0, %v746
        %748 = vdwg.mxu0
        %749 = vmatpush.bf16.msra.mxu0 %v666
        %750 = vmatpush.bf16.msra.mxu0 %v664
        %751 = vmatpush.bf16.msra.mxu0 %v662
        %752 = vmatpush.bf16.msra.mxu0 %v660
        %753 = vmatpush.bf16.msra.mxu0 %v658
        %754 = vmatpush.bf16.msra.mxu0 %v656
        %755 = vmatpush.bf16.msra.mxu0 %v654
        %756 = vmatpush.bf16.msra.mxu0 %v652
        %757 = vmatmul.bf16.gmra.mxu0 %v438
        %v758 = vpop.f32.mrf.mxu0
        %v759 = vadd.f32 %v710, %v758
        %v760 = vpop.f32.mrf.mxu0
        %v761 = vadd.f32 %v712, %v760
        %762 = vmatmul.bf16.gmra.mxu0 %v440
        %v763 = vpop.f32.mrf.mxu0
        %v764 = vadd.f32 %v715, %v763
        %v765 = vpop.f32.mrf.mxu0
        %v766 = vadd.f32 %v717, %v765
        %767 = vmatmul.bf16.gmra.mxu0 %v442
        %v768 = vpop.f32.mrf.mxu0
        %v769 = vadd.f32 %v720, %v768
        %v770 = vpop.f32.mrf.mxu0
        %v771 = vadd.f32 %v722, %v770
        %772 = vmatmul.bf16.gmra.mxu0 %v444
        %v773 = vpop.f32.mrf.mxu0
        %v774 = vadd.f32 %v725, %v773
        %v775 = vpop.f32.mrf.mxu0
        %v776 = vadd.f32 %v727, %v775
        %777 = vmatmul.bf16.gmra.mxu0 %v446
        %v778 = vpop.f32.mrf.mxu0
        %v779 = vadd.f32 %v730, %v778
        %v780 = vpop.f32.mrf.mxu0
        %v781 = vadd.f32 %v732, %v780
        %782 = vmatmul.bf16.gmra.mxu0 %v448
        %v783 = vpop.f32.mrf.mxu0
        %v784 = vadd.f32 %v735, %v783
        %v785 = vpop.f32.mrf.mxu0
        %v786 = vadd.f32 %v737, %v785
        %787 = vmatmul.bf16.gmra.mxu0 %v450
        %v788 = vpop.f32.mrf.mxu0
        %v789 = vadd.f32 %v740, %v788
        %v790 = vpop.f32.mrf.mxu0
        %v791 = vadd.f32 %v742, %v790
        %792 = vmatmul.bf16.gmra.mxu0 %v472
        %v793 = vpop.f32.mrf.mxu0
        %v794 = vadd.f32 %v745, %v793
        %v795 = vpop.f32.mrf.mxu0
        %v796 = vadd.f32 %v747, %v795
        %797 = vdwg.mxu0
        %798 = vmatpush.bf16.msra.mxu0 %v651
        %799 = vmatpush.bf16.msra.mxu0 %v649
        %800 = vmatpush.bf16.msra.mxu0 %v647
        %801 = vmatpush.bf16.msra.mxu0 %v645
        %802 = vmatpush.bf16.msra.mxu0 %v643
        %803 = vmatpush.bf16.msra.mxu0 %v641
        %804 = vmatpush.bf16.msra.mxu0 %v639
        %805 = vmatpush.bf16.msra.mxu0 %v637
        %806 = vmatmul.bf16.gmra.mxu0 %v437
        %v807 = vpop.f32.mrf.mxu0
        %v808 = vadd.f32 0.0, %v807
        %v809 = vpop.f32.mrf.mxu0
        %v810 = vadd.f32 0.0, %v809
        %811 = vmatmul.bf16.gmra.mxu0 %v439
        %v812 = vpop.f32.mrf.mxu0
        %v813 = vadd.f32 0.0, %v812
        %v814 = vpop.f32.mrf.mxu0
        %v815 = vadd.f32 0.0, %v814
        %816 = vmatmul.bf16.gmra.mxu0 %v441
        %v817 = vpop.f32.mrf.mxu0
        %v818 = vadd.f32 0.0, %v817
        %v819 = vpop.f32.mrf.mxu0
        %v820 = vadd.f32 0.0, %v819
        %821 = vmatmul.bf16.gmra.mxu0 %v443
        %v822 = vpop.f32.mrf.mxu0
        %v823 = vadd.f32 0.0, %v822
        %v824 = vpop.f32.mrf.mxu0
        %v825 = vadd.f32 0.0, %v824
        %826 = vmatmul.bf16.gmra.mxu0 %v445
        %v827 = vpop.f32.mrf.mxu0
        %v828 = vadd.f32 0.0, %v827
        %v829 = vpop.f32.mrf.mxu0
        %v830 = vadd.f32 0.0, %v829
        %831 = vmatmul.bf16.gmra.mxu0 %v447
        %v832 = vpop.f32.mrf.mxu0
        %v833 = vadd.f32 0.0, %v832
        %v834 = vpop.f32.mrf.mxu0
        %v835 = vadd.f32 0.0, %v834
        %836 = vmatmul.bf16.gmra.mxu0 %v449
        %v837 = vpop.f32.mrf.mxu0
        %v838 = vadd.f32 0.0, %v837
        %v839 = vpop.f32.mrf.mxu0
        %v840 = vadd.f32 0.0, %v839
        %841 = vmatmul.bf16.gmra.mxu0 %v471
        %v842 = vpop.f32.mrf.mxu0
        %v843 = vadd.f32 0.0, %v842
        %v844 = vpop.f32.mrf.mxu0
        %v845 = vadd.f32 0.0, %v844
        %846 = vdwg.mxu0
        %847 = vmatpush.bf16.msra.mxu0 %v667
        %848 = vmatpush.bf16.msra.mxu0 %v665
        %849 = vmatpush.bf16.msra.mxu0 %v663
        %850 = vmatpush.bf16.msra.mxu0 %v661
        %851 = vmatpush.bf16.msra.mxu0 %v659
        %852 = vmatpush.bf16.msra.mxu0 %v657
        %853 = vmatpush.bf16.msra.mxu0 %v655
        %854 = vmatpush.bf16.msra.mxu0 %v653
        %855 = vmatmul.bf16.gmra.mxu0 %v438
        %v856 = vpop.f32.mrf.mxu0
        %v857 = vadd.f32 %v808, %v856
        %v858 = vpop.f32.mrf.mxu0
        %v859 = vadd.f32 %v810, %v858
        %860 = vmatmul.bf16.gmra.mxu0 %v440
        %v861 = vpop.f32.mrf.mxu0
        %v862 = vadd.f32 %v813, %v861
        %v863 = vpop.f32.mrf.mxu0
        %v864 = vadd.f32 %v815, %v863
        %865 = vmatmul.bf16.gmra.mxu0 %v442
        %v866 = vpop.f32.mrf.mxu0
        %v867 = vadd.f32 %v818, %v866
        %v868 = vpop.f32.mrf.mxu0
        %v869 = vadd.f32 %v820, %v868
        %870 = vmatmul.bf16.gmra.mxu0 %v444
        %v871 = vpop.f32.mrf.mxu0
        %v872 = vadd.f32 %v823, %v871
        %v873 = vpop.f32.mrf.mxu0
        %v874 = vadd.f32 %v825, %v873
        %875 = vmatmul.bf16.gmra.mxu0 %v446
        %v876 = vpop.f32.mrf.mxu0
        %v877 = vadd.f32 %v828, %v876
        %v878 = vpop.f32.mrf.mxu0
        %v879 = vadd.f32 %v830, %v878
        %880 = vmatmul.bf16.gmra.mxu0 %v448
        %v881 = vpop.f32.mrf.mxu0
        %v882 = vadd.f32 %v833, %v881
        %v883 = vpop.f32.mrf.mxu0
        %v884 = vadd.f32 %v835, %v883
        %885 = vmatmul.bf16.gmra.mxu0 %v450
        %v886 = vpop.f32.mrf.mxu0
        %v887 = vadd.f32 %v838, %v886
        %v888 = vpop.f32.mrf.mxu0
        %v889 = vadd.f32 %v840, %v888
        %890 = vmatmul.bf16.gmra.mxu0 %v472
        %v891 = vpop.f32.mrf.mxu0
        %v892 = vadd.f32 %v843, %v891
        %v893 = vpop.f32.mrf.mxu0
        %v894 = vadd.f32 %v845, %v893
        %895 = vdwg.mxu0
        %v928 = vunpack.c.l.b16 %v475
        %v929 = vunpack.c.h.b16 %v475
        %v930 = vunpack.c.l.b16 %v476
        %v931 = vunpack.c.h.b16 %v476
        %v932 = vunpack.c.l.b16 %v477
        %v933 = vunpack.c.h.b16 %v477
        %v934 = vunpack.c.l.b16 %v478
        %v935 = vunpack.c.h.b16 %v478
        %v936 = vunpack.c.l.b16 %v479
        %v937 = vunpack.c.h.b16 %v479
        %v938 = vunpack.c.l.b16 %v480
        %v939 = vunpack.c.h.b16 %v480
        %v940 = vunpack.c.l.b16 %v481
        %v941 = vunpack.c.h.b16 %v481
        %v942 = vunpack.c.l.b16 %v482
        %v943 = vunpack.c.h.b16 %v482
        %v944 = vunpack.c.l.b16 %v483
        %v945 = vunpack.c.h.b16 %v483
        %v946 = vunpack.c.l.b16 %v484
        %v947 = vunpack.c.h.b16 %v484
        %v948 = vunpack.c.l.b16 %v485
        %v949 = vunpack.c.h.b16 %v485
        %v950 = vunpack.c.l.b16 %v486
        %v951 = vunpack.c.h.b16 %v486
        %v952 = vunpack.c.l.b16 %v487
        %v953 = vunpack.c.h.b16 %v487
        %v954 = vunpack.c.l.b16 %v488
        %v955 = vunpack.c.h.b16 %v488
        %v956 = vunpack.c.l.b16 %v489
        %v957 = vunpack.c.h.b16 %v489
        %v958 = vunpack.c.l.b16 %v490
        %v959 = vunpack.c.h.b16 %v490
        %v960 = vunpack.c.l.b16 %v491
        %v961 = vunpack.c.h.b16 %v491
        %v962 = vunpack.c.l.b16 %v492
        %v963 = vunpack.c.h.b16 %v492
        %v964 = vunpack.c.l.b16 %v493
        %v965 = vunpack.c.h.b16 %v493
        %v966 = vunpack.c.l.b16 %v494
        %v967 = vunpack.c.h.b16 %v494
        %v968 = vunpack.c.l.b16 %v495
        %v969 = vunpack.c.h.b16 %v495
        %v970 = vunpack.c.l.b16 %v496
        %v971 = vunpack.c.h.b16 %v496
        %v972 = vunpack.c.l.b16 %v497
        %v973 = vunpack.c.h.b16 %v497
        %v974 = vunpack.c.l.b16 %v498
        %v975 = vunpack.c.h.b16 %v498
        %v976 = vunpack.c.l.b16 %v499
        %v977 = vunpack.c.h.b16 %v499
        %v978 = vunpack.c.l.b16 %v500
        %v979 = vunpack.c.h.b16 %v500
        %v980 = vunpack.c.l.b16 %v501
        %v981 = vunpack.c.h.b16 %v501
        %v982 = vunpack.c.l.b16 %v502
        %v983 = vunpack.c.h.b16 %v502
        %v984 = vunpack.c.l.b16 %v503
        %v985 = vunpack.c.h.b16 %v503
        %v986 = vunpack.c.l.b16 %v504
        %v987 = vunpack.c.h.b16 %v504
        %v988 = vunpack.c.l.b16 %v505
        %v989 = vunpack.c.h.b16 %v505
        %v990 = vunpack.c.l.b16 %v506
        %v991 = vunpack.c.h.b16 %v506
        %v992 = vpack.c.b16 %v930, %v928
        %v993 = vpack.c.b16 %v931, %v929
        %v994 = vpack.c.b16 %v934, %v932
        %v995 = vpack.c.b16 %v935, %v933
        %v996 = vpack.c.b16 %v938, %v936
        %v997 = vpack.c.b16 %v939, %v937
        %v998 = vpack.c.b16 %v942, %v940
        %v999 = vpack.c.b16 %v943, %v941
        %v1000 = vpack.c.b16 %v946, %v944
        %v1001 = vpack.c.b16 %v947, %v945
        %v1002 = vpack.c.b16 %v950, %v948
        %v1003 = vpack.c.b16 %v951, %v949
        %v1004 = vpack.c.b16 %v954, %v952
        %v1005 = vpack.c.b16 %v955, %v953
        %v1006 = vpack.c.b16 %v958, %v956
        %v1007 = vpack.c.b16 %v959, %v957
        %v1008 = vpack.c.b16 %v962, %v960
        %v1009 = vpack.c.b16 %v963, %v961
        %v1010 = vpack.c.b16 %v966, %v964
        %v1011 = vpack.c.b16 %v967, %v965
        %v1012 = vpack.c.b16 %v970, %v968
        %v1013 = vpack.c.b16 %v971, %v969
        %v1014 = vpack.c.b16 %v974, %v972
        %v1015 = vpack.c.b16 %v975, %v973
        %v1016 = vpack.c.b16 %v978, %v976
        %v1017 = vpack.c.b16 %v979, %v977
        %v1018 = vpack.c.b16 %v982, %v980
        %v1019 = vpack.c.b16 %v983, %v981
        %v1020 = vpack.c.b16 %v986, %v984
        %v1021 = vpack.c.b16 %v987, %v985
        %v1022 = vpack.c.b16 %v990, %v988
        %v1023 = vpack.c.b16 %v991, %v989
        %1056 = vmatpush.bf16.msra.mxu0 %v1006
        %1057 = vmatpush.bf16.msra.mxu0 %v1004
        %1058 = vmatpush.bf16.msra.mxu0 %v1002
        %1059 = vmatpush.bf16.msra.mxu0 %v1000
        %1060 = vmatpush.bf16.msra.mxu0 %v998
        %1061 = vmatpush.bf16.msra.mxu0 %v996
        %1062 = vmatpush.bf16.msra.mxu0 %v994
        %1063 = vmatpush.bf16.msra.mxu0 %v992
        %1064 = vmatmul.bf16.gmra.mxu0 0
        %v1065 = vpop.f32.mrf.mxu0
        %v1066 = vadd.f32 %v759, %v1065
        %v1067 = vpop.f32.mrf.mxu0
        %v1068 = vadd.f32 %v761, %v1067
        %1069 = vmatmul.bf16.gmra.mxu0 %v437
        %v1070 = vpop.f32.mrf.mxu0
        %v1071 = vadd.f32 %v764, %v1070
        %v1072 = vpop.f32.mrf.mxu0
        %v1073 = vadd.f32 %v766, %v1072
        %1074 = vmatmul.bf16.gmra.mxu0 %v439
        %v1075 = vpop.f32.mrf.mxu0
        %v1076 = vadd.f32 %v769, %v1075
        %v1077 = vpop.f32.mrf.mxu0
        %v1078 = vadd.f32 %v771, %v1077
        %1079 = vmatmul.bf16.gmra.mxu0 %v441
        %v1080 = vpop.f32.mrf.mxu0
        %v1081 = vadd.f32 %v774, %v1080
        %v1082 = vpop.f32.mrf.mxu0
        %v1083 = vadd.f32 %v776, %v1082
        %1084 = vmatmul.bf16.gmra.mxu0 %v443
        %v1085 = vpop.f32.mrf.mxu0
        %v1086 = vadd.f32 %v779, %v1085
        %v1087 = vpop.f32.mrf.mxu0
        %v1088 = vadd.f32 %v781, %v1087
        %1089 = vmatmul.bf16.gmra.mxu0 %v445
        %v1090 = vpop.f32.mrf.mxu0
        %v1091 = vadd.f32 %v784, %v1090
        %v1092 = vpop.f32.mrf.mxu0
        %v1093 = vadd.f32 %v786, %v1092
        %1094 = vmatmul.bf16.gmra.mxu0 %v447
        %v1095 = vpop.f32.mrf.mxu0
        %v1096 = vadd.f32 %v789, %v1095
        %v1097 = vpop.f32.mrf.mxu0
        %v1098 = vadd.f32 %v791, %v1097
        %1099 = vmatmul.bf16.gmra.mxu0 %v449
        %v1100 = vpop.f32.mrf.mxu0
        %v1101 = vadd.f32 %v794, %v1100
        %v1102 = vpop.f32.mrf.mxu0
        %v1103 = vadd.f32 %v796, %v1102
        %1104 = vdwg.mxu0
        %1105 = vmatpush.bf16.msra.mxu0 %v1022
        %1106 = vmatpush.bf16.msra.mxu0 %v1020
        %1107 = vmatpush.bf16.msra.mxu0 %v1018
        %1108 = vmatpush.bf16.msra.mxu0 %v1016
        %1109 = vmatpush.bf16.msra.mxu0 %v1014
        %1110 = vmatpush.bf16.msra.mxu0 %v1012
        %1111 = vmatpush.bf16.msra.mxu0 %v1010
        %1112 = vmatpush.bf16.msra.mxu0 %v1008
        %1113 = vmatmul.bf16.gmra.mxu0 0
        %v1114 = vpop.f32.mrf.mxu0
        %v1115 = vadd.f32 %v1066, %v1114
        %v1116 = vpop.f32.mrf.mxu0
        %v1117 = vadd.f32 %v1068, %v1116
        %1118 = vmatmul.bf16.gmra.mxu0 %v438
        %v1119 = vpop.f32.mrf.mxu0
        %v1120 = vadd.f32 %v1071, %v1119
        %v1121 = vpop.f32.mrf.mxu0
        %v1122 = vadd.f32 %v1073, %v1121
        %1123 = vmatmul.bf16.gmra.mxu0 %v440
        %v1124 = vpop.f32.mrf.mxu0
        %v1125 = vadd.f32 %v1076, %v1124
        %v1126 = vpop.f32.mrf.mxu0
        %v1127 = vadd.f32 %v1078, %v1126
        %1128 = vmatmul.bf16.gmra.mxu0 %v442
        %v1129 = vpop.f32.mrf.mxu0
        %v1130 = vadd.f32 %v1081, %v1129
        %v1131 = vpop.f32.mrf.mxu0
        %v1132 = vadd.f32 %v1083, %v1131
        %1133 = vmatmul.bf16.gmra.mxu0 %v444
        %v1134 = vpop.f32.mrf.mxu0
        %v1135 = vadd.f32 %v1086, %v1134
        %v1136 = vpop.f32.mrf.mxu0
        %v1137 = vadd.f32 %v1088, %v1136
        %1138 = vmatmul.bf16.gmra.mxu0 %v446
        %v1139 = vpop.f32.mrf.mxu0
        %v1140 = vadd.f32 %v1091, %v1139
        %v1141 = vpop.f32.mrf.mxu0
        %v1142 = vadd.f32 %v1093, %v1141
        %1143 = vmatmul.bf16.gmra.mxu0 %v448
        %v1144 = vpop.f32.mrf.mxu0
        %v1145 = vadd.f32 %v1096, %v1144
        %v1146 = vpop.f32.mrf.mxu0
        %v1147 = vadd.f32 %v1098, %v1146
        %1148 = vmatmul.bf16.gmra.mxu0 %v450
        %v1149 = vpop.f32.mrf.mxu0
        %v1150 = vadd.f32 %v1101, %v1149
        %v1151 = vpop.f32.mrf.mxu0
        %v1152 = vadd.f32 %v1103, %v1151
        %1153 = vdwg.mxu0
        %1154 = vmatpush.bf16.msra.mxu0 %v1007
        %1155 = vmatpush.bf16.msra.mxu0 %v1005
        %1156 = vmatpush.bf16.msra.mxu0 %v1003
        %1157 = vmatpush.bf16.msra.mxu0 %v1001
        %1158 = vmatpush.bf16.msra.mxu0 %v999
        %1159 = vmatpush.bf16.msra.mxu0 %v997
        %1160 = vmatpush.bf16.msra.mxu0 %v995
        %1161 = vmatpush.bf16.msra.mxu0 %v993
        %1162 = vmatmul.bf16.gmra.mxu0 0
        %v1163 = vpop.f32.mrf.mxu0
        %v1164 = vadd.f32 %v857, %v1163
        %v1165 = vpop.f32.mrf.mxu0
        %v1166 = vadd.f32 %v859, %v1165
        %1167 = vmatmul.bf16.gmra.mxu0 %v437
        %v1168 = vpop.f32.mrf.mxu0
        %v1169 = vadd.f32 %v862, %v1168
        %v1170 = vpop.f32.mrf.mxu0
        %v1171 = vadd.f32 %v864, %v1170
        %1172 = vmatmul.bf16.gmra.mxu0 %v439
        %v1173 = vpop.f32.mrf.mxu0
        %v1174 = vadd.f32 %v867, %v1173
        %v1175 = vpop.f32.mrf.mxu0
        %v1176 = vadd.f32 %v869, %v1175
        %1177 = vmatmul.bf16.gmra.mxu0 %v441
        %v1178 = vpop.f32.mrf.mxu0
        %v1179 = vadd.f32 %v872, %v1178
        %v1180 = vpop.f32.mrf.mxu0
        %v1181 = vadd.f32 %v874, %v1180
        %1182 = vmatmul.bf16.gmra.mxu0 %v443
        %v1183 = vpop.f32.mrf.mxu0
        %v1184 = vadd.f32 %v877, %v1183
        %v1185 = vpop.f32.mrf.mxu0
        %v1186 = vadd.f32 %v879, %v1185
        %1187 = vmatmul.bf16.gmra.mxu0 %v445
        %v1188 = vpop.f32.mrf.mxu0
        %v1189 = vadd.f32 %v882, %v1188
        %v1190 = vpop.f32.mrf.mxu0
        %v1191 = vadd.f32 %v884, %v1190
        %1192 = vmatmul.bf16.gmra.mxu0 %v447
        %v1193 = vpop.f32.mrf.mxu0
        %v1194 = vadd.f32 %v887, %v1193
        %v1195 = vpop.f32.mrf.mxu0
        %v1196 = vadd.f32 %v889, %v1195
        %1197 = vmatmul.bf16.gmra.mxu0 %v449
        %v1198 = vpop.f32.mrf.mxu0
        %v1199 = vadd.f32 %v892, %v1198
        %v1200 = vpop.f32.mrf.mxu0
        %v1201 = vadd.f32 %v894, %v1200
        %1202 = vdwg.mxu0
        %1203 = vmatpush.bf16.msra.mxu0 %v1023
        %1204 = vmatpush.bf16.msra.mxu0 %v1021
        %1205 = vmatpush.bf16.msra.mxu0 %v1019
        %1206 = vmatpush.bf16.msra.mxu0 %v1017
        %1207 = vmatpush.bf16.msra.mxu0 %v1015
        %1208 = vmatpush.bf16.msra.mxu0 %v1013
        %1209 = vmatpush.bf16.msra.mxu0 %v1011
        %1210 = vmatpush.bf16.msra.mxu0 %v1009
        %1211 = vmatmul.bf16.gmra.mxu0 0
        %v1212 = vpop.f32.mrf.mxu0
        %v1213 = vadd.f32 %v1164, %v1212
        %v1214 = vpop.f32.mrf.mxu0
        %v1215 = vadd.f32 %v1166, %v1214
        %1216 = vmatmul.bf16.gmra.mxu0 %v438
        %v1217 = vpop.f32.mrf.mxu0
        %v1218 = vadd.f32 %v1169, %v1217
        %v1219 = vpop.f32.mrf.mxu0
        %v1220 = vadd.f32 %v1171, %v1219
        %1221 = vmatmul.bf16.gmra.mxu0 %v440
        %v1222 = vpop.f32.mrf.mxu0
        %v1223 = vadd.f32 %v1174, %v1222
        %v1224 = vpop.f32.mrf.mxu0
        %v1225 = vadd.f32 %v1176, %v1224
        %1226 = vmatmul.bf16.gmra.mxu0 %v442
        %v1227 = vpop.f32.mrf.mxu0
        %v1228 = vadd.f32 %v1179, %v1227
        %v1229 = vpop.f32.mrf.mxu0
        %v1230 = vadd.f32 %v1181, %v1229
        %1231 = vmatmul.bf16.gmra.mxu0 %v444
        %v1232 = vpop.f32.mrf.mxu0
        %v1233 = vadd.f32 %v1184, %v1232
        %v1234 = vpop.f32.mrf.mxu0
        %v1235 = vadd.f32 %v1186, %v1234
        %1236 = vmatmul.bf16.gmra.mxu0 %v446
        %v1237 = vpop.f32.mrf.mxu0
        %v1238 = vadd.f32 %v1189, %v1237
        %v1239 = vpop.f32.mrf.mxu0
        %v1240 = vadd.f32 %v1191, %v1239
        %1241 = vmatmul.bf16.gmra.mxu0 %v448
        %v1242 = vpop.f32.mrf.mxu0
        %v1243 = vadd.f32 %v1194, %v1242
        %v1244 = vpop.f32.mrf.mxu0
        %v1245 = vadd.f32 %v1196, %v1244
        %1246 = vmatmul.bf16.gmra.mxu0 %v450
        %v1247 = vpop.f32.mrf.mxu0
        %v1248 = vadd.f32 %v1199, %v1247
        %v1249 = vpop.f32.mrf.mxu0
        %v1250 = vadd.f32 %v1201, %v1249
        %1251 = vdwg.mxu0
        %s1252 = scalar_lea.vmem %s1, 512
        %v1253 = vld [vmem:[%s1252] sm:$0xff]
        %v1254 = vld [vmem:[%s1252 + $0x8] sm:$0xff]
        %v1255 = vld [vmem:[%s1252 + $0x10] sm:$0xff]
        %v1256 = vld [vmem:[%s1252 + $0x18] sm:$0xff]
        %v1257 = vld [vmem:[%s1252 + $0x20] sm:$0xff]
        %v1258 = vld [vmem:[%s1252 + $0x28] sm:$0xff]
        %v1259 = vld [vmem:[%s1252 + $0x30] sm:$0xff]
        %v1260 = vld [vmem:[%s1252 + $0x38] sm:$0xff]
        %v1261 = vld [vmem:[%s1252 + $0x40] sm:$0xff]
        %v1262 = vld [vmem:[%s1252 + $0x48] sm:$0xff]
        %v1263 = vld [vmem:[%s1252 + $0x50] sm:$0xff]
        %v1264 = vld [vmem:[%s1252 + $0x58] sm:$0xff]
        %v1265 = vld [vmem:[%s1252 + $0x60] sm:$0xff]
        %v1266 = vld [vmem:[%s1252 + $0x68] sm:$0xff]
        %v1267 = vld [vmem:[%s1252 + $0x70] sm:$0xff]
        %v1268 = vld [vmem:[%s1252 + $0x78] sm:$0xff]
        %v1269 = vld [vmem:[%s1252 + $0x80] sm:$0xff]
        %v1270 = vld [vmem:[%s1252 + $0x88] sm:$0xff]
        %v1271 = vld [vmem:[%s1252 + $0x90] sm:$0xff]
        %v1272 = vld [vmem:[%s1252 + $0x98] sm:$0xff]
        %v1273 = vld [vmem:[%s1252 + $0xa0] sm:$0xff]
        %v1274 = vld [vmem:[%s1252 + $0xa8] sm:$0xff]
        %v1275 = vld [vmem:[%s1252 + $0xb0] sm:$0xff]
        %v1276 = vld [vmem:[%s1252 + $0xb8] sm:$0xff]
        %v1277 = vld [vmem:[%s1252 + $0xc0] sm:$0xff]
        %v1278 = vld [vmem:[%s1252 + $0xc8] sm:$0xff]
        %v1279 = vld [vmem:[%s1252 + $0xd0] sm:$0xff]
        %v1280 = vld [vmem:[%s1252 + $0xd8] sm:$0xff]
        %v1281 = vld [vmem:[%s1252 + $0xe0] sm:$0xff]
        %v1282 = vld [vmem:[%s1252 + $0xe8] sm:$0xff]
        %v1283 = vld [vmem:[%s1252 + $0xf0] sm:$0xff]
        %v1284 = vld [vmem:[%s1252 + $0xf8] sm:$0xff]
        %v1317 = vunpack.c.l.b16 %v1253
        %v1318 = vunpack.c.h.b16 %v1253
        %v1319 = vunpack.c.l.b16 %v1254
        %v1320 = vunpack.c.h.b16 %v1254
        %v1321 = vunpack.c.l.b16 %v1255
        %v1322 = vunpack.c.h.b16 %v1255
        %v1323 = vunpack.c.l.b16 %v1256
        %v1324 = vunpack.c.h.b16 %v1256
        %v1325 = vunpack.c.l.b16 %v1257
        %v1326 = vunpack.c.h.b16 %v1257
        %v1327 = vunpack.c.l.b16 %v1258
        %v1328 = vunpack.c.h.b16 %v1258
        %v1329 = vunpack.c.l.b16 %v1259
        %v1330 = vunpack.c.h.b16 %v1259
        %v1331 = vunpack.c.l.b16 %v1260
        %v1332 = vunpack.c.h.b16 %v1260
        %v1333 = vunpack.c.l.b16 %v1261
        %v1334 = vunpack.c.h.b16 %v1261
        %v1335 = vunpack.c.l.b16 %v1262
        %v1336 = vunpack.c.h.b16 %v1262
        %v1337 = vunpack.c.l.b16 %v1263
        %v1338 = vunpack.c.h.b16 %v1263
        %v1339 = vunpack.c.l.b16 %v1264
        %v1340 = vunpack.c.h.b16 %v1264
        %v1341 = vunpack.c.l.b16 %v1265
        %v1342 = vunpack.c.h.b16 %v1265
        %v1343 = vunpack.c.l.b16 %v1266
        %v1344 = vunpack.c.h.b16 %v1266
        %v1345 = vunpack.c.l.b16 %v1267
        %v1346 = vunpack.c.h.b16 %v1267
        %v1347 = vunpack.c.l.b16 %v1268
        %v1348 = vunpack.c.h.b16 %v1268
        %v1349 = vunpack.c.l.b16 %v1269
        %v1350 = vunpack.c.h.b16 %v1269
        %v1351 = vunpack.c.l.b16 %v1270
        %v1352 = vunpack.c.h.b16 %v1270
        %v1353 = vunpack.c.l.b16 %v1271
        %v1354 = vunpack.c.h.b16 %v1271
        %v1355 = vunpack.c.l.b16 %v1272
        %v1356 = vunpack.c.h.b16 %v1272
        %v1357 = vunpack.c.l.b16 %v1273
        %v1358 = vunpack.c.h.b16 %v1273
        %v1359 = vunpack.c.l.b16 %v1274
        %v1360 = vunpack.c.h.b16 %v1274
        %v1361 = vunpack.c.l.b16 %v1275
        %v1362 = vunpack.c.h.b16 %v1275
        %v1363 = vunpack.c.l.b16 %v1276
        %v1364 = vunpack.c.h.b16 %v1276
        %v1365 = vunpack.c.l.b16 %v1277
        %v1366 = vunpack.c.h.b16 %v1277
        %v1367 = vunpack.c.l.b16 %v1278
        %v1368 = vunpack.c.h.b16 %v1278
        %v1369 = vunpack.c.l.b16 %v1279
        %v1370 = vunpack.c.h.b16 %v1279
        %v1371 = vunpack.c.l.b16 %v1280
        %v1372 = vunpack.c.h.b16 %v1280
        %v1373 = vunpack.c.l.b16 %v1281
        %v1374 = vunpack.c.h.b16 %v1281
        %v1375 = vunpack.c.l.b16 %v1282
        %v1376 = vunpack.c.h.b16 %v1282
        %v1377 = vunpack.c.l.b16 %v1283
        %v1378 = vunpack.c.h.b16 %v1283
        %v1379 = vunpack.c.l.b16 %v1284
        %v1380 = vunpack.c.h.b16 %v1284
        %v1381 = vpack.c.b16 %v1319, %v1317
        %v1382 = vpack.c.b16 %v1320, %v1318
        %v1383 = vpack.c.b16 %v1323, %v1321
        %v1384 = vpack.c.b16 %v1324, %v1322
        %v1385 = vpack.c.b16 %v1327, %v1325
        %v1386 = vpack.c.b16 %v1328, %v1326
        %v1387 = vpack.c.b16 %v1331, %v1329
        %v1388 = vpack.c.b16 %v1332, %v1330
        %v1389 = vpack.c.b16 %v1335, %v1333
        %v1390 = vpack.c.b16 %v1336, %v1334
        %v1391 = vpack.c.b16 %v1339, %v1337
        %v1392 = vpack.c.b16 %v1340, %v1338
        %v1393 = vpack.c.b16 %v1343, %v1341
        %v1394 = vpack.c.b16 %v1344, %v1342
        %v1395 = vpack.c.b16 %v1347, %v1345
        %v1396 = vpack.c.b16 %v1348, %v1346
        %v1397 = vpack.c.b16 %v1351, %v1349
        %v1398 = vpack.c.b16 %v1352, %v1350
        %v1399 = vpack.c.b16 %v1355, %v1353
        %v1400 = vpack.c.b16 %v1356, %v1354
        %v1401 = vpack.c.b16 %v1359, %v1357
        %v1402 = vpack.c.b16 %v1360, %v1358
        %v1403 = vpack.c.b16 %v1363, %v1361
        %v1404 = vpack.c.b16 %v1364, %v1362
        %v1405 = vpack.c.b16 %v1367, %v1365
        %v1406 = vpack.c.b16 %v1368, %v1366
        %v1407 = vpack.c.b16 %v1371, %v1369
        %v1408 = vpack.c.b16 %v1372, %v1370
        %v1409 = vpack.c.b16 %v1375, %v1373
        %v1410 = vpack.c.b16 %v1376, %v1374
        %v1411 = vpack.c.b16 %v1379, %v1377
        %v1412 = vpack.c.b16 %v1380, %v1378
        %1445 = vmatpush.bf16.msra.mxu0 %v1395
        %1446 = vmatpush.bf16.msra.mxu0 %v1393
        %1447 = vmatpush.bf16.msra.mxu0 %v1391
        %1448 = vmatpush.bf16.msra.mxu0 %v1389
        %1449 = vmatpush.bf16.msra.mxu0 %v1387
        %1450 = vmatpush.bf16.msra.mxu0 %v1385
        %1451 = vmatpush.bf16.msra.mxu0 %v1383
        %1452 = vmatpush.bf16.msra.mxu0 %v1381
        %1453 = vmatmul.bf16.gmra.mxu0 %v439
        %v1454 = vpop.f32.mrf.mxu0
        %v1455 = vadd.f32 0.0, %v1454
        %v1456 = vpop.f32.mrf.mxu0
        %v1457 = vadd.f32 0.0, %v1456
        %1458 = vmatmul.bf16.gmra.mxu0 %v441
        %v1459 = vpop.f32.mrf.mxu0
        %v1460 = vadd.f32 0.0, %v1459
        %v1461 = vpop.f32.mrf.mxu0
        %v1462 = vadd.f32 0.0, %v1461
        %1463 = vmatmul.bf16.gmra.mxu0 %v443
        %v1464 = vpop.f32.mrf.mxu0
        %v1465 = vadd.f32 0.0, %v1464
        %v1466 = vpop.f32.mrf.mxu0
        %v1467 = vadd.f32 0.0, %v1466
        %1468 = vmatmul.bf16.gmra.mxu0 %v445
        %v1469 = vpop.f32.mrf.mxu0
        %v1470 = vadd.f32 0.0, %v1469
        %v1471 = vpop.f32.mrf.mxu0
        %v1472 = vadd.f32 0.0, %v1471
        %1473 = vmatmul.bf16.gmra.mxu0 %v447
        %v1474 = vpop.f32.mrf.mxu0
        %v1475 = vadd.f32 0.0, %v1474
        %v1476 = vpop.f32.mrf.mxu0
        %v1477 = vadd.f32 0.0, %v1476
        %1478 = vmatmul.bf16.gmra.mxu0 %v449
        %v1479 = vpop.f32.mrf.mxu0
        %v1480 = vadd.f32 0.0, %v1479
        %v1481 = vpop.f32.mrf.mxu0
        %v1482 = vadd.f32 0.0, %v1481
        %1483 = vmatmul.bf16.gmra.mxu0 %v471
        %v1484 = vpop.f32.mrf.mxu0
        %v1485 = vadd.f32 0.0, %v1484
        %v1486 = vpop.f32.mrf.mxu0
        %v1487 = vadd.f32 0.0, %v1486
        %1488 = vmatmul.bf16.gmra.mxu0 0
        %v1489 = vpop.f32.mrf.mxu0
        %v1490 = vadd.f32 0.0, %v1489
        %v1491 = vpop.f32.mrf.mxu0
        %v1492 = vadd.f32 0.0, %v1491
        %1493 = vdwg.mxu0
        %1494 = vmatpush.bf16.msra.mxu0 %v1411
        %1495 = vmatpush.bf16.msra.mxu0 %v1409
        %1496 = vmatpush.bf16.msra.mxu0 %v1407
        %1497 = vmatpush.bf16.msra.mxu0 %v1405
        %1498 = vmatpush.bf16.msra.mxu0 %v1403
        %1499 = vmatpush.bf16.msra.mxu0 %v1401
        %1500 = vmatpush.bf16.msra.mxu0 %v1399
        %1501 = vmatpush.bf16.msra.mxu0 %v1397
        %1502 = vmatmul.bf16.gmra.mxu0 %v440
        %v1503 = vpop.f32.mrf.mxu0
        %v1504 = vadd.f32 %v1455, %v1503
        %v1505 = vpop.f32.mrf.mxu0
        %v1506 = vadd.f32 %v1457, %v1505
        %1507 = vmatmul.bf16.gmra.mxu0 %v442
        %v1508 = vpop.f32.mrf.mxu0
        %v1509 = vadd.f32 %v1460, %v1508
        %v1510 = vpop.f32.mrf.mxu0
        %v1511 = vadd.f32 %v1462, %v1510
        %1512 = vmatmul.bf16.gmra.mxu0 %v444
        %v1513 = vpop.f32.mrf.mxu0
        %v1514 = vadd.f32 %v1465, %v1513
        %v1515 = vpop.f32.mrf.mxu0
        %v1516 = vadd.f32 %v1467, %v1515
        %1517 = vmatmul.bf16.gmra.mxu0 %v446
        %v1518 = vpop.f32.mrf.mxu0
        %v1519 = vadd.f32 %v1470, %v1518
        %v1520 = vpop.f32.mrf.mxu0
        %v1521 = vadd.f32 %v1472, %v1520
        %1522 = vmatmul.bf16.gmra.mxu0 %v448
        %v1523 = vpop.f32.mrf.mxu0
        %v1524 = vadd.f32 %v1475, %v1523
        %v1525 = vpop.f32.mrf.mxu0
        %v1526 = vadd.f32 %v1477, %v1525
        %1527 = vmatmul.bf16.gmra.mxu0 %v450
        %v1528 = vpop.f32.mrf.mxu0
        %v1529 = vadd.f32 %v1480, %v1528
        %v1530 = vpop.f32.mrf.mxu0
        %v1531 = vadd.f32 %v1482, %v1530
        %1532 = vmatmul.bf16.gmra.mxu0 %v472
        %v1533 = vpop.f32.mrf.mxu0
        %v1534 = vadd.f32 %v1485, %v1533
        %v1535 = vpop.f32.mrf.mxu0
        %v1536 = vadd.f32 %v1487, %v1535
        %1537 = vmatmul.bf16.gmra.mxu0 0
        %v1538 = vpop.f32.mrf.mxu0
        %v1539 = vadd.f32 %v1490, %v1538
        %v1540 = vpop.f32.mrf.mxu0
        %v1541 = vadd.f32 %v1492, %v1540
        %1542 = vdwg.mxu0
        %1543 = vmatpush.bf16.msra.mxu0 %v1396
        %1544 = vmatpush.bf16.msra.mxu0 %v1394
        %1545 = vmatpush.bf16.msra.mxu0 %v1392
        %1546 = vmatpush.bf16.msra.mxu0 %v1390
        %1547 = vmatpush.bf16.msra.mxu0 %v1388
        %1548 = vmatpush.bf16.msra.mxu0 %v1386
        %1549 = vmatpush.bf16.msra.mxu0 %v1384
        %1550 = vmatpush.bf16.msra.mxu0 %v1382
        %1551 = vmatmul.bf16.gmra.mxu0 %v439
        %v1552 = vpop.f32.mrf.mxu0
        %v1553 = vadd.f32 0.0, %v1552
        %v1554 = vpop.f32.mrf.mxu0
        %v1555 = vadd.f32 0.0, %v1554
        %1556 = vmatmul.bf16.gmra.mxu0 %v441
        %v1557 = vpop.f32.mrf.mxu0
        %v1558 = vadd.f32 0.0, %v1557
        %v1559 = vpop.f32.mrf.mxu0
        %v1560 = vadd.f32 0.0, %v1559
        %1561 = vmatmul.bf16.gmra.mxu0 %v443
        %v1562 = vpop.f32.mrf.mxu0
        %v1563 = vadd.f32 0.0, %v1562
        %v1564 = vpop.f32.mrf.mxu0
        %v1565 = vadd.f32 0.0, %v1564
        %1566 = vmatmul.bf16.gmra.mxu0 %v445
        %v1567 = vpop.f32.mrf.mxu0
        %v1568 = vadd.f32 0.0, %v1567
        %v1569 = vpop.f32.mrf.mxu0
        %v1570 = vadd.f32 0.0, %v1569
        %1571 = vmatmul.bf16.gmra.mxu0 %v447
        %v1572 = vpop.f32.mrf.mxu0
        %v1573 = vadd.f32 0.0, %v1572
        %v1574 = vpop.f32.mrf.mxu0
        %v1575 = vadd.f32 0.0, %v1574
        %1576 = vmatmul.bf16.gmra.mxu0 %v449
        %v1577 = vpop.f32.mrf.mxu0
        %v1578 = vadd.f32 0.0, %v1577
        %v1579 = vpop.f32.mrf.mxu0
        %v1580 = vadd.f32 0.0, %v1579
        %1581 = vmatmul.bf16.gmra.mxu0 %v471
        %v1582 = vpop.f32.mrf.mxu0
        %v1583 = vadd.f32 0.0, %v1582
        %v1584 = vpop.f32.mrf.mxu0
        %v1585 = vadd.f32 0.0, %v1584
        %1586 = vmatmul.bf16.gmra.mxu0 0
        %v1587 = vpop.f32.mrf.mxu0
        %v1588 = vadd.f32 0.0, %v1587
        %v1589 = vpop.f32.mrf.mxu0
        %v1590 = vadd.f32 0.0, %v1589
        %1591 = vdwg.mxu0
        %1592 = vmatpush.bf16.msra.mxu0 %v1412
        %1593 = vmatpush.bf16.msra.mxu0 %v1410
        %1594 = vmatpush.bf16.msra.mxu0 %v1408
        %1595 = vmatpush.bf16.msra.mxu0 %v1406
        %1596 = vmatpush.bf16.msra.mxu0 %v1404
        %1597 = vmatpush.bf16.msra.mxu0 %v1402
        %1598 = vmatpush.bf16.msra.mxu0 %v1400
        %1599 = vmatpush.bf16.msra.mxu0 %v1398
        %1600 = vmatmul.bf16.gmra.mxu0 %v440
        %v1601 = vpop.f32.mrf.mxu0
        %v1602 = vadd.f32 %v1553, %v1601
        %v1603 = vpop.f32.mrf.mxu0
        %v1604 = vadd.f32 %v1555, %v1603
        %1605 = vmatmul.bf16.gmra.mxu0 %v442
        %v1606 = vpop.f32.mrf.mxu0
        %v1607 = vadd.f32 %v1558, %v1606
        %v1608 = vpop.f32.mrf.mxu0
        %v1609 = vadd.f32 %v1560, %v1608
        %1610 = vmatmul.bf16.gmra.mxu0 %v444
        %v1611 = vpop.f32.mrf.mxu0
        %v1612 = vadd.f32 %v1563, %v1611
        %v1613 = vpop.f32.mrf.mxu0
        %v1614 = vadd.f32 %v1565, %v1613
        %1615 = vmatmul.bf16.gmra.mxu0 %v446
        %v1616 = vpop.f32.mrf.mxu0
        %v1617 = vadd.f32 %v1568, %v1616
        %v1618 = vpop.f32.mrf.mxu0
        %v1619 = vadd.f32 %v1570, %v1618
        %1620 = vmatmul.bf16.gmra.mxu0 %v448
        %v1621 = vpop.f32.mrf.mxu0
        %v1622 = vadd.f32 %v1573, %v1621
        %v1623 = vpop.f32.mrf.mxu0
        %v1624 = vadd.f32 %v1575, %v1623
        %1625 = vmatmul.bf16.gmra.mxu0 %v450
        %v1626 = vpop.f32.mrf.mxu0
        %v1627 = vadd.f32 %v1578, %v1626
        %v1628 = vpop.f32.mrf.mxu0
        %v1629 = vadd.f32 %v1580, %v1628
        %1630 = vmatmul.bf16.gmra.mxu0 %v472
        %v1631 = vpop.f32.mrf.mxu0
        %v1632 = vadd.f32 %v1583, %v1631
        %v1633 = vpop.f32.mrf.mxu0
        %v1634 = vadd.f32 %v1585, %v1633
        %1635 = vmatmul.bf16.gmra.mxu0 0
        %v1636 = vpop.f32.mrf.mxu0
        %v1637 = vadd.f32 %v1588, %v1636
        %v1638 = vpop.f32.mrf.mxu0
        %v1639 = vadd.f32 %v1590, %v1638
        %1640 = vdwg.mxu0
        %v1641 = vadd.f32 %v1115, %v1504
        %v1642 = vadd.f32 %v1213, %v1602
        %v1643 = vadd.f32 %v1117, %v1506
        %v1644 = vadd.f32 %v1215, %v1604
        %v1645 = vadd.f32 %v1120, %v1509
        %v1646 = vadd.f32 %v1218, %v1607
        %v1647 = vadd.f32 %v1122, %v1511
        %v1648 = vadd.f32 %v1220, %v1609
        %v1649 = vadd.f32 %v1125, %v1514
        %v1650 = vadd.f32 %v1223, %v1612
        %v1651 = vadd.f32 %v1127, %v1516
        %v1652 = vadd.f32 %v1225, %v1614
        %v1653 = vadd.f32 %v1130, %v1519
        %v1654 = vadd.f32 %v1228, %v1617
        %v1655 = vadd.f32 %v1132, %v1521
        %v1656 = vadd.f32 %v1230, %v1619
        %v1657 = vadd.f32 %v1135, %v1524
        %v1658 = vadd.f32 %v1233, %v1622
        %v1659 = vadd.f32 %v1137, %v1526
        %v1660 = vadd.f32 %v1235, %v1624
        %v1661 = vadd.f32 %v1140, %v1529
        %v1662 = vadd.f32 %v1238, %v1627
        %v1663 = vadd.f32 %v1142, %v1531
        %v1664 = vadd.f32 %v1240, %v1629
        %v1665 = vadd.f32 %v1145, %v1534
        %v1666 = vadd.f32 %v1243, %v1632
        %v1667 = vadd.f32 %v1147, %v1536
        %v1668 = vadd.f32 %v1245, %v1634
        %v1669 = vadd.f32 %v1150, %v1539
        %v1670 = vadd.f32 %v1248, %v1637
        %v1671 = vadd.f32 %v1152, %v1541
        %v1672 = vadd.f32 %v1250, %v1639
        %v1673 = vld [vmem:[%s2] sm:$0x3]
        %v1675 = vperm.slane %v1673, 0
        %v1676 = vperm.slane %v1673, 1
        %v1679 = vadd.f32 %v1641, %v1675
        %v1680 = vadd.f32 %v1642, %v1676
        %v1681 = vadd.f32 %v1643, %v1675
        %v1682 = vadd.f32 %v1644, %v1676
        %v1683 = vadd.f32 %v1645, %v1675
        %v1684 = vadd.f32 %v1646, %v1676
        %v1685 = vadd.f32 %v1647, %v1675
        %v1686 = vadd.f32 %v1648, %v1676
        %v1687 = vadd.f32 %v1649, %v1675
        %v1688 = vadd.f32 %v1650, %v1676
        %v1689 = vadd.f32 %v1651, %v1675
        %v1690 = vadd.f32 %v1652, %v1676
        %v1691 = vadd.f32 %v1653, %v1675
        %v1692 = vadd.f32 %v1654, %v1676
        %v1693 = vadd.f32 %v1655, %v1675
        %v1694 = vadd.f32 %v1656, %v1676
        %v1695 = vadd.f32 %v1657, %v1675
        %v1696 = vadd.f32 %v1658, %v1676
        %v1697 = vadd.f32 %v1659, %v1675
        %v1698 = vadd.f32 %v1660, %v1676
        %v1699 = vadd.f32 %v1661, %v1675
        %v1700 = vadd.f32 %v1662, %v1676
        %v1701 = vadd.f32 %v1663, %v1675
        %v1702 = vadd.f32 %v1664, %v1676
        %v1703 = vadd.f32 %v1665, %v1675
        %v1704 = vadd.f32 %v1666, %v1676
        %v1705 = vadd.f32 %v1667, %v1675
        %v1706 = vadd.f32 %v1668, %v1676
        %v1707 = vadd.f32 %v1669, %v1675
        %v1708 = vadd.f32 %v1670, %v1676
        %v1709 = vadd.f32 %v1671, %v1675
        %v1710 = vadd.f32 %v1672, %v1676
        %v1711 = vmax.f32 %v1679, 0.0
        %v1712 = vmax.f32 %v1680, 0.0
        %v1713 = vmax.f32 %v1681, 0.0
        %v1714 = vmax.f32 %v1682, 0.0
        %v1715 = vmax.f32 %v1683, 0.0
        %v1716 = vmax.f32 %v1684, 0.0
        %v1717 = vmax.f32 %v1685, 0.0
        %v1718 = vmax.f32 %v1686, 0.0
        %v1719 = vmax.f32 %v1687, 0.0
        %v1720 = vmax.f32 %v1688, 0.0
        %v1721 = vmax.f32 %v1689, 0.0
        %v1722 = vmax.f32 %v1690, 0.0
        %v1723 = vmax.f32 %v1691, 0.0
        %v1724 = vmax.f32 %v1692, 0.0
        %v1725 = vmax.f32 %v1693, 0.0
        %v1726 = vmax.f32 %v1694, 0.0
        %v1727 = vmax.f32 %v1695, 0.0
        %v1728 = vmax.f32 %v1696, 0.0
        %v1729 = vmax.f32 %v1697, 0.0
        %v1730 = vmax.f32 %v1698, 0.0
        %v1731 = vmax.f32 %v1699, 0.0
        %v1732 = vmax.f32 %v1700, 0.0
        %v1733 = vmax.f32 %v1701, 0.0
        %v1734 = vmax.f32 %v1702, 0.0
        %v1735 = vmax.f32 %v1703, 0.0
        %v1736 = vmax.f32 %v1704, 0.0
        %v1737 = vmax.f32 %v1705, 0.0
        %v1738 = vmax.f32 %v1706, 0.0
        %v1739 = vmax.f32 %v1707, 0.0
        %v1740 = vmax.f32 %v1708, 0.0
        %v1741 = vmax.f32 %v1709, 0.0
        %v1742 = vmax.f32 %v1710, 0.0
        %v1743 = vpack.c.bf16 %v1712, %v1711
        %v1744 = vpack.c.bf16 %v1714, %v1713
        %v1745 = vpack.c.bf16 %v1716, %v1715
        %v1746 = vpack.c.bf16 %v1718, %v1717
        %v1747 = vpack.c.bf16 %v1720, %v1719
        %v1748 = vpack.c.bf16 %v1722, %v1721
        %v1749 = vpack.c.bf16 %v1724, %v1723
        %v1750 = vpack.c.bf16 %v1726, %v1725
        %v1751 = vpack.c.bf16 %v1728, %v1727
        %v1752 = vpack.c.bf16 %v1730, %v1729
        %v1753 = vpack.c.bf16 %v1732, %v1731
        %v1754 = vpack.c.bf16 %v1734, %v1733
        %v1755 = vpack.c.bf16 %v1736, %v1735
        %v1756 = vpack.c.bf16 %v1738, %v1737
        %v1757 = vpack.c.bf16 %v1740, %v1739
        %v1758 = vpack.c.bf16 %v1742, %v1741
        %v1773 = vunpack.c.l.b16 %v1743
        %v1774 = vunpack.c.h.b16 %v1743
        %v1775 = vunpack.c.l.b16 %v1744
        %v1776 = vunpack.c.h.b16 %v1744
        %v1777 = vunpack.c.l.b16 %v1745
        %v1778 = vunpack.c.h.b16 %v1745
        %v1779 = vunpack.c.l.b16 %v1746
        %v1780 = vunpack.c.h.b16 %v1746
        %v1781 = vunpack.c.l.b16 %v1747
        %v1782 = vunpack.c.h.b16 %v1747
        %v1783 = vunpack.c.l.b16 %v1748
        %v1784 = vunpack.c.h.b16 %v1748
        %v1785 = vunpack.c.l.b16 %v1749
        %v1786 = vunpack.c.h.b16 %v1749
        %v1787 = vunpack.c.l.b16 %v1750
        %v1788 = vunpack.c.h.b16 %v1750
        %v1789 = vunpack.c.l.b16 %v1751
        %v1790 = vunpack.c.h.b16 %v1751
        %v1791 = vunpack.c.l.b16 %v1752
        %v1792 = vunpack.c.h.b16 %v1752
        %v1793 = vunpack.c.l.b16 %v1753
        %v1794 = vunpack.c.h.b16 %v1753
        %v1795 = vunpack.c.l.b16 %v1754
        %v1796 = vunpack.c.h.b16 %v1754
        %v1797 = vunpack.c.l.b16 %v1755
        %v1798 = vunpack.c.h.b16 %v1755
        %v1799 = vunpack.c.l.b16 %v1756
        %v1800 = vunpack.c.h.b16 %v1756
        %v1801 = vpack.c.b16 %v1775, %v1773
        %v1802 = vpack.c.b16 %v1776, %v1774
        %v1803 = vpack.c.b16 %v1779, %v1777
        %v1804 = vpack.c.b16 %v1780, %v1778
        %v1805 = vpack.c.b16 %v1783, %v1781
        %v1806 = vpack.c.b16 %v1784, %v1782
        %v1807 = vpack.c.b16 %v1787, %v1785
        %v1808 = vpack.c.b16 %v1788, %v1786
        %v1809 = vpack.c.b16 %v1791, %v1789
        %v1810 = vpack.c.b16 %v1792, %v1790
        %v1811 = vpack.c.b16 %v1795, %v1793
        %v1812 = vpack.c.b16 %v1796, %v1794
        %v1813 = vpack.c.b16 %v1799, %v1797
        %v1814 = vpack.c.b16 %v1800, %v1798
        %v1831 = vunpack.c.l.b16 %v1757
        %v1832 = vunpack.c.h.b16 %v1757
        %v1833 = vunpack.c.l.b16 %v1758
        %v1834 = vunpack.c.h.b16 %v1758
        %v1835 = vpack.c.b16 %v1833, %v1831
        %v1836 = vpack.c.b16 %v1834, %v1832
        %s1839 = scalar_lea.vmem %s1, 768
        %v1840 = vld [vmem:[%s1839] sm:$0xff]
        %v1841 = vld [vmem:[%s1839 + $0x8] sm:$0xff]
        %v1842 = vld [vmem:[%s1839 + $0x10] sm:$0xff]
        %v1843 = vld [vmem:[%s1839 + $0x18] sm:$0xff]
        %v1844 = vld [vmem:[%s1839 + $0x20] sm:$0xff]
        %v1845 = vld [vmem:[%s1839 + $0x28] sm:$0xff]
        %v1846 = vld [vmem:[%s1839 + $0x30] sm:$0xff]
        %v1847 = vld [vmem:[%s1839 + $0x38] sm:$0xff]
        %v1848 = vld [vmem:[%s1839 + $0x40] sm:$0xff]
        %v1849 = vld [vmem:[%s1839 + $0x48] sm:$0xff]
        %v1850 = vld [vmem:[%s1839 + $0x50] sm:$0xff]
        %v1851 = vld [vmem:[%s1839 + $0x58] sm:$0xff]
        %v1852 = vld [vmem:[%s1839 + $0x60] sm:$0xff]
        %v1853 = vld [vmem:[%s1839 + $0x68] sm:$0xff]
        %v1854 = vld [vmem:[%s1839 + $0x70] sm:$0xff]
        %v1855 = vld [vmem:[%s1839 + $0x78] sm:$0xff]
        %v1856 = vld [vmem:[%s1839 + $0x80] sm:$0xff]
        %v1857 = vld [vmem:[%s1839 + $0x88] sm:$0xff]
        %v1858 = vld [vmem:[%s1839 + $0x90] sm:$0xff]
        %v1859 = vld [vmem:[%s1839 + $0x98] sm:$0xff]
        %v1860 = vld [vmem:[%s1839 + $0xa0] sm:$0xff]
        %v1861 = vld [vmem:[%s1839 + $0xa8] sm:$0xff]
        %v1862 = vld [vmem:[%s1839 + $0xb0] sm:$0xff]
        %v1863 = vld [vmem:[%s1839 + $0xb8] sm:$0xff]
        %v1864 = vld [vmem:[%s1839 + $0xc0] sm:$0xff]
        %v1865 = vld [vmem:[%s1839 + $0xc8] sm:$0xff]
        %v1866 = vld [vmem:[%s1839 + $0xd0] sm:$0xff]
        %v1867 = vld [vmem:[%s1839 + $0xd8] sm:$0xff]
        %v1868 = vld [vmem:[%s1839 + $0xe0] sm:$0xff]
        %v1869 = vld [vmem:[%s1839 + $0xe8] sm:$0xff]
        %v1870 = vld [vmem:[%s1839 + $0xf0] sm:$0xff]
        %v1871 = vld [vmem:[%s1839 + $0xf8] sm:$0xff]
        %s1872 = scalar_lea.vmem %s1, 1024
        %v1873 = vld [vmem:[%s1872] sm:$0xff]
        %v1874 = vld [vmem:[%s1872 + $0x8] sm:$0xff]
        %v1875 = vld [vmem:[%s1872 + $0x10] sm:$0xff]
        %v1876 = vld [vmem:[%s1872 + $0x18] sm:$0xff]
        %v1877 = vld [vmem:[%s1872 + $0x20] sm:$0xff]
        %v1878 = vld [vmem:[%s1872 + $0x28] sm:$0xff]
        %v1879 = vld [vmem:[%s1872 + $0x30] sm:$0xff]
        %v1880 = vld [vmem:[%s1872 + $0x38] sm:$0xff]
        %v1881 = vld [vmem:[%s1872 + $0x40] sm:$0xff]
        %v1882 = vld [vmem:[%s1872 + $0x48] sm:$0xff]
        %v1883 = vld [vmem:[%s1872 + $0x50] sm:$0xff]
        %v1884 = vld [vmem:[%s1872 + $0x58] sm:$0xff]
        %v1885 = vld [vmem:[%s1872 + $0x60] sm:$0xff]
        %v1886 = vld [vmem:[%s1872 + $0x68] sm:$0xff]
        %v1887 = vld [vmem:[%s1872 + $0x70] sm:$0xff]
        %v1888 = vld [vmem:[%s1872 + $0x78] sm:$0xff]
        %v1889 = vld [vmem:[%s1872 + $0x80] sm:$0xff]
        %v1890 = vld [vmem:[%s1872 + $0x88] sm:$0xff]
        %v1891 = vld [vmem:[%s1872 + $0x90] sm:$0xff]
        %v1892 = vld [vmem:[%s1872 + $0x98] sm:$0xff]
        %v1893 = vld [vmem:[%s1872 + $0xa0] sm:$0xff]
        %v1894 = vld [vmem:[%s1872 + $0xa8] sm:$0xff]
        %v1895 = vld [vmem:[%s1872 + $0xb0] sm:$0xff]
        %v1896 = vld [vmem:[%s1872 + $0xb8] sm:$0xff]
        %v1897 = vld [vmem:[%s1872 + $0xc0] sm:$0xff]
        %v1898 = vld [vmem:[%s1872 + $0xc8] sm:$0xff]
        %v1899 = vld [vmem:[%s1872 + $0xd0] sm:$0xff]
        %v1900 = vld [vmem:[%s1872 + $0xd8] sm:$0xff]
        %v1901 = vld [vmem:[%s1872 + $0xe0] sm:$0xff]
        %v1902 = vld [vmem:[%s1872 + $0xe8] sm:$0xff]
        %v1903 = vld [vmem:[%s1872 + $0xf0] sm:$0xff]
        %v1904 = vld [vmem:[%s1872 + $0xf8] sm:$0xff]
        %v1937 = vunpack.c.l.b16 %v1873
        %v1938 = vunpack.c.h.b16 %v1873
        %v1939 = vunpack.c.l.b16 %v1874
        %v1940 = vunpack.c.h.b16 %v1874
        %v1941 = vunpack.c.l.b16 %v1875
        %v1942 = vunpack.c.h.b16 %v1875
        %v1943 = vunpack.c.l.b16 %v1876
        %v1944 = vunpack.c.h.b16 %v1876
        %v1945 = vunpack.c.l.b16 %v1877
        %v1946 = vunpack.c.h.b16 %v1877
        %v1947 = vunpack.c.l.b16 %v1878
        %v1948 = vunpack.c.h.b16 %v1878
        %v1949 = vunpack.c.l.b16 %v1879
        %v1950 = vunpack.c.h.b16 %v1879
        %v1951 = vunpack.c.l.b16 %v1880
        %v1952 = vunpack.c.h.b16 %v1880
        %v1953 = vunpack.c.l.b16 %v1881
        %v1954 = vunpack.c.h.b16 %v1881
        %v1955 = vunpack.c.l.b16 %v1882
        %v1956 = vunpack.c.h.b16 %v1882
        %v1957 = vunpack.c.l.b16 %v1883
        %v1958 = vunpack.c.h.b16 %v1883
        %v1959 = vunpack.c.l.b16 %v1884
        %v1960 = vunpack.c.h.b16 %v1884
        %v1961 = vunpack.c.l.b16 %v1885
        %v1962 = vunpack.c.h.b16 %v1885
        %v1963 = vunpack.c.l.b16 %v1886
        %v1964 = vunpack.c.h.b16 %v1886
        %v1965 = vunpack.c.l.b16 %v1887
        %v1966 = vunpack.c.h.b16 %v1887
        %v1967 = vunpack.c.l.b16 %v1888
        %v1968 = vunpack.c.h.b16 %v1888
        %v1969 = vunpack.c.l.b16 %v1889
        %v1970 = vunpack.c.h.b16 %v1889
        %v1971 = vunpack.c.l.b16 %v1890
        %v1972 = vunpack.c.h.b16 %v1890
        %v1973 = vunpack.c.l.b16 %v1891
        %v1974 = vunpack.c.h.b16 %v1891
        %v1975 = vunpack.c.l.b16 %v1892
        %v1976 = vunpack.c.h.b16 %v1892
        %v1977 = vunpack.c.l.b16 %v1893
        %v1978 = vunpack.c.h.b16 %v1893
        %v1979 = vunpack.c.l.b16 %v1894
        %v1980 = vunpack.c.h.b16 %v1894
        %v1981 = vunpack.c.l.b16 %v1895
        %v1982 = vunpack.c.h.b16 %v1895
        %v1983 = vunpack.c.l.b16 %v1896
        %v1984 = vunpack.c.h.b16 %v1896
        %v1985 = vunpack.c.l.b16 %v1897
        %v1986 = vunpack.c.h.b16 %v1897
        %v1987 = vunpack.c.l.b16 %v1898
        %v1988 = vunpack.c.h.b16 %v1898
        %v1989 = vunpack.c.l.b16 %v1899
        %v1990 = vunpack.c.h.b16 %v1899
        %v1991 = vunpack.c.l.b16 %v1900
        %v1992 = vunpack.c.h.b16 %v1900
        %v1993 = vunpack.c.l.b16 %v1901
        %v1994 = vunpack.c.h.b16 %v1901
        %v1995 = vunpack.c.l.b16 %v1902
        %v1996 = vunpack.c.h.b16 %v1902
        %v1997 = vunpack.c.l.b16 %v1903
        %v1998 = vunpack.c.h.b16 %v1903
        %v1999 = vunpack.c.l.b16 %v1904
        %v2000 = vunpack.c.h.b16 %v1904
        %v2001 = vpack.c.b16 %v1939, %v1937
        %v2002 = vpack.c.b16 %v1940, %v1938
        %v2003 = vpack.c.b16 %v1943, %v1941
        %v2004 = vpack.c.b16 %v1944, %v1942
        %v2005 = vpack.c.b16 %v1947, %v1945
        %v2006 = vpack.c.b16 %v1948, %v1946
        %v2007 = vpack.c.b16 %v1951, %v1949
        %v2008 = vpack.c.b16 %v1952, %v1950
        %v2009 = vpack.c.b16 %v1955, %v1953
        %v2010 = vpack.c.b16 %v1956, %v1954
        %v2011 = vpack.c.b16 %v1959, %v1957
        %v2012 = vpack.c.b16 %v1960, %v1958
        %v2013 = vpack.c.b16 %v1963, %v1961
        %v2014 = vpack.c.b16 %v1964, %v1962
        %v2015 = vpack.c.b16 %v1967, %v1965
        %v2016 = vpack.c.b16 %v1968, %v1966
        %v2017 = vpack.c.b16 %v1971, %v1969
        %v2018 = vpack.c.b16 %v1972, %v1970
        %v2019 = vpack.c.b16 %v1975, %v1973
        %v2020 = vpack.c.b16 %v1976, %v1974
        %v2021 = vpack.c.b16 %v1979, %v1977
        %v2022 = vpack.c.b16 %v1980, %v1978
        %v2023 = vpack.c.b16 %v1983, %v1981
        %v2024 = vpack.c.b16 %v1984, %v1982
        %v2025 = vpack.c.b16 %v1987, %v1985
        %v2026 = vpack.c.b16 %v1988, %v1986
        %v2027 = vpack.c.b16 %v1991, %v1989
        %v2028 = vpack.c.b16 %v1992, %v1990
        %v2029 = vpack.c.b16 %v1995, %v1993
        %v2030 = vpack.c.b16 %v1996, %v1994
        %v2031 = vpack.c.b16 %v1999, %v1997
        %v2032 = vpack.c.b16 %v2000, %v1998
        %2065 = vmatpush.bf16.msra.mxu0 %v2015
        %2066 = vmatpush.bf16.msra.mxu0 %v2013
        %2067 = vmatpush.bf16.msra.mxu0 %v2011
        %2068 = vmatpush.bf16.msra.mxu0 %v2009
        %2069 = vmatpush.bf16.msra.mxu0 %v2007
        %2070 = vmatpush.bf16.msra.mxu0 %v2005
        %2071 = vmatpush.bf16.msra.mxu0 %v2003
        %2072 = vmatpush.bf16.msra.mxu0 %v2001
        %2073 = vmatmul.bf16.gmra.mxu0 %v1801
        %v2074 = vpop.f32.mrf.mxu0
        %v2075 = vadd.f32 0.0, %v2074
        %v2076 = vpop.f32.mrf.mxu0
        %v2077 = vadd.f32 0.0, %v2076
        %2078 = vmatmul.bf16.gmra.mxu0 %v1803
        %v2079 = vpop.f32.mrf.mxu0
        %v2080 = vadd.f32 0.0, %v2079
        %v2081 = vpop.f32.mrf.mxu0
        %v2082 = vadd.f32 0.0, %v2081
        %2083 = vmatmul.bf16.gmra.mxu0 %v1805
        %v2084 = vpop.f32.mrf.mxu0
        %v2085 = vadd.f32 0.0, %v2084
        %v2086 = vpop.f32.mrf.mxu0
        %v2087 = vadd.f32 0.0, %v2086
        %2088 = vmatmul.bf16.gmra.mxu0 %v1807
        %v2089 = vpop.f32.mrf.mxu0
        %v2090 = vadd.f32 0.0, %v2089
        %v2091 = vpop.f32.mrf.mxu0
        %v2092 = vadd.f32 0.0, %v2091
        %2093 = vmatmul.bf16.gmra.mxu0 %v1809
        %v2094 = vpop.f32.mrf.mxu0
        %v2095 = vadd.f32 0.0, %v2094
        %v2096 = vpop.f32.mrf.mxu0
        %v2097 = vadd.f32 0.0, %v2096
        %2098 = vmatmul.bf16.gmra.mxu0 %v1811
        %v2099 = vpop.f32.mrf.mxu0
        %v2100 = vadd.f32 0.0, %v2099
        %v2101 = vpop.f32.mrf.mxu0
        %v2102 = vadd.f32 0.0, %v2101
        %2103 = vmatmul.bf16.gmra.mxu0 %v1813
        %v2104 = vpop.f32.mrf.mxu0
        %v2105 = vadd.f32 0.0, %v2104
        %v2106 = vpop.f32.mrf.mxu0
        %v2107 = vadd.f32 0.0, %v2106
        %2108 = vmatmul.bf16.gmra.mxu0 %v1835
        %v2109 = vpop.f32.mrf.mxu0
        %v2110 = vadd.f32 0.0, %v2109
        %v2111 = vpop.f32.mrf.mxu0
        %v2112 = vadd.f32 0.0, %v2111
        %2113 = vdwg.mxu0
        %2114 = vmatpush.bf16.msra.mxu0 %v2031
        %2115 = vmatpush.bf16.msra.mxu0 %v2029
        %2116 = vmatpush.bf16.msra.mxu0 %v2027
        %2117 = vmatpush.bf16.msra.mxu0 %v2025
        %2118 = vmatpush.bf16.msra.mxu0 %v2023
        %2119 = vmatpush.bf16.msra.mxu0 %v2021
        %2120 = vmatpush.bf16.msra.mxu0 %v2019
        %2121 = vmatpush.bf16.msra.mxu0 %v2017
        %2122 = vmatmul.bf16.gmra.mxu0 %v1802
        %v2123 = vpop.f32.mrf.mxu0
        %v2124 = vadd.f32 %v2075, %v2123
        %v2125 = vpop.f32.mrf.mxu0
        %v2126 = vadd.f32 %v2077, %v2125
        %2127 = vmatmul.bf16.gmra.mxu0 %v1804
        %v2128 = vpop.f32.mrf.mxu0
        %v2129 = vadd.f32 %v2080, %v2128
        %v2130 = vpop.f32.mrf.mxu0
        %v2131 = vadd.f32 %v2082, %v2130
        %2132 = vmatmul.bf16.gmra.mxu0 %v1806
        %v2133 = vpop.f32.mrf.mxu0
        %v2134 = vadd.f32 %v2085, %v2133
        %v2135 = vpop.f32.mrf.mxu0
        %v2136 = vadd.f32 %v2087, %v2135
        %2137 = vmatmul.bf16.gmra.mxu0 %v1808
        %v2138 = vpop.f32.mrf.mxu0
        %v2139 = vadd.f32 %v2090, %v2138
        %v2140 = vpop.f32.mrf.mxu0
        %v2141 = vadd.f32 %v2092, %v2140
        %2142 = vmatmul.bf16.gmra.mxu0 %v1810
        %v2143 = vpop.f32.mrf.mxu0
        %v2144 = vadd.f32 %v2095, %v2143
        %v2145 = vpop.f32.mrf.mxu0
        %v2146 = vadd.f32 %v2097, %v2145
        %2147 = vmatmul.bf16.gmra.mxu0 %v1812
        %v2148 = vpop.f32.mrf.mxu0
        %v2149 = vadd.f32 %v2100, %v2148
        %v2150 = vpop.f32.mrf.mxu0
        %v2151 = vadd.f32 %v2102, %v2150
        %2152 = vmatmul.bf16.gmra.mxu0 %v1814
        %v2153 = vpop.f32.mrf.mxu0
        %v2154 = vadd.f32 %v2105, %v2153
        %v2155 = vpop.f32.mrf.mxu0
        %v2156 = vadd.f32 %v2107, %v2155
        %2157 = vmatmul.bf16.gmra.mxu0 %v1836
        %v2158 = vpop.f32.mrf.mxu0
        %v2159 = vadd.f32 %v2110, %v2158
        %v2160 = vpop.f32.mrf.mxu0
        %v2161 = vadd.f32 %v2112, %v2160
        %2162 = vdwg.mxu0
        %2163 = vmatpush.bf16.msra.mxu0 %v2016
        %2164 = vmatpush.bf16.msra.mxu0 %v2014
        %2165 = vmatpush.bf16.msra.mxu0 %v2012
        %2166 = vmatpush.bf16.msra.mxu0 %v2010
        %2167 = vmatpush.bf16.msra.mxu0 %v2008
        %2168 = vmatpush.bf16.msra.mxu0 %v2006
        %2169 = vmatpush.bf16.msra.mxu0 %v2004
        %2170 = vmatpush.bf16.msra.mxu0 %v2002
        %2171 = vmatmul.bf16.gmra.mxu0 %v1801
        %v2172 = vpop.f32.mrf.mxu0
        %v2173 = vadd.f32 0.0, %v2172
        %v2174 = vpop.f32.mrf.mxu0
        %v2175 = vadd.f32 0.0, %v2174
        %2176 = vmatmul.bf16.gmra.mxu0 %v1803
        %v2177 = vpop.f32.mrf.mxu0
        %v2178 = vadd.f32 0.0, %v2177
        %v2179 = vpop.f32.mrf.mxu0
        %v2180 = vadd.f32 0.0, %v2179
        %2181 = vmatmul.bf16.gmra.mxu0 %v1805
        %v2182 = vpop.f32.mrf.mxu0
        %v2183 = vadd.f32 0.0, %v2182
        %v2184 = vpop.f32.mrf.mxu0
        %v2185 = vadd.f32 0.0, %v2184
        %2186 = vmatmul.bf16.gmra.mxu0 %v1807
        %v2187 = vpop.f32.mrf.mxu0
        %v2188 = vadd.f32 0.0, %v2187
        %v2189 = vpop.f32.mrf.mxu0
        %v2190 = vadd.f32 0.0, %v2189
        %2191 = vmatmul.bf16.gmra.mxu0 %v1809
        %v2192 = vpop.f32.mrf.mxu0
        %v2193 = vadd.f32 0.0, %v2192
        %v2194 = vpop.f32.mrf.mxu0
        %v2195 = vadd.f32 0.0, %v2194
        %2196 = vmatmul.bf16.gmra.mxu0 %v1811
        %v2197 = vpop.f32.mrf.mxu0
        %v2198 = vadd.f32 0.0, %v2197
        %v2199 = vpop.f32.mrf.mxu0
        %v2200 = vadd.f32 0.0, %v2199
        %2201 = vmatmul.bf16.gmra.mxu0 %v1813
        %v2202 = vpop.f32.mrf.mxu0
        %v2203 = vadd.f32 0.0, %v2202
        %v2204 = vpop.f32.mrf.mxu0
        %v2205 = vadd.f32 0.0, %v2204
        %2206 = vmatmul.bf16.gmra.mxu0 %v1835
        %v2207 = vpop.f32.mrf.mxu0
        %v2208 = vadd.f32 0.0, %v2207
        %v2209 = vpop.f32.mrf.mxu0
        %v2210 = vadd.f32 0.0, %v2209
        %2211 = vdwg.mxu0
        %2212 = vmatpush.bf16.msra.mxu0 %v2032
        %2213 = vmatpush.bf16.msra.mxu0 %v2030
        %2214 = vmatpush.bf16.msra.mxu0 %v2028
        %2215 = vmatpush.bf16.msra.mxu0 %v2026
        %2216 = vmatpush.bf16.msra.mxu0 %v2024
        %2217 = vmatpush.bf16.msra.mxu0 %v2022
        %2218 = vmatpush.bf16.msra.mxu0 %v2020
        %2219 = vmatpush.bf16.msra.mxu0 %v2018
        %2220 = vmatmul.bf16.gmra.mxu0 %v1802
        %v2221 = vpop.f32.mrf.mxu0
        %v2222 = vadd.f32 %v2173, %v2221
        %v2223 = vpop.f32.mrf.mxu0
        %v2224 = vadd.f32 %v2175, %v2223
        %2225 = vmatmul.bf16.gmra.mxu0 %v1804
        %v2226 = vpop.f32.mrf.mxu0
        %v2227 = vadd.f32 %v2178, %v2226
        %v2228 = vpop.f32.mrf.mxu0
        %v2229 = vadd.f32 %v2180, %v2228
        %2230 = vmatmul.bf16.gmra.mxu0 %v1806
        %v2231 = vpop.f32.mrf.mxu0
        %v2232 = vadd.f32 %v2183, %v2231
        %v2233 = vpop.f32.mrf.mxu0
        %v2234 = vadd.f32 %v2185, %v2233
        %2235 = vmatmul.bf16.gmra.mxu0 %v1808
        %v2236 = vpop.f32.mrf.mxu0
        %v2237 = vadd.f32 %v2188, %v2236
        %v2238 = vpop.f32.mrf.mxu0
        %v2239 = vadd.f32 %v2190, %v2238
        %2240 = vmatmul.bf16.gmra.mxu0 %v1810
        %v2241 = vpop.f32.mrf.mxu0
        %v2242 = vadd.f32 %v2193, %v2241
        %v2243 = vpop.f32.mrf.mxu0
        %v2244 = vadd.f32 %v2195, %v2243
        %2245 = vmatmul.bf16.gmra.mxu0 %v1812
        %v2246 = vpop.f32.mrf.mxu0
        %v2247 = vadd.f32 %v2198, %v2246
        %v2248 = vpop.f32.mrf.mxu0
        %v2249 = vadd.f32 %v2200, %v2248
        %2250 = vmatmul.bf16.gmra.mxu0 %v1814
        %v2251 = vpop.f32.mrf.mxu0
        %v2252 = vadd.f32 %v2203, %v2251
        %v2253 = vpop.f32.mrf.mxu0
        %v2254 = vadd.f32 %v2205, %v2253
        %2255 = vmatmul.bf16.gmra.mxu0 %v1836
        %v2256 = vpop.f32.mrf.mxu0
        %v2257 = vadd.f32 %v2208, %v2256
        %v2258 = vpop.f32.mrf.mxu0
        %v2259 = vadd.f32 %v2210, %v2258
        %2260 = vdwg.mxu0
        %v2293 = vunpack.c.l.b16 %v1840
        %v2294 = vunpack.c.h.b16 %v1840
        %v2295 = vunpack.c.l.b16 %v1841
        %v2296 = vunpack.c.h.b16 %v1841
        %v2297 = vunpack.c.l.b16 %v1842
        %v2298 = vunpack.c.h.b16 %v1842
        %v2299 = vunpack.c.l.b16 %v1843
        %v2300 = vunpack.c.h.b16 %v1843
        %v2301 = vunpack.c.l.b16 %v1844
        %v2302 = vunpack.c.h.b16 %v1844
        %v2303 = vunpack.c.l.b16 %v1845
        %v2304 = vunpack.c.h.b16 %v1845
        %v2305 = vunpack.c.l.b16 %v1846
        %v2306 = vunpack.c.h.b16 %v1846
        %v2307 = vunpack.c.l.b16 %v1847
        %v2308 = vunpack.c.h.b16 %v1847
        %v2309 = vunpack.c.l.b16 %v1848
        %v2310 = vunpack.c.h.b16 %v1848
        %v2311 = vunpack.c.l.b16 %v1849
        %v2312 = vunpack.c.h.b16 %v1849
        %v2313 = vunpack.c.l.b16 %v1850
        %v2314 = vunpack.c.h.b16 %v1850
        %v2315 = vunpack.c.l.b16 %v1851
        %v2316 = vunpack.c.h.b16 %v1851
        %v2317 = vunpack.c.l.b16 %v1852
        %v2318 = vunpack.c.h.b16 %v1852
        %v2319 = vunpack.c.l.b16 %v1853
        %v2320 = vunpack.c.h.b16 %v1853
        %v2321 = vunpack.c.l.b16 %v1854
        %v2322 = vunpack.c.h.b16 %v1854
        %v2323 = vunpack.c.l.b16 %v1855
        %v2324 = vunpack.c.h.b16 %v1855
        %v2325 = vunpack.c.l.b16 %v1856
        %v2326 = vunpack.c.h.b16 %v1856
        %v2327 = vunpack.c.l.b16 %v1857
        %v2328 = vunpack.c.h.b16 %v1857
        %v2329 = vunpack.c.l.b16 %v1858
        %v2330 = vunpack.c.h.b16 %v1858
        %v2331 = vunpack.c.l.b16 %v1859
        %v2332 = vunpack.c.h.b16 %v1859
        %v2333 = vunpack.c.l.b16 %v1860
        %v2334 = vunpack.c.h.b16 %v1860
        %v2335 = vunpack.c.l.b16 %v1861
        %v2336 = vunpack.c.h.b16 %v1861
        %v2337 = vunpack.c.l.b16 %v1862
        %v2338 = vunpack.c.h.b16 %v1862
        %v2339 = vunpack.c.l.b16 %v1863
        %v2340 = vunpack.c.h.b16 %v1863
        %v2341 = vunpack.c.l.b16 %v1864
        %v2342 = vunpack.c.h.b16 %v1864
        %v2343 = vunpack.c.l.b16 %v1865
        %v2344 = vunpack.c.h.b16 %v1865
        %v2345 = vunpack.c.l.b16 %v1866
        %v2346 = vunpack.c.h.b16 %v1866
        %v2347 = vunpack.c.l.b16 %v1867
        %v2348 = vunpack.c.h.b16 %v1867
        %v2349 = vunpack.c.l.b16 %v1868
        %v2350 = vunpack.c.h.b16 %v1868
        %v2351 = vunpack.c.l.b16 %v1869
        %v2352 = vunpack.c.h.b16 %v1869
        %v2353 = vunpack.c.l.b16 %v1870
        %v2354 = vunpack.c.h.b16 %v1870
        %v2355 = vunpack.c.l.b16 %v1871
        %v2356 = vunpack.c.h.b16 %v1871
        %v2357 = vpack.c.b16 %v2295, %v2293
        %v2358 = vpack.c.b16 %v2296, %v2294
        %v2359 = vpack.c.b16 %v2299, %v2297
        %v2360 = vpack.c.b16 %v2300, %v2298
        %v2361 = vpack.c.b16 %v2303, %v2301
        %v2362 = vpack.c.b16 %v2304, %v2302
        %v2363 = vpack.c.b16 %v2307, %v2305
        %v2364 = vpack.c.b16 %v2308, %v2306
        %v2365 = vpack.c.b16 %v2311, %v2309
        %v2366 = vpack.c.b16 %v2312, %v2310
        %v2367 = vpack.c.b16 %v2315, %v2313
        %v2368 = vpack.c.b16 %v2316, %v2314
        %v2369 = vpack.c.b16 %v2319, %v2317
        %v2370 = vpack.c.b16 %v2320, %v2318
        %v2371 = vpack.c.b16 %v2323, %v2321
        %v2372 = vpack.c.b16 %v2324, %v2322
        %v2373 = vpack.c.b16 %v2327, %v2325
        %v2374 = vpack.c.b16 %v2328, %v2326
        %v2375 = vpack.c.b16 %v2331, %v2329
        %v2376 = vpack.c.b16 %v2332, %v2330
        %v2377 = vpack.c.b16 %v2335, %v2333
        %v2378 = vpack.c.b16 %v2336, %v2334
        %v2379 = vpack.c.b16 %v2339, %v2337
        %v2380 = vpack.c.b16 %v2340, %v2338
        %v2381 = vpack.c.b16 %v2343, %v2341
        %v2382 = vpack.c.b16 %v2344, %v2342
        %v2383 = vpack.c.b16 %v2347, %v2345
        %v2384 = vpack.c.b16 %v2348, %v2346
        %v2385 = vpack.c.b16 %v2351, %v2349
        %v2386 = vpack.c.b16 %v2352, %v2350
        %v2387 = vpack.c.b16 %v2355, %v2353
        %v2388 = vpack.c.b16 %v2356, %v2354
        %2421 = vmatpush.bf16.msra.mxu0 %v2371
        %2422 = vmatpush.bf16.msra.mxu0 %v2369
        %2423 = vmatpush.bf16.msra.mxu0 %v2367
        %2424 = vmatpush.bf16.msra.mxu0 %v2365
        %2425 = vmatpush.bf16.msra.mxu0 %v2363
        %2426 = vmatpush.bf16.msra.mxu0 %v2361
        %2427 = vmatpush.bf16.msra.mxu0 %v2359
        %2428 = vmatpush.bf16.msra.mxu0 %v2357
        %2429 = vmatmul.bf16.gmra.mxu0 0
        %v2430 = vpop.f32.mrf.mxu0
        %v2431 = vadd.f32 %v2124, %v2430
        %v2432 = vpop.f32.mrf.mxu0
        %v2433 = vadd.f32 %v2126, %v2432
        %2434 = vmatmul.bf16.gmra.mxu0 %v1801
        %v2435 = vpop.f32.mrf.mxu0
        %v2436 = vadd.f32 %v2129, %v2435
        %v2437 = vpop.f32.mrf.mxu0
        %v2438 = vadd.f32 %v2131, %v2437
        %2439 = vmatmul.bf16.gmra.mxu0 %v1803
        %v2440 = vpop.f32.mrf.mxu0
        %v2441 = vadd.f32 %v2134, %v2440
        %v2442 = vpop.f32.mrf.mxu0
        %v2443 = vadd.f32 %v2136, %v2442
        %2444 = vmatmul.bf16.gmra.mxu0 %v1805
        %v2445 = vpop.f32.mrf.mxu0
        %v2446 = vadd.f32 %v2139, %v2445
        %v2447 = vpop.f32.mrf.mxu0
        %v2448 = vadd.f32 %v2141, %v2447
        %2449 = vmatmul.bf16.gmra.mxu0 %v1807
        %v2450 = vpop.f32.mrf.mxu0
        %v2451 = vadd.f32 %v2144, %v2450
        %v2452 = vpop.f32.mrf.mxu0
        %v2453 = vadd.f32 %v2146, %v2452
        %2454 = vmatmul.bf16.gmra.mxu0 %v1809
        %v2455 = vpop.f32.mrf.mxu0
        %v2456 = vadd.f32 %v2149, %v2455
        %v2457 = vpop.f32.mrf.mxu0
        %v2458 = vadd.f32 %v2151, %v2457
        %2459 = vmatmul.bf16.gmra.mxu0 %v1811
        %v2460 = vpop.f32.mrf.mxu0
        %v2461 = vadd.f32 %v2154, %v2460
        %v2462 = vpop.f32.mrf.mxu0
        %v2463 = vadd.f32 %v2156, %v2462
        %2464 = vmatmul.bf16.gmra.mxu0 %v1813
        %v2465 = vpop.f32.mrf.mxu0
        %v2466 = vadd.f32 %v2159, %v2465
        %v2467 = vpop.f32.mrf.mxu0
        %v2468 = vadd.f32 %v2161, %v2467
        %2469 = vdwg.mxu0
        %2470 = vmatpush.bf16.msra.mxu0 %v2387
        %2471 = vmatpush.bf16.msra.mxu0 %v2385
        %2472 = vmatpush.bf16.msra.mxu0 %v2383
        %2473 = vmatpush.bf16.msra.mxu0 %v2381
        %2474 = vmatpush.bf16.msra.mxu0 %v2379
        %2475 = vmatpush.bf16.msra.mxu0 %v2377
        %2476 = vmatpush.bf16.msra.mxu0 %v2375
        %2477 = vmatpush.bf16.msra.mxu0 %v2373
        %2478 = vmatmul.bf16.gmra.mxu0 0
        %v2479 = vpop.f32.mrf.mxu0
        %v2480 = vadd.f32 %v2431, %v2479
        %v2481 = vpop.f32.mrf.mxu0
        %v2482 = vadd.f32 %v2433, %v2481
        %2483 = vmatmul.bf16.gmra.mxu0 %v1802
        %v2484 = vpop.f32.mrf.mxu0
        %v2485 = vadd.f32 %v2436, %v2484
        %v2486 = vpop.f32.mrf.mxu0
        %v2487 = vadd.f32 %v2438, %v2486
        %2488 = vmatmul.bf16.gmra.mxu0 %v1804
        %v2489 = vpop.f32.mrf.mxu0
        %v2490 = vadd.f32 %v2441, %v2489
        %v2491 = vpop.f32.mrf.mxu0
        %v2492 = vadd.f32 %v2443, %v2491
        %2493 = vmatmul.bf16.gmra.mxu0 %v1806
        %v2494 = vpop.f32.mrf.mxu0
        %v2495 = vadd.f32 %v2446, %v2494
        %v2496 = vpop.f32.mrf.mxu0
        %v2497 = vadd.f32 %v2448, %v2496
        %2498 = vmatmul.bf16.gmra.mxu0 %v1808
        %v2499 = vpop.f32.mrf.mxu0
        %v2500 = vadd.f32 %v2451, %v2499
        %v2501 = vpop.f32.mrf.mxu0
        %v2502 = vadd.f32 %v2453, %v2501
        %2503 = vmatmul.bf16.gmra.mxu0 %v1810
        %v2504 = vpop.f32.mrf.mxu0
        %v2505 = vadd.f32 %v2456, %v2504
        %v2506 = vpop.f32.mrf.mxu0
        %v2507 = vadd.f32 %v2458, %v2506
        %2508 = vmatmul.bf16.gmra.mxu0 %v1812
        %v2509 = vpop.f32.mrf.mxu0
        %v2510 = vadd.f32 %v2461, %v2509
        %v2511 = vpop.f32.mrf.mxu0
        %v2512 = vadd.f32 %v2463, %v2511
        %2513 = vmatmul.bf16.gmra.mxu0 %v1814
        %v2514 = vpop.f32.mrf.mxu0
        %v2515 = vadd.f32 %v2466, %v2514
        %v2516 = vpop.f32.mrf.mxu0
        %v2517 = vadd.f32 %v2468, %v2516
        %2518 = vdwg.mxu0
        %2519 = vmatpush.bf16.msra.mxu0 %v2372
        %2520 = vmatpush.bf16.msra.mxu0 %v2370
        %2521 = vmatpush.bf16.msra.mxu0 %v2368
        %2522 = vmatpush.bf16.msra.mxu0 %v2366
        %2523 = vmatpush.bf16.msra.mxu0 %v2364
        %2524 = vmatpush.bf16.msra.mxu0 %v2362
        %2525 = vmatpush.bf16.msra.mxu0 %v2360
        %2526 = vmatpush.bf16.msra.mxu0 %v2358
        %2527 = vmatmul.bf16.gmra.mxu0 0
        %v2528 = vpop.f32.mrf.mxu0
        %v2529 = vadd.f32 %v2222, %v2528
        %v2530 = vpop.f32.mrf.mxu0
        %v2531 = vadd.f32 %v2224, %v2530
        %2532 = vmatmul.bf16.gmra.mxu0 %v1801
        %v2533 = vpop.f32.mrf.mxu0
        %v2534 = vadd.f32 %v2227, %v2533
        %v2535 = vpop.f32.mrf.mxu0
        %v2536 = vadd.f32 %v2229, %v2535
        %2537 = vmatmul.bf16.gmra.mxu0 %v1803
        %v2538 = vpop.f32.mrf.mxu0
        %v2539 = vadd.f32 %v2232, %v2538
        %v2540 = vpop.f32.mrf.mxu0
        %v2541 = vadd.f32 %v2234, %v2540
        %2542 = vmatmul.bf16.gmra.mxu0 %v1805
        %v2543 = vpop.f32.mrf.mxu0
        %v2544 = vadd.f32 %v2237, %v2543
        %v2545 = vpop.f32.mrf.mxu0
        %v2546 = vadd.f32 %v2239, %v2545
        %2547 = vmatmul.bf16.gmra.mxu0 %v1807
        %v2548 = vpop.f32.mrf.mxu0
        %v2549 = vadd.f32 %v2242, %v2548
        %v2550 = vpop.f32.mrf.mxu0
        %v2551 = vadd.f32 %v2244, %v2550
        %2552 = vmatmul.bf16.gmra.mxu0 %v1809
        %v2553 = vpop.f32.mrf.mxu0
        %v2554 = vadd.f32 %v2247, %v2553
        %v2555 = vpop.f32.mrf.mxu0
        %v2556 = vadd.f32 %v2249, %v2555
        %2557 = vmatmul.bf16.gmra.mxu0 %v1811
        %v2558 = vpop.f32.mrf.mxu0
        %v2559 = vadd.f32 %v2252, %v2558
        %v2560 = vpop.f32.mrf.mxu0
        %v2561 = vadd.f32 %v2254, %v2560
        %2562 = vmatmul.bf16.gmra.mxu0 %v1813
        %v2563 = vpop.f32.mrf.mxu0
        %v2564 = vadd.f32 %v2257, %v2563
        %v2565 = vpop.f32.mrf.mxu0
        %v2566 = vadd.f32 %v2259, %v2565
        %2567 = vdwg.mxu0
        %2568 = vmatpush.bf16.msra.mxu0 %v2388
        %2569 = vmatpush.bf16.msra.mxu0 %v2386
        %2570 = vmatpush.bf16.msra.mxu0 %v2384
        %2571 = vmatpush.bf16.msra.mxu0 %v2382
        %2572 = vmatpush.bf16.msra.mxu0 %v2380
        %2573 = vmatpush.bf16.msra.mxu0 %v2378
        %2574 = vmatpush.bf16.msra.mxu0 %v2376
        %2575 = vmatpush.bf16.msra.mxu0 %v2374
        %2576 = vmatmul.bf16.gmra.mxu0 0
        %v2577 = vpop.f32.mrf.mxu0
        %v2578 = vadd.f32 %v2529, %v2577
        %v2579 = vpop.f32.mrf.mxu0
        %v2580 = vadd.f32 %v2531, %v2579
        %2581 = vmatmul.bf16.gmra.mxu0 %v1802
        %v2582 = vpop.f32.mrf.mxu0
        %v2583 = vadd.f32 %v2534, %v2582
        %v2584 = vpop.f32.mrf.mxu0
        %v2585 = vadd.f32 %v2536, %v2584
        %2586 = vmatmul.bf16.gmra.mxu0 %v1804
        %v2587 = vpop.f32.mrf.mxu0
        %v2588 = vadd.f32 %v2539, %v2587
        %v2589 = vpop.f32.mrf.mxu0
        %v2590 = vadd.f32 %v2541, %v2589
        %2591 = vmatmul.bf16.gmra.mxu0 %v1806
        %v2592 = vpop.f32.mrf.mxu0
        %v2593 = vadd.f32 %v2544, %v2592
        %v2594 = vpop.f32.mrf.mxu0
        %v2595 = vadd.f32 %v2546, %v2594
        %2596 = vmatmul.bf16.gmra.mxu0 %v1808
        %v2597 = vpop.f32.mrf.mxu0
        %v2598 = vadd.f32 %v2549, %v2597
        %v2599 = vpop.f32.mrf.mxu0
        %v2600 = vadd.f32 %v2551, %v2599
        %2601 = vmatmul.bf16.gmra.mxu0 %v1810
        %v2602 = vpop.f32.mrf.mxu0
        %v2603 = vadd.f32 %v2554, %v2602
        %v2604 = vpop.f32.mrf.mxu0
        %v2605 = vadd.f32 %v2556, %v2604
        %2606 = vmatmul.bf16.gmra.mxu0 %v1812
        %v2607 = vpop.f32.mrf.mxu0
        %v2608 = vadd.f32 %v2559, %v2607
        %v2609 = vpop.f32.mrf.mxu0
        %v2610 = vadd.f32 %v2561, %v2609
        %2611 = vmatmul.bf16.gmra.mxu0 %v1814
        %v2612 = vpop.f32.mrf.mxu0
        %v2613 = vadd.f32 %v2564, %v2612
        %v2614 = vpop.f32.mrf.mxu0
        %v2615 = vadd.f32 %v2566, %v2614
        %2616 = vdwg.mxu0
        %s2617 = scalar_lea.vmem %s1, 1280
        %v2618 = vld [vmem:[%s2617] sm:$0xff]
        %v2619 = vld [vmem:[%s2617 + $0x8] sm:$0xff]
        %v2620 = vld [vmem:[%s2617 + $0x10] sm:$0xff]
        %v2621 = vld [vmem:[%s2617 + $0x18] sm:$0xff]
        %v2622 = vld [vmem:[%s2617 + $0x20] sm:$0xff]
        %v2623 = vld [vmem:[%s2617 + $0x28] sm:$0xff]
        %v2624 = vld [vmem:[%s2617 + $0x30] sm:$0xff]
        %v2625 = vld [vmem:[%s2617 + $0x38] sm:$0xff]
        %v2626 = vld [vmem:[%s2617 + $0x40] sm:$0xff]
        %v2627 = vld [vmem:[%s2617 + $0x48] sm:$0xff]
        %v2628 = vld [vmem:[%s2617 + $0x50] sm:$0xff]
        %v2629 = vld [vmem:[%s2617 + $0x58] sm:$0xff]
        %v2630 = vld [vmem:[%s2617 + $0x60] sm:$0xff]
        %v2631 = vld [vmem:[%s2617 + $0x68] sm:$0xff]
        %v2632 = vld [vmem:[%s2617 + $0x70] sm:$0xff]
        %v2633 = vld [vmem:[%s2617 + $0x78] sm:$0xff]
        %v2634 = vld [vmem:[%s2617 + $0x80] sm:$0xff]
        %v2635 = vld [vmem:[%s2617 + $0x88] sm:$0xff]
        %v2636 = vld [vmem:[%s2617 + $0x90] sm:$0xff]
        %v2637 = vld [vmem:[%s2617 + $0x98] sm:$0xff]
        %v2638 = vld [vmem:[%s2617 + $0xa0] sm:$0xff]
        %v2639 = vld [vmem:[%s2617 + $0xa8] sm:$0xff]
        %v2640 = vld [vmem:[%s2617 + $0xb0] sm:$0xff]
        %v2641 = vld [vmem:[%s2617 + $0xb8] sm:$0xff]
        %v2642 = vld [vmem:[%s2617 + $0xc0] sm:$0xff]
        %v2643 = vld [vmem:[%s2617 + $0xc8] sm:$0xff]
        %v2644 = vld [vmem:[%s2617 + $0xd0] sm:$0xff]
        %v2645 = vld [vmem:[%s2617 + $0xd8] sm:$0xff]
        %v2646 = vld [vmem:[%s2617 + $0xe0] sm:$0xff]
        %v2647 = vld [vmem:[%s2617 + $0xe8] sm:$0xff]
        %v2648 = vld [vmem:[%s2617 + $0xf0] sm:$0xff]
        %v2649 = vld [vmem:[%s2617 + $0xf8] sm:$0xff]
        %v2682 = vunpack.c.l.b16 %v2618
        %v2683 = vunpack.c.h.b16 %v2618
        %v2684 = vunpack.c.l.b16 %v2619
        %v2685 = vunpack.c.h.b16 %v2619
        %v2686 = vunpack.c.l.b16 %v2620
        %v2687 = vunpack.c.h.b16 %v2620
        %v2688 = vunpack.c.l.b16 %v2621
        %v2689 = vunpack.c.h.b16 %v2621
        %v2690 = vunpack.c.l.b16 %v2622
        %v2691 = vunpack.c.h.b16 %v2622
        %v2692 = vunpack.c.l.b16 %v2623
        %v2693 = vunpack.c.h.b16 %v2623
        %v2694 = vunpack.c.l.b16 %v2624
        %v2695 = vunpack.c.h.b16 %v2624
        %v2696 = vunpack.c.l.b16 %v2625
        %v2697 = vunpack.c.h.b16 %v2625
        %v2698 = vunpack.c.l.b16 %v2626
        %v2699 = vunpack.c.h.b16 %v2626
        %v2700 = vunpack.c.l.b16 %v2627
        %v2701 = vunpack.c.h.b16 %v2627
        %v2702 = vunpack.c.l.b16 %v2628
        %v2703 = vunpack.c.h.b16 %v2628
        %v2704 = vunpack.c.l.b16 %v2629
        %v2705 = vunpack.c.h.b16 %v2629
        %v2706 = vunpack.c.l.b16 %v2630
        %v2707 = vunpack.c.h.b16 %v2630
        %v2708 = vunpack.c.l.b16 %v2631
        %v2709 = vunpack.c.h.b16 %v2631
        %v2710 = vunpack.c.l.b16 %v2632
        %v2711 = vunpack.c.h.b16 %v2632
        %v2712 = vunpack.c.l.b16 %v2633
        %v2713 = vunpack.c.h.b16 %v2633
        %v2714 = vunpack.c.l.b16 %v2634
        %v2715 = vunpack.c.h.b16 %v2634
        %v2716 = vunpack.c.l.b16 %v2635
        %v2717 = vunpack.c.h.b16 %v2635
        %v2718 = vunpack.c.l.b16 %v2636
        %v2719 = vunpack.c.h.b16 %v2636
        %v2720 = vunpack.c.l.b16 %v2637
        %v2721 = vunpack.c.h.b16 %v2637
        %v2722 = vunpack.c.l.b16 %v2638
        %v2723 = vunpack.c.h.b16 %v2638
        %v2724 = vunpack.c.l.b16 %v2639
        %v2725 = vunpack.c.h.b16 %v2639
        %v2726 = vunpack.c.l.b16 %v2640
        %v2727 = vunpack.c.h.b16 %v2640
        %v2728 = vunpack.c.l.b16 %v2641
        %v2729 = vunpack.c.h.b16 %v2641
        %v2730 = vunpack.c.l.b16 %v2642
        %v2731 = vunpack.c.h.b16 %v2642
        %v2732 = vunpack.c.l.b16 %v2643
        %v2733 = vunpack.c.h.b16 %v2643
        %v2734 = vunpack.c.l.b16 %v2644
        %v2735 = vunpack.c.h.b16 %v2644
        %v2736 = vunpack.c.l.b16 %v2645
        %v2737 = vunpack.c.h.b16 %v2645
        %v2738 = vunpack.c.l.b16 %v2646
        %v2739 = vunpack.c.h.b16 %v2646
        %v2740 = vunpack.c.l.b16 %v2647
        %v2741 = vunpack.c.h.b16 %v2647
        %v2742 = vunpack.c.l.b16 %v2648
        %v2743 = vunpack.c.h.b16 %v2648
        %v2744 = vunpack.c.l.b16 %v2649
        %v2745 = vunpack.c.h.b16 %v2649
        %v2746 = vpack.c.b16 %v2684, %v2682
        %v2747 = vpack.c.b16 %v2685, %v2683
        %v2748 = vpack.c.b16 %v2688, %v2686
        %v2749 = vpack.c.b16 %v2689, %v2687
        %v2750 = vpack.c.b16 %v2692, %v2690
        %v2751 = vpack.c.b16 %v2693, %v2691
        %v2752 = vpack.c.b16 %v2696, %v2694
        %v2753 = vpack.c.b16 %v2697, %v2695
        %v2754 = vpack.c.b16 %v2700, %v2698
        %v2755 = vpack.c.b16 %v2701, %v2699
        %v2756 = vpack.c.b16 %v2704, %v2702
        %v2757 = vpack.c.b16 %v2705, %v2703
        %v2758 = vpack.c.b16 %v2708, %v2706
        %v2759 = vpack.c.b16 %v2709, %v2707
        %v2760 = vpack.c.b16 %v2712, %v2710
        %v2761 = vpack.c.b16 %v2713, %v2711
        %v2762 = vpack.c.b16 %v2716, %v2714
        %v2763 = vpack.c.b16 %v2717, %v2715
        %v2764 = vpack.c.b16 %v2720, %v2718
        %v2765 = vpack.c.b16 %v2721, %v2719
        %v2766 = vpack.c.b16 %v2724, %v2722
        %v2767 = vpack.c.b16 %v2725, %v2723
        %v2768 = vpack.c.b16 %v2728, %v2726
        %v2769 = vpack.c.b16 %v2729, %v2727
        %v2770 = vpack.c.b16 %v2732, %v2730
        %v2771 = vpack.c.b16 %v2733, %v2731
        %v2772 = vpack.c.b16 %v2736, %v2734
        %v2773 = vpack.c.b16 %v2737, %v2735
        %v2774 = vpack.c.b16 %v2740, %v2738
        %v2775 = vpack.c.b16 %v2741, %v2739
        %v2776 = vpack.c.b16 %v2744, %v2742
        %v2777 = vpack.c.b16 %v2745, %v2743
        %2810 = vmatpush.bf16.msra.mxu0 %v2760
        %2811 = vmatpush.bf16.msra.mxu0 %v2758
        %2812 = vmatpush.bf16.msra.mxu0 %v2756
        %2813 = vmatpush.bf16.msra.mxu0 %v2754
        %2814 = vmatpush.bf16.msra.mxu0 %v2752
        %2815 = vmatpush.bf16.msra.mxu0 %v2750
        %2816 = vmatpush.bf16.msra.mxu0 %v2748
        %2817 = vmatpush.bf16.msra.mxu0 %v2746
        %2818 = vmatmul.bf16.gmra.mxu0 %v1803
        %v2819 = vpop.f32.mrf.mxu0
        %v2820 = vadd.f32 0.0, %v2819
        %v2821 = vpop.f32.mrf.mxu0
        %v2822 = vadd.f32 0.0, %v2821
        %2823 = vmatmul.bf16.gmra.mxu0 %v1805
        %v2824 = vpop.f32.mrf.mxu0
        %v2825 = vadd.f32 0.0, %v2824
        %v2826 = vpop.f32.mrf.mxu0
        %v2827 = vadd.f32 0.0, %v2826
        %2828 = vmatmul.bf16.gmra.mxu0 %v1807
        %v2829 = vpop.f32.mrf.mxu0
        %v2830 = vadd.f32 0.0, %v2829
        %v2831 = vpop.f32.mrf.mxu0
        %v2832 = vadd.f32 0.0, %v2831
        %2833 = vmatmul.bf16.gmra.mxu0 %v1809
        %v2834 = vpop.f32.mrf.mxu0
        %v2835 = vadd.f32 0.0, %v2834
        %v2836 = vpop.f32.mrf.mxu0
        %v2837 = vadd.f32 0.0, %v2836
        %2838 = vmatmul.bf16.gmra.mxu0 %v1811
        %v2839 = vpop.f32.mrf.mxu0
        %v2840 = vadd.f32 0.0, %v2839
        %v2841 = vpop.f32.mrf.mxu0
        %v2842 = vadd.f32 0.0, %v2841
        %2843 = vmatmul.bf16.gmra.mxu0 %v1813
        %v2844 = vpop.f32.mrf.mxu0
        %v2845 = vadd.f32 0.0, %v2844
        %v2846 = vpop.f32.mrf.mxu0
        %v2847 = vadd.f32 0.0, %v2846
        %2848 = vmatmul.bf16.gmra.mxu0 %v1835
        %v2849 = vpop.f32.mrf.mxu0
        %v2850 = vadd.f32 0.0, %v2849
        %v2851 = vpop.f32.mrf.mxu0
        %v2852 = vadd.f32 0.0, %v2851
        %2853 = vmatmul.bf16.gmra.mxu0 0
        %v2854 = vpop.f32.mrf.mxu0
        %v2855 = vadd.f32 0.0, %v2854
        %v2856 = vpop.f32.mrf.mxu0
        %v2857 = vadd.f32 0.0, %v2856
        %2858 = vdwg.mxu0
        %2859 = vmatpush.bf16.msra.mxu0 %v2776
        %2860 = vmatpush.bf16.msra.mxu0 %v2774
        %2861 = vmatpush.bf16.msra.mxu0 %v2772
        %2862 = vmatpush.bf16.msra.mxu0 %v2770
        %2863 = vmatpush.bf16.msra.mxu0 %v2768
        %2864 = vmatpush.bf16.msra.mxu0 %v2766
        %2865 = vmatpush.bf16.msra.mxu0 %v2764
        %2866 = vmatpush.bf16.msra.mxu0 %v2762
        %2867 = vmatmul.bf16.gmra.mxu0 %v1804
        %v2868 = vpop.f32.mrf.mxu0
        %v2869 = vadd.f32 %v2820, %v2868
        %v2870 = vpop.f32.mrf.mxu0
        %v2871 = vadd.f32 %v2822, %v2870
        %2872 = vmatmul.bf16.gmra.mxu0 %v1806
        %v2873 = vpop.f32.mrf.mxu0
        %v2874 = vadd.f32 %v2825, %v2873
        %v2875 = vpop.f32.mrf.mxu0
        %v2876 = vadd.f32 %v2827, %v2875
        %2877 = vmatmul.bf16.gmra.mxu0 %v1808
        %v2878 = vpop.f32.mrf.mxu0
        %v2879 = vadd.f32 %v2830, %v2878
        %v2880 = vpop.f32.mrf.mxu0
        %v2881 = vadd.f32 %v2832, %v2880
        %2882 = vmatmul.bf16.gmra.mxu0 %v1810
        %v2883 = vpop.f32.mrf.mxu0
        %v2884 = vadd.f32 %v2835, %v2883
        %v2885 = vpop.f32.mrf.mxu0
        %v2886 = vadd.f32 %v2837, %v2885
        %2887 = vmatmul.bf16.gmra.mxu0 %v1812
        %v2888 = vpop.f32.mrf.mxu0
        %v2889 = vadd.f32 %v2840, %v2888
        %v2890 = vpop.f32.mrf.mxu0
        %v2891 = vadd.f32 %v2842, %v2890
        %2892 = vmatmul.bf16.gmra.mxu0 %v1814
        %v2893 = vpop.f32.mrf.mxu0
        %v2894 = vadd.f32 %v2845, %v2893
        %v2895 = vpop.f32.mrf.mxu0
        %v2896 = vadd.f32 %v2847, %v2895
        %2897 = vmatmul.bf16.gmra.mxu0 %v1836
        %v2898 = vpop.f32.mrf.mxu0
        %v2899 = vadd.f32 %v2850, %v2898
        %v2900 = vpop.f32.mrf.mxu0
        %v2901 = vadd.f32 %v2852, %v2900
        %2902 = vmatmul.bf16.gmra.mxu0 0
        %v2903 = vpop.f32.mrf.mxu0
        %v2904 = vadd.f32 %v2855, %v2903
        %v2905 = vpop.f32.mrf.mxu0
        %v2906 = vadd.f32 %v2857, %v2905
        %2907 = vdwg.mxu0
        %2908 = vmatpush.bf16.msra.mxu0 %v2761
        %2909 = vmatpush.bf16.msra.mxu0 %v2759
        %2910 = vmatpush.bf16.msra.mxu0 %v2757
        %2911 = vmatpush.bf16.msra.mxu0 %v2755
        %2912 = vmatpush.bf16.msra.mxu0 %v2753
        %2913 = vmatpush.bf16.msra.mxu0 %v2751
        %2914 = vmatpush.bf16.msra.mxu0 %v2749
        %2915 = vmatpush.bf16.msra.mxu0 %v2747
        %2916 = vmatmul.bf16.gmra.mxu0 %v1803
        %v2917 = vpop.f32.mrf.mxu0
        %v2918 = vadd.f32 0.0, %v2917
        %v2919 = vpop.f32.mrf.mxu0
        %v2920 = vadd.f32 0.0, %v2919
        %2921 = vmatmul.bf16.gmra.mxu0 %v1805
        %v2922 = vpop.f32.mrf.mxu0
        %v2923 = vadd.f32 0.0, %v2922
        %v2924 = vpop.f32.mrf.mxu0
        %v2925 = vadd.f32 0.0, %v2924
        %2926 = vmatmul.bf16.gmra.mxu0 %v1807
        %v2927 = vpop.f32.mrf.mxu0
        %v2928 = vadd.f32 0.0, %v2927
        %v2929 = vpop.f32.mrf.mxu0
        %v2930 = vadd.f32 0.0, %v2929
        %2931 = vmatmul.bf16.gmra.mxu0 %v1809
        %v2932 = vpop.f32.mrf.mxu0
        %v2933 = vadd.f32 0.0, %v2932
        %v2934 = vpop.f32.mrf.mxu0
        %v2935 = vadd.f32 0.0, %v2934
        %2936 = vmatmul.bf16.gmra.mxu0 %v1811
        %v2937 = vpop.f32.mrf.mxu0
        %v2938 = vadd.f32 0.0, %v2937
        %v2939 = vpop.f32.mrf.mxu0
        %v2940 = vadd.f32 0.0, %v2939
        %2941 = vmatmul.bf16.gmra.mxu0 %v1813
        %v2942 = vpop.f32.mrf.mxu0
        %v2943 = vadd.f32 0.0, %v2942
        %v2944 = vpop.f32.mrf.mxu0
        %v2945 = vadd.f32 0.0, %v2944
        %2946 = vmatmul.bf16.gmra.mxu0 %v1835
        %v2947 = vpop.f32.mrf.mxu0
        %v2948 = vadd.f32 0.0, %v2947
        %v2949 = vpop.f32.mrf.mxu0
        %v2950 = vadd.f32 0.0, %v2949
        %2951 = vmatmul.bf16.gmra.mxu0 0
        %v2952 = vpop.f32.mrf.mxu0
        %v2953 = vadd.f32 0.0, %v2952
        %v2954 = vpop.f32.mrf.mxu0
        %v2955 = vadd.f32 0.0, %v2954
        %2956 = vdwg.mxu0
        %2957 = vmatpush.bf16.msra.mxu0 %v2777
        %2958 = vmatpush.bf16.msra.mxu0 %v2775
        %2959 = vmatpush.bf16.msra.mxu0 %v2773
        %2960 = vmatpush.bf16.msra.mxu0 %v2771
        %2961 = vmatpush.bf16.msra.mxu0 %v2769
        %2962 = vmatpush.bf16.msra.mxu0 %v2767
        %2963 = vmatpush.bf16.msra.mxu0 %v2765
        %2964 = vmatpush.bf16.msra.mxu0 %v2763
        %2965 = vmatmul.bf16.gmra.mxu0 %v1804
        %v2966 = vpop.f32.mrf.mxu0
        %v2967 = vadd.f32 %v2918, %v2966
        %v2968 = vpop.f32.mrf.mxu0
        %v2969 = vadd.f32 %v2920, %v2968
        %2970 = vmatmul.bf16.gmra.mxu0 %v1806
        %v2971 = vpop.f32.mrf.mxu0
        %v2972 = vadd.f32 %v2923, %v2971
        %v2973 = vpop.f32.mrf.mxu0
        %v2974 = vadd.f32 %v2925, %v2973
        %2975 = vmatmul.bf16.gmra.mxu0 %v1808
        %v2976 = vpop.f32.mrf.mxu0
        %v2977 = vadd.f32 %v2928, %v2976
        %v2978 = vpop.f32.mrf.mxu0
        %v2979 = vadd.f32 %v2930, %v2978
        %2980 = vmatmul.bf16.gmra.mxu0 %v1810
        %v2981 = vpop.f32.mrf.mxu0
        %v2982 = vadd.f32 %v2933, %v2981
        %v2983 = vpop.f32.mrf.mxu0
        %v2984 = vadd.f32 %v2935, %v2983
        %2985 = vmatmul.bf16.gmra.mxu0 %v1812
        %v2986 = vpop.f32.mrf.mxu0
        %v2987 = vadd.f32 %v2938, %v2986
        %v2988 = vpop.f32.mrf.mxu0
        %v2989 = vadd.f32 %v2940, %v2988
        %2990 = vmatmul.bf16.gmra.mxu0 %v1814
        %v2991 = vpop.f32.mrf.mxu0
        %v2992 = vadd.f32 %v2943, %v2991
        %v2993 = vpop.f32.mrf.mxu0
        %v2994 = vadd.f32 %v2945, %v2993
        %2995 = vmatmul.bf16.gmra.mxu0 %v1836
        %v2996 = vpop.f32.mrf.mxu0
        %v2997 = vadd.f32 %v2948, %v2996
        %v2998 = vpop.f32.mrf.mxu0
        %v2999 = vadd.f32 %v2950, %v2998
        %3000 = vmatmul.bf16.gmra.mxu0 0
        %v3001 = vpop.f32.mrf.mxu0
        %v3002 = vadd.f32 %v2953, %v3001
        %v3003 = vpop.f32.mrf.mxu0
        %v3004 = vadd.f32 %v2955, %v3003
        %3005 = vdwg.mxu0
        %v3006 = vadd.f32 %v2480, %v2869
        %v3007 = vadd.f32 %v2578, %v2967
        %v3008 = vadd.f32 %v2482, %v2871
        %v3009 = vadd.f32 %v2580, %v2969
        %v3010 = vadd.f32 %v2485, %v2874
        %v3011 = vadd.f32 %v2583, %v2972
        %v3012 = vadd.f32 %v2487, %v2876
        %v3013 = vadd.f32 %v2585, %v2974
        %v3014 = vadd.f32 %v2490, %v2879
        %v3015 = vadd.f32 %v2588, %v2977
        %v3016 = vadd.f32 %v2492, %v2881
        %v3017 = vadd.f32 %v2590, %v2979
        %v3018 = vadd.f32 %v2495, %v2884
        %v3019 = vadd.f32 %v2593, %v2982
        %v3020 = vadd.f32 %v2497, %v2886
        %v3021 = vadd.f32 %v2595, %v2984
        %v3022 = vadd.f32 %v2500, %v2889
        %v3023 = vadd.f32 %v2598, %v2987
        %v3024 = vadd.f32 %v2502, %v2891
        %v3025 = vadd.f32 %v2600, %v2989
        %v3026 = vadd.f32 %v2505, %v2894
        %v3027 = vadd.f32 %v2603, %v2992
        %v3028 = vadd.f32 %v2507, %v2896
        %v3029 = vadd.f32 %v2605, %v2994
        %v3030 = vadd.f32 %v2510, %v2899
        %v3031 = vadd.f32 %v2608, %v2997
        %v3032 = vadd.f32 %v2512, %v2901
        %v3033 = vadd.f32 %v2610, %v2999
        %v3034 = vadd.f32 %v2515, %v2904
        %v3035 = vadd.f32 %v2613, %v3002
        %v3036 = vadd.f32 %v2517, %v2906
        %v3037 = vadd.f32 %v2615, %v3004
        %s3038 = scalar_lea.vmem %s2, 2
        %v3039 = vld [vmem:[%s3038] sm:$0x3]
        %v3041 = vperm.slane %v3039, 0
        %v3042 = vperm.slane %v3039, 1
        %v3045 = vadd.f32 %v3006, %v3041
        %v3046 = vadd.f32 %v3007, %v3042
        %v3047 = vadd.f32 %v3008, %v3041
        %v3048 = vadd.f32 %v3009, %v3042
        %v3049 = vadd.f32 %v3010, %v3041
        %v3050 = vadd.f32 %v3011, %v3042
        %v3051 = vadd.f32 %v3012, %v3041
        %v3052 = vadd.f32 %v3013, %v3042
        %v3053 = vadd.f32 %v3014, %v3041
        %v3054 = vadd.f32 %v3015, %v3042
        %v3055 = vadd.f32 %v3016, %v3041
        %v3056 = vadd.f32 %v3017, %v3042
        %v3057 = vadd.f32 %v3018, %v3041
        %v3058 = vadd.f32 %v3019, %v3042
        %v3059 = vadd.f32 %v3020, %v3041
        %v3060 = vadd.f32 %v3021, %v3042
        %v3061 = vadd.f32 %v3022, %v3041
        %v3062 = vadd.f32 %v3023, %v3042
        %v3063 = vadd.f32 %v3024, %v3041
        %v3064 = vadd.f32 %v3025, %v3042
        %v3065 = vadd.f32 %v3026, %v3041
        %v3066 = vadd.f32 %v3027, %v3042
        %v3067 = vadd.f32 %v3028, %v3041
        %v3068 = vadd.f32 %v3029, %v3042
        %v3069 = vadd.f32 %v3030, %v3041
        %v3070 = vadd.f32 %v3031, %v3042
        %v3071 = vadd.f32 %v3032, %v3041
        %v3072 = vadd.f32 %v3033, %v3042
        %v3073 = vadd.f32 %v3034, %v3041
        %v3074 = vadd.f32 %v3035, %v3042
        %v3075 = vadd.f32 %v3036, %v3041
        %v3076 = vadd.f32 %v3037, %v3042
        %v3077 = vmax.f32 %v3045, 0.0
        %v3078 = vmax.f32 %v3046, 0.0
        %v3079 = vmax.f32 %v3047, 0.0
        %v3080 = vmax.f32 %v3048, 0.0
        %v3081 = vmax.f32 %v3049, 0.0
        %v3082 = vmax.f32 %v3050, 0.0
        %v3083 = vmax.f32 %v3051, 0.0
        %v3084 = vmax.f32 %v3052, 0.0
        %v3085 = vmax.f32 %v3053, 0.0
        %v3086 = vmax.f32 %v3054, 0.0
        %v3087 = vmax.f32 %v3055, 0.0
        %v3088 = vmax.f32 %v3056, 0.0
        %v3089 = vmax.f32 %v3057, 0.0
        %v3090 = vmax.f32 %v3058, 0.0
        %v3091 = vmax.f32 %v3059, 0.0
        %v3092 = vmax.f32 %v3060, 0.0
        %v3093 = vmax.f32 %v3061, 0.0
        %v3094 = vmax.f32 %v3062, 0.0
        %v3095 = vmax.f32 %v3063, 0.0
        %v3096 = vmax.f32 %v3064, 0.0
        %v3097 = vmax.f32 %v3065, 0.0
        %v3098 = vmax.f32 %v3066, 0.0
        %v3099 = vmax.f32 %v3067, 0.0
        %v3100 = vmax.f32 %v3068, 0.0
        %v3101 = vmax.f32 %v3069, 0.0
        %v3102 = vmax.f32 %v3070, 0.0
        %v3103 = vmax.f32 %v3071, 0.0
        %v3104 = vmax.f32 %v3072, 0.0
        %v3105 = vmax.f32 %v3073, 0.0
        %v3106 = vmax.f32 %v3074, 0.0
        %v3107 = vmax.f32 %v3075, 0.0
        %v3108 = vmax.f32 %v3076, 0.0
        %v3109 = vpack.c.bf16 %v3078, %v3077
        %v3110 = vpack.c.bf16 %v3080, %v3079
        %v3111 = vpack.c.bf16 %v3082, %v3081
        %v3112 = vpack.c.bf16 %v3084, %v3083
        %v3113 = vpack.c.bf16 %v3086, %v3085
        %v3114 = vpack.c.bf16 %v3088, %v3087
        %v3115 = vpack.c.bf16 %v3090, %v3089
        %v3116 = vpack.c.bf16 %v3092, %v3091
        %v3117 = vpack.c.bf16 %v3094, %v3093
        %v3118 = vpack.c.bf16 %v3096, %v3095
        %v3119 = vpack.c.bf16 %v3098, %v3097
        %v3120 = vpack.c.bf16 %v3100, %v3099
        %v3121 = vpack.c.bf16 %v3102, %v3101
        %v3122 = vpack.c.bf16 %v3104, %v3103
        %v3123 = vpack.c.bf16 %v3106, %v3105
        %v3124 = vpack.c.bf16 %v3108, %v3107
        %v3139 = vunpack.c.l.b16 %v3109
        %v3140 = vunpack.c.h.b16 %v3109
        %v3141 = vunpack.c.l.b16 %v3110
        %v3142 = vunpack.c.h.b16 %v3110
        %v3143 = vunpack.c.l.b16 %v3111
        %v3144 = vunpack.c.h.b16 %v3111
        %v3145 = vunpack.c.l.b16 %v3112
        %v3146 = vunpack.c.h.b16 %v3112
        %v3147 = vunpack.c.l.b16 %v3113
        %v3148 = vunpack.c.h.b16 %v3113
        %v3149 = vunpack.c.l.b16 %v3114
        %v3150 = vunpack.c.h.b16 %v3114
        %v3151 = vunpack.c.l.b16 %v3115
        %v3152 = vunpack.c.h.b16 %v3115
        %v3153 = vunpack.c.l.b16 %v3116
        %v3154 = vunpack.c.h.b16 %v3116
        %v3155 = vunpack.c.l.b16 %v3117
        %v3156 = vunpack.c.h.b16 %v3117
        %v3157 = vunpack.c.l.b16 %v3118
        %v3158 = vunpack.c.h.b16 %v3118
        %v3159 = vunpack.c.l.b16 %v3119
        %v3160 = vunpack.c.h.b16 %v3119
        %v3161 = vunpack.c.l.b16 %v3120
        %v3162 = vunpack.c.h.b16 %v3120
        %v3163 = vunpack.c.l.b16 %v3121
        %v3164 = vunpack.c.h.b16 %v3121
        %v3165 = vunpack.c.l.b16 %v3122
        %v3166 = vunpack.c.h.b16 %v3122
        %v3167 = vpack.c.b16 %v3141, %v3139
        %v3168 = vpack.c.b16 %v3142, %v3140
        %v3169 = vpack.c.b16 %v3145, %v3143
        %v3170 = vpack.c.b16 %v3146, %v3144
        %v3171 = vpack.c.b16 %v3149, %v3147
        %v3172 = vpack.c.b16 %v3150, %v3148
        %v3173 = vpack.c.b16 %v3153, %v3151
        %v3174 = vpack.c.b16 %v3154, %v3152
        %v3175 = vpack.c.b16 %v3157, %v3155
        %v3176 = vpack.c.b16 %v3158, %v3156
        %v3177 = vpack.c.b16 %v3161, %v3159
        %v3178 = vpack.c.b16 %v3162, %v3160
        %v3179 = vpack.c.b16 %v3165, %v3163
        %v3180 = vpack.c.b16 %v3166, %v3164
        %v3197 = vunpack.c.l.b16 %v3123
        %v3198 = vunpack.c.h.b16 %v3123
        %v3199 = vunpack.c.l.b16 %v3124
        %v3200 = vunpack.c.h.b16 %v3124
        %v3201 = vpack.c.b16 %v3199, %v3197
        %v3202 = vpack.c.b16 %v3200, %v3198
        %s3205 = scalar_lea.vmem %s1, 1536
        %v3206 = vld [vmem:[%s3205] sm:$0xff]
        %v3207 = vld [vmem:[%s3205 + $0x8] sm:$0xff]
        %v3208 = vld [vmem:[%s3205 + $0x10] sm:$0xff]
        %v3209 = vld [vmem:[%s3205 + $0x18] sm:$0xff]
        %v3210 = vld [vmem:[%s3205 + $0x20] sm:$0xff]
        %v3211 = vld [vmem:[%s3205 + $0x28] sm:$0xff]
        %v3212 = vld [vmem:[%s3205 + $0x30] sm:$0xff]
        %v3213 = vld [vmem:[%s3205 + $0x38] sm:$0xff]
        %v3214 = vld [vmem:[%s3205 + $0x40] sm:$0xff]
        %v3215 = vld [vmem:[%s3205 + $0x48] sm:$0xff]
        %v3216 = vld [vmem:[%s3205 + $0x50] sm:$0xff]
        %v3217 = vld [vmem:[%s3205 + $0x58] sm:$0xff]
        %v3218 = vld [vmem:[%s3205 + $0x60] sm:$0xff]
        %v3219 = vld [vmem:[%s3205 + $0x68] sm:$0xff]
        %v3220 = vld [vmem:[%s3205 + $0x70] sm:$0xff]
        %v3221 = vld [vmem:[%s3205 + $0x78] sm:$0xff]
        %v3222 = vld [vmem:[%s3205 + $0x80] sm:$0xff]
        %v3223 = vld [vmem:[%s3205 + $0x88] sm:$0xff]
        %v3224 = vld [vmem:[%s3205 + $0x90] sm:$0xff]
        %v3225 = vld [vmem:[%s3205 + $0x98] sm:$0xff]
        %v3226 = vld [vmem:[%s3205 + $0xa0] sm:$0xff]
        %v3227 = vld [vmem:[%s3205 + $0xa8] sm:$0xff]
        %v3228 = vld [vmem:[%s3205 + $0xb0] sm:$0xff]
        %v3229 = vld [vmem:[%s3205 + $0xb8] sm:$0xff]
        %v3230 = vld [vmem:[%s3205 + $0xc0] sm:$0xff]
        %v3231 = vld [vmem:[%s3205 + $0xc8] sm:$0xff]
        %v3232 = vld [vmem:[%s3205 + $0xd0] sm:$0xff]
        %v3233 = vld [vmem:[%s3205 + $0xd8] sm:$0xff]
        %v3234 = vld [vmem:[%s3205 + $0xe0] sm:$0xff]
        %v3235 = vld [vmem:[%s3205 + $0xe8] sm:$0xff]
        %v3236 = vld [vmem:[%s3205 + $0xf0] sm:$0xff]
        %v3237 = vld [vmem:[%s3205 + $0xf8] sm:$0xff]
        %s3238 = scalar_lea.vmem %s1, 1792
        %v3239 = vld [vmem:[%s3238] sm:$0xff]
        %v3240 = vld [vmem:[%s3238 + $0x8] sm:$0xff]
        %v3241 = vld [vmem:[%s3238 + $0x10] sm:$0xff]
        %v3242 = vld [vmem:[%s3238 + $0x18] sm:$0xff]
        %v3243 = vld [vmem:[%s3238 + $0x20] sm:$0xff]
        %v3244 = vld [vmem:[%s3238 + $0x28] sm:$0xff]
        %v3245 = vld [vmem:[%s3238 + $0x30] sm:$0xff]
        %v3246 = vld [vmem:[%s3238 + $0x38] sm:$0xff]
        %v3247 = vld [vmem:[%s3238 + $0x40] sm:$0xff]
        %v3248 = vld [vmem:[%s3238 + $0x48] sm:$0xff]
        %v3249 = vld [vmem:[%s3238 + $0x50] sm:$0xff]
        %v3250 = vld [vmem:[%s3238 + $0x58] sm:$0xff]
        %v3251 = vld [vmem:[%s3238 + $0x60] sm:$0xff]
        %v3252 = vld [vmem:[%s3238 + $0x68] sm:$0xff]
        %v3253 = vld [vmem:[%s3238 + $0x70] sm:$0xff]
        %v3254 = vld [vmem:[%s3238 + $0x78] sm:$0xff]
        %v3255 = vld [vmem:[%s3238 + $0x80] sm:$0xff]
        %v3256 = vld [vmem:[%s3238 + $0x88] sm:$0xff]
        %v3257 = vld [vmem:[%s3238 + $0x90] sm:$0xff]
        %v3258 = vld [vmem:[%s3238 + $0x98] sm:$0xff]
        %v3259 = vld [vmem:[%s3238 + $0xa0] sm:$0xff]
        %v3260 = vld [vmem:[%s3238 + $0xa8] sm:$0xff]
        %v3261 = vld [vmem:[%s3238 + $0xb0] sm:$0xff]
        %v3262 = vld [vmem:[%s3238 + $0xb8] sm:$0xff]
        %v3263 = vld [vmem:[%s3238 + $0xc0] sm:$0xff]
        %v3264 = vld [vmem:[%s3238 + $0xc8] sm:$0xff]
        %v3265 = vld [vmem:[%s3238 + $0xd0] sm:$0xff]
        %v3266 = vld [vmem:[%s3238 + $0xd8] sm:$0xff]
        %v3267 = vld [vmem:[%s3238 + $0xe0] sm:$0xff]
        %v3268 = vld [vmem:[%s3238 + $0xe8] sm:$0xff]
        %v3269 = vld [vmem:[%s3238 + $0xf0] sm:$0xff]
        %v3270 = vld [vmem:[%s3238 + $0xf8] sm:$0xff]
        %v3303 = vunpack.c.l.b16 %v3239
        %v3304 = vunpack.c.h.b16 %v3239
        %v3305 = vunpack.c.l.b16 %v3240
        %v3306 = vunpack.c.h.b16 %v3240
        %v3307 = vunpack.c.l.b16 %v3241
        %v3308 = vunpack.c.h.b16 %v3241
        %v3309 = vunpack.c.l.b16 %v3242
        %v3310 = vunpack.c.h.b16 %v3242
        %v3311 = vunpack.c.l.b16 %v3243
        %v3312 = vunpack.c.h.b16 %v3243
        %v3313 = vunpack.c.l.b16 %v3244
        %v3314 = vunpack.c.h.b16 %v3244
        %v3315 = vunpack.c.l.b16 %v3245
        %v3316 = vunpack.c.h.b16 %v3245
        %v3317 = vunpack.c.l.b16 %v3246
        %v3318 = vunpack.c.h.b16 %v3246
        %v3319 = vunpack.c.l.b16 %v3247
        %v3320 = vunpack.c.h.b16 %v3247
        %v3321 = vunpack.c.l.b16 %v3248
        %v3322 = vunpack.c.h.b16 %v3248
        %v3323 = vunpack.c.l.b16 %v3249
        %v3324 = vunpack.c.h.b16 %v3249
        %v3325 = vunpack.c.l.b16 %v3250
        %v3326 = vunpack.c.h.b16 %v3250
        %v3327 = vunpack.c.l.b16 %v3251
        %v3328 = vunpack.c.h.b16 %v3251
        %v3329 = vunpack.c.l.b16 %v3252
        %v3330 = vunpack.c.h.b16 %v3252
        %v3331 = vunpack.c.l.b16 %v3253
        %v3332 = vunpack.c.h.b16 %v3253
        %v3333 = vunpack.c.l.b16 %v3254
        %v3334 = vunpack.c.h.b16 %v3254
        %v3335 = vunpack.c.l.b16 %v3255
        %v3336 = vunpack.c.h.b16 %v3255
        %v3337 = vunpack.c.l.b16 %v3256
        %v3338 = vunpack.c.h.b16 %v3256
        %v3339 = vunpack.c.l.b16 %v3257
        %v3340 = vunpack.c.h.b16 %v3257
        %v3341 = vunpack.c.l.b16 %v3258
        %v3342 = vunpack.c.h.b16 %v3258
        %v3343 = vunpack.c.l.b16 %v3259
        %v3344 = vunpack.c.h.b16 %v3259
        %v3345 = vunpack.c.l.b16 %v3260
        %v3346 = vunpack.c.h.b16 %v3260
        %v3347 = vunpack.c.l.b16 %v3261
        %v3348 = vunpack.c.h.b16 %v3261
        %v3349 = vunpack.c.l.b16 %v3262
        %v3350 = vunpack.c.h.b16 %v3262
        %v3351 = vunpack.c.l.b16 %v3263
        %v3352 = vunpack.c.h.b16 %v3263
        %v3353 = vunpack.c.l.b16 %v3264
        %v3354 = vunpack.c.h.b16 %v3264
        %v3355 = vunpack.c.l.b16 %v3265
        %v3356 = vunpack.c.h.b16 %v3265
        %v3357 = vunpack.c.l.b16 %v3266
        %v3358 = vunpack.c.h.b16 %v3266
        %v3359 = vunpack.c.l.b16 %v3267
        %v3360 = vunpack.c.h.b16 %v3267
        %v3361 = vunpack.c.l.b16 %v3268
        %v3362 = vunpack.c.h.b16 %v3268
        %v3363 = vunpack.c.l.b16 %v3269
        %v3364 = vunpack.c.h.b16 %v3269
        %v3365 = vunpack.c.l.b16 %v3270
        %v3366 = vunpack.c.h.b16 %v3270
        %v3367 = vpack.c.b16 %v3305, %v3303
        %v3368 = vpack.c.b16 %v3306, %v3304
        %v3369 = vpack.c.b16 %v3309, %v3307
        %v3370 = vpack.c.b16 %v3310, %v3308
        %v3371 = vpack.c.b16 %v3313, %v3311
        %v3372 = vpack.c.b16 %v3314, %v3312
        %v3373 = vpack.c.b16 %v3317, %v3315
        %v3374 = vpack.c.b16 %v3318, %v3316
        %v3375 = vpack.c.b16 %v3321, %v3319
        %v3376 = vpack.c.b16 %v3322, %v3320
        %v3377 = vpack.c.b16 %v3325, %v3323
        %v3378 = vpack.c.b16 %v3326, %v3324
        %v3379 = vpack.c.b16 %v3329, %v3327
        %v3380 = vpack.c.b16 %v3330, %v3328
        %v3381 = vpack.c.b16 %v3333, %v3331
        %v3382 = vpack.c.b16 %v3334, %v3332
        %v3383 = vpack.c.b16 %v3337, %v3335
        %v3384 = vpack.c.b16 %v3338, %v3336
        %v3385 = vpack.c.b16 %v3341, %v3339
        %v3386 = vpack.c.b16 %v3342, %v3340
        %v3387 = vpack.c.b16 %v3345, %v3343
        %v3388 = vpack.c.b16 %v3346, %v3344
        %v3389 = vpack.c.b16 %v3349, %v3347
        %v3390 = vpack.c.b16 %v3350, %v3348
        %v3391 = vpack.c.b16 %v3353, %v3351
        %v3392 = vpack.c.b16 %v3354, %v3352
        %v3393 = vpack.c.b16 %v3357, %v3355
        %v3394 = vpack.c.b16 %v3358, %v3356
        %v3395 = vpack.c.b16 %v3361, %v3359
        %v3396 = vpack.c.b16 %v3362, %v3360
        %v3397 = vpack.c.b16 %v3365, %v3363
        %v3398 = vpack.c.b16 %v3366, %v3364
        %3431 = vmatpush.bf16.msra.mxu0 %v3381
        %3432 = vmatpush.bf16.msra.mxu0 %v3379
        %3433 = vmatpush.bf16.msra.mxu0 %v3377
        %3434 = vmatpush.bf16.msra.mxu0 %v3375
        %3435 = vmatpush.bf16.msra.mxu0 %v3373
        %3436 = vmatpush.bf16.msra.mxu0 %v3371
        %3437 = vmatpush.bf16.msra.mxu0 %v3369
        %3438 = vmatpush.bf16.msra.mxu0 %v3367
        %3439 = vmatmul.bf16.gmra.mxu0 %v3167
        %v3440 = vpop.f32.mrf.mxu0
        %v3441 = vadd.f32 0.0, %v3440
        %v3442 = vpop.f32.mrf.mxu0
        %v3443 = vadd.f32 0.0, %v3442
        %3444 = vmatmul.bf16.gmra.mxu0 %v3169
        %v3445 = vpop.f32.mrf.mxu0
        %v3446 = vadd.f32 0.0, %v3445
        %v3447 = vpop.f32.mrf.mxu0
        %v3448 = vadd.f32 0.0, %v3447
        %3449 = vmatmul.bf16.gmra.mxu0 %v3171
        %v3450 = vpop.f32.mrf.mxu0
        %v3451 = vadd.f32 0.0, %v3450
        %v3452 = vpop.f32.mrf.mxu0
        %v3453 = vadd.f32 0.0, %v3452
        %3454 = vmatmul.bf16.gmra.mxu0 %v3173
        %v3455 = vpop.f32.mrf.mxu0
        %v3456 = vadd.f32 0.0, %v3455
        %v3457 = vpop.f32.mrf.mxu0
        %v3458 = vadd.f32 0.0, %v3457
        %3459 = vmatmul.bf16.gmra.mxu0 %v3175
        %v3460 = vpop.f32.mrf.mxu0
        %v3461 = vadd.f32 0.0, %v3460
        %v3462 = vpop.f32.mrf.mxu0
        %v3463 = vadd.f32 0.0, %v3462
        %3464 = vmatmul.bf16.gmra.mxu0 %v3177
        %v3465 = vpop.f32.mrf.mxu0
        %v3466 = vadd.f32 0.0, %v3465
        %v3467 = vpop.f32.mrf.mxu0
        %v3468 = vadd.f32 0.0, %v3467
        %3469 = vmatmul.bf16.gmra.mxu0 %v3179
        %v3470 = vpop.f32.mrf.mxu0
        %v3471 = vadd.f32 0.0, %v3470
        %v3472 = vpop.f32.mrf.mxu0
        %v3473 = vadd.f32 0.0, %v3472
        %3474 = vmatmul.bf16.gmra.mxu0 %v3201
        %v3475 = vpop.f32.mrf.mxu0
        %v3476 = vadd.f32 0.0, %v3475
        %v3477 = vpop.f32.mrf.mxu0
        %v3478 = vadd.f32 0.0, %v3477
        %3479 = vdwg.mxu0
        %3480 = vmatpush.bf16.msra.mxu0 %v3397
        %3481 = vmatpush.bf16.msra.mxu0 %v3395
        %3482 = vmatpush.bf16.msra.mxu0 %v3393
        %3483 = vmatpush.bf16.msra.mxu0 %v3391
        %3484 = vmatpush.bf16.msra.mxu0 %v3389
        %3485 = vmatpush.bf16.msra.mxu0 %v3387
        %3486 = vmatpush.bf16.msra.mxu0 %v3385
        %3487 = vmatpush.bf16.msra.mxu0 %v3383
        %3488 = vmatmul.bf16.gmra.mxu0 %v3168
        %v3489 = vpop.f32.mrf.mxu0
        %v3490 = vadd.f32 %v3441, %v3489
        %v3491 = vpop.f32.mrf.mxu0
        %v3492 = vadd.f32 %v3443, %v3491
        %3493 = vmatmul.bf16.gmra.mxu0 %v3170
        %v3494 = vpop.f32.mrf.mxu0
        %v3495 = vadd.f32 %v3446, %v3494
        %v3496 = vpop.f32.mrf.mxu0
        %v3497 = vadd.f32 %v3448, %v3496
        %3498 = vmatmul.bf16.gmra.mxu0 %v3172
        %v3499 = vpop.f32.mrf.mxu0
        %v3500 = vadd.f32 %v3451, %v3499
        %v3501 = vpop.f32.mrf.mxu0
        %v3502 = vadd.f32 %v3453, %v3501
        %3503 = vmatmul.bf16.gmra.mxu0 %v3174
        %v3504 = vpop.f32.mrf.mxu0
        %v3505 = vadd.f32 %v3456, %v3504
        %v3506 = vpop.f32.mrf.mxu0
        %v3507 = vadd.f32 %v3458, %v3506
        %3508 = vmatmul.bf16.gmra.mxu0 %v3176
        %v3509 = vpop.f32.mrf.mxu0
        %v3510 = vadd.f32 %v3461, %v3509
        %v3511 = vpop.f32.mrf.mxu0
        %v3512 = vadd.f32 %v3463, %v3511
        %3513 = vmatmul.bf16.gmra.mxu0 %v3178
        %v3514 = vpop.f32.mrf.mxu0
        %v3515 = vadd.f32 %v3466, %v3514
        %v3516 = vpop.f32.mrf.mxu0
        %v3517 = vadd.f32 %v3468, %v3516
        %3518 = vmatmul.bf16.gmra.mxu0 %v3180
        %v3519 = vpop.f32.mrf.mxu0
        %v3520 = vadd.f32 %v3471, %v3519
        %v3521 = vpop.f32.mrf.mxu0
        %v3522 = vadd.f32 %v3473, %v3521
        %3523 = vmatmul.bf16.gmra.mxu0 %v3202
        %v3524 = vpop.f32.mrf.mxu0
        %v3525 = vadd.f32 %v3476, %v3524
        %v3526 = vpop.f32.mrf.mxu0
        %v3527 = vadd.f32 %v3478, %v3526
        %3528 = vdwg.mxu0
        %3529 = vmatpush.bf16.msra.mxu0 %v3382
        %3530 = vmatpush.bf16.msra.mxu0 %v3380
        %3531 = vmatpush.bf16.msra.mxu0 %v3378
        %3532 = vmatpush.bf16.msra.mxu0 %v3376
        %3533 = vmatpush.bf16.msra.mxu0 %v3374
        %3534 = vmatpush.bf16.msra.mxu0 %v3372
        %3535 = vmatpush.bf16.msra.mxu0 %v3370
        %3536 = vmatpush.bf16.msra.mxu0 %v3368
        %3537 = vmatmul.bf16.gmra.mxu0 %v3167
        %v3538 = vpop.f32.mrf.mxu0
        %v3539 = vadd.f32 0.0, %v3538
        %v3540 = vpop.f32.mrf.mxu0
        %v3541 = vadd.f32 0.0, %v3540
        %3542 = vmatmul.bf16.gmra.mxu0 %v3169
        %v3543 = vpop.f32.mrf.mxu0
        %v3544 = vadd.f32 0.0, %v3543
        %v3545 = vpop.f32.mrf.mxu0
        %v3546 = vadd.f32 0.0, %v3545
        %3547 = vmatmul.bf16.gmra.mxu0 %v3171
        %v3548 = vpop.f32.mrf.mxu0
        %v3549 = vadd.f32 0.0, %v3548
        %v3550 = vpop.f32.mrf.mxu0
        %v3551 = vadd.f32 0.0, %v3550
        %3552 = vmatmul.bf16.gmra.mxu0 %v3173
        %v3553 = vpop.f32.mrf.mxu0
        %v3554 = vadd.f32 0.0, %v3553
        %v3555 = vpop.f32.mrf.mxu0
        %v3556 = vadd.f32 0.0, %v3555
        %3557 = vmatmul.bf16.gmra.mxu0 %v3175
        %v3558 = vpop.f32.mrf.mxu0
        %v3559 = vadd.f32 0.0, %v3558
        %v3560 = vpop.f32.mrf.mxu0
        %v3561 = vadd.f32 0.0, %v3560
        %3562 = vmatmul.bf16.gmra.mxu0 %v3177
        %v3563 = vpop.f32.mrf.mxu0
        %v3564 = vadd.f32 0.0, %v3563
        %v3565 = vpop.f32.mrf.mxu0
        %v3566 = vadd.f32 0.0, %v3565
        %3567 = vmatmul.bf16.gmra.mxu0 %v3179
        %v3568 = vpop.f32.mrf.mxu0
        %v3569 = vadd.f32 0.0, %v3568
        %v3570 = vpop.f32.mrf.mxu0
        %v3571 = vadd.f32 0.0, %v3570
        %3572 = vmatmul.bf16.gmra.mxu0 %v3201
        %v3573 = vpop.f32.mrf.mxu0
        %v3574 = vadd.f32 0.0, %v3573
        %v3575 = vpop.f32.mrf.mxu0
        %v3576 = vadd.f32 0.0, %v3575
        %3577 = vdwg.mxu0
        %3578 = vmatpush.bf16.msra.mxu0 %v3398
        %3579 = vmatpush.bf16.msra.mxu0 %v3396
        %3580 = vmatpush.bf16.msra.mxu0 %v3394
        %3581 = vmatpush.bf16.msra.mxu0 %v3392
        %3582 = vmatpush.bf16.msra.mxu0 %v3390
        %3583 = vmatpush.bf16.msra.mxu0 %v3388
        %3584 = vmatpush.bf16.msra.mxu0 %v3386
        %3585 = vmatpush.bf16.msra.mxu0 %v3384
        %3586 = vmatmul.bf16.gmra.mxu0 %v3168
        %v3587 = vpop.f32.mrf.mxu0
        %v3588 = vadd.f32 %v3539, %v3587
        %v3589 = vpop.f32.mrf.mxu0
        %v3590 = vadd.f32 %v3541, %v3589
        %3591 = vmatmul.bf16.gmra.mxu0 %v3170
        %v3592 = vpop.f32.mrf.mxu0
        %v3593 = vadd.f32 %v3544, %v3592
        %v3594 = vpop.f32.mrf.mxu0
        %v3595 = vadd.f32 %v3546, %v3594
        %3596 = vmatmul.bf16.gmra.mxu0 %v3172
        %v3597 = vpop.f32.mrf.mxu0
        %v3598 = vadd.f32 %v3549, %v3597
        %v3599 = vpop.f32.mrf.mxu0
        %v3600 = vadd.f32 %v3551, %v3599
        %3601 = vmatmul.bf16.gmra.mxu0 %v3174
        %v3602 = vpop.f32.mrf.mxu0
        %v3603 = vadd.f32 %v3554, %v3602
        %v3604 = vpop.f32.mrf.mxu0
        %v3605 = vadd.f32 %v3556, %v3604
        %3606 = vmatmul.bf16.gmra.mxu0 %v3176
        %v3607 = vpop.f32.mrf.mxu0
        %v3608 = vadd.f32 %v3559, %v3607
        %v3609 = vpop.f32.mrf.mxu0
        %v3610 = vadd.f32 %v3561, %v3609
        %3611 = vmatmul.bf16.gmra.mxu0 %v3178
        %v3612 = vpop.f32.mrf.mxu0
        %v3613 = vadd.f32 %v3564, %v3612
        %v3614 = vpop.f32.mrf.mxu0
        %v3615 = vadd.f32 %v3566, %v3614
        %3616 = vmatmul.bf16.gmra.mxu0 %v3180
        %v3617 = vpop.f32.mrf.mxu0
        %v3618 = vadd.f32 %v3569, %v3617
        %v3619 = vpop.f32.mrf.mxu0
        %v3620 = vadd.f32 %v3571, %v3619
        %3621 = vmatmul.bf16.gmra.mxu0 %v3202
        %v3622 = vpop.f32.mrf.mxu0
        %v3623 = vadd.f32 %v3574, %v3622
        %v3624 = vpop.f32.mrf.mxu0
        %v3625 = vadd.f32 %v3576, %v3624
        %3626 = vdwg.mxu0
        %v3659 = vunpack.c.l.b16 %v3206
        %v3660 = vunpack.c.h.b16 %v3206
        %v3661 = vunpack.c.l.b16 %v3207
        %v3662 = vunpack.c.h.b16 %v3207
        %v3663 = vunpack.c.l.b16 %v3208
        %v3664 = vunpack.c.h.b16 %v3208
        %v3665 = vunpack.c.l.b16 %v3209
        %v3666 = vunpack.c.h.b16 %v3209
        %v3667 = vunpack.c.l.b16 %v3210
        %v3668 = vunpack.c.h.b16 %v3210
        %v3669 = vunpack.c.l.b16 %v3211
        %v3670 = vunpack.c.h.b16 %v3211
        %v3671 = vunpack.c.l.b16 %v3212
        %v3672 = vunpack.c.h.b16 %v3212
        %v3673 = vunpack.c.l.b16 %v3213
        %v3674 = vunpack.c.h.b16 %v3213
        %v3675 = vunpack.c.l.b16 %v3214
        %v3676 = vunpack.c.h.b16 %v3214
        %v3677 = vunpack.c.l.b16 %v3215
        %v3678 = vunpack.c.h.b16 %v3215
        %v3679 = vunpack.c.l.b16 %v3216
        %v3680 = vunpack.c.h.b16 %v3216
        %v3681 = vunpack.c.l.b16 %v3217
        %v3682 = vunpack.c.h.b16 %v3217
        %v3683 = vunpack.c.l.b16 %v3218
        %v3684 = vunpack.c.h.b16 %v3218
        %v3685 = vunpack.c.l.b16 %v3219
        %v3686 = vunpack.c.h.b16 %v3219
        %v3687 = vunpack.c.l.b16 %v3220
        %v3688 = vunpack.c.h.b16 %v3220
        %v3689 = vunpack.c.l.b16 %v3221
        %v3690 = vunpack.c.h.b16 %v3221
        %v3691 = vunpack.c.l.b16 %v3222
        %v3692 = vunpack.c.h.b16 %v3222
        %v3693 = vunpack.c.l.b16 %v3223
        %v3694 = vunpack.c.h.b16 %v3223
        %v3695 = vunpack.c.l.b16 %v3224
        %v3696 = vunpack.c.h.b16 %v3224
        %v3697 = vunpack.c.l.b16 %v3225
        %v3698 = vunpack.c.h.b16 %v3225
        %v3699 = vunpack.c.l.b16 %v3226
        %v3700 = vunpack.c.h.b16 %v3226
        %v3701 = vunpack.c.l.b16 %v3227
        %v3702 = vunpack.c.h.b16 %v3227
        %v3703 = vunpack.c.l.b16 %v3228
        %v3704 = vunpack.c.h.b16 %v3228
        %v3705 = vunpack.c.l.b16 %v3229
        %v3706 = vunpack.c.h.b16 %v3229
        %v3707 = vunpack.c.l.b16 %v3230
        %v3708 = vunpack.c.h.b16 %v3230
        %v3709 = vunpack.c.l.b16 %v3231
        %v3710 = vunpack.c.h.b16 %v3231
        %v3711 = vunpack.c.l.b16 %v3232
        %v3712 = vunpack.c.h.b16 %v3232
        %v3713 = vunpack.c.l.b16 %v3233
        %v3714 = vunpack.c.h.b16 %v3233
        %v3715 = vunpack.c.l.b16 %v3234
        %v3716 = vunpack.c.h.b16 %v3234
        %v3717 = vunpack.c.l.b16 %v3235
        %v3718 = vunpack.c.h.b16 %v3235
        %v3719 = vunpack.c.l.b16 %v3236
        %v3720 = vunpack.c.h.b16 %v3236
        %v3721 = vunpack.c.l.b16 %v3237
        %v3722 = vunpack.c.h.b16 %v3237
        %v3723 = vpack.c.b16 %v3661, %v3659
        %v3724 = vpack.c.b16 %v3662, %v3660
        %v3725 = vpack.c.b16 %v3665, %v3663
        %v3726 = vpack.c.b16 %v3666, %v3664
        %v3727 = vpack.c.b16 %v3669, %v3667
        %v3728 = vpack.c.b16 %v3670, %v3668
        %v3729 = vpack.c.b16 %v3673, %v3671
        %v3730 = vpack.c.b16 %v3674, %v3672
        %v3731 = vpack.c.b16 %v3677, %v3675
        %v3732 = vpack.c.b16 %v3678, %v3676
        %v3733 = vpack.c.b16 %v3681, %v3679
        %v3734 = vpack.c.b16 %v3682, %v3680
        %v3735 = vpack.c.b16 %v3685, %v3683
        %v3736 = vpack.c.b16 %v3686, %v3684
        %v3737 = vpack.c.b16 %v3689, %v3687
        %v3738 = vpack.c.b16 %v3690, %v3688
        %v3739 = vpack.c.b16 %v3693, %v3691
        %v3740 = vpack.c.b16 %v3694, %v3692
        %v3741 = vpack.c.b16 %v3697, %v3695
        %v3742 = vpack.c.b16 %v3698, %v3696
        %v3743 = vpack.c.b16 %v3701, %v3699
        %v3744 = vpack.c.b16 %v3702, %v3700
        %v3745 = vpack.c.b16 %v3705, %v3703
        %v3746 = vpack.c.b16 %v3706, %v3704
        %v3747 = vpack.c.b16 %v3709, %v3707
        %v3748 = vpack.c.b16 %v3710, %v3708
        %v3749 = vpack.c.b16 %v3713, %v3711
        %v3750 = vpack.c.b16 %v3714, %v3712
        %v3751 = vpack.c.b16 %v3717, %v3715
        %v3752 = vpack.c.b16 %v3718, %v3716
        %v3753 = vpack.c.b16 %v3721, %v3719
        %v3754 = vpack.c.b16 %v3722, %v3720
        %3787 = vmatpush.bf16.msra.mxu0 %v3737
        %3788 = vmatpush.bf16.msra.mxu0 %v3735
        %3789 = vmatpush.bf16.msra.mxu0 %v3733
        %3790 = vmatpush.bf16.msra.mxu0 %v3731
        %3791 = vmatpush.bf16.msra.mxu0 %v3729
        %3792 = vmatpush.bf16.msra.mxu0 %v3727
        %3793 = vmatpush.bf16.msra.mxu0 %v3725
        %3794 = vmatpush.bf16.msra.mxu0 %v3723
        %3795 = vmatmul.bf16.gmra.mxu0 0
        %v3796 = vpop.f32.mrf.mxu0
        %v3797 = vadd.f32 %v3490, %v3796
        %v3798 = vpop.f32.mrf.mxu0
        %v3799 = vadd.f32 %v3492, %v3798
        %3800 = vmatmul.bf16.gmra.mxu0 %v3167
        %v3801 = vpop.f32.mrf.mxu0
        %v3802 = vadd.f32 %v3495, %v3801
        %v3803 = vpop.f32.mrf.mxu0
        %v3804 = vadd.f32 %v3497, %v3803
        %3805 = vmatmul.bf16.gmra.mxu0 %v3169
        %v3806 = vpop.f32.mrf.mxu0
        %v3807 = vadd.f32 %v3500, %v3806
        %v3808 = vpop.f32.mrf.mxu0
        %v3809 = vadd.f32 %v3502, %v3808
        %3810 = vmatmul.bf16.gmra.mxu0 %v3171
        %v3811 = vpop.f32.mrf.mxu0
        %v3812 = vadd.f32 %v3505, %v3811
        %v3813 = vpop.f32.mrf.mxu0
        %v3814 = vadd.f32 %v3507, %v3813
        %3815 = vmatmul.bf16.gmra.mxu0 %v3173
        %v3816 = vpop.f32.mrf.mxu0
        %v3817 = vadd.f32 %v3510, %v3816
        %v3818 = vpop.f32.mrf.mxu0
        %v3819 = vadd.f32 %v3512, %v3818
        %3820 = vmatmul.bf16.gmra.mxu0 %v3175
        %v3821 = vpop.f32.mrf.mxu0
        %v3822 = vadd.f32 %v3515, %v3821
        %v3823 = vpop.f32.mrf.mxu0
        %v3824 = vadd.f32 %v3517, %v3823
        %3825 = vmatmul.bf16.gmra.mxu0 %v3177
        %v3826 = vpop.f32.mrf.mxu0
        %v3827 = vadd.f32 %v3520, %v3826
        %v3828 = vpop.f32.mrf.mxu0
        %v3829 = vadd.f32 %v3522, %v3828
        %3830 = vmatmul.bf16.gmra.mxu0 %v3179
        %v3831 = vpop.f32.mrf.mxu0
        %v3832 = vadd.f32 %v3525, %v3831
        %v3833 = vpop.f32.mrf.mxu0
        %v3834 = vadd.f32 %v3527, %v3833
        %3835 = vdwg.mxu0
        %3836 = vmatpush.bf16.msra.mxu0 %v3753
        %3837 = vmatpush.bf16.msra.mxu0 %v3751
        %3838 = vmatpush.bf16.msra.mxu0 %v3749
        %3839 = vmatpush.bf16.msra.mxu0 %v3747
        %3840 = vmatpush.bf16.msra.mxu0 %v3745
        %3841 = vmatpush.bf16.msra.mxu0 %v3743
        %3842 = vmatpush.bf16.msra.mxu0 %v3741
        %3843 = vmatpush.bf16.msra.mxu0 %v3739
        %3844 = vmatmul.bf16.gmra.mxu0 0
        %v3845 = vpop.f32.mrf.mxu0
        %v3846 = vadd.f32 %v3797, %v3845
        %v3847 = vpop.f32.mrf.mxu0
        %v3848 = vadd.f32 %v3799, %v3847
        %3849 = vmatmul.bf16.gmra.mxu0 %v3168
        %v3850 = vpop.f32.mrf.mxu0
        %v3851 = vadd.f32 %v3802, %v3850
        %v3852 = vpop.f32.mrf.mxu0
        %v3853 = vadd.f32 %v3804, %v3852
        %3854 = vmatmul.bf16.gmra.mxu0 %v3170
        %v3855 = vpop.f32.mrf.mxu0
        %v3856 = vadd.f32 %v3807, %v3855
        %v3857 = vpop.f32.mrf.mxu0
        %v3858 = vadd.f32 %v3809, %v3857
        %3859 = vmatmul.bf16.gmra.mxu0 %v3172
        %v3860 = vpop.f32.mrf.mxu0
        %v3861 = vadd.f32 %v3812, %v3860
        %v3862 = vpop.f32.mrf.mxu0
        %v3863 = vadd.f32 %v3814, %v3862
        %3864 = vmatmul.bf16.gmra.mxu0 %v3174
        %v3865 = vpop.f32.mrf.mxu0
        %v3866 = vadd.f32 %v3817, %v3865
        %v3867 = vpop.f32.mrf.mxu0
        %v3868 = vadd.f32 %v3819, %v3867
        %3869 = vmatmul.bf16.gmra.mxu0 %v3176
        %v3870 = vpop.f32.mrf.mxu0
        %v3871 = vadd.f32 %v3822, %v3870
        %v3872 = vpop.f32.mrf.mxu0
        %v3873 = vadd.f32 %v3824, %v3872
        %3874 = vmatmul.bf16.gmra.mxu0 %v3178
        %v3875 = vpop.f32.mrf.mxu0
        %v3876 = vadd.f32 %v3827, %v3875
        %v3877 = vpop.f32.mrf.mxu0
        %v3878 = vadd.f32 %v3829, %v3877
        %3879 = vmatmul.bf16.gmra.mxu0 %v3180
        %v3880 = vpop.f32.mrf.mxu0
        %v3881 = vadd.f32 %v3832, %v3880
        %v3882 = vpop.f32.mrf.mxu0
        %v3883 = vadd.f32 %v3834, %v3882
        %3884 = vdwg.mxu0
        %3885 = vmatpush.bf16.msra.mxu0 %v3738
        %3886 = vmatpush.bf16.msra.mxu0 %v3736
        %3887 = vmatpush.bf16.msra.mxu0 %v3734
        %3888 = vmatpush.bf16.msra.mxu0 %v3732
        %3889 = vmatpush.bf16.msra.mxu0 %v3730
        %3890 = vmatpush.bf16.msra.mxu0 %v3728
        %3891 = vmatpush.bf16.msra.mxu0 %v3726
        %3892 = vmatpush.bf16.msra.mxu0 %v3724
        %3893 = vmatmul.bf16.gmra.mxu0 0
        %v3894 = vpop.f32.mrf.mxu0
        %v3895 = vadd.f32 %v3588, %v3894
        %v3896 = vpop.f32.mrf.mxu0
        %v3897 = vadd.f32 %v3590, %v3896
        %3898 = vmatmul.bf16.gmra.mxu0 %v3167
        %v3899 = vpop.f32.mrf.mxu0
        %v3900 = vadd.f32 %v3593, %v3899
        %v3901 = vpop.f32.mrf.mxu0
        %v3902 = vadd.f32 %v3595, %v3901
        %3903 = vmatmul.bf16.gmra.mxu0 %v3169
        %v3904 = vpop.f32.mrf.mxu0
        %v3905 = vadd.f32 %v3598, %v3904
        %v3906 = vpop.f32.mrf.mxu0
        %v3907 = vadd.f32 %v3600, %v3906
        %3908 = vmatmul.bf16.gmra.mxu0 %v3171
        %v3909 = vpop.f32.mrf.mxu0
        %v3910 = vadd.f32 %v3603, %v3909
        %v3911 = vpop.f32.mrf.mxu0
        %v3912 = vadd.f32 %v3605, %v3911
        %3913 = vmatmul.bf16.gmra.mxu0 %v3173
        %v3914 = vpop.f32.mrf.mxu0
        %v3915 = vadd.f32 %v3608, %v3914
        %v3916 = vpop.f32.mrf.mxu0
        %v3917 = vadd.f32 %v3610, %v3916
        %3918 = vmatmul.bf16.gmra.mxu0 %v3175
        %v3919 = vpop.f32.mrf.mxu0
        %v3920 = vadd.f32 %v3613, %v3919
        %v3921 = vpop.f32.mrf.mxu0
        %v3922 = vadd.f32 %v3615, %v3921
        %3923 = vmatmul.bf16.gmra.mxu0 %v3177
        %v3924 = vpop.f32.mrf.mxu0
        %v3925 = vadd.f32 %v3618, %v3924
        %v3926 = vpop.f32.mrf.mxu0
        %v3927 = vadd.f32 %v3620, %v3926
        %3928 = vmatmul.bf16.gmra.mxu0 %v3179
        %v3929 = vpop.f32.mrf.mxu0
        %v3930 = vadd.f32 %v3623, %v3929
        %v3931 = vpop.f32.mrf.mxu0
        %v3932 = vadd.f32 %v3625, %v3931
        %3933 = vdwg.mxu0
        %3934 = vmatpush.bf16.msra.mxu0 %v3754
        %3935 = vmatpush.bf16.msra.mxu0 %v3752
        %3936 = vmatpush.bf16.msra.mxu0 %v3750
        %3937 = vmatpush.bf16.msra.mxu0 %v3748
        %3938 = vmatpush.bf16.msra.mxu0 %v3746
        %3939 = vmatpush.bf16.msra.mxu0 %v3744
        %3940 = vmatpush.bf16.msra.mxu0 %v3742
        %3941 = vmatpush.bf16.msra.mxu0 %v3740
        %3942 = vmatmul.bf16.gmra.mxu0 0
        %v3943 = vpop.f32.mrf.mxu0
        %v3944 = vadd.f32 %v3895, %v3943
        %v3945 = vpop.f32.mrf.mxu0
        %v3946 = vadd.f32 %v3897, %v3945
        %3947 = vmatmul.bf16.gmra.mxu0 %v3168
        %v3948 = vpop.f32.mrf.mxu0
        %v3949 = vadd.f32 %v3900, %v3948
        %v3950 = vpop.f32.mrf.mxu0
        %v3951 = vadd.f32 %v3902, %v3950
        %3952 = vmatmul.bf16.gmra.mxu0 %v3170
        %v3953 = vpop.f32.mrf.mxu0
        %v3954 = vadd.f32 %v3905, %v3953
        %v3955 = vpop.f32.mrf.mxu0
        %v3956 = vadd.f32 %v3907, %v3955
        %3957 = vmatmul.bf16.gmra.mxu0 %v3172
        %v3958 = vpop.f32.mrf.mxu0
        %v3959 = vadd.f32 %v3910, %v3958
        %v3960 = vpop.f32.mrf.mxu0
        %v3961 = vadd.f32 %v3912, %v3960
        %3962 = vmatmul.bf16.gmra.mxu0 %v3174
        %v3963 = vpop.f32.mrf.mxu0
        %v3964 = vadd.f32 %v3915, %v3963
        %v3965 = vpop.f32.mrf.mxu0
        %v3966 = vadd.f32 %v3917, %v3965
        %3967 = vmatmul.bf16.gmra.mxu0 %v3176
        %v3968 = vpop.f32.mrf.mxu0
        %v3969 = vadd.f32 %v3920, %v3968
        %v3970 = vpop.f32.mrf.mxu0
        %v3971 = vadd.f32 %v3922, %v3970
        %3972 = vmatmul.bf16.gmra.mxu0 %v3178
        %v3973 = vpop.f32.mrf.mxu0
        %v3974 = vadd.f32 %v3925, %v3973
        %v3975 = vpop.f32.mrf.mxu0
        %v3976 = vadd.f32 %v3927, %v3975
        %3977 = vmatmul.bf16.gmra.mxu0 %v3180
        %v3978 = vpop.f32.mrf.mxu0
        %v3979 = vadd.f32 %v3930, %v3978
        %v3980 = vpop.f32.mrf.mxu0
        %v3981 = vadd.f32 %v3932, %v3980
        %3982 = vdwg.mxu0
        %s3983 = scalar_lea.vmem %s1, 2048
        %v3984 = vld [vmem:[%s3983] sm:$0xff]
        %v3985 = vld [vmem:[%s3983 + $0x8] sm:$0xff]
        %v3986 = vld [vmem:[%s3983 + $0x10] sm:$0xff]
        %v3987 = vld [vmem:[%s3983 + $0x18] sm:$0xff]
        %v3988 = vld [vmem:[%s3983 + $0x20] sm:$0xff]
        %v3989 = vld [vmem:[%s3983 + $0x28] sm:$0xff]
        %v3990 = vld [vmem:[%s3983 + $0x30] sm:$0xff]
        %v3991 = vld [vmem:[%s3983 + $0x38] sm:$0xff]
        %v3992 = vld [vmem:[%s3983 + $0x40] sm:$0xff]
        %v3993 = vld [vmem:[%s3983 + $0x48] sm:$0xff]
        %v3994 = vld [vmem:[%s3983 + $0x50] sm:$0xff]
        %v3995 = vld [vmem:[%s3983 + $0x58] sm:$0xff]
        %v3996 = vld [vmem:[%s3983 + $0x60] sm:$0xff]
        %v3997 = vld [vmem:[%s3983 + $0x68] sm:$0xff]
        %v3998 = vld [vmem:[%s3983 + $0x70] sm:$0xff]
        %v3999 = vld [vmem:[%s3983 + $0x78] sm:$0xff]
        %v4000 = vld [vmem:[%s3983 + $0x80] sm:$0xff]
        %v4001 = vld [vmem:[%s3983 + $0x88] sm:$0xff]
        %v4002 = vld [vmem:[%s3983 + $0x90] sm:$0xff]
        %v4003 = vld [vmem:[%s3983 + $0x98] sm:$0xff]
        %v4004 = vld [vmem:[%s3983 + $0xa0] sm:$0xff]
        %v4005 = vld [vmem:[%s3983 + $0xa8] sm:$0xff]
        %v4006 = vld [vmem:[%s3983 + $0xb0] sm:$0xff]
        %v4007 = vld [vmem:[%s3983 + $0xb8] sm:$0xff]
        %v4008 = vld [vmem:[%s3983 + $0xc0] sm:$0xff]
        %v4009 = vld [vmem:[%s3983 + $0xc8] sm:$0xff]
        %v4010 = vld [vmem:[%s3983 + $0xd0] sm:$0xff]
        %v4011 = vld [vmem:[%s3983 + $0xd8] sm:$0xff]
        %v4012 = vld [vmem:[%s3983 + $0xe0] sm:$0xff]
        %v4013 = vld [vmem:[%s3983 + $0xe8] sm:$0xff]
        %v4014 = vld [vmem:[%s3983 + $0xf0] sm:$0xff]
        %v4015 = vld [vmem:[%s3983 + $0xf8] sm:$0xff]
        %v4048 = vunpack.c.l.b16 %v3984
        %v4049 = vunpack.c.h.b16 %v3984
        %v4050 = vunpack.c.l.b16 %v3985
        %v4051 = vunpack.c.h.b16 %v3985
        %v4052 = vunpack.c.l.b16 %v3986
        %v4053 = vunpack.c.h.b16 %v3986
        %v4054 = vunpack.c.l.b16 %v3987
        %v4055 = vunpack.c.h.b16 %v3987
        %v4056 = vunpack.c.l.b16 %v3988
        %v4057 = vunpack.c.h.b16 %v3988
        %v4058 = vunpack.c.l.b16 %v3989
        %v4059 = vunpack.c.h.b16 %v3989
        %v4060 = vunpack.c.l.b16 %v3990
        %v4061 = vunpack.c.h.b16 %v3990
        %v4062 = vunpack.c.l.b16 %v3991
        %v4063 = vunpack.c.h.b16 %v3991
        %v4064 = vunpack.c.l.b16 %v3992
        %v4065 = vunpack.c.h.b16 %v3992
        %v4066 = vunpack.c.l.b16 %v3993
        %v4067 = vunpack.c.h.b16 %v3993
        %v4068 = vunpack.c.l.b16 %v3994
        %v4069 = vunpack.c.h.b16 %v3994
        %v4070 = vunpack.c.l.b16 %v3995
        %v4071 = vunpack.c.h.b16 %v3995
        %v4072 = vunpack.c.l.b16 %v3996
        %v4073 = vunpack.c.h.b16 %v3996
        %v4074 = vunpack.c.l.b16 %v3997
        %v4075 = vunpack.c.h.b16 %v3997
        %v4076 = vunpack.c.l.b16 %v3998
        %v4077 = vunpack.c.h.b16 %v3998
        %v4078 = vunpack.c.l.b16 %v3999
        %v4079 = vunpack.c.h.b16 %v3999
        %v4080 = vunpack.c.l.b16 %v4000
        %v4081 = vunpack.c.h.b16 %v4000
        %v4082 = vunpack.c.l.b16 %v4001
        %v4083 = vunpack.c.h.b16 %v4001
        %v4084 = vunpack.c.l.b16 %v4002
        %v4085 = vunpack.c.h.b16 %v4002
        %v4086 = vunpack.c.l.b16 %v4003
        %v4087 = vunpack.c.h.b16 %v4003
        %v4088 = vunpack.c.l.b16 %v4004
        %v4089 = vunpack.c.h.b16 %v4004
        %v4090 = vunpack.c.l.b16 %v4005
        %v4091 = vunpack.c.h.b16 %v4005
        %v4092 = vunpack.c.l.b16 %v4006
        %v4093 = vunpack.c.h.b16 %v4006
        %v4094 = vunpack.c.l.b16 %v4007
        %v4095 = vunpack.c.h.b16 %v4007
        %v4096 = vunpack.c.l.b16 %v4008
        %v4097 = vunpack.c.h.b16 %v4008
        %v4098 = vunpack.c.l.b16 %v4009
        %v4099 = vunpack.c.h.b16 %v4009
        %v4100 = vunpack.c.l.b16 %v4010
        %v4101 = vunpack.c.h.b16 %v4010
        %v4102 = vunpack.c.l.b16 %v4011
        %v4103 = vunpack.c.h.b16 %v4011
        %v4104 = vunpack.c.l.b16 %v4012
        %v4105 = vunpack.c.h.b16 %v4012
        %v4106 = vunpack.c.l.b16 %v4013
        %v4107 = vunpack.c.h.b16 %v4013
        %v4108 = vunpack.c.l.b16 %v4014
        %v4109 = vunpack.c.h.b16 %v4014
        %v4110 = vunpack.c.l.b16 %v4015
        %v4111 = vunpack.c.h.b16 %v4015
        %v4112 = vpack.c.b16 %v4050, %v4048
        %v4113 = vpack.c.b16 %v4051, %v4049
        %v4114 = vpack.c.b16 %v4054, %v4052
        %v4115 = vpack.c.b16 %v4055, %v4053
        %v4116 = vpack.c.b16 %v4058, %v4056
        %v4117 = vpack.c.b16 %v4059, %v4057
        %v4118 = vpack.c.b16 %v4062, %v4060
        %v4119 = vpack.c.b16 %v4063, %v4061
        %v4120 = vpack.c.b16 %v4066, %v4064
        %v4121 = vpack.c.b16 %v4067, %v4065
        %v4122 = vpack.c.b16 %v4070, %v4068
        %v4123 = vpack.c.b16 %v4071, %v4069
        %v4124 = vpack.c.b16 %v4074, %v4072
        %v4125 = vpack.c.b16 %v4075, %v4073
        %v4126 = vpack.c.b16 %v4078, %v4076
        %v4127 = vpack.c.b16 %v4079, %v4077
        %v4128 = vpack.c.b16 %v4082, %v4080
        %v4129 = vpack.c.b16 %v4083, %v4081
        %v4130 = vpack.c.b16 %v4086, %v4084
        %v4131 = vpack.c.b16 %v4087, %v4085
        %v4132 = vpack.c.b16 %v4090, %v4088
        %v4133 = vpack.c.b16 %v4091, %v4089
        %v4134 = vpack.c.b16 %v4094, %v4092
        %v4135 = vpack.c.b16 %v4095, %v4093
        %v4136 = vpack.c.b16 %v4098, %v4096
        %v4137 = vpack.c.b16 %v4099, %v4097
        %v4138 = vpack.c.b16 %v4102, %v4100
        %v4139 = vpack.c.b16 %v4103, %v4101
        %v4140 = vpack.c.b16 %v4106, %v4104
        %v4141 = vpack.c.b16 %v4107, %v4105
        %v4142 = vpack.c.b16 %v4110, %v4108
        %v4143 = vpack.c.b16 %v4111, %v4109
        %4176 = vmatpush.bf16.msra.mxu0 %v4126
        %4177 = vmatpush.bf16.msra.mxu0 %v4124
        %4178 = vmatpush.bf16.msra.mxu0 %v4122
        %4179 = vmatpush.bf16.msra.mxu0 %v4120
        %4180 = vmatpush.bf16.msra.mxu0 %v4118
        %4181 = vmatpush.bf16.msra.mxu0 %v4116
        %4182 = vmatpush.bf16.msra.mxu0 %v4114
        %4183 = vmatpush.bf16.msra.mxu0 %v4112
        %4184 = vmatmul.bf16.gmra.mxu0 %v3169
        %v4185 = vpop.f32.mrf.mxu0
        %v4186 = vadd.f32 0.0, %v4185
        %v4187 = vpop.f32.mrf.mxu0
        %v4188 = vadd.f32 0.0, %v4187
        %4189 = vmatmul.bf16.gmra.mxu0 %v3171
        %v4190 = vpop.f32.mrf.mxu0
        %v4191 = vadd.f32 0.0, %v4190
        %v4192 = vpop.f32.mrf.mxu0
        %v4193 = vadd.f32 0.0, %v4192
        %4194 = vmatmul.bf16.gmra.mxu0 %v3173
        %v4195 = vpop.f32.mrf.mxu0
        %v4196 = vadd.f32 0.0, %v4195
        %v4197 = vpop.f32.mrf.mxu0
        %v4198 = vadd.f32 0.0, %v4197
        %4199 = vmatmul.bf16.gmra.mxu0 %v3175
        %v4200 = vpop.f32.mrf.mxu0
        %v4201 = vadd.f32 0.0, %v4200
        %v4202 = vpop.f32.mrf.mxu0
        %v4203 = vadd.f32 0.0, %v4202
        %4204 = vmatmul.bf16.gmra.mxu0 %v3177
        %v4205 = vpop.f32.mrf.mxu0
        %v4206 = vadd.f32 0.0, %v4205
        %v4207 = vpop.f32.mrf.mxu0
        %v4208 = vadd.f32 0.0, %v4207
        %4209 = vmatmul.bf16.gmra.mxu0 %v3179
        %v4210 = vpop.f32.mrf.mxu0
        %v4211 = vadd.f32 0.0, %v4210
        %v4212 = vpop.f32.mrf.mxu0
        %v4213 = vadd.f32 0.0, %v4212
        %4214 = vmatmul.bf16.gmra.mxu0 %v3201
        %v4215 = vpop.f32.mrf.mxu0
        %v4216 = vadd.f32 0.0, %v4215
        %v4217 = vpop.f32.mrf.mxu0
        %v4218 = vadd.f32 0.0, %v4217
        %4219 = vmatmul.bf16.gmra.mxu0 0
        %v4220 = vpop.f32.mrf.mxu0
        %v4221 = vadd.f32 0.0, %v4220
        %v4222 = vpop.f32.mrf.mxu0
        %v4223 = vadd.f32 0.0, %v4222
        %4224 = vdwg.mxu0
        %4225 = vmatpush.bf16.msra.mxu0 %v4142
        %4226 = vmatpush.bf16.msra.mxu0 %v4140
        %4227 = vmatpush.bf16.msra.mxu0 %v4138
        %4228 = vmatpush.bf16.msra.mxu0 %v4136
        %4229 = vmatpush.bf16.msra.mxu0 %v4134
        %4230 = vmatpush.bf16.msra.mxu0 %v4132
        %4231 = vmatpush.bf16.msra.mxu0 %v4130
        %4232 = vmatpush.bf16.msra.mxu0 %v4128
        %4233 = vmatmul.bf16.gmra.mxu0 %v3170
        %v4234 = vpop.f32.mrf.mxu0
        %v4235 = vadd.f32 %v4186, %v4234
        %v4236 = vpop.f32.mrf.mxu0
        %v4237 = vadd.f32 %v4188, %v4236
        %4238 = vmatmul.bf16.gmra.mxu0 %v3172
        %v4239 = vpop.f32.mrf.mxu0
        %v4240 = vadd.f32 %v4191, %v4239
        %v4241 = vpop.f32.mrf.mxu0
        %v4242 = vadd.f32 %v4193, %v4241
        %4243 = vmatmul.bf16.gmra.mxu0 %v3174
        %v4244 = vpop.f32.mrf.mxu0
        %v4245 = vadd.f32 %v4196, %v4244
        %v4246 = vpop.f32.mrf.mxu0
        %v4247 = vadd.f32 %v4198, %v4246
        %4248 = vmatmul.bf16.gmra.mxu0 %v3176
        %v4249 = vpop.f32.mrf.mxu0
        %v4250 = vadd.f32 %v4201, %v4249
        %v4251 = vpop.f32.mrf.mxu0
        %v4252 = vadd.f32 %v4203, %v4251
        %4253 = vmatmul.bf16.gmra.mxu0 %v3178
        %v4254 = vpop.f32.mrf.mxu0
        %v4255 = vadd.f32 %v4206, %v4254
        %v4256 = vpop.f32.mrf.mxu0
        %v4257 = vadd.f32 %v4208, %v4256
        %4258 = vmatmul.bf16.gmra.mxu0 %v3180
        %v4259 = vpop.f32.mrf.mxu0
        %v4260 = vadd.f32 %v4211, %v4259
        %v4261 = vpop.f32.mrf.mxu0
        %v4262 = vadd.f32 %v4213, %v4261
        %4263 = vmatmul.bf16.gmra.mxu0 %v3202
        %v4264 = vpop.f32.mrf.mxu0
        %v4265 = vadd.f32 %v4216, %v4264
        %v4266 = vpop.f32.mrf.mxu0
        %v4267 = vadd.f32 %v4218, %v4266
        %4268 = vmatmul.bf16.gmra.mxu0 0
        %v4269 = vpop.f32.mrf.mxu0
        %v4270 = vadd.f32 %v4221, %v4269
        %v4271 = vpop.f32.mrf.mxu0
        %v4272 = vadd.f32 %v4223, %v4271
        %4273 = vdwg.mxu0
        %4274 = vmatpush.bf16.msra.mxu0 %v4127
        %4275 = vmatpush.bf16.msra.mxu0 %v4125
        %4276 = vmatpush.bf16.msra.mxu0 %v4123
        %4277 = vmatpush.bf16.msra.mxu0 %v4121
        %4278 = vmatpush.bf16.msra.mxu0 %v4119
        %4279 = vmatpush.bf16.msra.mxu0 %v4117
        %4280 = vmatpush.bf16.msra.mxu0 %v4115
        %4281 = vmatpush.bf16.msra.mxu0 %v4113
        %4282 = vmatmul.bf16.gmra.mxu0 %v3169
        %v4283 = vpop.f32.mrf.mxu0
        %v4284 = vadd.f32 0.0, %v4283
        %v4285 = vpop.f32.mrf.mxu0
        %v4286 = vadd.f32 0.0, %v4285
        %4287 = vmatmul.bf16.gmra.mxu0 %v3171
        %v4288 = vpop.f32.mrf.mxu0
        %v4289 = vadd.f32 0.0, %v4288
        %v4290 = vpop.f32.mrf.mxu0
        %v4291 = vadd.f32 0.0, %v4290
        %4292 = vmatmul.bf16.gmra.mxu0 %v3173
        %v4293 = vpop.f32.mrf.mxu0
        %v4294 = vadd.f32 0.0, %v4293
        %v4295 = vpop.f32.mrf.mxu0
        %v4296 = vadd.f32 0.0, %v4295
        %4297 = vmatmul.bf16.gmra.mxu0 %v3175
        %v4298 = vpop.f32.mrf.mxu0
        %v4299 = vadd.f32 0.0, %v4298
        %v4300 = vpop.f32.mrf.mxu0
        %v4301 = vadd.f32 0.0, %v4300
        %4302 = vmatmul.bf16.gmra.mxu0 %v3177
        %v4303 = vpop.f32.mrf.mxu0
        %v4304 = vadd.f32 0.0, %v4303
        %v4305 = vpop.f32.mrf.mxu0
        %v4306 = vadd.f32 0.0, %v4305
        %4307 = vmatmul.bf16.gmra.mxu0 %v3179
        %v4308 = vpop.f32.mrf.mxu0
        %v4309 = vadd.f32 0.0, %v4308
        %v4310 = vpop.f32.mrf.mxu0
        %v4311 = vadd.f32 0.0, %v4310
        %4312 = vmatmul.bf16.gmra.mxu0 %v3201
        %v4313 = vpop.f32.mrf.mxu0
        %v4314 = vadd.f32 0.0, %v4313
        %v4315 = vpop.f32.mrf.mxu0
        %v4316 = vadd.f32 0.0, %v4315
        %4317 = vmatmul.bf16.gmra.mxu0 0
        %v4318 = vpop.f32.mrf.mxu0
        %v4319 = vadd.f32 0.0, %v4318
        %v4320 = vpop.f32.mrf.mxu0
        %v4321 = vadd.f32 0.0, %v4320
        %4322 = vdwg.mxu0
        %4323 = vmatpush.bf16.msra.mxu0 %v4143
        %4324 = vmatpush.bf16.msra.mxu0 %v4141
        %4325 = vmatpush.bf16.msra.mxu0 %v4139
        %4326 = vmatpush.bf16.msra.mxu0 %v4137
        %4327 = vmatpush.bf16.msra.mxu0 %v4135
        %4328 = vmatpush.bf16.msra.mxu0 %v4133
        %4329 = vmatpush.bf16.msra.mxu0 %v4131
        %4330 = vmatpush.bf16.msra.mxu0 %v4129
        %4331 = vmatmul.bf16.gmra.mxu0 %v3170
        %v4332 = vpop.f32.mrf.mxu0
        %v4333 = vadd.f32 %v4284, %v4332
        %v4334 = vpop.f32.mrf.mxu0
        %v4335 = vadd.f32 %v4286, %v4334
        %4336 = vmatmul.bf16.gmra.mxu0 %v3172
        %v4337 = vpop.f32.mrf.mxu0
        %v4338 = vadd.f32 %v4289, %v4337
        %v4339 = vpop.f32.mrf.mxu0
        %v4340 = vadd.f32 %v4291, %v4339
        %4341 = vmatmul.bf16.gmra.mxu0 %v3174
        %v4342 = vpop.f32.mrf.mxu0
        %v4343 = vadd.f32 %v4294, %v4342
        %v4344 = vpop.f32.mrf.mxu0
        %v4345 = vadd.f32 %v4296, %v4344
        %4346 = vmatmul.bf16.gmra.mxu0 %v3176
        %v4347 = vpop.f32.mrf.mxu0
        %v4348 = vadd.f32 %v4299, %v4347
        %v4349 = vpop.f32.mrf.mxu0
        %v4350 = vadd.f32 %v4301, %v4349
        %4351 = vmatmul.bf16.gmra.mxu0 %v3178
        %v4352 = vpop.f32.mrf.mxu0
        %v4353 = vadd.f32 %v4304, %v4352
        %v4354 = vpop.f32.mrf.mxu0
        %v4355 = vadd.f32 %v4306, %v4354
        %4356 = vmatmul.bf16.gmra.mxu0 %v3180
        %v4357 = vpop.f32.mrf.mxu0
        %v4358 = vadd.f32 %v4309, %v4357
        %v4359 = vpop.f32.mrf.mxu0
        %v4360 = vadd.f32 %v4311, %v4359
        %4361 = vmatmul.bf16.gmra.mxu0 %v3202
        %v4362 = vpop.f32.mrf.mxu0
        %v4363 = vadd.f32 %v4314, %v4362
        %v4364 = vpop.f32.mrf.mxu0
        %v4365 = vadd.f32 %v4316, %v4364
        %4366 = vmatmul.bf16.gmra.mxu0 0
        %v4367 = vpop.f32.mrf.mxu0
        %v4368 = vadd.f32 %v4319, %v4367
        %v4369 = vpop.f32.mrf.mxu0
        %v4370 = vadd.f32 %v4321, %v4369
        %4371 = vdwg.mxu0
        %v4372 = vadd.f32 %v3846, %v4235
        %v4373 = vadd.f32 %v3944, %v4333
        %v4374 = vadd.f32 %v3848, %v4237
        %v4375 = vadd.f32 %v3946, %v4335
        %v4376 = vadd.f32 %v3851, %v4240
        %v4377 = vadd.f32 %v3949, %v4338
        %v4378 = vadd.f32 %v3853, %v4242
        %v4379 = vadd.f32 %v3951, %v4340
        %v4380 = vadd.f32 %v3856, %v4245
        %v4381 = vadd.f32 %v3954, %v4343
        %v4382 = vadd.f32 %v3858, %v4247
        %v4383 = vadd.f32 %v3956, %v4345
        %v4384 = vadd.f32 %v3861, %v4250
        %v4385 = vadd.f32 %v3959, %v4348
        %v4386 = vadd.f32 %v3863, %v4252
        %v4387 = vadd.f32 %v3961, %v4350
        %v4388 = vadd.f32 %v3866, %v4255
        %v4389 = vadd.f32 %v3964, %v4353
        %v4390 = vadd.f32 %v3868, %v4257
        %v4391 = vadd.f32 %v3966, %v4355
        %v4392 = vadd.f32 %v3871, %v4260
        %v4393 = vadd.f32 %v3969, %v4358
        %v4394 = vadd.f32 %v3873, %v4262
        %v4395 = vadd.f32 %v3971, %v4360
        %v4396 = vadd.f32 %v3876, %v4265
        %v4397 = vadd.f32 %v3974, %v4363
        %v4398 = vadd.f32 %v3878, %v4267
        %v4399 = vadd.f32 %v3976, %v4365
        %v4400 = vadd.f32 %v3881, %v4270
        %v4401 = vadd.f32 %v3979, %v4368
        %v4402 = vadd.f32 %v3883, %v4272
        %v4403 = vadd.f32 %v3981, %v4370
        %s4404 = scalar_lea.vmem %s2, 4
        %v4405 = vld [vmem:[%s4404] sm:$0x3]
        %v4407 = vperm.slane %v4405, 0
        %v4408 = vperm.slane %v4405, 1
        %v4411 = vadd.f32 %v4372, %v4407
        %v4412 = vadd.f32 %v4373, %v4408
        %v4413 = vadd.f32 %v4374, %v4407
        %v4414 = vadd.f32 %v4375, %v4408
        %v4415 = vadd.f32 %v4376, %v4407
        %v4416 = vadd.f32 %v4377, %v4408
        %v4417 = vadd.f32 %v4378, %v4407
        %v4418 = vadd.f32 %v4379, %v4408
        %v4419 = vadd.f32 %v4380, %v4407
        %v4420 = vadd.f32 %v4381, %v4408
        %v4421 = vadd.f32 %v4382, %v4407
        %v4422 = vadd.f32 %v4383, %v4408
        %v4423 = vadd.f32 %v4384, %v4407
        %v4424 = vadd.f32 %v4385, %v4408
        %v4425 = vadd.f32 %v4386, %v4407
        %v4426 = vadd.f32 %v4387, %v4408
        %v4427 = vadd.f32 %v4388, %v4407
        %v4428 = vadd.f32 %v4389, %v4408
        %v4429 = vadd.f32 %v4390, %v4407
        %v4430 = vadd.f32 %v4391, %v4408
        %v4431 = vadd.f32 %v4392, %v4407
        %v4432 = vadd.f32 %v4393, %v4408
        %v4433 = vadd.f32 %v4394, %v4407
        %v4434 = vadd.f32 %v4395, %v4408
        %v4435 = vadd.f32 %v4396, %v4407
        %v4436 = vadd.f32 %v4397, %v4408
        %v4437 = vadd.f32 %v4398, %v4407
        %v4438 = vadd.f32 %v4399, %v4408
        %v4439 = vadd.f32 %v4400, %v4407
        %v4440 = vadd.f32 %v4401, %v4408
        %v4441 = vadd.f32 %v4402, %v4407
        %v4442 = vadd.f32 %v4403, %v4408
        %v4443 = vunpack.c.l.bf16 %v1743
        %v4444 = vunpack.c.h.bf16 %v1743
        %v4445 = vunpack.c.l.bf16 %v1744
        %v4446 = vunpack.c.h.bf16 %v1744
        %v4447 = vunpack.c.l.bf16 %v1745
        %v4448 = vunpack.c.h.bf16 %v1745
        %v4449 = vunpack.c.l.bf16 %v1746
        %v4450 = vunpack.c.h.bf16 %v1746
        %v4451 = vunpack.c.l.bf16 %v1747
        %v4452 = vunpack.c.h.bf16 %v1747
        %v4453 = vunpack.c.l.bf16 %v1748
        %v4454 = vunpack.c.h.bf16 %v1748
        %v4455 = vunpack.c.l.bf16 %v1749
        %v4456 = vunpack.c.h.bf16 %v1749
        %v4457 = vunpack.c.l.bf16 %v1750
        %v4458 = vunpack.c.h.bf16 %v1750
        %v4459 = vunpack.c.l.bf16 %v1751
        %v4460 = vunpack.c.h.bf16 %v1751
        %v4461 = vunpack.c.l.bf16 %v1752
        %v4462 = vunpack.c.h.bf16 %v1752
        %v4463 = vunpack.c.l.bf16 %v1753
        %v4464 = vunpack.c.h.bf16 %v1753
        %v4465 = vunpack.c.l.bf16 %v1754
        %v4466 = vunpack.c.h.bf16 %v1754
        %v4467 = vunpack.c.l.bf16 %v1755
        %v4468 = vunpack.c.h.bf16 %v1755
        %v4469 = vunpack.c.l.bf16 %v1756
        %v4470 = vunpack.c.h.bf16 %v1756
        %v4471 = vunpack.c.l.bf16 %v1757
        %v4472 = vunpack.c.h.bf16 %v1757
        %v4473 = vunpack.c.l.bf16 %v1758
        %v4474 = vunpack.c.h.bf16 %v1758
        %v4475 = vadd.f32 %v4411, %v4443
        %v4476 = vadd.f32 %v4412, %v4444
        %v4477 = vadd.f32 %v4413, %v4445
        %v4478 = vadd.f32 %v4414, %v4446
        %v4479 = vadd.f32 %v4415, %v4447
        %v4480 = vadd.f32 %v4416, %v4448
        %v4481 = vadd.f32 %v4417, %v4449
        %v4482 = vadd.f32 %v4418, %v4450
        %v4483 = vadd.f32 %v4419, %v4451
        %v4484 = vadd.f32 %v4420, %v4452
        %v4485 = vadd.f32 %v4421, %v4453
        %v4486 = vadd.f32 %v4422, %v4454
        %v4487 = vadd.f32 %v4423, %v4455
        %v4488 = vadd.f32 %v4424, %v4456
        %v4489 = vadd.f32 %v4425, %v4457
        %v4490 = vadd.f32 %v4426, %v4458
        %v4491 = vadd.f32 %v4427, %v4459
        %v4492 = vadd.f32 %v4428, %v4460
        %v4493 = vadd.f32 %v4429, %v4461
        %v4494 = vadd.f32 %v4430, %v4462
        %v4495 = vadd.f32 %v4431, %v4463
        %v4496 = vadd.f32 %v4432, %v4464
        %v4497 = vadd.f32 %v4433, %v4465
        %v4498 = vadd.f32 %v4434, %v4466
        %v4499 = vadd.f32 %v4435, %v4467
        %v4500 = vadd.f32 %v4436, %v4468
        %v4501 = vadd.f32 %v4437, %v4469
        %v4502 = vadd.f32 %v4438, %v4470
        %v4503 = vadd.f32 %v4439, %v4471
        %v4504 = vadd.f32 %v4440, %v4472
        %v4505 = vadd.f32 %v4441, %v4473
        %v4506 = vadd.f32 %v4442, %v4474
        %v4507 = vmax.f32 %v4475, 0.0
        %v4508 = vmax.f32 %v4476, 0.0
        %v4509 = vmax.f32 %v4477, 0.0
        %v4510 = vmax.f32 %v4478, 0.0
        %v4511 = vmax.f32 %v4479, 0.0
        %v4512 = vmax.f32 %v4480, 0.0
        %v4513 = vmax.f32 %v4481, 0.0
        %v4514 = vmax.f32 %v4482, 0.0
        %v4515 = vmax.f32 %v4483, 0.0
        %v4516 = vmax.f32 %v4484, 0.0
        %v4517 = vmax.f32 %v4485, 0.0
        %v4518 = vmax.f32 %v4486, 0.0
        %v4519 = vmax.f32 %v4487, 0.0
        %v4520 = vmax.f32 %v4488, 0.0
        %v4521 = vmax.f32 %v4489, 0.0
        %v4522 = vmax.f32 %v4490, 0.0
        %v4523 = vmax.f32 %v4491, 0.0
        %v4524 = vmax.f32 %v4492, 0.0
        %v4525 = vmax.f32 %v4493, 0.0
        %v4526 = vmax.f32 %v4494, 0.0
        %v4527 = vmax.f32 %v4495, 0.0
        %v4528 = vmax.f32 %v4496, 0.0
        %v4529 = vmax.f32 %v4497, 0.0
        %v4530 = vmax.f32 %v4498, 0.0
        %v4531 = vmax.f32 %v4499, 0.0
        %v4532 = vmax.f32 %v4500, 0.0
        %v4533 = vmax.f32 %v4501, 0.0
        %v4534 = vmax.f32 %v4502, 0.0
        %v4535 = vmax.f32 %v4503, 0.0
        %v4536 = vmax.f32 %v4504, 0.0
        %v4537 = vmax.f32 %v4505, 0.0
        %v4538 = vmax.f32 %v4506, 0.0
        %v4539 = vpack.c.bf16 %v4508, %v4507
        %v4540 = vpack.c.bf16 %v4510, %v4509
        %v4541 = vpack.c.bf16 %v4512, %v4511
        %v4542 = vpack.c.bf16 %v4514, %v4513
        %v4543 = vpack.c.bf16 %v4516, %v4515
        %v4544 = vpack.c.bf16 %v4518, %v4517
        %v4545 = vpack.c.bf16 %v4520, %v4519
        %v4546 = vpack.c.bf16 %v4522, %v4521
        %v4547 = vpack.c.bf16 %v4524, %v4523
        %v4548 = vpack.c.bf16 %v4526, %v4525
        %v4549 = vpack.c.bf16 %v4528, %v4527
        %v4550 = vpack.c.bf16 %v4530, %v4529
        %v4551 = vpack.c.bf16 %v4532, %v4531
        %v4552 = vpack.c.bf16 %v4534, %v4533
        %v4553 = vpack.c.bf16 %v4536, %v4535
        %v4554 = vpack.c.bf16 %v4538, %v4537
        %v4569 = vunpack.c.l.b16 %v4539
        %v4570 = vunpack.c.h.b16 %v4539
        %v4571 = vunpack.c.l.b16 %v4540
        %v4572 = vunpack.c.h.b16 %v4540
        %v4573 = vunpack.c.l.b16 %v4541
        %v4574 = vunpack.c.h.b16 %v4541
        %v4575 = vunpack.c.l.b16 %v4542
        %v4576 = vunpack.c.h.b16 %v4542
        %v4577 = vunpack.c.l.b16 %v4543
        %v4578 = vunpack.c.h.b16 %v4543
        %v4579 = vunpack.c.l.b16 %v4544
        %v4580 = vunpack.c.h.b16 %v4544
        %v4581 = vunpack.c.l.b16 %v4545
        %v4582 = vunpack.c.h.b16 %v4545
        %v4583 = vunpack.c.l.b16 %v4546
        %v4584 = vunpack.c.h.b16 %v4546
        %v4585 = vunpack.c.l.b16 %v4547
        %v4586 = vunpack.c.h.b16 %v4547
        %v4587 = vunpack.c.l.b16 %v4548
        %v4588 = vunpack.c.h.b16 %v4548
        %v4589 = vunpack.c.l.b16 %v4549
        %v4590 = vunpack.c.h.b16 %v4549
        %v4591 = vunpack.c.l.b16 %v4550
        %v4592 = vunpack.c.h.b16 %v4550
        %v4593 = vunpack.c.l.b16 %v4551
        %v4594 = vunpack.c.h.b16 %v4551
        %v4595 = vunpack.c.l.b16 %v4552
        %v4596 = vunpack.c.h.b16 %v4552
        %v4597 = vpack.c.b16 %v4571, %v4569
        %v4598 = vpack.c.b16 %v4572, %v4570
        %v4599 = vpack.c.b16 %v4575, %v4573
        %v4600 = vpack.c.b16 %v4576, %v4574
        %v4601 = vpack.c.b16 %v4579, %v4577
        %v4602 = vpack.c.b16 %v4580, %v4578
        %v4603 = vpack.c.b16 %v4583, %v4581
        %v4604 = vpack.c.b16 %v4584, %v4582
        %v4605 = vpack.c.b16 %v4587, %v4585
        %v4606 = vpack.c.b16 %v4588, %v4586
        %v4607 = vpack.c.b16 %v4591, %v4589
        %v4608 = vpack.c.b16 %v4592, %v4590
        %v4609 = vpack.c.b16 %v4595, %v4593
        %v4610 = vpack.c.b16 %v4596, %v4594
        %v4627 = vunpack.c.l.b16 %v4553
        %v4628 = vunpack.c.h.b16 %v4553
        %v4629 = vunpack.c.l.b16 %v4554
        %v4630 = vunpack.c.h.b16 %v4554
        %v4631 = vpack.c.b16 %v4629, %v4627
        %v4632 = vpack.c.b16 %v4630, %v4628
        %s4635 = scalar_lea.vmem %s1, 2304
        %v4636 = vld [vmem:[%s4635] sm:$0xff]
        %v4637 = vld [vmem:[%s4635 + $0x8] sm:$0xff]
        %v4638 = vld [vmem:[%s4635 + $0x10] sm:$0xff]
        %v4639 = vld [vmem:[%s4635 + $0x18] sm:$0xff]
        %v4640 = vld [vmem:[%s4635 + $0x20] sm:$0xff]
        %v4641 = vld [vmem:[%s4635 + $0x28] sm:$0xff]
        %v4642 = vld [vmem:[%s4635 + $0x30] sm:$0xff]
        %v4643 = vld [vmem:[%s4635 + $0x38] sm:$0xff]
        %v4644 = vld [vmem:[%s4635 + $0x40] sm:$0xff]
        %v4645 = vld [vmem:[%s4635 + $0x48] sm:$0xff]
        %v4646 = vld [vmem:[%s4635 + $0x50] sm:$0xff]
        %v4647 = vld [vmem:[%s4635 + $0x58] sm:$0xff]
        %v4648 = vld [vmem:[%s4635 + $0x60] sm:$0xff]
        %v4649 = vld [vmem:[%s4635 + $0x68] sm:$0xff]
        %v4650 = vld [vmem:[%s4635 + $0x70] sm:$0xff]
        %v4651 = vld [vmem:[%s4635 + $0x78] sm:$0xff]
        %v4652 = vld [vmem:[%s4635 + $0x80] sm:$0xff]
        %v4653 = vld [vmem:[%s4635 + $0x88] sm:$0xff]
        %v4654 = vld [vmem:[%s4635 + $0x90] sm:$0xff]
        %v4655 = vld [vmem:[%s4635 + $0x98] sm:$0xff]
        %v4656 = vld [vmem:[%s4635 + $0xa0] sm:$0xff]
        %v4657 = vld [vmem:[%s4635 + $0xa8] sm:$0xff]
        %v4658 = vld [vmem:[%s4635 + $0xb0] sm:$0xff]
        %v4659 = vld [vmem:[%s4635 + $0xb8] sm:$0xff]
        %v4660 = vld [vmem:[%s4635 + $0xc0] sm:$0xff]
        %v4661 = vld [vmem:[%s4635 + $0xc8] sm:$0xff]
        %v4662 = vld [vmem:[%s4635 + $0xd0] sm:$0xff]
        %v4663 = vld [vmem:[%s4635 + $0xd8] sm:$0xff]
        %v4664 = vld [vmem:[%s4635 + $0xe0] sm:$0xff]
        %v4665 = vld [vmem:[%s4635 + $0xe8] sm:$0xff]
        %v4666 = vld [vmem:[%s4635 + $0xf0] sm:$0xff]
        %v4667 = vld [vmem:[%s4635 + $0xf8] sm:$0xff]
        %s4668 = scalar_lea.vmem %s1, 2560
        %v4669 = vld [vmem:[%s4668] sm:$0xff]
        %v4670 = vld [vmem:[%s4668 + $0x8] sm:$0xff]
        %v4671 = vld [vmem:[%s4668 + $0x10] sm:$0xff]
        %v4672 = vld [vmem:[%s4668 + $0x18] sm:$0xff]
        %v4673 = vld [vmem:[%s4668 + $0x20] sm:$0xff]
        %v4674 = vld [vmem:[%s4668 + $0x28] sm:$0xff]
        %v4675 = vld [vmem:[%s4668 + $0x30] sm:$0xff]
        %v4676 = vld [vmem:[%s4668 + $0x38] sm:$0xff]
        %v4677 = vld [vmem:[%s4668 + $0x40] sm:$0xff]
        %v4678 = vld [vmem:[%s4668 + $0x48] sm:$0xff]
        %v4679 = vld [vmem:[%s4668 + $0x50] sm:$0xff]
        %v4680 = vld [vmem:[%s4668 + $0x58] sm:$0xff]
        %v4681 = vld [vmem:[%s4668 + $0x60] sm:$0xff]
        %v4682 = vld [vmem:[%s4668 + $0x68] sm:$0xff]
        %v4683 = vld [vmem:[%s4668 + $0x70] sm:$0xff]
        %v4684 = vld [vmem:[%s4668 + $0x78] sm:$0xff]
        %v4685 = vld [vmem:[%s4668 + $0x80] sm:$0xff]
        %v4686 = vld [vmem:[%s4668 + $0x88] sm:$0xff]
        %v4687 = vld [vmem:[%s4668 + $0x90] sm:$0xff]
        %v4688 = vld [vmem:[%s4668 + $0x98] sm:$0xff]
        %v4689 = vld [vmem:[%s4668 + $0xa0] sm:$0xff]
        %v4690 = vld [vmem:[%s4668 + $0xa8] sm:$0xff]
        %v4691 = vld [vmem:[%s4668 + $0xb0] sm:$0xff]
        %v4692 = vld [vmem:[%s4668 + $0xb8] sm:$0xff]
        %v4693 = vld [vmem:[%s4668 + $0xc0] sm:$0xff]
        %v4694 = vld [vmem:[%s4668 + $0xc8] sm:$0xff]
        %v4695 = vld [vmem:[%s4668 + $0xd0] sm:$0xff]
        %v4696 = vld [vmem:[%s4668 + $0xd8] sm:$0xff]
        %v4697 = vld [vmem:[%s4668 + $0xe0] sm:$0xff]
        %v4698 = vld [vmem:[%s4668 + $0xe8] sm:$0xff]
        %v4699 = vld [vmem:[%s4668 + $0xf0] sm:$0xff]
        %v4700 = vld [vmem:[%s4668 + $0xf8] sm:$0xff]
        %v4733 = vunpack.c.l.b16 %v4669
        %v4734 = vunpack.c.h.b16 %v4669
        %v4735 = vunpack.c.l.b16 %v4670
        %v4736 = vunpack.c.h.b16 %v4670
        %v4737 = vunpack.c.l.b16 %v4671
        %v4738 = vunpack.c.h.b16 %v4671
        %v4739 = vunpack.c.l.b16 %v4672
        %v4740 = vunpack.c.h.b16 %v4672
        %v4741 = vunpack.c.l.b16 %v4673
        %v4742 = vunpack.c.h.b16 %v4673
        %v4743 = vunpack.c.l.b16 %v4674
        %v4744 = vunpack.c.h.b16 %v4674
        %v4745 = vunpack.c.l.b16 %v4675
        %v4746 = vunpack.c.h.b16 %v4675
        %v4747 = vunpack.c.l.b16 %v4676
        %v4748 = vunpack.c.h.b16 %v4676
        %v4749 = vunpack.c.l.b16 %v4677
        %v4750 = vunpack.c.h.b16 %v4677
        %v4751 = vunpack.c.l.b16 %v4678
        %v4752 = vunpack.c.h.b16 %v4678
        %v4753 = vunpack.c.l.b16 %v4679
        %v4754 = vunpack.c.h.b16 %v4679
        %v4755 = vunpack.c.l.b16 %v4680
        %v4756 = vunpack.c.h.b16 %v4680
        %v4757 = vunpack.c.l.b16 %v4681
        %v4758 = vunpack.c.h.b16 %v4681
        %v4759 = vunpack.c.l.b16 %v4682
        %v4760 = vunpack.c.h.b16 %v4682
        %v4761 = vunpack.c.l.b16 %v4683
        %v4762 = vunpack.c.h.b16 %v4683
        %v4763 = vunpack.c.l.b16 %v4684
        %v4764 = vunpack.c.h.b16 %v4684
        %v4765 = vunpack.c.l.b16 %v4685
        %v4766 = vunpack.c.h.b16 %v4685
        %v4767 = vunpack.c.l.b16 %v4686
        %v4768 = vunpack.c.h.b16 %v4686
        %v4769 = vunpack.c.l.b16 %v4687
        %v4770 = vunpack.c.h.b16 %v4687
        %v4771 = vunpack.c.l.b16 %v4688
        %v4772 = vunpack.c.h.b16 %v4688
        %v4773 = vunpack.c.l.b16 %v4689
        %v4774 = vunpack.c.h.b16 %v4689
        %v4775 = vunpack.c.l.b16 %v4690
        %v4776 = vunpack.c.h.b16 %v4690
        %v4777 = vunpack.c.l.b16 %v4691
        %v4778 = vunpack.c.h.b16 %v4691
        %v4779 = vunpack.c.l.b16 %v4692
        %v4780 = vunpack.c.h.b16 %v4692
        %v4781 = vunpack.c.l.b16 %v4693
        %v4782 = vunpack.c.h.b16 %v4693
        %v4783 = vunpack.c.l.b16 %v4694
        %v4784 = vunpack.c.h.b16 %v4694
        %v4785 = vunpack.c.l.b16 %v4695
        %v4786 = vunpack.c.h.b16 %v4695
        %v4787 = vunpack.c.l.b16 %v4696
        %v4788 = vunpack.c.h.b16 %v4696
        %v4789 = vunpack.c.l.b16 %v4697
        %v4790 = vunpack.c.h.b16 %v4697
        %v4791 = vunpack.c.l.b16 %v4698
        %v4792 = vunpack.c.h.b16 %v4698
        %v4793 = vunpack.c.l.b16 %v4699
        %v4794 = vunpack.c.h.b16 %v4699
        %v4795 = vunpack.c.l.b16 %v4700
        %v4796 = vunpack.c.h.b16 %v4700
        %v4797 = vpack.c.b16 %v4735, %v4733
        %v4798 = vpack.c.b16 %v4736, %v4734
        %v4799 = vpack.c.b16 %v4739, %v4737
        %v4800 = vpack.c.b16 %v4740, %v4738
        %v4801 = vpack.c.b16 %v4743, %v4741
        %v4802 = vpack.c.b16 %v4744, %v4742
        %v4803 = vpack.c.b16 %v4747, %v4745
        %v4804 = vpack.c.b16 %v4748, %v4746
        %v4805 = vpack.c.b16 %v4751, %v4749
        %v4806 = vpack.c.b16 %v4752, %v4750
        %v4807 = vpack.c.b16 %v4755, %v4753
        %v4808 = vpack.c.b16 %v4756, %v4754
        %v4809 = vpack.c.b16 %v4759, %v4757
        %v4810 = vpack.c.b16 %v4760, %v4758
        %v4811 = vpack.c.b16 %v4763, %v4761
        %v4812 = vpack.c.b16 %v4764, %v4762
        %v4813 = vpack.c.b16 %v4767, %v4765
        %v4814 = vpack.c.b16 %v4768, %v4766
        %v4815 = vpack.c.b16 %v4771, %v4769
        %v4816 = vpack.c.b16 %v4772, %v4770
        %v4817 = vpack.c.b16 %v4775, %v4773
        %v4818 = vpack.c.b16 %v4776, %v4774
        %v4819 = vpack.c.b16 %v4779, %v4777
        %v4820 = vpack.c.b16 %v4780, %v4778
        %v4821 = vpack.c.b16 %v4783, %v4781
        %v4822 = vpack.c.b16 %v4784, %v4782
        %v4823 = vpack.c.b16 %v4787, %v4785
        %v4824 = vpack.c.b16 %v4788, %v4786
        %v4825 = vpack.c.b16 %v4791, %v4789
        %v4826 = vpack.c.b16 %v4792, %v4790
        %v4827 = vpack.c.b16 %v4795, %v4793
        %v4828 = vpack.c.b16 %v4796, %v4794
        %4861 = vmatpush.bf16.msra.mxu0 %v4811
        %4862 = vmatpush.bf16.msra.mxu0 %v4809
        %4863 = vmatpush.bf16.msra.mxu0 %v4807
        %4864 = vmatpush.bf16.msra.mxu0 %v4805
        %4865 = vmatpush.bf16.msra.mxu0 %v4803
        %4866 = vmatpush.bf16.msra.mxu0 %v4801
        %4867 = vmatpush.bf16.msra.mxu0 %v4799
        %4868 = vmatpush.bf16.msra.mxu0 %v4797
        %4869 = vmatmul.bf16.gmra.mxu0 %v4597
        %v4870 = vpop.f32.mrf.mxu0
        %v4871 = vadd.f32 0.0, %v4870
        %v4872 = vpop.f32.mrf.mxu0
        %v4873 = vadd.f32 0.0, %v4872
        %4874 = vmatmul.bf16.gmra.mxu0 %v4599
        %v4875 = vpop.f32.mrf.mxu0
        %v4876 = vadd.f32 0.0, %v4875
        %v4877 = vpop.f32.mrf.mxu0
        %v4878 = vadd.f32 0.0, %v4877
        %4879 = vmatmul.bf16.gmra.mxu0 %v4601
        %v4880 = vpop.f32.mrf.mxu0
        %v4881 = vadd.f32 0.0, %v4880
        %v4882 = vpop.f32.mrf.mxu0
        %v4883 = vadd.f32 0.0, %v4882
        %4884 = vmatmul.bf16.gmra.mxu0 %v4603
        %v4885 = vpop.f32.mrf.mxu0
        %v4886 = vadd.f32 0.0, %v4885
        %v4887 = vpop.f32.mrf.mxu0
        %v4888 = vadd.f32 0.0, %v4887
        %4889 = vmatmul.bf16.gmra.mxu0 %v4605
        %v4890 = vpop.f32.mrf.mxu0
        %v4891 = vadd.f32 0.0, %v4890
        %v4892 = vpop.f32.mrf.mxu0
        %v4893 = vadd.f32 0.0, %v4892
        %4894 = vmatmul.bf16.gmra.mxu0 %v4607
        %v4895 = vpop.f32.mrf.mxu0
        %v4896 = vadd.f32 0.0, %v4895
        %v4897 = vpop.f32.mrf.mxu0
        %v4898 = vadd.f32 0.0, %v4897
        %4899 = vmatmul.bf16.gmra.mxu0 %v4609
        %v4900 = vpop.f32.mrf.mxu0
        %v4901 = vadd.f32 0.0, %v4900
        %v4902 = vpop.f32.mrf.mxu0
        %v4903 = vadd.f32 0.0, %v4902
        %4904 = vmatmul.bf16.gmra.mxu0 %v4631
        %v4905 = vpop.f32.mrf.mxu0
        %v4906 = vadd.f32 0.0, %v4905
        %v4907 = vpop.f32.mrf.mxu0
        %v4908 = vadd.f32 0.0, %v4907
        %4909 = vdwg.mxu0
        %4910 = vmatpush.bf16.msra.mxu0 %v4827
        %4911 = vmatpush.bf16.msra.mxu0 %v4825
        %4912 = vmatpush.bf16.msra.mxu0 %v4823
        %4913 = vmatpush.bf16.msra.mxu0 %v4821
        %4914 = vmatpush.bf16.msra.mxu0 %v4819
        %4915 = vmatpush.bf16.msra.mxu0 %v4817
        %4916 = vmatpush.bf16.msra.mxu0 %v4815
        %4917 = vmatpush.bf16.msra.mxu0 %v4813
        %4918 = vmatmul.bf16.gmra.mxu0 %v4598
        %v4919 = vpop.f32.mrf.mxu0
        %v4920 = vadd.f32 %v4871, %v4919
        %v4921 = vpop.f32.mrf.mxu0
        %v4922 = vadd.f32 %v4873, %v4921
        %4923 = vmatmul.bf16.gmra.mxu0 %v4600
        %v4924 = vpop.f32.mrf.mxu0
        %v4925 = vadd.f32 %v4876, %v4924
        %v4926 = vpop.f32.mrf.mxu0
        %v4927 = vadd.f32 %v4878, %v4926
        %4928 = vmatmul.bf16.gmra.mxu0 %v4602
        %v4929 = vpop.f32.mrf.mxu0
        %v4930 = vadd.f32 %v4881, %v4929
        %v4931 = vpop.f32.mrf.mxu0
        %v4932 = vadd.f32 %v4883, %v4931
        %4933 = vmatmul.bf16.gmra.mxu0 %v4604
        %v4934 = vpop.f32.mrf.mxu0
        %v4935 = vadd.f32 %v4886, %v4934
        %v4936 = vpop.f32.mrf.mxu0
        %v4937 = vadd.f32 %v4888, %v4936
        %4938 = vmatmul.bf16.gmra.mxu0 %v4606
        %v4939 = vpop.f32.mrf.mxu0
        %v4940 = vadd.f32 %v4891, %v4939
        %v4941 = vpop.f32.mrf.mxu0
        %v4942 = vadd.f32 %v4893, %v4941
        %4943 = vmatmul.bf16.gmra.mxu0 %v4608
        %v4944 = vpop.f32.mrf.mxu0
        %v4945 = vadd.f32 %v4896, %v4944
        %v4946 = vpop.f32.mrf.mxu0
        %v4947 = vadd.f32 %v4898, %v4946
        %4948 = vmatmul.bf16.gmra.mxu0 %v4610
        %v4949 = vpop.f32.mrf.mxu0
        %v4950 = vadd.f32 %v4901, %v4949
        %v4951 = vpop.f32.mrf.mxu0
        %v4952 = vadd.f32 %v4903, %v4951
        %4953 = vmatmul.bf16.gmra.mxu0 %v4632
        %v4954 = vpop.f32.mrf.mxu0
        %v4955 = vadd.f32 %v4906, %v4954
        %v4956 = vpop.f32.mrf.mxu0
        %v4957 = vadd.f32 %v4908, %v4956
        %4958 = vdwg.mxu0
        %4959 = vmatpush.bf16.msra.mxu0 %v4812
        %4960 = vmatpush.bf16.msra.mxu0 %v4810
        %4961 = vmatpush.bf16.msra.mxu0 %v4808
        %4962 = vmatpush.bf16.msra.mxu0 %v4806
        %4963 = vmatpush.bf16.msra.mxu0 %v4804
        %4964 = vmatpush.bf16.msra.mxu0 %v4802
        %4965 = vmatpush.bf16.msra.mxu0 %v4800
        %4966 = vmatpush.bf16.msra.mxu0 %v4798
        %4967 = vmatmul.bf16.gmra.mxu0 %v4597
        %v4968 = vpop.f32.mrf.mxu0
        %v4969 = vadd.f32 0.0, %v4968
        %v4970 = vpop.f32.mrf.mxu0
        %v4971 = vadd.f32 0.0, %v4970
        %4972 = vmatmul.bf16.gmra.mxu0 %v4599
        %v4973 = vpop.f32.mrf.mxu0
        %v4974 = vadd.f32 0.0, %v4973
        %v4975 = vpop.f32.mrf.mxu0
        %v4976 = vadd.f32 0.0, %v4975
        %4977 = vmatmul.bf16.gmra.mxu0 %v4601
        %v4978 = vpop.f32.mrf.mxu0
        %v4979 = vadd.f32 0.0, %v4978
        %v4980 = vpop.f32.mrf.mxu0
        %v4981 = vadd.f32 0.0, %v4980
        %4982 = vmatmul.bf16.gmra.mxu0 %v4603
        %v4983 = vpop.f32.mrf.mxu0
        %v4984 = vadd.f32 0.0, %v4983
        %v4985 = vpop.f32.mrf.mxu0
        %v4986 = vadd.f32 0.0, %v4985
        %4987 = vmatmul.bf16.gmra.mxu0 %v4605
        %v4988 = vpop.f32.mrf.mxu0
        %v4989 = vadd.f32 0.0, %v4988
        %v4990 = vpop.f32.mrf.mxu0
        %v4991 = vadd.f32 0.0, %v4990
        %4992 = vmatmul.bf16.gmra.mxu0 %v4607
        %v4993 = vpop.f32.mrf.mxu0
        %v4994 = vadd.f32 0.0, %v4993
        %v4995 = vpop.f32.mrf.mxu0
        %v4996 = vadd.f32 0.0, %v4995
        %4997 = vmatmul.bf16.gmra.mxu0 %v4609
        %v4998 = vpop.f32.mrf.mxu0
        %v4999 = vadd.f32 0.0, %v4998
        %v5000 = vpop.f32.mrf.mxu0
        %v5001 = vadd.f32 0.0, %v5000
        %5002 = vmatmul.bf16.gmra.mxu0 %v4631
        %v5003 = vpop.f32.mrf.mxu0
        %v5004 = vadd.f32 0.0, %v5003
        %v5005 = vpop.f32.mrf.mxu0
        %v5006 = vadd.f32 0.0, %v5005
        %5007 = vdwg.mxu0
        %5008 = vmatpush.bf16.msra.mxu0 %v4828
        %5009 = vmatpush.bf16.msra.mxu0 %v4826
        %5010 = vmatpush.bf16.msra.mxu0 %v4824
        %5011 = vmatpush.bf16.msra.mxu0 %v4822
        %5012 = vmatpush.bf16.msra.mxu0 %v4820
        %5013 = vmatpush.bf16.msra.mxu0 %v4818
        %5014 = vmatpush.bf16.msra.mxu0 %v4816
        %5015 = vmatpush.bf16.msra.mxu0 %v4814
        %5016 = vmatmul.bf16.gmra.mxu0 %v4598
        %v5017 = vpop.f32.mrf.mxu0
        %v5018 = vadd.f32 %v4969, %v5017
        %v5019 = vpop.f32.mrf.mxu0
        %v5020 = vadd.f32 %v4971, %v5019
        %5021 = vmatmul.bf16.gmra.mxu0 %v4600
        %v5022 = vpop.f32.mrf.mxu0
        %v5023 = vadd.f32 %v4974, %v5022
        %v5024 = vpop.f32.mrf.mxu0
        %v5025 = vadd.f32 %v4976, %v5024
        %5026 = vmatmul.bf16.gmra.mxu0 %v4602
        %v5027 = vpop.f32.mrf.mxu0
        %v5028 = vadd.f32 %v4979, %v5027
        %v5029 = vpop.f32.mrf.mxu0
        %v5030 = vadd.f32 %v4981, %v5029
        %5031 = vmatmul.bf16.gmra.mxu0 %v4604
        %v5032 = vpop.f32.mrf.mxu0
        %v5033 = vadd.f32 %v4984, %v5032
        %v5034 = vpop.f32.mrf.mxu0
        %v5035 = vadd.f32 %v4986, %v5034
        %5036 = vmatmul.bf16.gmra.mxu0 %v4606
        %v5037 = vpop.f32.mrf.mxu0
        %v5038 = vadd.f32 %v4989, %v5037
        %v5039 = vpop.f32.mrf.mxu0
        %v5040 = vadd.f32 %v4991, %v5039
        %5041 = vmatmul.bf16.gmra.mxu0 %v4608
        %v5042 = vpop.f32.mrf.mxu0
        %v5043 = vadd.f32 %v4994, %v5042
        %v5044 = vpop.f32.mrf.mxu0
        %v5045 = vadd.f32 %v4996, %v5044
        %5046 = vmatmul.bf16.gmra.mxu0 %v4610
        %v5047 = vpop.f32.mrf.mxu0
        %v5048 = vadd.f32 %v4999, %v5047
        %v5049 = vpop.f32.mrf.mxu0
        %v5050 = vadd.f32 %v5001, %v5049
        %5051 = vmatmul.bf16.gmra.mxu0 %v4632
        %v5052 = vpop.f32.mrf.mxu0
        %v5053 = vadd.f32 %v5004, %v5052
        %v5054 = vpop.f32.mrf.mxu0
        %v5055 = vadd.f32 %v5006, %v5054
        %5056 = vdwg.mxu0
        %v5089 = vunpack.c.l.b16 %v4636
        %v5090 = vunpack.c.h.b16 %v4636
        %v5091 = vunpack.c.l.b16 %v4637
        %v5092 = vunpack.c.h.b16 %v4637
        %v5093 = vunpack.c.l.b16 %v4638
        %v5094 = vunpack.c.h.b16 %v4638
        %v5095 = vunpack.c.l.b16 %v4639
        %v5096 = vunpack.c.h.b16 %v4639
        %v5097 = vunpack.c.l.b16 %v4640
        %v5098 = vunpack.c.h.b16 %v4640
        %v5099 = vunpack.c.l.b16 %v4641
        %v5100 = vunpack.c.h.b16 %v4641
        %v5101 = vunpack.c.l.b16 %v4642
        %v5102 = vunpack.c.h.b16 %v4642
        %v5103 = vunpack.c.l.b16 %v4643
        %v5104 = vunpack.c.h.b16 %v4643
        %v5105 = vunpack.c.l.b16 %v4644
        %v5106 = vunpack.c.h.b16 %v4644
        %v5107 = vunpack.c.l.b16 %v4645
        %v5108 = vunpack.c.h.b16 %v4645
        %v5109 = vunpack.c.l.b16 %v4646
        %v5110 = vunpack.c.h.b16 %v4646
        %v5111 = vunpack.c.l.b16 %v4647
        %v5112 = vunpack.c.h.b16 %v4647
        %v5113 = vunpack.c.l.b16 %v4648
        %v5114 = vunpack.c.h.b16 %v4648
        %v5115 = vunpack.c.l.b16 %v4649
        %v5116 = vunpack.c.h.b16 %v4649
        %v5117 = vunpack.c.l.b16 %v4650
        %v5118 = vunpack.c.h.b16 %v4650
        %v5119 = vunpack.c.l.b16 %v4651
        %v5120 = vunpack.c.h.b16 %v4651
        %v5121 = vunpack.c.l.b16 %v4652
        %v5122 = vunpack.c.h.b16 %v4652
        %v5123 = vunpack.c.l.b16 %v4653
        %v5124 = vunpack.c.h.b16 %v4653
        %v5125 = vunpack.c.l.b16 %v4654
        %v5126 = vunpack.c.h.b16 %v4654
        %v5127 = vunpack.c.l.b16 %v4655
        %v5128 = vunpack.c.h.b16 %v4655
        %v5129 = vunpack.c.l.b16 %v4656
        %v5130 = vunpack.c.h.b16 %v4656
        %v5131 = vunpack.c.l.b16 %v4657
        %v5132 = vunpack.c.h.b16 %v4657
        %v5133 = vunpack.c.l.b16 %v4658
        %v5134 = vunpack.c.h.b16 %v4658
        %v5135 = vunpack.c.l.b16 %v4659
        %v5136 = vunpack.c.h.b16 %v4659
        %v5137 = vunpack.c.l.b16 %v4660
        %v5138 = vunpack.c.h.b16 %v4660
        %v5139 = vunpack.c.l.b16 %v4661
        %v5140 = vunpack.c.h.b16 %v4661
        %v5141 = vunpack.c.l.b16 %v4662
        %v5142 = vunpack.c.h.b16 %v4662
        %v5143 = vunpack.c.l.b16 %v4663
        %v5144 = vunpack.c.h.b16 %v4663
        %v5145 = vunpack.c.l.b16 %v4664
        %v5146 = vunpack.c.h.b16 %v4664
        %v5147 = vunpack.c.l.b16 %v4665
        %v5148 = vunpack.c.h.b16 %v4665
        %v5149 = vunpack.c.l.b16 %v4666
        %v5150 = vunpack.c.h.b16 %v4666
        %v5151 = vunpack.c.l.b16 %v4667
        %v5152 = vunpack.c.h.b16 %v4667
        %v5153 = vpack.c.b16 %v5091, %v5089
        %v5154 = vpack.c.b16 %v5092, %v5090
        %v5155 = vpack.c.b16 %v5095, %v5093
        %v5156 = vpack.c.b16 %v5096, %v5094
        %v5157 = vpack.c.b16 %v5099, %v5097
        %v5158 = vpack.c.b16 %v5100, %v5098
        %v5159 = vpack.c.b16 %v5103, %v5101
        %v5160 = vpack.c.b16 %v5104, %v5102
        %v5161 = vpack.c.b16 %v5107, %v5105
        %v5162 = vpack.c.b16 %v5108, %v5106
        %v5163 = vpack.c.b16 %v5111, %v5109
        %v5164 = vpack.c.b16 %v5112, %v5110
        %v5165 = vpack.c.b16 %v5115, %v5113
        %v5166 = vpack.c.b16 %v5116, %v5114
        %v5167 = vpack.c.b16 %v5119, %v5117
        %v5168 = vpack.c.b16 %v5120, %v5118
        %v5169 = vpack.c.b16 %v5123, %v5121
        %v5170 = vpack.c.b16 %v5124, %v5122
        %v5171 = vpack.c.b16 %v5127, %v5125
        %v5172 = vpack.c.b16 %v5128, %v5126
        %v5173 = vpack.c.b16 %v5131, %v5129
        %v5174 = vpack.c.b16 %v5132, %v5130
        %v5175 = vpack.c.b16 %v5135, %v5133
        %v5176 = vpack.c.b16 %v5136, %v5134
        %v5177 = vpack.c.b16 %v5139, %v5137
        %v5178 = vpack.c.b16 %v5140, %v5138
        %v5179 = vpack.c.b16 %v5143, %v5141
        %v5180 = vpack.c.b16 %v5144, %v5142
        %v5181 = vpack.c.b16 %v5147, %v5145
        %v5182 = vpack.c.b16 %v5148, %v5146
        %v5183 = vpack.c.b16 %v5151, %v5149
        %v5184 = vpack.c.b16 %v5152, %v5150
        %5217 = vmatpush.bf16.msra.mxu0 %v5167
        %5218 = vmatpush.bf16.msra.mxu0 %v5165
        %5219 = vmatpush.bf16.msra.mxu0 %v5163
        %5220 = vmatpush.bf16.msra.mxu0 %v5161
        %5221 = vmatpush.bf16.msra.mxu0 %v5159
        %5222 = vmatpush.bf16.msra.mxu0 %v5157
        %5223 = vmatpush.bf16.msra.mxu0 %v5155
        %5224 = vmatpush.bf16.msra.mxu0 %v5153
        %5225 = vmatmul.bf16.gmra.mxu0 0
        %v5226 = vpop.f32.mrf.mxu0
        %v5227 = vadd.f32 %v4920, %v5226
        %v5228 = vpop.f32.mrf.mxu0
        %v5229 = vadd.f32 %v4922, %v5228
        %5230 = vmatmul.bf16.gmra.mxu0 %v4597
        %v5231 = vpop.f32.mrf.mxu0
        %v5232 = vadd.f32 %v4925, %v5231
        %v5233 = vpop.f32.mrf.mxu0
        %v5234 = vadd.f32 %v4927, %v5233
        %5235 = vmatmul.bf16.gmra.mxu0 %v4599
        %v5236 = vpop.f32.mrf.mxu0
        %v5237 = vadd.f32 %v4930, %v5236
        %v5238 = vpop.f32.mrf.mxu0
        %v5239 = vadd.f32 %v4932, %v5238
        %5240 = vmatmul.bf16.gmra.mxu0 %v4601
        %v5241 = vpop.f32.mrf.mxu0
        %v5242 = vadd.f32 %v4935, %v5241
        %v5243 = vpop.f32.mrf.mxu0
        %v5244 = vadd.f32 %v4937, %v5243
        %5245 = vmatmul.bf16.gmra.mxu0 %v4603
        %v5246 = vpop.f32.mrf.mxu0
        %v5247 = vadd.f32 %v4940, %v5246
        %v5248 = vpop.f32.mrf.mxu0
        %v5249 = vadd.f32 %v4942, %v5248
        %5250 = vmatmul.bf16.gmra.mxu0 %v4605
        %v5251 = vpop.f32.mrf.mxu0
        %v5252 = vadd.f32 %v4945, %v5251
        %v5253 = vpop.f32.mrf.mxu0
        %v5254 = vadd.f32 %v4947, %v5253
        %5255 = vmatmul.bf16.gmra.mxu0 %v4607
        %v5256 = vpop.f32.mrf.mxu0
        %v5257 = vadd.f32 %v4950, %v5256
        %v5258 = vpop.f32.mrf.mxu0
        %v5259 = vadd.f32 %v4952, %v5258
        %5260 = vmatmul.bf16.gmra.mxu0 %v4609
        %v5261 = vpop.f32.mrf.mxu0
        %v5262 = vadd.f32 %v4955, %v5261
        %v5263 = vpop.f32.mrf.mxu0
        %v5264 = vadd.f32 %v4957, %v5263
        %5265 = vdwg.mxu0
        %5266 = vmatpush.bf16.msra.mxu0 %v5183
        %5267 = vmatpush.bf16.msra.mxu0 %v5181
        %5268 = vmatpush.bf16.msra.mxu0 %v5179
        %5269 = vmatpush.bf16.msra.mxu0 %v5177
        %5270 = vmatpush.bf16.msra.mxu0 %v5175
        %5271 = vmatpush.bf16.msra.mxu0 %v5173
        %5272 = vmatpush.bf16.msra.mxu0 %v5171
        %5273 = vmatpush.bf16.msra.mxu0 %v5169
        %5274 = vmatmul.bf16.gmra.mxu0 0
        %v5275 = vpop.f32.mrf.mxu0
        %v5276 = vadd.f32 %v5227, %v5275
        %v5277 = vpop.f32.mrf.mxu0
        %v5278 = vadd.f32 %v5229, %v5277
        %5279 = vmatmul.bf16.gmra.mxu0 %v4598
        %v5280 = vpop.f32.mrf.mxu0
        %v5281 = vadd.f32 %v5232, %v5280
        %v5282 = vpop.f32.mrf.mxu0
        %v5283 = vadd.f32 %v5234, %v5282
        %5284 = vmatmul.bf16.gmra.mxu0 %v4600
        %v5285 = vpop.f32.mrf.mxu0
        %v5286 = vadd.f32 %v5237, %v5285
        %v5287 = vpop.f32.mrf.mxu0
        %v5288 = vadd.f32 %v5239, %v5287
        %5289 = vmatmul.bf16.gmra.mxu0 %v4602
        %v5290 = vpop.f32.mrf.mxu0
        %v5291 = vadd.f32 %v5242, %v5290
        %v5292 = vpop.f32.mrf.mxu0
        %v5293 = vadd.f32 %v5244, %v5292
        %5294 = vmatmul.bf16.gmra.mxu0 %v4604
        %v5295 = vpop.f32.mrf.mxu0
        %v5296 = vadd.f32 %v5247, %v5295
        %v5297 = vpop.f32.mrf.mxu0
        %v5298 = vadd.f32 %v5249, %v5297
        %5299 = vmatmul.bf16.gmra.mxu0 %v4606
        %v5300 = vpop.f32.mrf.mxu0
        %v5301 = vadd.f32 %v5252, %v5300
        %v5302 = vpop.f32.mrf.mxu0
        %v5303 = vadd.f32 %v5254, %v5302
        %5304 = vmatmul.bf16.gmra.mxu0 %v4608
        %v5305 = vpop.f32.mrf.mxu0
        %v5306 = vadd.f32 %v5257, %v5305
        %v5307 = vpop.f32.mrf.mxu0
        %v5308 = vadd.f32 %v5259, %v5307
        %5309 = vmatmul.bf16.gmra.mxu0 %v4610
        %v5310 = vpop.f32.mrf.mxu0
        %v5311 = vadd.f32 %v5262, %v5310
        %v5312 = vpop.f32.mrf.mxu0
        %v5313 = vadd.f32 %v5264, %v5312
        %5314 = vdwg.mxu0
        %5315 = vmatpush.bf16.msra.mxu0 %v5168
        %5316 = vmatpush.bf16.msra.mxu0 %v5166
        %5317 = vmatpush.bf16.msra.mxu0 %v5164
        %5318 = vmatpush.bf16.msra.mxu0 %v5162
        %5319 = vmatpush.bf16.msra.mxu0 %v5160
        %5320 = vmatpush.bf16.msra.mxu0 %v5158
        %5321 = vmatpush.bf16.msra.mxu0 %v5156
        %5322 = vmatpush.bf16.msra.mxu0 %v5154
        %5323 = vmatmul.bf16.gmra.mxu0 0
        %v5324 = vpop.f32.mrf.mxu0
        %v5325 = vadd.f32 %v5018, %v5324
        %v5326 = vpop.f32.mrf.mxu0
        %v5327 = vadd.f32 %v5020, %v5326
        %5328 = vmatmul.bf16.gmra.mxu0 %v4597
        %v5329 = vpop.f32.mrf.mxu0
        %v5330 = vadd.f32 %v5023, %v5329
        %v5331 = vpop.f32.mrf.mxu0
        %v5332 = vadd.f32 %v5025, %v5331
        %5333 = vmatmul.bf16.gmra.mxu0 %v4599
        %v5334 = vpop.f32.mrf.mxu0
        %v5335 = vadd.f32 %v5028, %v5334
        %v5336 = vpop.f32.mrf.mxu0
        %v5337 = vadd.f32 %v5030, %v5336
        %5338 = vmatmul.bf16.gmra.mxu0 %v4601
        %v5339 = vpop.f32.mrf.mxu0
        %v5340 = vadd.f32 %v5033, %v5339
        %v5341 = vpop.f32.mrf.mxu0
        %v5342 = vadd.f32 %v5035, %v5341
        %5343 = vmatmul.bf16.gmra.mxu0 %v4603
        %v5344 = vpop.f32.mrf.mxu0
        %v5345 = vadd.f32 %v5038, %v5344
        %v5346 = vpop.f32.mrf.mxu0
        %v5347 = vadd.f32 %v5040, %v5346
        %5348 = vmatmul.bf16.gmra.mxu0 %v4605
        %v5349 = vpop.f32.mrf.mxu0
        %v5350 = vadd.f32 %v5043, %v5349
        %v5351 = vpop.f32.mrf.mxu0
        %v5352 = vadd.f32 %v5045, %v5351
        %5353 = vmatmul.bf16.gmra.mxu0 %v4607
        %v5354 = vpop.f32.mrf.mxu0
        %v5355 = vadd.f32 %v5048, %v5354
        %v5356 = vpop.f32.mrf.mxu0
        %v5357 = vadd.f32 %v5050, %v5356
        %5358 = vmatmul.bf16.gmra.mxu0 %v4609
        %v5359 = vpop.f32.mrf.mxu0
        %v5360 = vadd.f32 %v5053, %v5359
        %v5361 = vpop.f32.mrf.mxu0
        %v5362 = vadd.f32 %v5055, %v5361
        %5363 = vdwg.mxu0
        %5364 = vmatpush.bf16.msra.mxu0 %v5184
        %5365 = vmatpush.bf16.msra.mxu0 %v5182
        %5366 = vmatpush.bf16.msra.mxu0 %v5180
        %5367 = vmatpush.bf16.msra.mxu0 %v5178
        %5368 = vmatpush.bf16.msra.mxu0 %v5176
        %5369 = vmatpush.bf16.msra.mxu0 %v5174
        %5370 = vmatpush.bf16.msra.mxu0 %v5172
        %5371 = vmatpush.bf16.msra.mxu0 %v5170
        %5372 = vmatmul.bf16.gmra.mxu0 0
        %v5373 = vpop.f32.mrf.mxu0
        %v5374 = vadd.f32 %v5325, %v5373
        %v5375 = vpop.f32.mrf.mxu0
        %v5376 = vadd.f32 %v5327, %v5375
        %5377 = vmatmul.bf16.gmra.mxu0 %v4598
        %v5378 = vpop.f32.mrf.mxu0
        %v5379 = vadd.f32 %v5330, %v5378
        %v5380 = vpop.f32.mrf.mxu0
        %v5381 = vadd.f32 %v5332, %v5380
        %5382 = vmatmul.bf16.gmra.mxu0 %v4600
        %v5383 = vpop.f32.mrf.mxu0
        %v5384 = vadd.f32 %v5335, %v5383
        %v5385 = vpop.f32.mrf.mxu0
        %v5386 = vadd.f32 %v5337, %v5385
        %5387 = vmatmul.bf16.gmra.mxu0 %v4602
        %v5388 = vpop.f32.mrf.mxu0
        %v5389 = vadd.f32 %v5340, %v5388
        %v5390 = vpop.f32.mrf.mxu0
        %v5391 = vadd.f32 %v5342, %v5390
        %5392 = vmatmul.bf16.gmra.mxu0 %v4604
        %v5393 = vpop.f32.mrf.mxu0
        %v5394 = vadd.f32 %v5345, %v5393
        %v5395 = vpop.f32.mrf.mxu0
        %v5396 = vadd.f32 %v5347, %v5395
        %5397 = vmatmul.bf16.gmra.mxu0 %v4606
        %v5398 = vpop.f32.mrf.mxu0
        %v5399 = vadd.f32 %v5350, %v5398
        %v5400 = vpop.f32.mrf.mxu0
        %v5401 = vadd.f32 %v5352, %v5400
        %5402 = vmatmul.bf16.gmra.mxu0 %v4608
        %v5403 = vpop.f32.mrf.mxu0
        %v5404 = vadd.f32 %v5355, %v5403
        %v5405 = vpop.f32.mrf.mxu0
        %v5406 = vadd.f32 %v5357, %v5405
        %5407 = vmatmul.bf16.gmra.mxu0 %v4610
        %v5408 = vpop.f32.mrf.mxu0
        %v5409 = vadd.f32 %v5360, %v5408
        %v5410 = vpop.f32.mrf.mxu0
        %v5411 = vadd.f32 %v5362, %v5410
        %5412 = vdwg.mxu0
        %s5413 = scalar_lea.vmem %s1, 2816
        %v5414 = vld [vmem:[%s5413] sm:$0xff]
        %v5415 = vld [vmem:[%s5413 + $0x8] sm:$0xff]
        %v5416 = vld [vmem:[%s5413 + $0x10] sm:$0xff]
        %v5417 = vld [vmem:[%s5413 + $0x18] sm:$0xff]
        %v5418 = vld [vmem:[%s5413 + $0x20] sm:$0xff]
        %v5419 = vld [vmem:[%s5413 + $0x28] sm:$0xff]
        %v5420 = vld [vmem:[%s5413 + $0x30] sm:$0xff]
        %v5421 = vld [vmem:[%s5413 + $0x38] sm:$0xff]
        %v5422 = vld [vmem:[%s5413 + $0x40] sm:$0xff]
        %v5423 = vld [vmem:[%s5413 + $0x48] sm:$0xff]
        %v5424 = vld [vmem:[%s5413 + $0x50] sm:$0xff]
        %v5425 = vld [vmem:[%s5413 + $0x58] sm:$0xff]
        %v5426 = vld [vmem:[%s5413 + $0x60] sm:$0xff]
        %v5427 = vld [vmem:[%s5413 + $0x68] sm:$0xff]
        %v5428 = vld [vmem:[%s5413 + $0x70] sm:$0xff]
        %v5429 = vld [vmem:[%s5413 + $0x78] sm:$0xff]
        %v5430 = vld [vmem:[%s5413 + $0x80] sm:$0xff]
        %v5431 = vld [vmem:[%s5413 + $0x88] sm:$0xff]
        %v5432 = vld [vmem:[%s5413 + $0x90] sm:$0xff]
        %v5433 = vld [vmem:[%s5413 + $0x98] sm:$0xff]
        %v5434 = vld [vmem:[%s5413 + $0xa0] sm:$0xff]
        %v5435 = vld [vmem:[%s5413 + $0xa8] sm:$0xff]
        %v5436 = vld [vmem:[%s5413 + $0xb0] sm:$0xff]
        %v5437 = vld [vmem:[%s5413 + $0xb8] sm:$0xff]
        %v5438 = vld [vmem:[%s5413 + $0xc0] sm:$0xff]
        %v5439 = vld [vmem:[%s5413 + $0xc8] sm:$0xff]
        %v5440 = vld [vmem:[%s5413 + $0xd0] sm:$0xff]
        %v5441 = vld [vmem:[%s5413 + $0xd8] sm:$0xff]
        %v5442 = vld [vmem:[%s5413 + $0xe0] sm:$0xff]
        %v5443 = vld [vmem:[%s5413 + $0xe8] sm:$0xff]
        %v5444 = vld [vmem:[%s5413 + $0xf0] sm:$0xff]
        %v5445 = vld [vmem:[%s5413 + $0xf8] sm:$0xff]
        %v5478 = vunpack.c.l.b16 %v5414
        %v5479 = vunpack.c.h.b16 %v5414
        %v5480 = vunpack.c.l.b16 %v5415
        %v5481 = vunpack.c.h.b16 %v5415
        %v5482 = vunpack.c.l.b16 %v5416
        %v5483 = vunpack.c.h.b16 %v5416
        %v5484 = vunpack.c.l.b16 %v5417
        %v5485 = vunpack.c.h.b16 %v5417
        %v5486 = vunpack.c.l.b16 %v5418
        %v5487 = vunpack.c.h.b16 %v5418
        %v5488 = vunpack.c.l.b16 %v5419
        %v5489 = vunpack.c.h.b16 %v5419
        %v5490 = vunpack.c.l.b16 %v5420
        %v5491 = vunpack.c.h.b16 %v5420
        %v5492 = vunpack.c.l.b16 %v5421
        %v5493 = vunpack.c.h.b16 %v5421
        %v5494 = vunpack.c.l.b16 %v5422
        %v5495 = vunpack.c.h.b16 %v5422
        %v5496 = vunpack.c.l.b16 %v5423
        %v5497 = vunpack.c.h.b16 %v5423
        %v5498 = vunpack.c.l.b16 %v5424
        %v5499 = vunpack.c.h.b16 %v5424
        %v5500 = vunpack.c.l.b16 %v5425
        %v5501 = vunpack.c.h.b16 %v5425
        %v5502 = vunpack.c.l.b16 %v5426
        %v5503 = vunpack.c.h.b16 %v5426
        %v5504 = vunpack.c.l.b16 %v5427
        %v5505 = vunpack.c.h.b16 %v5427
        %v5506 = vunpack.c.l.b16 %v5428
        %v5507 = vunpack.c.h.b16 %v5428
        %v5508 = vunpack.c.l.b16 %v5429
        %v5509 = vunpack.c.h.b16 %v5429
        %v5510 = vunpack.c.l.b16 %v5430
        %v5511 = vunpack.c.h.b16 %v5430
        %v5512 = vunpack.c.l.b16 %v5431
        %v5513 = vunpack.c.h.b16 %v5431
        %v5514 = vunpack.c.l.b16 %v5432
        %v5515 = vunpack.c.h.b16 %v5432
        %v5516 = vunpack.c.l.b16 %v5433
        %v5517 = vunpack.c.h.b16 %v5433
        %v5518 = vunpack.c.l.b16 %v5434
        %v5519 = vunpack.c.h.b16 %v5434
        %v5520 = vunpack.c.l.b16 %v5435
        %v5521 = vunpack.c.h.b16 %v5435
        %v5522 = vunpack.c.l.b16 %v5436
        %v5523 = vunpack.c.h.b16 %v5436
        %v5524 = vunpack.c.l.b16 %v5437
        %v5525 = vunpack.c.h.b16 %v5437
        %v5526 = vunpack.c.l.b16 %v5438
        %v5527 = vunpack.c.h.b16 %v5438
        %v5528 = vunpack.c.l.b16 %v5439
        %v5529 = vunpack.c.h.b16 %v5439
        %v5530 = vunpack.c.l.b16 %v5440
        %v5531 = vunpack.c.h.b16 %v5440
        %v5532 = vunpack.c.l.b16 %v5441
        %v5533 = vunpack.c.h.b16 %v5441
        %v5534 = vunpack.c.l.b16 %v5442
        %v5535 = vunpack.c.h.b16 %v5442
        %v5536 = vunpack.c.l.b16 %v5443
        %v5537 = vunpack.c.h.b16 %v5443
        %v5538 = vunpack.c.l.b16 %v5444
        %v5539 = vunpack.c.h.b16 %v5444
        %v5540 = vunpack.c.l.b16 %v5445
        %v5541 = vunpack.c.h.b16 %v5445
        %v5542 = vpack.c.b16 %v5480, %v5478
        %v5543 = vpack.c.b16 %v5481, %v5479
        %v5544 = vpack.c.b16 %v5484, %v5482
        %v5545 = vpack.c.b16 %v5485, %v5483
        %v5546 = vpack.c.b16 %v5488, %v5486
        %v5547 = vpack.c.b16 %v5489, %v5487
        %v5548 = vpack.c.b16 %v5492, %v5490
        %v5549 = vpack.c.b16 %v5493, %v5491
        %v5550 = vpack.c.b16 %v5496, %v5494
        %v5551 = vpack.c.b16 %v5497, %v5495
        %v5552 = vpack.c.b16 %v5500, %v5498
        %v5553 = vpack.c.b16 %v5501, %v5499
        %v5554 = vpack.c.b16 %v5504, %v5502
        %v5555 = vpack.c.b16 %v5505, %v5503
        %v5556 = vpack.c.b16 %v5508, %v5506
        %v5557 = vpack.c.b16 %v5509, %v5507
        %v5558 = vpack.c.b16 %v5512, %v5510
        %v5559 = vpack.c.b16 %v5513, %v5511
        %v5560 = vpack.c.b16 %v5516, %v5514
        %v5561 = vpack.c.b16 %v5517, %v5515
        %v5562 = vpack.c.b16 %v5520, %v5518
        %v5563 = vpack.c.b16 %v5521, %v5519
        %v5564 = vpack.c.b16 %v5524, %v5522
        %v5565 = vpack.c.b16 %v5525, %v5523
        %v5566 = vpack.c.b16 %v5528, %v5526
        %v5567 = vpack.c.b16 %v5529, %v5527
        %v5568 = vpack.c.b16 %v5532, %v5530
        %v5569 = vpack.c.b16 %v5533, %v5531
        %v5570 = vpack.c.b16 %v5536, %v5534
        %v5571 = vpack.c.b16 %v5537, %v5535
        %v5572 = vpack.c.b16 %v5540, %v5538
        %v5573 = vpack.c.b16 %v5541, %v5539
        %5606 = vmatpush.bf16.msra.mxu0 %v5556
        %5607 = vmatpush.bf16.msra.mxu0 %v5554
        %5608 = vmatpush.bf16.msra.mxu0 %v5552
        %5609 = vmatpush.bf16.msra.mxu0 %v5550
        %5610 = vmatpush.bf16.msra.mxu0 %v5548
        %5611 = vmatpush.bf16.msra.mxu0 %v5546
        %5612 = vmatpush.bf16.msra.mxu0 %v5544
        %5613 = vmatpush.bf16.msra.mxu0 %v5542
        %5614 = vmatmul.bf16.gmra.mxu0 %v4599
        %v5615 = vpop.f32.mrf.mxu0
        %v5616 = vadd.f32 0.0, %v5615
        %v5617 = vpop.f32.mrf.mxu0
        %v5618 = vadd.f32 0.0, %v5617
        %5619 = vmatmul.bf16.gmra.mxu0 %v4601
        %v5620 = vpop.f32.mrf.mxu0
        %v5621 = vadd.f32 0.0, %v5620
        %v5622 = vpop.f32.mrf.mxu0
        %v5623 = vadd.f32 0.0, %v5622
        %5624 = vmatmul.bf16.gmra.mxu0 %v4603
        %v5625 = vpop.f32.mrf.mxu0
        %v5626 = vadd.f32 0.0, %v5625
        %v5627 = vpop.f32.mrf.mxu0
        %v5628 = vadd.f32 0.0, %v5627
        %5629 = vmatmul.bf16.gmra.mxu0 %v4605
        %v5630 = vpop.f32.mrf.mxu0
        %v5631 = vadd.f32 0.0, %v5630
        %v5632 = vpop.f32.mrf.mxu0
        %v5633 = vadd.f32 0.0, %v5632
        %5634 = vmatmul.bf16.gmra.mxu0 %v4607
        %v5635 = vpop.f32.mrf.mxu0
        %v5636 = vadd.f32 0.0, %v5635
        %v5637 = vpop.f32.mrf.mxu0
        %v5638 = vadd.f32 0.0, %v5637
        %5639 = vmatmul.bf16.gmra.mxu0 %v4609
        %v5640 = vpop.f32.mrf.mxu0
        %v5641 = vadd.f32 0.0, %v5640
        %v5642 = vpop.f32.mrf.mxu0
        %v5643 = vadd.f32 0.0, %v5642
        %5644 = vmatmul.bf16.gmra.mxu0 %v4631
        %v5645 = vpop.f32.mrf.mxu0
        %v5646 = vadd.f32 0.0, %v5645
        %v5647 = vpop.f32.mrf.mxu0
        %v5648 = vadd.f32 0.0, %v5647
        %5649 = vmatmul.bf16.gmra.mxu0 0
        %v5650 = vpop.f32.mrf.mxu0
        %v5651 = vadd.f32 0.0, %v5650
        %v5652 = vpop.f32.mrf.mxu0
        %v5653 = vadd.f32 0.0, %v5652
        %5654 = vdwg.mxu0
        %5655 = vmatpush.bf16.msra.mxu0 %v5572
        %5656 = vmatpush.bf16.msra.mxu0 %v5570
        %5657 = vmatpush.bf16.msra.mxu0 %v5568
        %5658 = vmatpush.bf16.msra.mxu0 %v5566
        %5659 = vmatpush.bf16.msra.mxu0 %v5564
        %5660 = vmatpush.bf16.msra.mxu0 %v5562
        %5661 = vmatpush.bf16.msra.mxu0 %v5560
        %5662 = vmatpush.bf16.msra.mxu0 %v5558
        %5663 = vmatmul.bf16.gmra.mxu0 %v4600
        %v5664 = vpop.f32.mrf.mxu0
        %v5665 = vadd.f32 %v5616, %v5664
        %v5666 = vpop.f32.mrf.mxu0
        %v5667 = vadd.f32 %v5618, %v5666
        %5668 = vmatmul.bf16.gmra.mxu0 %v4602
        %v5669 = vpop.f32.mrf.mxu0
        %v5670 = vadd.f32 %v5621, %v5669
        %v5671 = vpop.f32.mrf.mxu0
        %v5672 = vadd.f32 %v5623, %v5671
        %5673 = vmatmul.bf16.gmra.mxu0 %v4604
        %v5674 = vpop.f32.mrf.mxu0
        %v5675 = vadd.f32 %v5626, %v5674
        %v5676 = vpop.f32.mrf.mxu0
        %v5677 = vadd.f32 %v5628, %v5676
        %5678 = vmatmul.bf16.gmra.mxu0 %v4606
        %v5679 = vpop.f32.mrf.mxu0
        %v5680 = vadd.f32 %v5631, %v5679
        %v5681 = vpop.f32.mrf.mxu0
        %v5682 = vadd.f32 %v5633, %v5681
        %5683 = vmatmul.bf16.gmra.mxu0 %v4608
        %v5684 = vpop.f32.mrf.mxu0
        %v5685 = vadd.f32 %v5636, %v5684
        %v5686 = vpop.f32.mrf.mxu0
        %v5687 = vadd.f32 %v5638, %v5686
        %5688 = vmatmul.bf16.gmra.mxu0 %v4610
        %v5689 = vpop.f32.mrf.mxu0
        %v5690 = vadd.f32 %v5641, %v5689
        %v5691 = vpop.f32.mrf.mxu0
        %v5692 = vadd.f32 %v5643, %v5691
        %5693 = vmatmul.bf16.gmra.mxu0 %v4632
        %v5694 = vpop.f32.mrf.mxu0
        %v5695 = vadd.f32 %v5646, %v5694
        %v5696 = vpop.f32.mrf.mxu0
        %v5697 = vadd.f32 %v5648, %v5696
        %5698 = vmatmul.bf16.gmra.mxu0 0
        %v5699 = vpop.f32.mrf.mxu0
        %v5700 = vadd.f32 %v5651, %v5699
        %v5701 = vpop.f32.mrf.mxu0
        %v5702 = vadd.f32 %v5653, %v5701
        %5703 = vdwg.mxu0
        %5704 = vmatpush.bf16.msra.mxu0 %v5557
        %5705 = vmatpush.bf16.msra.mxu0 %v5555
        %5706 = vmatpush.bf16.msra.mxu0 %v5553
        %5707 = vmatpush.bf16.msra.mxu0 %v5551
        %5708 = vmatpush.bf16.msra.mxu0 %v5549
        %5709 = vmatpush.bf16.msra.mxu0 %v5547
        %5710 = vmatpush.bf16.msra.mxu0 %v5545
        %5711 = vmatpush.bf16.msra.mxu0 %v5543
        %5712 = vmatmul.bf16.gmra.mxu0 %v4599
        %v5713 = vpop.f32.mrf.mxu0
        %v5714 = vadd.f32 0.0, %v5713
        %v5715 = vpop.f32.mrf.mxu0
        %v5716 = vadd.f32 0.0, %v5715
        %5717 = vmatmul.bf16.gmra.mxu0 %v4601
        %v5718 = vpop.f32.mrf.mxu0
        %v5719 = vadd.f32 0.0, %v5718
        %v5720 = vpop.f32.mrf.mxu0
        %v5721 = vadd.f32 0.0, %v5720
        %5722 = vmatmul.bf16.gmra.mxu0 %v4603
        %v5723 = vpop.f32.mrf.mxu0
        %v5724 = vadd.f32 0.0, %v5723
        %v5725 = vpop.f32.mrf.mxu0
        %v5726 = vadd.f32 0.0, %v5725
        %5727 = vmatmul.bf16.gmra.mxu0 %v4605
        %v5728 = vpop.f32.mrf.mxu0
        %v5729 = vadd.f32 0.0, %v5728
        %v5730 = vpop.f32.mrf.mxu0
        %v5731 = vadd.f32 0.0, %v5730
        %5732 = vmatmul.bf16.gmra.mxu0 %v4607
        %v5733 = vpop.f32.mrf.mxu0
        %v5734 = vadd.f32 0.0, %v5733
        %v5735 = vpop.f32.mrf.mxu0
        %v5736 = vadd.f32 0.0, %v5735
        %5737 = vmatmul.bf16.gmra.mxu0 %v4609
        %v5738 = vpop.f32.mrf.mxu0
        %v5739 = vadd.f32 0.0, %v5738
        %v5740 = vpop.f32.mrf.mxu0
        %v5741 = vadd.f32 0.0, %v5740
        %5742 = vmatmul.bf16.gmra.mxu0 %v4631
        %v5743 = vpop.f32.mrf.mxu0
        %v5744 = vadd.f32 0.0, %v5743
        %v5745 = vpop.f32.mrf.mxu0
        %v5746 = vadd.f32 0.0, %v5745
        %5747 = vmatmul.bf16.gmra.mxu0 0
        %v5748 = vpop.f32.mrf.mxu0
        %v5749 = vadd.f32 0.0, %v5748
        %v5750 = vpop.f32.mrf.mxu0
        %v5751 = vadd.f32 0.0, %v5750
        %5752 = vdwg.mxu0
        %5753 = vmatpush.bf16.msra.mxu0 %v5573
        %5754 = vmatpush.bf16.msra.mxu0 %v5571
        %5755 = vmatpush.bf16.msra.mxu0 %v5569
        %5756 = vmatpush.bf16.msra.mxu0 %v5567
        %5757 = vmatpush.bf16.msra.mxu0 %v5565
        %5758 = vmatpush.bf16.msra.mxu0 %v5563
        %5759 = vmatpush.bf16.msra.mxu0 %v5561
        %5760 = vmatpush.bf16.msra.mxu0 %v5559
        %5761 = vmatmul.bf16.gmra.mxu0 %v4600
        %v5762 = vpop.f32.mrf.mxu0
        %v5763 = vadd.f32 %v5714, %v5762
        %v5764 = vpop.f32.mrf.mxu0
        %v5765 = vadd.f32 %v5716, %v5764
        %5766 = vmatmul.bf16.gmra.mxu0 %v4602
        %v5767 = vpop.f32.mrf.mxu0
        %v5768 = vadd.f32 %v5719, %v5767
        %v5769 = vpop.f32.mrf.mxu0
        %v5770 = vadd.f32 %v5721, %v5769
        %5771 = vmatmul.bf16.gmra.mxu0 %v4604
        %v5772 = vpop.f32.mrf.mxu0
        %v5773 = vadd.f32 %v5724, %v5772
        %v5774 = vpop.f32.mrf.mxu0
        %v5775 = vadd.f32 %v5726, %v5774
        %5776 = vmatmul.bf16.gmra.mxu0 %v4606
        %v5777 = vpop.f32.mrf.mxu0
        %v5778 = vadd.f32 %v5729, %v5777
        %v5779 = vpop.f32.mrf.mxu0
        %v5780 = vadd.f32 %v5731, %v5779
        %5781 = vmatmul.bf16.gmra.mxu0 %v4608
        %v5782 = vpop.f32.mrf.mxu0
        %v5783 = vadd.f32 %v5734, %v5782
        %v5784 = vpop.f32.mrf.mxu0
        %v5785 = vadd.f32 %v5736, %v5784
        %5786 = vmatmul.bf16.gmra.mxu0 %v4610
        %v5787 = vpop.f32.mrf.mxu0
        %v5788 = vadd.f32 %v5739, %v5787
        %v5789 = vpop.f32.mrf.mxu0
        %v5790 = vadd.f32 %v5741, %v5789
        %5791 = vmatmul.bf16.gmra.mxu0 %v4632
        %v5792 = vpop.f32.mrf.mxu0
        %v5793 = vadd.f32 %v5744, %v5792
        %v5794 = vpop.f32.mrf.mxu0
        %v5795 = vadd.f32 %v5746, %v5794
        %5796 = vmatmul.bf16.gmra.mxu0 0
        %v5797 = vpop.f32.mrf.mxu0
        %v5798 = vadd.f32 %v5749, %v5797
        %v5799 = vpop.f32.mrf.mxu0
        %v5800 = vadd.f32 %v5751, %v5799
        %5801 = vdwg.mxu0
        %v5802 = vadd.f32 %v5276, %v5665
        %v5803 = vadd.f32 %v5374, %v5763
        %v5804 = vadd.f32 %v5278, %v5667
        %v5805 = vadd.f32 %v5376, %v5765
        %v5806 = vadd.f32 %v5281, %v5670
        %v5807 = vadd.f32 %v5379, %v5768
        %v5808 = vadd.f32 %v5283, %v5672
        %v5809 = vadd.f32 %v5381, %v5770
        %v5810 = vadd.f32 %v5286, %v5675
        %v5811 = vadd.f32 %v5384, %v5773
        %v5812 = vadd.f32 %v5288, %v5677
        %v5813 = vadd.f32 %v5386, %v5775
        %v5814 = vadd.f32 %v5291, %v5680
        %v5815 = vadd.f32 %v5389, %v5778
        %v5816 = vadd.f32 %v5293, %v5682
        %v5817 = vadd.f32 %v5391, %v5780
        %v5818 = vadd.f32 %v5296, %v5685
        %v5819 = vadd.f32 %v5394, %v5783
        %v5820 = vadd.f32 %v5298, %v5687
        %v5821 = vadd.f32 %v5396, %v5785
        %v5822 = vadd.f32 %v5301, %v5690
        %v5823 = vadd.f32 %v5399, %v5788
        %v5824 = vadd.f32 %v5303, %v5692
        %v5825 = vadd.f32 %v5401, %v5790
        %v5826 = vadd.f32 %v5306, %v5695
        %v5827 = vadd.f32 %v5404, %v5793
        %v5828 = vadd.f32 %v5308, %v5697
        %v5829 = vadd.f32 %v5406, %v5795
        %v5830 = vadd.f32 %v5311, %v5700
        %v5831 = vadd.f32 %v5409, %v5798
        %v5832 = vadd.f32 %v5313, %v5702
        %v5833 = vadd.f32 %v5411, %v5800
        %s5834 = scalar_lea.vmem %s2, 6
        %v5835 = vld [vmem:[%s5834] sm:$0x3]
        %v5837 = vperm.slane %v5835, 0
        %v5838 = vperm.slane %v5835, 1
        %v5841 = vadd.f32 %v5802, %v5837
        %v5842 = vadd.f32 %v5803, %v5838
        %v5843 = vadd.f32 %v5804, %v5837
        %v5844 = vadd.f32 %v5805, %v5838
        %v5845 = vadd.f32 %v5806, %v5837
        %v5846 = vadd.f32 %v5807, %v5838
        %v5847 = vadd.f32 %v5808, %v5837
        %v5848 = vadd.f32 %v5809, %v5838
        %v5849 = vadd.f32 %v5810, %v5837
        %v5850 = vadd.f32 %v5811, %v5838
        %v5851 = vadd.f32 %v5812, %v5837
        %v5852 = vadd.f32 %v5813, %v5838
        %v5853 = vadd.f32 %v5814, %v5837
        %v5854 = vadd.f32 %v5815, %v5838
        %v5855 = vadd.f32 %v5816, %v5837
        %v5856 = vadd.f32 %v5817, %v5838
        %v5857 = vadd.f32 %v5818, %v5837
        %v5858 = vadd.f32 %v5819, %v5838
        %v5859 = vadd.f32 %v5820, %v5837
        %v5860 = vadd.f32 %v5821, %v5838
        %v5861 = vadd.f32 %v5822, %v5837
        %v5862 = vadd.f32 %v5823, %v5838
        %v5863 = vadd.f32 %v5824, %v5837
        %v5864 = vadd.f32 %v5825, %v5838
        %v5865 = vadd.f32 %v5826, %v5837
        %v5866 = vadd.f32 %v5827, %v5838
        %v5867 = vadd.f32 %v5828, %v5837
        %v5868 = vadd.f32 %v5829, %v5838
        %v5869 = vadd.f32 %v5830, %v5837
        %v5870 = vadd.f32 %v5831, %v5838
        %v5871 = vadd.f32 %v5832, %v5837
        %v5872 = vadd.f32 %v5833, %v5838
        %v5873 = vmax.f32 %v5841, 0.0
        %v5874 = vmax.f32 %v5842, 0.0
        %v5875 = vmax.f32 %v5843, 0.0
        %v5876 = vmax.f32 %v5844, 0.0
        %v5877 = vmax.f32 %v5845, 0.0
        %v5878 = vmax.f32 %v5846, 0.0
        %v5879 = vmax.f32 %v5847, 0.0
        %v5880 = vmax.f32 %v5848, 0.0
        %v5881 = vmax.f32 %v5849, 0.0
        %v5882 = vmax.f32 %v5850, 0.0
        %v5883 = vmax.f32 %v5851, 0.0
        %v5884 = vmax.f32 %v5852, 0.0
        %v5885 = vmax.f32 %v5853, 0.0
        %v5886 = vmax.f32 %v5854, 0.0
        %v5887 = vmax.f32 %v5855, 0.0
        %v5888 = vmax.f32 %v5856, 0.0
        %v5889 = vmax.f32 %v5857, 0.0
        %v5890 = vmax.f32 %v5858, 0.0
        %v5891 = vmax.f32 %v5859, 0.0
        %v5892 = vmax.f32 %v5860, 0.0
        %v5893 = vmax.f32 %v5861, 0.0
        %v5894 = vmax.f32 %v5862, 0.0
        %v5895 = vmax.f32 %v5863, 0.0
        %v5896 = vmax.f32 %v5864, 0.0
        %v5897 = vmax.f32 %v5865, 0.0
        %v5898 = vmax.f32 %v5866, 0.0
        %v5899 = vmax.f32 %v5867, 0.0
        %v5900 = vmax.f32 %v5868, 0.0
        %v5901 = vmax.f32 %v5869, 0.0
        %v5902 = vmax.f32 %v5870, 0.0
        %v5903 = vmax.f32 %v5871, 0.0
        %v5904 = vmax.f32 %v5872, 0.0
        %v5905 = vpack.c.bf16 %v5874, %v5873
        %v5906 = vpack.c.bf16 %v5876, %v5875
        %v5907 = vpack.c.bf16 %v5878, %v5877
        %v5908 = vpack.c.bf16 %v5880, %v5879
        %v5909 = vpack.c.bf16 %v5882, %v5881
        %v5910 = vpack.c.bf16 %v5884, %v5883
        %v5911 = vpack.c.bf16 %v5886, %v5885
        %v5912 = vpack.c.bf16 %v5888, %v5887
        %v5913 = vpack.c.bf16 %v5890, %v5889
        %v5914 = vpack.c.bf16 %v5892, %v5891
        %v5915 = vpack.c.bf16 %v5894, %v5893
        %v5916 = vpack.c.bf16 %v5896, %v5895
        %v5917 = vpack.c.bf16 %v5898, %v5897
        %v5918 = vpack.c.bf16 %v5900, %v5899
        %v5919 = vpack.c.bf16 %v5902, %v5901
        %v5920 = vpack.c.bf16 %v5904, %v5903
        %v5935 = vunpack.c.l.b16 %v5905
        %v5936 = vunpack.c.h.b16 %v5905
        %v5937 = vunpack.c.l.b16 %v5906
        %v5938 = vunpack.c.h.b16 %v5906
        %v5939 = vunpack.c.l.b16 %v5907
        %v5940 = vunpack.c.h.b16 %v5907
        %v5941 = vunpack.c.l.b16 %v5908
        %v5942 = vunpack.c.h.b16 %v5908
        %v5943 = vunpack.c.l.b16 %v5909
        %v5944 = vunpack.c.h.b16 %v5909
        %v5945 = vunpack.c.l.b16 %v5910
        %v5946 = vunpack.c.h.b16 %v5910
        %v5947 = vunpack.c.l.b16 %v5911
        %v5948 = vunpack.c.h.b16 %v5911
        %v5949 = vunpack.c.l.b16 %v5912
        %v5950 = vunpack.c.h.b16 %v5912
        %v5951 = vunpack.c.l.b16 %v5913
        %v5952 = vunpack.c.h.b16 %v5913
        %v5953 = vunpack.c.l.b16 %v5914
        %v5954 = vunpack.c.h.b16 %v5914
        %v5955 = vunpack.c.l.b16 %v5915
        %v5956 = vunpack.c.h.b16 %v5915
        %v5957 = vunpack.c.l.b16 %v5916
        %v5958 = vunpack.c.h.b16 %v5916
        %v5959 = vunpack.c.l.b16 %v5917
        %v5960 = vunpack.c.h.b16 %v5917
        %v5961 = vunpack.c.l.b16 %v5918
        %v5962 = vunpack.c.h.b16 %v5918
        %v5963 = vpack.c.b16 %v5937, %v5935
        %v5964 = vpack.c.b16 %v5938, %v5936
        %v5965 = vpack.c.b16 %v5941, %v5939
        %v5966 = vpack.c.b16 %v5942, %v5940
        %v5967 = vpack.c.b16 %v5945, %v5943
        %v5968 = vpack.c.b16 %v5946, %v5944
        %v5969 = vpack.c.b16 %v5949, %v5947
        %v5970 = vpack.c.b16 %v5950, %v5948
        %v5971 = vpack.c.b16 %v5953, %v5951
        %v5972 = vpack.c.b16 %v5954, %v5952
        %v5973 = vpack.c.b16 %v5957, %v5955
        %v5974 = vpack.c.b16 %v5958, %v5956
        %v5975 = vpack.c.b16 %v5961, %v5959
        %v5976 = vpack.c.b16 %v5962, %v5960
        %v5993 = vunpack.c.l.b16 %v5919
        %v5994 = vunpack.c.h.b16 %v5919
        %v5995 = vunpack.c.l.b16 %v5920
        %v5996 = vunpack.c.h.b16 %v5920
        %v5997 = vpack.c.b16 %v5995, %v5993
        %v5998 = vpack.c.b16 %v5996, %v5994
        %s6001 = scalar_lea.vmem %s1, 3072
        %v6002 = vld [vmem:[%s6001] sm:$0xff]
        %v6003 = vld [vmem:[%s6001 + $0x8] sm:$0xff]
        %v6004 = vld [vmem:[%s6001 + $0x10] sm:$0xff]
        %v6005 = vld [vmem:[%s6001 + $0x18] sm:$0xff]
        %v6006 = vld [vmem:[%s6001 + $0x20] sm:$0xff]
        %v6007 = vld [vmem:[%s6001 + $0x28] sm:$0xff]
        %v6008 = vld [vmem:[%s6001 + $0x30] sm:$0xff]
        %v6009 = vld [vmem:[%s6001 + $0x38] sm:$0xff]
        %v6010 = vld [vmem:[%s6001 + $0x40] sm:$0xff]
        %v6011 = vld [vmem:[%s6001 + $0x48] sm:$0xff]
        %v6012 = vld [vmem:[%s6001 + $0x50] sm:$0xff]
        %v6013 = vld [vmem:[%s6001 + $0x58] sm:$0xff]
        %v6014 = vld [vmem:[%s6001 + $0x60] sm:$0xff]
        %v6015 = vld [vmem:[%s6001 + $0x68] sm:$0xff]
        %v6016 = vld [vmem:[%s6001 + $0x70] sm:$0xff]
        %v6017 = vld [vmem:[%s6001 + $0x78] sm:$0xff]
        %v6018 = vld [vmem:[%s6001 + $0x80] sm:$0xff]
        %v6019 = vld [vmem:[%s6001 + $0x88] sm:$0xff]
        %v6020 = vld [vmem:[%s6001 + $0x90] sm:$0xff]
        %v6021 = vld [vmem:[%s6001 + $0x98] sm:$0xff]
        %v6022 = vld [vmem:[%s6001 + $0xa0] sm:$0xff]
        %v6023 = vld [vmem:[%s6001 + $0xa8] sm:$0xff]
        %v6024 = vld [vmem:[%s6001 + $0xb0] sm:$0xff]
        %v6025 = vld [vmem:[%s6001 + $0xb8] sm:$0xff]
        %v6026 = vld [vmem:[%s6001 + $0xc0] sm:$0xff]
        %v6027 = vld [vmem:[%s6001 + $0xc8] sm:$0xff]
        %v6028 = vld [vmem:[%s6001 + $0xd0] sm:$0xff]
        %v6029 = vld [vmem:[%s6001 + $0xd8] sm:$0xff]
        %v6030 = vld [vmem:[%s6001 + $0xe0] sm:$0xff]
        %v6031 = vld [vmem:[%s6001 + $0xe8] sm:$0xff]
        %v6032 = vld [vmem:[%s6001 + $0xf0] sm:$0xff]
        %v6033 = vld [vmem:[%s6001 + $0xf8] sm:$0xff]
        %s6034 = scalar_lea.vmem %s1, 3328
        %v6035 = vld [vmem:[%s6034] sm:$0xff]
        %v6036 = vld [vmem:[%s6034 + $0x8] sm:$0xff]
        %v6037 = vld [vmem:[%s6034 + $0x10] sm:$0xff]
        %v6038 = vld [vmem:[%s6034 + $0x18] sm:$0xff]
        %v6039 = vld [vmem:[%s6034 + $0x20] sm:$0xff]
        %v6040 = vld [vmem:[%s6034 + $0x28] sm:$0xff]
        %v6041 = vld [vmem:[%s6034 + $0x30] sm:$0xff]
        %v6042 = vld [vmem:[%s6034 + $0x38] sm:$0xff]
        %v6043 = vld [vmem:[%s6034 + $0x40] sm:$0xff]
        %v6044 = vld [vmem:[%s6034 + $0x48] sm:$0xff]
        %v6045 = vld [vmem:[%s6034 + $0x50] sm:$0xff]
        %v6046 = vld [vmem:[%s6034 + $0x58] sm:$0xff]
        %v6047 = vld [vmem:[%s6034 + $0x60] sm:$0xff]
        %v6048 = vld [vmem:[%s6034 + $0x68] sm:$0xff]
        %v6049 = vld [vmem:[%s6034 + $0x70] sm:$0xff]
        %v6050 = vld [vmem:[%s6034 + $0x78] sm:$0xff]
        %v6051 = vld [vmem:[%s6034 + $0x80] sm:$0xff]
        %v6052 = vld [vmem:[%s6034 + $0x88] sm:$0xff]
        %v6053 = vld [vmem:[%s6034 + $0x90] sm:$0xff]
        %v6054 = vld [vmem:[%s6034 + $0x98] sm:$0xff]
        %v6055 = vld [vmem:[%s6034 + $0xa0] sm:$0xff]
        %v6056 = vld [vmem:[%s6034 + $0xa8] sm:$0xff]
        %v6057 = vld [vmem:[%s6034 + $0xb0] sm:$0xff]
        %v6058 = vld [vmem:[%s6034 + $0xb8] sm:$0xff]
        %v6059 = vld [vmem:[%s6034 + $0xc0] sm:$0xff]
        %v6060 = vld [vmem:[%s6034 + $0xc8] sm:$0xff]
        %v6061 = vld [vmem:[%s6034 + $0xd0] sm:$0xff]
        %v6062 = vld [vmem:[%s6034 + $0xd8] sm:$0xff]
        %v6063 = vld [vmem:[%s6034 + $0xe0] sm:$0xff]
        %v6064 = vld [vmem:[%s6034 + $0xe8] sm:$0xff]
        %v6065 = vld [vmem:[%s6034 + $0xf0] sm:$0xff]
        %v6066 = vld [vmem:[%s6034 + $0xf8] sm:$0xff]
        %v6099 = vunpack.c.l.b16 %v6035
        %v6100 = vunpack.c.h.b16 %v6035
        %v6101 = vunpack.c.l.b16 %v6036
        %v6102 = vunpack.c.h.b16 %v6036
        %v6103 = vunpack.c.l.b16 %v6037
        %v6104 = vunpack.c.h.b16 %v6037
        %v6105 = vunpack.c.l.b16 %v6038
        %v6106 = vunpack.c.h.b16 %v6038
        %v6107 = vunpack.c.l.b16 %v6039
        %v6108 = vunpack.c.h.b16 %v6039
        %v6109 = vunpack.c.l.b16 %v6040
        %v6110 = vunpack.c.h.b16 %v6040
        %v6111 = vunpack.c.l.b16 %v6041
        %v6112 = vunpack.c.h.b16 %v6041
        %v6113 = vunpack.c.l.b16 %v6042
        %v6114 = vunpack.c.h.b16 %v6042
        %v6115 = vunpack.c.l.b16 %v6043
        %v6116 = vunpack.c.h.b16 %v6043
        %v6117 = vunpack.c.l.b16 %v6044
        %v6118 = vunpack.c.h.b16 %v6044
        %v6119 = vunpack.c.l.b16 %v6045
        %v6120 = vunpack.c.h.b16 %v6045
        %v6121 = vunpack.c.l.b16 %v6046
        %v6122 = vunpack.c.h.b16 %v6046
        %v6123 = vunpack.c.l.b16 %v6047
        %v6124 = vunpack.c.h.b16 %v6047
        %v6125 = vunpack.c.l.b16 %v6048
        %v6126 = vunpack.c.h.b16 %v6048
        %v6127 = vunpack.c.l.b16 %v6049
        %v6128 = vunpack.c.h.b16 %v6049
        %v6129 = vunpack.c.l.b16 %v6050
        %v6130 = vunpack.c.h.b16 %v6050
        %v6131 = vunpack.c.l.b16 %v6051
        %v6132 = vunpack.c.h.b16 %v6051
        %v6133 = vunpack.c.l.b16 %v6052
        %v6134 = vunpack.c.h.b16 %v6052
        %v6135 = vunpack.c.l.b16 %v6053
        %v6136 = vunpack.c.h.b16 %v6053
        %v6137 = vunpack.c.l.b16 %v6054
        %v6138 = vunpack.c.h.b16 %v6054
        %v6139 = vunpack.c.l.b16 %v6055
        %v6140 = vunpack.c.h.b16 %v6055
        %v6141 = vunpack.c.l.b16 %v6056
        %v6142 = vunpack.c.h.b16 %v6056
        %v6143 = vunpack.c.l.b16 %v6057
        %v6144 = vunpack.c.h.b16 %v6057
        %v6145 = vunpack.c.l.b16 %v6058
        %v6146 = vunpack.c.h.b16 %v6058
        %v6147 = vunpack.c.l.b16 %v6059
        %v6148 = vunpack.c.h.b16 %v6059
        %v6149 = vunpack.c.l.b16 %v6060
        %v6150 = vunpack.c.h.b16 %v6060
        %v6151 = vunpack.c.l.b16 %v6061
        %v6152 = vunpack.c.h.b16 %v6061
        %v6153 = vunpack.c.l.b16 %v6062
        %v6154 = vunpack.c.h.b16 %v6062
        %v6155 = vunpack.c.l.b16 %v6063
        %v6156 = vunpack.c.h.b16 %v6063
        %v6157 = vunpack.c.l.b16 %v6064
        %v6158 = vunpack.c.h.b16 %v6064
        %v6159 = vunpack.c.l.b16 %v6065
        %v6160 = vunpack.c.h.b16 %v6065
        %v6161 = vunpack.c.l.b16 %v6066
        %v6162 = vunpack.c.h.b16 %v6066
        %v6163 = vpack.c.b16 %v6101, %v6099
        %v6164 = vpack.c.b16 %v6102, %v6100
        %v6165 = vpack.c.b16 %v6105, %v6103
        %v6166 = vpack.c.b16 %v6106, %v6104
        %v6167 = vpack.c.b16 %v6109, %v6107
        %v6168 = vpack.c.b16 %v6110, %v6108
        %v6169 = vpack.c.b16 %v6113, %v6111
        %v6170 = vpack.c.b16 %v6114, %v6112
        %v6171 = vpack.c.b16 %v6117, %v6115
        %v6172 = vpack.c.b16 %v6118, %v6116
        %v6173 = vpack.c.b16 %v6121, %v6119
        %v6174 = vpack.c.b16 %v6122, %v6120
        %v6175 = vpack.c.b16 %v6125, %v6123
        %v6176 = vpack.c.b16 %v6126, %v6124
        %v6177 = vpack.c.b16 %v6129, %v6127
        %v6178 = vpack.c.b16 %v6130, %v6128
        %v6179 = vpack.c.b16 %v6133, %v6131
        %v6180 = vpack.c.b16 %v6134, %v6132
        %v6181 = vpack.c.b16 %v6137, %v6135
        %v6182 = vpack.c.b16 %v6138, %v6136
        %v6183 = vpack.c.b16 %v6141, %v6139
        %v6184 = vpack.c.b16 %v6142, %v6140
        %v6185 = vpack.c.b16 %v6145, %v6143
        %v6186 = vpack.c.b16 %v6146, %v6144
        %v6187 = vpack.c.b16 %v6149, %v6147
        %v6188 = vpack.c.b16 %v6150, %v6148
        %v6189 = vpack.c.b16 %v6153, %v6151
        %v6190 = vpack.c.b16 %v6154, %v6152
        %v6191 = vpack.c.b16 %v6157, %v6155
        %v6192 = vpack.c.b16 %v6158, %v6156
        %v6193 = vpack.c.b16 %v6161, %v6159
        %v6194 = vpack.c.b16 %v6162, %v6160
        %6227 = vmatpush.bf16.msra.mxu0 %v6177
        %6228 = vmatpush.bf16.msra.mxu0 %v6175
        %6229 = vmatpush.bf16.msra.mxu0 %v6173
        %6230 = vmatpush.bf16.msra.mxu0 %v6171
        %6231 = vmatpush.bf16.msra.mxu0 %v6169
        %6232 = vmatpush.bf16.msra.mxu0 %v6167
        %6233 = vmatpush.bf16.msra.mxu0 %v6165
        %6234 = vmatpush.bf16.msra.mxu0 %v6163
        %6235 = vmatmul.bf16.gmra.mxu0 %v5963
        %v6236 = vpop.f32.mrf.mxu0
        %v6237 = vadd.f32 0.0, %v6236
        %v6238 = vpop.f32.mrf.mxu0
        %v6239 = vadd.f32 0.0, %v6238
        %6240 = vmatmul.bf16.gmra.mxu0 %v5965
        %v6241 = vpop.f32.mrf.mxu0
        %v6242 = vadd.f32 0.0, %v6241
        %v6243 = vpop.f32.mrf.mxu0
        %v6244 = vadd.f32 0.0, %v6243
        %6245 = vmatmul.bf16.gmra.mxu0 %v5967
        %v6246 = vpop.f32.mrf.mxu0
        %v6247 = vadd.f32 0.0, %v6246
        %v6248 = vpop.f32.mrf.mxu0
        %v6249 = vadd.f32 0.0, %v6248
        %6250 = vmatmul.bf16.gmra.mxu0 %v5969
        %v6251 = vpop.f32.mrf.mxu0
        %v6252 = vadd.f32 0.0, %v6251
        %v6253 = vpop.f32.mrf.mxu0
        %v6254 = vadd.f32 0.0, %v6253
        %6255 = vmatmul.bf16.gmra.mxu0 %v5971
        %v6256 = vpop.f32.mrf.mxu0
        %v6257 = vadd.f32 0.0, %v6256
        %v6258 = vpop.f32.mrf.mxu0
        %v6259 = vadd.f32 0.0, %v6258
        %6260 = vmatmul.bf16.gmra.mxu0 %v5973
        %v6261 = vpop.f32.mrf.mxu0
        %v6262 = vadd.f32 0.0, %v6261
        %v6263 = vpop.f32.mrf.mxu0
        %v6264 = vadd.f32 0.0, %v6263
        %6265 = vmatmul.bf16.gmra.mxu0 %v5975
        %v6266 = vpop.f32.mrf.mxu0
        %v6267 = vadd.f32 0.0, %v6266
        %v6268 = vpop.f32.mrf.mxu0
        %v6269 = vadd.f32 0.0, %v6268
        %6270 = vmatmul.bf16.gmra.mxu0 %v5997
        %v6271 = vpop.f32.mrf.mxu0
        %v6272 = vadd.f32 0.0, %v6271
        %v6273 = vpop.f32.mrf.mxu0
        %v6274 = vadd.f32 0.0, %v6273
        %6275 = vdwg.mxu0
        %6276 = vmatpush.bf16.msra.mxu0 %v6193
        %6277 = vmatpush.bf16.msra.mxu0 %v6191
        %6278 = vmatpush.bf16.msra.mxu0 %v6189
        %6279 = vmatpush.bf16.msra.mxu0 %v6187
        %6280 = vmatpush.bf16.msra.mxu0 %v6185
        %6281 = vmatpush.bf16.msra.mxu0 %v6183
        %6282 = vmatpush.bf16.msra.mxu0 %v6181
        %6283 = vmatpush.bf16.msra.mxu0 %v6179
        %6284 = vmatmul.bf16.gmra.mxu0 %v5964
        %v6285 = vpop.f32.mrf.mxu0
        %v6286 = vadd.f32 %v6237, %v6285
        %v6287 = vpop.f32.mrf.mxu0
        %v6288 = vadd.f32 %v6239, %v6287
        %6289 = vmatmul.bf16.gmra.mxu0 %v5966
        %v6290 = vpop.f32.mrf.mxu0
        %v6291 = vadd.f32 %v6242, %v6290
        %v6292 = vpop.f32.mrf.mxu0
        %v6293 = vadd.f32 %v6244, %v6292
        %6294 = vmatmul.bf16.gmra.mxu0 %v5968
        %v6295 = vpop.f32.mrf.mxu0
        %v6296 = vadd.f32 %v6247, %v6295
        %v6297 = vpop.f32.mrf.mxu0
        %v6298 = vadd.f32 %v6249, %v6297
        %6299 = vmatmul.bf16.gmra.mxu0 %v5970
        %v6300 = vpop.f32.mrf.mxu0
        %v6301 = vadd.f32 %v6252, %v6300
        %v6302 = vpop.f32.mrf.mxu0
        %v6303 = vadd.f32 %v6254, %v6302
        %6304 = vmatmul.bf16.gmra.mxu0 %v5972
        %v6305 = vpop.f32.mrf.mxu0
        %v6306 = vadd.f32 %v6257, %v6305
        %v6307 = vpop.f32.mrf.mxu0
        %v6308 = vadd.f32 %v6259, %v6307
        %6309 = vmatmul.bf16.gmra.mxu0 %v5974
        %v6310 = vpop.f32.mrf.mxu0
        %v6311 = vadd.f32 %v6262, %v6310
        %v6312 = vpop.f32.mrf.mxu0
        %v6313 = vadd.f32 %v6264, %v6312
        %6314 = vmatmul.bf16.gmra.mxu0 %v5976
        %v6315 = vpop.f32.mrf.mxu0
        %v6316 = vadd.f32 %v6267, %v6315
        %v6317 = vpop.f32.mrf.mxu0
        %v6318 = vadd.f32 %v6269, %v6317
        %6319 = vmatmul.bf16.gmra.mxu0 %v5998
        %v6320 = vpop.f32.mrf.mxu0
        %v6321 = vadd.f32 %v6272, %v6320
        %v6322 = vpop.f32.mrf.mxu0
        %v6323 = vadd.f32 %v6274, %v6322
        %6324 = vdwg.mxu0
        %6325 = vmatpush.bf16.msra.mxu0 %v6178
        %6326 = vmatpush.bf16.msra.mxu0 %v6176
        %6327 = vmatpush.bf16.msra.mxu0 %v6174
        %6328 = vmatpush.bf16.msra.mxu0 %v6172
        %6329 = vmatpush.bf16.msra.mxu0 %v6170
        %6330 = vmatpush.bf16.msra.mxu0 %v6168
        %6331 = vmatpush.bf16.msra.mxu0 %v6166
        %6332 = vmatpush.bf16.msra.mxu0 %v6164
        %6333 = vmatmul.bf16.gmra.mxu0 %v5963
        %v6334 = vpop.f32.mrf.mxu0
        %v6335 = vadd.f32 0.0, %v6334
        %v6336 = vpop.f32.mrf.mxu0
        %v6337 = vadd.f32 0.0, %v6336
        %6338 = vmatmul.bf16.gmra.mxu0 %v5965
        %v6339 = vpop.f32.mrf.mxu0
        %v6340 = vadd.f32 0.0, %v6339
        %v6341 = vpop.f32.mrf.mxu0
        %v6342 = vadd.f32 0.0, %v6341
        %6343 = vmatmul.bf16.gmra.mxu0 %v5967
        %v6344 = vpop.f32.mrf.mxu0
        %v6345 = vadd.f32 0.0, %v6344
        %v6346 = vpop.f32.mrf.mxu0
        %v6347 = vadd.f32 0.0, %v6346
        %6348 = vmatmul.bf16.gmra.mxu0 %v5969
        %v6349 = vpop.f32.mrf.mxu0
        %v6350 = vadd.f32 0.0, %v6349
        %v6351 = vpop.f32.mrf.mxu0
        %v6352 = vadd.f32 0.0, %v6351
        %6353 = vmatmul.bf16.gmra.mxu0 %v5971
        %v6354 = vpop.f32.mrf.mxu0
        %v6355 = vadd.f32 0.0, %v6354
        %v6356 = vpop.f32.mrf.mxu0
        %v6357 = vadd.f32 0.0, %v6356
        %6358 = vmatmul.bf16.gmra.mxu0 %v5973
        %v6359 = vpop.f32.mrf.mxu0
        %v6360 = vadd.f32 0.0, %v6359
        %v6361 = vpop.f32.mrf.mxu0
        %v6362 = vadd.f32 0.0, %v6361
        %6363 = vmatmul.bf16.gmra.mxu0 %v5975
        %v6364 = vpop.f32.mrf.mxu0
        %v6365 = vadd.f32 0.0, %v6364
        %v6366 = vpop.f32.mrf.mxu0
        %v6367 = vadd.f32 0.0, %v6366
        %6368 = vmatmul.bf16.gmra.mxu0 %v5997
        %v6369 = vpop.f32.mrf.mxu0
        %v6370 = vadd.f32 0.0, %v6369
        %v6371 = vpop.f32.mrf.mxu0
        %v6372 = vadd.f32 0.0, %v6371
        %6373 = vdwg.mxu0
        %6374 = vmatpush.bf16.msra.mxu0 %v6194
        %6375 = vmatpush.bf16.msra.mxu0 %v6192
        %6376 = vmatpush.bf16.msra.mxu0 %v6190
        %6377 = vmatpush.bf16.msra.mxu0 %v6188
        %6378 = vmatpush.bf16.msra.mxu0 %v6186
        %6379 = vmatpush.bf16.msra.mxu0 %v6184
        %6380 = vmatpush.bf16.msra.mxu0 %v6182
        %6381 = vmatpush.bf16.msra.mxu0 %v6180
        %6382 = vmatmul.bf16.gmra.mxu0 %v5964
        %v6383 = vpop.f32.mrf.mxu0
        %v6384 = vadd.f32 %v6335, %v6383
        %v6385 = vpop.f32.mrf.mxu0
        %v6386 = vadd.f32 %v6337, %v6385
        %6387 = vmatmul.bf16.gmra.mxu0 %v5966
        %v6388 = vpop.f32.mrf.mxu0
        %v6389 = vadd.f32 %v6340, %v6388
        %v6390 = vpop.f32.mrf.mxu0
        %v6391 = vadd.f32 %v6342, %v6390
        %6392 = vmatmul.bf16.gmra.mxu0 %v5968
        %v6393 = vpop.f32.mrf.mxu0
        %v6394 = vadd.f32 %v6345, %v6393
        %v6395 = vpop.f32.mrf.mxu0
        %v6396 = vadd.f32 %v6347, %v6395
        %6397 = vmatmul.bf16.gmra.mxu0 %v5970
        %v6398 = vpop.f32.mrf.mxu0
        %v6399 = vadd.f32 %v6350, %v6398
        %v6400 = vpop.f32.mrf.mxu0
        %v6401 = vadd.f32 %v6352, %v6400
        %6402 = vmatmul.bf16.gmra.mxu0 %v5972
        %v6403 = vpop.f32.mrf.mxu0
        %v6404 = vadd.f32 %v6355, %v6403
        %v6405 = vpop.f32.mrf.mxu0
        %v6406 = vadd.f32 %v6357, %v6405
        %6407 = vmatmul.bf16.gmra.mxu0 %v5974
        %v6408 = vpop.f32.mrf.mxu0
        %v6409 = vadd.f32 %v6360, %v6408
        %v6410 = vpop.f32.mrf.mxu0
        %v6411 = vadd.f32 %v6362, %v6410
        %6412 = vmatmul.bf16.gmra.mxu0 %v5976
        %v6413 = vpop.f32.mrf.mxu0
        %v6414 = vadd.f32 %v6365, %v6413
        %v6415 = vpop.f32.mrf.mxu0
        %v6416 = vadd.f32 %v6367, %v6415
        %6417 = vmatmul.bf16.gmra.mxu0 %v5998
        %v6418 = vpop.f32.mrf.mxu0
        %v6419 = vadd.f32 %v6370, %v6418
        %v6420 = vpop.f32.mrf.mxu0
        %v6421 = vadd.f32 %v6372, %v6420
        %6422 = vdwg.mxu0
        %v6455 = vunpack.c.l.b16 %v6002
        %v6456 = vunpack.c.h.b16 %v6002
        %v6457 = vunpack.c.l.b16 %v6003
        %v6458 = vunpack.c.h.b16 %v6003
        %v6459 = vunpack.c.l.b16 %v6004
        %v6460 = vunpack.c.h.b16 %v6004
        %v6461 = vunpack.c.l.b16 %v6005
        %v6462 = vunpack.c.h.b16 %v6005
        %v6463 = vunpack.c.l.b16 %v6006
        %v6464 = vunpack.c.h.b16 %v6006
        %v6465 = vunpack.c.l.b16 %v6007
        %v6466 = vunpack.c.h.b16 %v6007
        %v6467 = vunpack.c.l.b16 %v6008
        %v6468 = vunpack.c.h.b16 %v6008
        %v6469 = vunpack.c.l.b16 %v6009
        %v6470 = vunpack.c.h.b16 %v6009
        %v6471 = vunpack.c.l.b16 %v6010
        %v6472 = vunpack.c.h.b16 %v6010
        %v6473 = vunpack.c.l.b16 %v6011
        %v6474 = vunpack.c.h.b16 %v6011
        %v6475 = vunpack.c.l.b16 %v6012
        %v6476 = vunpack.c.h.b16 %v6012
        %v6477 = vunpack.c.l.b16 %v6013
        %v6478 = vunpack.c.h.b16 %v6013
        %v6479 = vunpack.c.l.b16 %v6014
        %v6480 = vunpack.c.h.b16 %v6014
        %v6481 = vunpack.c.l.b16 %v6015
        %v6482 = vunpack.c.h.b16 %v6015
        %v6483 = vunpack.c.l.b16 %v6016
        %v6484 = vunpack.c.h.b16 %v6016
        %v6485 = vunpack.c.l.b16 %v6017
        %v6486 = vunpack.c.h.b16 %v6017
        %v6487 = vunpack.c.l.b16 %v6018
        %v6488 = vunpack.c.h.b16 %v6018
        %v6489 = vunpack.c.l.b16 %v6019
        %v6490 = vunpack.c.h.b16 %v6019
        %v6491 = vunpack.c.l.b16 %v6020
        %v6492 = vunpack.c.h.b16 %v6020
        %v6493 = vunpack.c.l.b16 %v6021
        %v6494 = vunpack.c.h.b16 %v6021
        %v6495 = vunpack.c.l.b16 %v6022
        %v6496 = vunpack.c.h.b16 %v6022
        %v6497 = vunpack.c.l.b16 %v6023
        %v6498 = vunpack.c.h.b16 %v6023
        %v6499 = vunpack.c.l.b16 %v6024
        %v6500 = vunpack.c.h.b16 %v6024
        %v6501 = vunpack.c.l.b16 %v6025
        %v6502 = vunpack.c.h.b16 %v6025
        %v6503 = vunpack.c.l.b16 %v6026
        %v6504 = vunpack.c.h.b16 %v6026
        %v6505 = vunpack.c.l.b16 %v6027
        %v6506 = vunpack.c.h.b16 %v6027
        %v6507 = vunpack.c.l.b16 %v6028
        %v6508 = vunpack.c.h.b16 %v6028
        %v6509 = vunpack.c.l.b16 %v6029
        %v6510 = vunpack.c.h.b16 %v6029
        %v6511 = vunpack.c.l.b16 %v6030
        %v6512 = vunpack.c.h.b16 %v6030
        %v6513 = vunpack.c.l.b16 %v6031
        %v6514 = vunpack.c.h.b16 %v6031
        %v6515 = vunpack.c.l.b16 %v6032
        %v6516 = vunpack.c.h.b16 %v6032
        %v6517 = vunpack.c.l.b16 %v6033
        %v6518 = vunpack.c.h.b16 %v6033
        %v6519 = vpack.c.b16 %v6457, %v6455
        %v6520 = vpack.c.b16 %v6458, %v6456
        %v6521 = vpack.c.b16 %v6461, %v6459
        %v6522 = vpack.c.b16 %v6462, %v6460
        %v6523 = vpack.c.b16 %v6465, %v6463
        %v6524 = vpack.c.b16 %v6466, %v6464
        %v6525 = vpack.c.b16 %v6469, %v6467
        %v6526 = vpack.c.b16 %v6470, %v6468
        %v6527 = vpack.c.b16 %v6473, %v6471
        %v6528 = vpack.c.b16 %v6474, %v6472
        %v6529 = vpack.c.b16 %v6477, %v6475
        %v6530 = vpack.c.b16 %v6478, %v6476
        %v6531 = vpack.c.b16 %v6481, %v6479
        %v6532 = vpack.c.b16 %v6482, %v6480
        %v6533 = vpack.c.b16 %v6485, %v6483
        %v6534 = vpack.c.b16 %v6486, %v6484
        %v6535 = vpack.c.b16 %v6489, %v6487
        %v6536 = vpack.c.b16 %v6490, %v6488
        %v6537 = vpack.c.b16 %v6493, %v6491
        %v6538 = vpack.c.b16 %v6494, %v6492
        %v6539 = vpack.c.b16 %v6497, %v6495
        %v6540 = vpack.c.b16 %v6498, %v6496
        %v6541 = vpack.c.b16 %v6501, %v6499
        %v6542 = vpack.c.b16 %v6502, %v6500
        %v6543 = vpack.c.b16 %v6505, %v6503
        %v6544 = vpack.c.b16 %v6506, %v6504
        %v6545 = vpack.c.b16 %v6509, %v6507
        %v6546 = vpack.c.b16 %v6510, %v6508
        %v6547 = vpack.c.b16 %v6513, %v6511
        %v6548 = vpack.c.b16 %v6514, %v6512
        %v6549 = vpack.c.b16 %v6517, %v6515
        %v6550 = vpack.c.b16 %v6518, %v6516
        %6583 = vmatpush.bf16.msra.mxu0 %v6533
        %6584 = vmatpush.bf16.msra.mxu0 %v6531
        %6585 = vmatpush.bf16.msra.mxu0 %v6529
        %6586 = vmatpush.bf16.msra.mxu0 %v6527
        %6587 = vmatpush.bf16.msra.mxu0 %v6525
        %6588 = vmatpush.bf16.msra.mxu0 %v6523
        %6589 = vmatpush.bf16.msra.mxu0 %v6521
        %6590 = vmatpush.bf16.msra.mxu0 %v6519
        %6591 = vmatmul.bf16.gmra.mxu0 0
        %v6592 = vpop.f32.mrf.mxu0
        %v6593 = vadd.f32 %v6286, %v6592
        %v6594 = vpop.f32.mrf.mxu0
        %v6595 = vadd.f32 %v6288, %v6594
        %6596 = vmatmul.bf16.gmra.mxu0 %v5963
        %v6597 = vpop.f32.mrf.mxu0
        %v6598 = vadd.f32 %v6291, %v6597
        %v6599 = vpop.f32.mrf.mxu0
        %v6600 = vadd.f32 %v6293, %v6599
        %6601 = vmatmul.bf16.gmra.mxu0 %v5965
        %v6602 = vpop.f32.mrf.mxu0
        %v6603 = vadd.f32 %v6296, %v6602
        %v6604 = vpop.f32.mrf.mxu0
        %v6605 = vadd.f32 %v6298, %v6604
        %6606 = vmatmul.bf16.gmra.mxu0 %v5967
        %v6607 = vpop.f32.mrf.mxu0
        %v6608 = vadd.f32 %v6301, %v6607
        %v6609 = vpop.f32.mrf.mxu0
        %v6610 = vadd.f32 %v6303, %v6609
        %6611 = vmatmul.bf16.gmra.mxu0 %v5969
        %v6612 = vpop.f32.mrf.mxu0
        %v6613 = vadd.f32 %v6306, %v6612
        %v6614 = vpop.f32.mrf.mxu0
        %v6615 = vadd.f32 %v6308, %v6614
        %6616 = vmatmul.bf16.gmra.mxu0 %v5971
        %v6617 = vpop.f32.mrf.mxu0
        %v6618 = vadd.f32 %v6311, %v6617
        %v6619 = vpop.f32.mrf.mxu0
        %v6620 = vadd.f32 %v6313, %v6619
        %6621 = vmatmul.bf16.gmra.mxu0 %v5973
        %v6622 = vpop.f32.mrf.mxu0
        %v6623 = vadd.f32 %v6316, %v6622
        %v6624 = vpop.f32.mrf.mxu0
        %v6625 = vadd.f32 %v6318, %v6624
        %6626 = vmatmul.bf16.gmra.mxu0 %v5975
        %v6627 = vpop.f32.mrf.mxu0
        %v6628 = vadd.f32 %v6321, %v6627
        %v6629 = vpop.f32.mrf.mxu0
        %v6630 = vadd.f32 %v6323, %v6629
        %6631 = vdwg.mxu0
        %6632 = vmatpush.bf16.msra.mxu0 %v6549
        %6633 = vmatpush.bf16.msra.mxu0 %v6547
        %6634 = vmatpush.bf16.msra.mxu0 %v6545
        %6635 = vmatpush.bf16.msra.mxu0 %v6543
        %6636 = vmatpush.bf16.msra.mxu0 %v6541
        %6637 = vmatpush.bf16.msra.mxu0 %v6539
        %6638 = vmatpush.bf16.msra.mxu0 %v6537
        %6639 = vmatpush.bf16.msra.mxu0 %v6535
        %6640 = vmatmul.bf16.gmra.mxu0 0
        %v6641 = vpop.f32.mrf.mxu0
        %v6642 = vadd.f32 %v6593, %v6641
        %v6643 = vpop.f32.mrf.mxu0
        %v6644 = vadd.f32 %v6595, %v6643
        %6645 = vmatmul.bf16.gmra.mxu0 %v5964
        %v6646 = vpop.f32.mrf.mxu0
        %v6647 = vadd.f32 %v6598, %v6646
        %v6648 = vpop.f32.mrf.mxu0
        %v6649 = vadd.f32 %v6600, %v6648
        %6650 = vmatmul.bf16.gmra.mxu0 %v5966
        %v6651 = vpop.f32.mrf.mxu0
        %v6652 = vadd.f32 %v6603, %v6651
        %v6653 = vpop.f32.mrf.mxu0
        %v6654 = vadd.f32 %v6605, %v6653
        %6655 = vmatmul.bf16.gmra.mxu0 %v5968
        %v6656 = vpop.f32.mrf.mxu0
        %v6657 = vadd.f32 %v6608, %v6656
        %v6658 = vpop.f32.mrf.mxu0
        %v6659 = vadd.f32 %v6610, %v6658
        %6660 = vmatmul.bf16.gmra.mxu0 %v5970
        %v6661 = vpop.f32.mrf.mxu0
        %v6662 = vadd.f32 %v6613, %v6661
        %v6663 = vpop.f32.mrf.mxu0
        %v6664 = vadd.f32 %v6615, %v6663
        %6665 = vmatmul.bf16.gmra.mxu0 %v5972
        %v6666 = vpop.f32.mrf.mxu0
        %v6667 = vadd.f32 %v6618, %v6666
        %v6668 = vpop.f32.mrf.mxu0
        %v6669 = vadd.f32 %v6620, %v6668
        %6670 = vmatmul.bf16.gmra.mxu0 %v5974
        %v6671 = vpop.f32.mrf.mxu0
        %v6672 = vadd.f32 %v6623, %v6671
        %v6673 = vpop.f32.mrf.mxu0
        %v6674 = vadd.f32 %v6625, %v6673
        %6675 = vmatmul.bf16.gmra.mxu0 %v5976
        %v6676 = vpop.f32.mrf.mxu0
        %v6677 = vadd.f32 %v6628, %v6676
        %v6678 = vpop.f32.mrf.mxu0
        %v6679 = vadd.f32 %v6630, %v6678
        %6680 = vdwg.mxu0
        %6681 = vmatpush.bf16.msra.mxu0 %v6534
        %6682 = vmatpush.bf16.msra.mxu0 %v6532
        %6683 = vmatpush.bf16.msra.mxu0 %v6530
        %6684 = vmatpush.bf16.msra.mxu0 %v6528
        %6685 = vmatpush.bf16.msra.mxu0 %v6526
        %6686 = vmatpush.bf16.msra.mxu0 %v6524
        %6687 = vmatpush.bf16.msra.mxu0 %v6522
        %6688 = vmatpush.bf16.msra.mxu0 %v6520
        %6689 = vmatmul.bf16.gmra.mxu0 0
        %v6690 = vpop.f32.mrf.mxu0
        %v6691 = vadd.f32 %v6384, %v6690
        %v6692 = vpop.f32.mrf.mxu0
        %v6693 = vadd.f32 %v6386, %v6692
        %6694 = vmatmul.bf16.gmra.mxu0 %v5963
        %v6695 = vpop.f32.mrf.mxu0
        %v6696 = vadd.f32 %v6389, %v6695
        %v6697 = vpop.f32.mrf.mxu0
        %v6698 = vadd.f32 %v6391, %v6697
        %6699 = vmatmul.bf16.gmra.mxu0 %v5965
        %v6700 = vpop.f32.mrf.mxu0
        %v6701 = vadd.f32 %v6394, %v6700
        %v6702 = vpop.f32.mrf.mxu0
        %v6703 = vadd.f32 %v6396, %v6702
        %6704 = vmatmul.bf16.gmra.mxu0 %v5967
        %v6705 = vpop.f32.mrf.mxu0
        %v6706 = vadd.f32 %v6399, %v6705
        %v6707 = vpop.f32.mrf.mxu0
        %v6708 = vadd.f32 %v6401, %v6707
        %6709 = vmatmul.bf16.gmra.mxu0 %v5969
        %v6710 = vpop.f32.mrf.mxu0
        %v6711 = vadd.f32 %v6404, %v6710
        %v6712 = vpop.f32.mrf.mxu0
        %v6713 = vadd.f32 %v6406, %v6712
        %6714 = vmatmul.bf16.gmra.mxu0 %v5971
        %v6715 = vpop.f32.mrf.mxu0
        %v6716 = vadd.f32 %v6409, %v6715
        %v6717 = vpop.f32.mrf.mxu0
        %v6718 = vadd.f32 %v6411, %v6717
        %6719 = vmatmul.bf16.gmra.mxu0 %v5973
        %v6720 = vpop.f32.mrf.mxu0
        %v6721 = vadd.f32 %v6414, %v6720
        %v6722 = vpop.f32.mrf.mxu0
        %v6723 = vadd.f32 %v6416, %v6722
        %6724 = vmatmul.bf16.gmra.mxu0 %v5975
        %v6725 = vpop.f32.mrf.mxu0
        %v6726 = vadd.f32 %v6419, %v6725
        %v6727 = vpop.f32.mrf.mxu0
        %v6728 = vadd.f32 %v6421, %v6727
        %6729 = vdwg.mxu0
        %6730 = vmatpush.bf16.msra.mxu0 %v6550
        %6731 = vmatpush.bf16.msra.mxu0 %v6548
        %6732 = vmatpush.bf16.msra.mxu0 %v6546
        %6733 = vmatpush.bf16.msra.mxu0 %v6544
        %6734 = vmatpush.bf16.msra.mxu0 %v6542
        %6735 = vmatpush.bf16.msra.mxu0 %v6540
        %6736 = vmatpush.bf16.msra.mxu0 %v6538
        %6737 = vmatpush.bf16.msra.mxu0 %v6536
        %6738 = vmatmul.bf16.gmra.mxu0 0
        %v6739 = vpop.f32.mrf.mxu0
        %v6740 = vadd.f32 %v6691, %v6739
        %v6741 = vpop.f32.mrf.mxu0
        %v6742 = vadd.f32 %v6693, %v6741
        %6743 = vmatmul.bf16.gmra.mxu0 %v5964
        %v6744 = vpop.f32.mrf.mxu0
        %v6745 = vadd.f32 %v6696, %v6744
        %v6746 = vpop.f32.mrf.mxu0
        %v6747 = vadd.f32 %v6698, %v6746
        %6748 = vmatmul.bf16.gmra.mxu0 %v5966
        %v6749 = vpop.f32.mrf.mxu0
        %v6750 = vadd.f32 %v6701, %v6749
        %v6751 = vpop.f32.mrf.mxu0
        %v6752 = vadd.f32 %v6703, %v6751
        %6753 = vmatmul.bf16.gmra.mxu0 %v5968
        %v6754 = vpop.f32.mrf.mxu0
        %v6755 = vadd.f32 %v6706, %v6754
        %v6756 = vpop.f32.mrf.mxu0
        %v6757 = vadd.f32 %v6708, %v6756
        %6758 = vmatmul.bf16.gmra.mxu0 %v5970
        %v6759 = vpop.f32.mrf.mxu0
        %v6760 = vadd.f32 %v6711, %v6759
        %v6761 = vpop.f32.mrf.mxu0
        %v6762 = vadd.f32 %v6713, %v6761
        %6763 = vmatmul.bf16.gmra.mxu0 %v5972
        %v6764 = vpop.f32.mrf.mxu0
        %v6765 = vadd.f32 %v6716, %v6764
        %v6766 = vpop.f32.mrf.mxu0
        %v6767 = vadd.f32 %v6718, %v6766
        %6768 = vmatmul.bf16.gmra.mxu0 %v5974
        %v6769 = vpop.f32.mrf.mxu0
        %v6770 = vadd.f32 %v6721, %v6769
        %v6771 = vpop.f32.mrf.mxu0
        %v6772 = vadd.f32 %v6723, %v6771
        %6773 = vmatmul.bf16.gmra.mxu0 %v5976
        %v6774 = vpop.f32.mrf.mxu0
        %v6775 = vadd.f32 %v6726, %v6774
        %v6776 = vpop.f32.mrf.mxu0
        %v6777 = vadd.f32 %v6728, %v6776
        %6778 = vdwg.mxu0
        %s6779 = scalar_lea.vmem %s1, 3584
        %v6780 = vld [vmem:[%s6779] sm:$0xff]
        %v6781 = vld [vmem:[%s6779 + $0x8] sm:$0xff]
        %v6782 = vld [vmem:[%s6779 + $0x10] sm:$0xff]
        %v6783 = vld [vmem:[%s6779 + $0x18] sm:$0xff]
        %v6784 = vld [vmem:[%s6779 + $0x20] sm:$0xff]
        %v6785 = vld [vmem:[%s6779 + $0x28] sm:$0xff]
        %v6786 = vld [vmem:[%s6779 + $0x30] sm:$0xff]
        %v6787 = vld [vmem:[%s6779 + $0x38] sm:$0xff]
        %v6788 = vld [vmem:[%s6779 + $0x40] sm:$0xff]
        %v6789 = vld [vmem:[%s6779 + $0x48] sm:$0xff]
        %v6790 = vld [vmem:[%s6779 + $0x50] sm:$0xff]
        %v6791 = vld [vmem:[%s6779 + $0x58] sm:$0xff]
        %v6792 = vld [vmem:[%s6779 + $0x60] sm:$0xff]
        %v6793 = vld [vmem:[%s6779 + $0x68] sm:$0xff]
        %v6794 = vld [vmem:[%s6779 + $0x70] sm:$0xff]
        %v6795 = vld [vmem:[%s6779 + $0x78] sm:$0xff]
        %v6796 = vld [vmem:[%s6779 + $0x80] sm:$0xff]
        %v6797 = vld [vmem:[%s6779 + $0x88] sm:$0xff]
        %v6798 = vld [vmem:[%s6779 + $0x90] sm:$0xff]
        %v6799 = vld [vmem:[%s6779 + $0x98] sm:$0xff]
        %v6800 = vld [vmem:[%s6779 + $0xa0] sm:$0xff]
        %v6801 = vld [vmem:[%s6779 + $0xa8] sm:$0xff]
        %v6802 = vld [vmem:[%s6779 + $0xb0] sm:$0xff]
        %v6803 = vld [vmem:[%s6779 + $0xb8] sm:$0xff]
        %v6804 = vld [vmem:[%s6779 + $0xc0] sm:$0xff]
        %v6805 = vld [vmem:[%s6779 + $0xc8] sm:$0xff]
        %v6806 = vld [vmem:[%s6779 + $0xd0] sm:$0xff]
        %v6807 = vld [vmem:[%s6779 + $0xd8] sm:$0xff]
        %v6808 = vld [vmem:[%s6779 + $0xe0] sm:$0xff]
        %v6809 = vld [vmem:[%s6779 + $0xe8] sm:$0xff]
        %v6810 = vld [vmem:[%s6779 + $0xf0] sm:$0xff]
        %v6811 = vld [vmem:[%s6779 + $0xf8] sm:$0xff]
        %v6844 = vunpack.c.l.b16 %v6780
        %v6845 = vunpack.c.h.b16 %v6780
        %v6846 = vunpack.c.l.b16 %v6781
        %v6847 = vunpack.c.h.b16 %v6781
        %v6848 = vunpack.c.l.b16 %v6782
        %v6849 = vunpack.c.h.b16 %v6782
        %v6850 = vunpack.c.l.b16 %v6783
        %v6851 = vunpack.c.h.b16 %v6783
        %v6852 = vunpack.c.l.b16 %v6784
        %v6853 = vunpack.c.h.b16 %v6784
        %v6854 = vunpack.c.l.b16 %v6785
        %v6855 = vunpack.c.h.b16 %v6785
        %v6856 = vunpack.c.l.b16 %v6786
        %v6857 = vunpack.c.h.b16 %v6786
        %v6858 = vunpack.c.l.b16 %v6787
        %v6859 = vunpack.c.h.b16 %v6787
        %v6860 = vunpack.c.l.b16 %v6788
        %v6861 = vunpack.c.h.b16 %v6788
        %v6862 = vunpack.c.l.b16 %v6789
        %v6863 = vunpack.c.h.b16 %v6789
        %v6864 = vunpack.c.l.b16 %v6790
        %v6865 = vunpack.c.h.b16 %v6790
        %v6866 = vunpack.c.l.b16 %v6791
        %v6867 = vunpack.c.h.b16 %v6791
        %v6868 = vunpack.c.l.b16 %v6792
        %v6869 = vunpack.c.h.b16 %v6792
        %v6870 = vunpack.c.l.b16 %v6793
        %v6871 = vunpack.c.h.b16 %v6793
        %v6872 = vunpack.c.l.b16 %v6794
        %v6873 = vunpack.c.h.b16 %v6794
        %v6874 = vunpack.c.l.b16 %v6795
        %v6875 = vunpack.c.h.b16 %v6795
        %v6876 = vunpack.c.l.b16 %v6796
        %v6877 = vunpack.c.h.b16 %v6796
        %v6878 = vunpack.c.l.b16 %v6797
        %v6879 = vunpack.c.h.b16 %v6797
        %v6880 = vunpack.c.l.b16 %v6798
        %v6881 = vunpack.c.h.b16 %v6798
        %v6882 = vunpack.c.l.b16 %v6799
        %v6883 = vunpack.c.h.b16 %v6799
        %v6884 = vunpack.c.l.b16 %v6800
        %v6885 = vunpack.c.h.b16 %v6800
        %v6886 = vunpack.c.l.b16 %v6801
        %v6887 = vunpack.c.h.b16 %v6801
        %v6888 = vunpack.c.l.b16 %v6802
        %v6889 = vunpack.c.h.b16 %v6802
        %v6890 = vunpack.c.l.b16 %v6803
        %v6891 = vunpack.c.h.b16 %v6803
        %v6892 = vunpack.c.l.b16 %v6804
        %v6893 = vunpack.c.h.b16 %v6804
        %v6894 = vunpack.c.l.b16 %v6805
        %v6895 = vunpack.c.h.b16 %v6805
        %v6896 = vunpack.c.l.b16 %v6806
        %v6897 = vunpack.c.h.b16 %v6806
        %v6898 = vunpack.c.l.b16 %v6807
        %v6899 = vunpack.c.h.b16 %v6807
        %v6900 = vunpack.c.l.b16 %v6808
        %v6901 = vunpack.c.h.b16 %v6808
        %v6902 = vunpack.c.l.b16 %v6809
        %v6903 = vunpack.c.h.b16 %v6809
        %v6904 = vunpack.c.l.b16 %v6810
        %v6905 = vunpack.c.h.b16 %v6810
        %v6906 = vunpack.c.l.b16 %v6811
        %v6907 = vunpack.c.h.b16 %v6811
        %v6908 = vpack.c.b16 %v6846, %v6844
        %v6909 = vpack.c.b16 %v6847, %v6845
        %v6910 = vpack.c.b16 %v6850, %v6848
        %v6911 = vpack.c.b16 %v6851, %v6849
        %v6912 = vpack.c.b16 %v6854, %v6852
        %v6913 = vpack.c.b16 %v6855, %v6853
        %v6914 = vpack.c.b16 %v6858, %v6856
        %v6915 = vpack.c.b16 %v6859, %v6857
        %v6916 = vpack.c.b16 %v6862, %v6860
        %v6917 = vpack.c.b16 %v6863, %v6861
        %v6918 = vpack.c.b16 %v6866, %v6864
        %v6919 = vpack.c.b16 %v6867, %v6865
        %v6920 = vpack.c.b16 %v6870, %v6868
        %v6921 = vpack.c.b16 %v6871, %v6869
        %v6922 = vpack.c.b16 %v6874, %v6872
        %v6923 = vpack.c.b16 %v6875, %v6873
        %v6924 = vpack.c.b16 %v6878, %v6876
        %v6925 = vpack.c.b16 %v6879, %v6877
        %v6926 = vpack.c.b16 %v6882, %v6880
        %v6927 = vpack.c.b16 %v6883, %v6881
        %v6928 = vpack.c.b16 %v6886, %v6884
        %v6929 = vpack.c.b16 %v6887, %v6885
        %v6930 = vpack.c.b16 %v6890, %v6888
        %v6931 = vpack.c.b16 %v6891, %v6889
        %v6932 = vpack.c.b16 %v6894, %v6892
        %v6933 = vpack.c.b16 %v6895, %v6893
        %v6934 = vpack.c.b16 %v6898, %v6896
        %v6935 = vpack.c.b16 %v6899, %v6897
        %v6936 = vpack.c.b16 %v6902, %v6900
        %v6937 = vpack.c.b16 %v6903, %v6901
        %v6938 = vpack.c.b16 %v6906, %v6904
        %v6939 = vpack.c.b16 %v6907, %v6905
        %6972 = vmatpush.bf16.msra.mxu0 %v6922
        %6973 = vmatpush.bf16.msra.mxu0 %v6920
        %6974 = vmatpush.bf16.msra.mxu0 %v6918
        %6975 = vmatpush.bf16.msra.mxu0 %v6916
        %6976 = vmatpush.bf16.msra.mxu0 %v6914
        %6977 = vmatpush.bf16.msra.mxu0 %v6912
        %6978 = vmatpush.bf16.msra.mxu0 %v6910
        %6979 = vmatpush.bf16.msra.mxu0 %v6908
        %6980 = vmatmul.bf16.gmra.mxu0 %v5965
        %v6981 = vpop.f32.mrf.mxu0
        %v6982 = vadd.f32 0.0, %v6981
        %v6983 = vpop.f32.mrf.mxu0
        %v6984 = vadd.f32 0.0, %v6983
        %6985 = vmatmul.bf16.gmra.mxu0 %v5967
        %v6986 = vpop.f32.mrf.mxu0
        %v6987 = vadd.f32 0.0, %v6986
        %v6988 = vpop.f32.mrf.mxu0
        %v6989 = vadd.f32 0.0, %v6988
        %6990 = vmatmul.bf16.gmra.mxu0 %v5969
        %v6991 = vpop.f32.mrf.mxu0
        %v6992 = vadd.f32 0.0, %v6991
        %v6993 = vpop.f32.mrf.mxu0
        %v6994 = vadd.f32 0.0, %v6993
        %6995 = vmatmul.bf16.gmra.mxu0 %v5971
        %v6996 = vpop.f32.mrf.mxu0
        %v6997 = vadd.f32 0.0, %v6996
        %v6998 = vpop.f32.mrf.mxu0
        %v6999 = vadd.f32 0.0, %v6998
        %7000 = vmatmul.bf16.gmra.mxu0 %v5973
        %v7001 = vpop.f32.mrf.mxu0
        %v7002 = vadd.f32 0.0, %v7001
        %v7003 = vpop.f32.mrf.mxu0
        %v7004 = vadd.f32 0.0, %v7003
        %7005 = vmatmul.bf16.gmra.mxu0 %v5975
        %v7006 = vpop.f32.mrf.mxu0
        %v7007 = vadd.f32 0.0, %v7006
        %v7008 = vpop.f32.mrf.mxu0
        %v7009 = vadd.f32 0.0, %v7008
        %7010 = vmatmul.bf16.gmra.mxu0 %v5997
        %v7011 = vpop.f32.mrf.mxu0
        %v7012 = vadd.f32 0.0, %v7011
        %v7013 = vpop.f32.mrf.mxu0
        %v7014 = vadd.f32 0.0, %v7013
        %7015 = vmatmul.bf16.gmra.mxu0 0
        %v7016 = vpop.f32.mrf.mxu0
        %v7017 = vadd.f32 0.0, %v7016
        %v7018 = vpop.f32.mrf.mxu0
        %v7019 = vadd.f32 0.0, %v7018
        %7020 = vdwg.mxu0
        %7021 = vmatpush.bf16.msra.mxu0 %v6938
        %7022 = vmatpush.bf16.msra.mxu0 %v6936
        %7023 = vmatpush.bf16.msra.mxu0 %v6934
        %7024 = vmatpush.bf16.msra.mxu0 %v6932
        %7025 = vmatpush.bf16.msra.mxu0 %v6930
        %7026 = vmatpush.bf16.msra.mxu0 %v6928
        %7027 = vmatpush.bf16.msra.mxu0 %v6926
        %7028 = vmatpush.bf16.msra.mxu0 %v6924
        %7029 = vmatmul.bf16.gmra.mxu0 %v5966
        %v7030 = vpop.f32.mrf.mxu0
        %v7031 = vadd.f32 %v6982, %v7030
        %v7032 = vpop.f32.mrf.mxu0
        %v7033 = vadd.f32 %v6984, %v7032
        %7034 = vmatmul.bf16.gmra.mxu0 %v5968
        %v7035 = vpop.f32.mrf.mxu0
        %v7036 = vadd.f32 %v6987, %v7035
        %v7037 = vpop.f32.mrf.mxu0
        %v7038 = vadd.f32 %v6989, %v7037
        %7039 = vmatmul.bf16.gmra.mxu0 %v5970
        %v7040 = vpop.f32.mrf.mxu0
        %v7041 = vadd.f32 %v6992, %v7040
        %v7042 = vpop.f32.mrf.mxu0
        %v7043 = vadd.f32 %v6994, %v7042
        %7044 = vmatmul.bf16.gmra.mxu0 %v5972
        %v7045 = vpop.f32.mrf.mxu0
        %v7046 = vadd.f32 %v6997, %v7045
        %v7047 = vpop.f32.mrf.mxu0
        %v7048 = vadd.f32 %v6999, %v7047
        %7049 = vmatmul.bf16.gmra.mxu0 %v5974
        %v7050 = vpop.f32.mrf.mxu0
        %v7051 = vadd.f32 %v7002, %v7050
        %v7052 = vpop.f32.mrf.mxu0
        %v7053 = vadd.f32 %v7004, %v7052
        %7054 = vmatmul.bf16.gmra.mxu0 %v5976
        %v7055 = vpop.f32.mrf.mxu0
        %v7056 = vadd.f32 %v7007, %v7055
        %v7057 = vpop.f32.mrf.mxu0
        %v7058 = vadd.f32 %v7009, %v7057
        %7059 = vmatmul.bf16.gmra.mxu0 %v5998
        %v7060 = vpop.f32.mrf.mxu0
        %v7061 = vadd.f32 %v7012, %v7060
        %v7062 = vpop.f32.mrf.mxu0
        %v7063 = vadd.f32 %v7014, %v7062
        %7064 = vmatmul.bf16.gmra.mxu0 0
        %v7065 = vpop.f32.mrf.mxu0
        %v7066 = vadd.f32 %v7017, %v7065
        %v7067 = vpop.f32.mrf.mxu0
        %v7068 = vadd.f32 %v7019, %v7067
        %7069 = vdwg.mxu0
        %7070 = vmatpush.bf16.msra.mxu0 %v6923
        %7071 = vmatpush.bf16.msra.mxu0 %v6921
        %7072 = vmatpush.bf16.msra.mxu0 %v6919
        %7073 = vmatpush.bf16.msra.mxu0 %v6917
        %7074 = vmatpush.bf16.msra.mxu0 %v6915
        %7075 = vmatpush.bf16.msra.mxu0 %v6913
        %7076 = vmatpush.bf16.msra.mxu0 %v6911
        %7077 = vmatpush.bf16.msra.mxu0 %v6909
        %7078 = vmatmul.bf16.gmra.mxu0 %v5965
        %v7079 = vpop.f32.mrf.mxu0
        %v7080 = vadd.f32 0.0, %v7079
        %v7081 = vpop.f32.mrf.mxu0
        %v7082 = vadd.f32 0.0, %v7081
        %7083 = vmatmul.bf16.gmra.mxu0 %v5967
        %v7084 = vpop.f32.mrf.mxu0
        %v7085 = vadd.f32 0.0, %v7084
        %v7086 = vpop.f32.mrf.mxu0
        %v7087 = vadd.f32 0.0, %v7086
        %7088 = vmatmul.bf16.gmra.mxu0 %v5969
        %v7089 = vpop.f32.mrf.mxu0
        %v7090 = vadd.f32 0.0, %v7089
        %v7091 = vpop.f32.mrf.mxu0
        %v7092 = vadd.f32 0.0, %v7091
        %7093 = vmatmul.bf16.gmra.mxu0 %v5971
        %v7094 = vpop.f32.mrf.mxu0
        %v7095 = vadd.f32 0.0, %v7094
        %v7096 = vpop.f32.mrf.mxu0
        %v7097 = vadd.f32 0.0, %v7096
        %7098 = vmatmul.bf16.gmra.mxu0 %v5973
        %v7099 = vpop.f32.mrf.mxu0
        %v7100 = vadd.f32 0.0, %v7099
        %v7101 = vpop.f32.mrf.mxu0
        %v7102 = vadd.f32 0.0, %v7101
        %7103 = vmatmul.bf16.gmra.mxu0 %v5975
        %v7104 = vpop.f32.mrf.mxu0
        %v7105 = vadd.f32 0.0, %v7104
        %v7106 = vpop.f32.mrf.mxu0
        %v7107 = vadd.f32 0.0, %v7106
        %7108 = vmatmul.bf16.gmra.mxu0 %v5997
        %v7109 = vpop.f32.mrf.mxu0
        %v7110 = vadd.f32 0.0, %v7109
        %v7111 = vpop.f32.mrf.mxu0
        %v7112 = vadd.f32 0.0, %v7111
        %7113 = vmatmul.bf16.gmra.mxu0 0
        %v7114 = vpop.f32.mrf.mxu0
        %v7115 = vadd.f32 0.0, %v7114
        %v7116 = vpop.f32.mrf.mxu0
        %v7117 = vadd.f32 0.0, %v7116
        %7118 = vdwg.mxu0
        %7119 = vmatpush.bf16.msra.mxu0 %v6939
        %7120 = vmatpush.bf16.msra.mxu0 %v6937
        %7121 = vmatpush.bf16.msra.mxu0 %v6935
        %7122 = vmatpush.bf16.msra.mxu0 %v6933
        %7123 = vmatpush.bf16.msra.mxu0 %v6931
        %7124 = vmatpush.bf16.msra.mxu0 %v6929
        %7125 = vmatpush.bf16.msra.mxu0 %v6927
        %7126 = vmatpush.bf16.msra.mxu0 %v6925
        %7127 = vmatmul.bf16.gmra.mxu0 %v5966
        %v7128 = vpop.f32.mrf.mxu0
        %v7129 = vadd.f32 %v7080, %v7128
        %v7130 = vpop.f32.mrf.mxu0
        %v7131 = vadd.f32 %v7082, %v7130
        %7132 = vmatmul.bf16.gmra.mxu0 %v5968
        %v7133 = vpop.f32.mrf.mxu0
        %v7134 = vadd.f32 %v7085, %v7133
        %v7135 = vpop.f32.mrf.mxu0
        %v7136 = vadd.f32 %v7087, %v7135
        %7137 = vmatmul.bf16.gmra.mxu0 %v5970
        %v7138 = vpop.f32.mrf.mxu0
        %v7139 = vadd.f32 %v7090, %v7138
        %v7140 = vpop.f32.mrf.mxu0
        %v7141 = vadd.f32 %v7092, %v7140
        %7142 = vmatmul.bf16.gmra.mxu0 %v5972
        %v7143 = vpop.f32.mrf.mxu0
        %v7144 = vadd.f32 %v7095, %v7143
        %v7145 = vpop.f32.mrf.mxu0
        %v7146 = vadd.f32 %v7097, %v7145
        %7147 = vmatmul.bf16.gmra.mxu0 %v5974
        %v7148 = vpop.f32.mrf.mxu0
        %v7149 = vadd.f32 %v7100, %v7148
        %v7150 = vpop.f32.mrf.mxu0
        %v7151 = vadd.f32 %v7102, %v7150
        %7152 = vmatmul.bf16.gmra.mxu0 %v5976
        %v7153 = vpop.f32.mrf.mxu0
        %v7154 = vadd.f32 %v7105, %v7153
        %v7155 = vpop.f32.mrf.mxu0
        %v7156 = vadd.f32 %v7107, %v7155
        %7157 = vmatmul.bf16.gmra.mxu0 %v5998
        %v7158 = vpop.f32.mrf.mxu0
        %v7159 = vadd.f32 %v7110, %v7158
        %v7160 = vpop.f32.mrf.mxu0
        %v7161 = vadd.f32 %v7112, %v7160
        %7162 = vmatmul.bf16.gmra.mxu0 0
        %v7163 = vpop.f32.mrf.mxu0
        %v7164 = vadd.f32 %v7115, %v7163
        %v7165 = vpop.f32.mrf.mxu0
        %v7166 = vadd.f32 %v7117, %v7165
        %7167 = vdwg.mxu0
        %v7168 = vadd.f32 %v6642, %v7031
        %v7169 = vadd.f32 %v6740, %v7129
        %v7170 = vadd.f32 %v6644, %v7033
        %v7171 = vadd.f32 %v6742, %v7131
        %v7172 = vadd.f32 %v6647, %v7036
        %v7173 = vadd.f32 %v6745, %v7134
        %v7174 = vadd.f32 %v6649, %v7038
        %v7175 = vadd.f32 %v6747, %v7136
        %v7176 = vadd.f32 %v6652, %v7041
        %v7177 = vadd.f32 %v6750, %v7139
        %v7178 = vadd.f32 %v6654, %v7043
        %v7179 = vadd.f32 %v6752, %v7141
        %v7180 = vadd.f32 %v6657, %v7046
        %v7181 = vadd.f32 %v6755, %v7144
        %v7182 = vadd.f32 %v6659, %v7048
        %v7183 = vadd.f32 %v6757, %v7146
        %v7184 = vadd.f32 %v6662, %v7051
        %v7185 = vadd.f32 %v6760, %v7149
        %v7186 = vadd.f32 %v6664, %v7053
        %v7187 = vadd.f32 %v6762, %v7151
        %v7188 = vadd.f32 %v6667, %v7056
        %v7189 = vadd.f32 %v6765, %v7154
        %v7190 = vadd.f32 %v6669, %v7058
        %v7191 = vadd.f32 %v6767, %v7156
        %v7192 = vadd.f32 %v6672, %v7061
        %v7193 = vadd.f32 %v6770, %v7159
        %v7194 = vadd.f32 %v6674, %v7063
        %v7195 = vadd.f32 %v6772, %v7161
        %v7196 = vadd.f32 %v6677, %v7066
        %v7197 = vadd.f32 %v6775, %v7164
        %v7198 = vadd.f32 %v6679, %v7068
        %v7199 = vadd.f32 %v6777, %v7166
        %s7200 = scalar_lea.vmem %s2, 8
        %v7201 = vld [vmem:[%s7200] sm:$0x3]
        %v7203 = vperm.slane %v7201, 0
        %v7204 = vperm.slane %v7201, 1
        %v7207 = vadd.f32 %v7168, %v7203
        %v7208 = vadd.f32 %v7169, %v7204
        %v7209 = vadd.f32 %v7170, %v7203
        %v7210 = vadd.f32 %v7171, %v7204
        %v7211 = vadd.f32 %v7172, %v7203
        %v7212 = vadd.f32 %v7173, %v7204
        %v7213 = vadd.f32 %v7174, %v7203
        %v7214 = vadd.f32 %v7175, %v7204
        %v7215 = vadd.f32 %v7176, %v7203
        %v7216 = vadd.f32 %v7177, %v7204
        %v7217 = vadd.f32 %v7178, %v7203
        %v7218 = vadd.f32 %v7179, %v7204
        %v7219 = vadd.f32 %v7180, %v7203
        %v7220 = vadd.f32 %v7181, %v7204
        %v7221 = vadd.f32 %v7182, %v7203
        %v7222 = vadd.f32 %v7183, %v7204
        %v7223 = vadd.f32 %v7184, %v7203
        %v7224 = vadd.f32 %v7185, %v7204
        %v7225 = vadd.f32 %v7186, %v7203
        %v7226 = vadd.f32 %v7187, %v7204
        %v7227 = vadd.f32 %v7188, %v7203
        %v7228 = vadd.f32 %v7189, %v7204
        %v7229 = vadd.f32 %v7190, %v7203
        %v7230 = vadd.f32 %v7191, %v7204
        %v7231 = vadd.f32 %v7192, %v7203
        %v7232 = vadd.f32 %v7193, %v7204
        %v7233 = vadd.f32 %v7194, %v7203
        %v7234 = vadd.f32 %v7195, %v7204
        %v7235 = vadd.f32 %v7196, %v7203
        %v7236 = vadd.f32 %v7197, %v7204
        %v7237 = vadd.f32 %v7198, %v7203
        %v7238 = vadd.f32 %v7199, %v7204
        %v7239 = vunpack.c.l.bf16 %v4539
        %v7240 = vunpack.c.h.bf16 %v4539
        %v7241 = vunpack.c.l.bf16 %v4540
        %v7242 = vunpack.c.h.bf16 %v4540
        %v7243 = vunpack.c.l.bf16 %v4541
        %v7244 = vunpack.c.h.bf16 %v4541
        %v7245 = vunpack.c.l.bf16 %v4542
        %v7246 = vunpack.c.h.bf16 %v4542
        %v7247 = vunpack.c.l.bf16 %v4543
        %v7248 = vunpack.c.h.bf16 %v4543
        %v7249 = vunpack.c.l.bf16 %v4544
        %v7250 = vunpack.c.h.bf16 %v4544
        %v7251 = vunpack.c.l.bf16 %v4545
        %v7252 = vunpack.c.h.bf16 %v4545
        %v7253 = vunpack.c.l.bf16 %v4546
        %v7254 = vunpack.c.h.bf16 %v4546
        %v7255 = vunpack.c.l.bf16 %v4547
        %v7256 = vunpack.c.h.bf16 %v4547
        %v7257 = vunpack.c.l.bf16 %v4548
        %v7258 = vunpack.c.h.bf16 %v4548
        %v7259 = vunpack.c.l.bf16 %v4549
        %v7260 = vunpack.c.h.bf16 %v4549
        %v7261 = vunpack.c.l.bf16 %v4550
        %v7262 = vunpack.c.h.bf16 %v4550
        %v7263 = vunpack.c.l.bf16 %v4551
        %v7264 = vunpack.c.h.bf16 %v4551
        %v7265 = vunpack.c.l.bf16 %v4552
        %v7266 = vunpack.c.h.bf16 %v4552
        %v7267 = vunpack.c.l.bf16 %v4553
        %v7268 = vunpack.c.h.bf16 %v4553
        %v7269 = vunpack.c.l.bf16 %v4554
        %v7270 = vunpack.c.h.bf16 %v4554
        %v7271 = vadd.f32 %v7207, %v7239
        %v7272 = vadd.f32 %v7208, %v7240
        %v7273 = vadd.f32 %v7209, %v7241
        %v7274 = vadd.f32 %v7210, %v7242
        %v7275 = vadd.f32 %v7211, %v7243
        %v7276 = vadd.f32 %v7212, %v7244
        %v7277 = vadd.f32 %v7213, %v7245
        %v7278 = vadd.f32 %v7214, %v7246
        %v7279 = vadd.f32 %v7215, %v7247
        %v7280 = vadd.f32 %v7216, %v7248
        %v7281 = vadd.f32 %v7217, %v7249
        %v7282 = vadd.f32 %v7218, %v7250
        %v7283 = vadd.f32 %v7219, %v7251
        %v7284 = vadd.f32 %v7220, %v7252
        %v7285 = vadd.f32 %v7221, %v7253
        %v7286 = vadd.f32 %v7222, %v7254
        %v7287 = vadd.f32 %v7223, %v7255
        %v7288 = vadd.f32 %v7224, %v7256
        %v7289 = vadd.f32 %v7225, %v7257
        %v7290 = vadd.f32 %v7226, %v7258
        %v7291 = vadd.f32 %v7227, %v7259
        %v7292 = vadd.f32 %v7228, %v7260
        %v7293 = vadd.f32 %v7229, %v7261
        %v7294 = vadd.f32 %v7230, %v7262
        %v7295 = vadd.f32 %v7231, %v7263
        %v7296 = vadd.f32 %v7232, %v7264
        %v7297 = vadd.f32 %v7233, %v7265
        %v7298 = vadd.f32 %v7234, %v7266
        %v7299 = vadd.f32 %v7235, %v7267
        %v7300 = vadd.f32 %v7236, %v7268
        %v7301 = vadd.f32 %v7237, %v7269
        %v7302 = vadd.f32 %v7238, %v7270
        %v7303 = vmax.f32 %v7271, 0.0
        %v7304 = vmax.f32 %v7272, 0.0
        %v7305 = vmax.f32 %v7273, 0.0
        %v7306 = vmax.f32 %v7274, 0.0
        %v7307 = vmax.f32 %v7275, 0.0
        %v7308 = vmax.f32 %v7276, 0.0
        %v7309 = vmax.f32 %v7277, 0.0
        %v7310 = vmax.f32 %v7278, 0.0
        %v7311 = vmax.f32 %v7279, 0.0
        %v7312 = vmax.f32 %v7280, 0.0
        %v7313 = vmax.f32 %v7281, 0.0
        %v7314 = vmax.f32 %v7282, 0.0
        %v7315 = vmax.f32 %v7283, 0.0
        %v7316 = vmax.f32 %v7284, 0.0
        %v7317 = vmax.f32 %v7285, 0.0
        %v7318 = vmax.f32 %v7286, 0.0
        %v7319 = vmax.f32 %v7287, 0.0
        %v7320 = vmax.f32 %v7288, 0.0
        %v7321 = vmax.f32 %v7289, 0.0
        %v7322 = vmax.f32 %v7290, 0.0
        %v7323 = vmax.f32 %v7291, 0.0
        %v7324 = vmax.f32 %v7292, 0.0
        %v7325 = vmax.f32 %v7293, 0.0
        %v7326 = vmax.f32 %v7294, 0.0
        %v7327 = vmax.f32 %v7295, 0.0
        %v7328 = vmax.f32 %v7296, 0.0
        %v7329 = vmax.f32 %v7297, 0.0
        %v7330 = vmax.f32 %v7298, 0.0
        %v7331 = vmax.f32 %v7299, 0.0
        %v7332 = vmax.f32 %v7300, 0.0
        %v7333 = vmax.f32 %v7301, 0.0
        %v7334 = vmax.f32 %v7302, 0.0
        %v7335 = vpack.c.bf16 %v7305, %v7303
        %v7336 = vpack.c.bf16 %v7306, %v7304
        %v7337 = vpack.c.bf16 %v7309, %v7307
        %v7338 = vpack.c.bf16 %v7310, %v7308
        %v7339 = vpack.c.bf16 %v7313, %v7311
        %v7340 = vpack.c.bf16 %v7314, %v7312
        %v7341 = vpack.c.bf16 %v7317, %v7315
        %v7342 = vpack.c.bf16 %v7318, %v7316
        %v7343 = vpack.c.bf16 %v7321, %v7319
        %v7344 = vpack.c.bf16 %v7322, %v7320
        %v7345 = vpack.c.bf16 %v7325, %v7323
        %v7346 = vpack.c.bf16 %v7326, %v7324
        %v7347 = vpack.c.bf16 %v7329, %v7327
        %v7348 = vpack.c.bf16 %v7330, %v7328
        %v7349 = vpack.c.bf16 %v7333, %v7331
        %v7350 = vpack.c.bf16 %v7334, %v7332
        %v7351 = vld [vmem:[%s3] sm:$0xf]
        %v7352 = vld [vmem:[%s3 + $0x4] sm:$0xf]
        %v7353 = vld [vmem:[%s3 + $0x8] sm:$0xf]
        %v7354 = vld [vmem:[%s3 + $0xc] sm:$0xf]
        %v7355 = vld [vmem:[%s3 + $0x10] sm:$0xf]
        %v7356 = vld [vmem:[%s3 + $0x14] sm:$0xf]
        %v7357 = vld [vmem:[%s3 + $0x18] sm:$0xf]
        %v7358 = vld [vmem:[%s3 + $0x1c] sm:$0xf]
        %v7359 = vld [vmem:[%s3 + $0x20] sm:$0xf]
        %v7360 = vld [vmem:[%s3 + $0x24] sm:$0xf]
        %v7361 = vld [vmem:[%s3 + $0x28] sm:$0xf]
        %v7362 = vld [vmem:[%s3 + $0x2c] sm:$0xf]
        %v7363 = vld [vmem:[%s3 + $0x30] sm:$0xf]
        %v7364 = vld [vmem:[%s3 + $0x34] sm:$0xf]
        %v7365 = vld [vmem:[%s3 + $0x38] sm:$0xf]
        %v7366 = vld [vmem:[%s3 + $0x3c] sm:$0xf]
        %v7367 = vld [vmem:[%s3 + $0x40] sm:$0xf]
        %v7368 = vld [vmem:[%s3 + $0x44] sm:$0xf]
        %v7369 = vld [vmem:[%s3 + $0x48] sm:$0xf]
        %v7370 = vld [vmem:[%s3 + $0x4c] sm:$0xf]
        %v7371 = vld [vmem:[%s3 + $0x50] sm:$0xf]
        %v7372 = vld [vmem:[%s3 + $0x54] sm:$0xf]
        %v7373 = vld [vmem:[%s3 + $0x58] sm:$0xf]
        %v7374 = vld [vmem:[%s3 + $0x5c] sm:$0xf]
        %v7375 = vld [vmem:[%s3 + $0x60] sm:$0xf]
        %v7376 = vld [vmem:[%s3 + $0x64] sm:$0xf]
        %v7377 = vld [vmem:[%s3 + $0x68] sm:$0xf]
        %v7378 = vld [vmem:[%s3 + $0x6c] sm:$0xf]
        %v7379 = vld [vmem:[%s3 + $0x70] sm:$0xf]
        %v7380 = vld [vmem:[%s3 + $0x74] sm:$0xf]
        %v7381 = vld [vmem:[%s3 + $0x78] sm:$0xf]
        %v7382 = vld [vmem:[%s3 + $0x7c] sm:$0xf]
        %v7383 = vld [vmem:[%s4] sm:$0x1]
        %v7385 = vperm.slane %v7383, 0
        %v7419 = vunpack.c.l.b16 %v7351
        %v7420 = vunpack.c.l.b16 %v7352
        %v7421 = vunpack.c.l.b16 %v7353
        %v7422 = vunpack.c.l.b16 %v7354
        %v7423 = vunpack.c.l.b16 %v7355
        %v7424 = vunpack.c.l.b16 %v7356
        %v7425 = vunpack.c.l.b16 %v7357
        %v7426 = vunpack.c.l.b16 %v7358
        %v7427 = vunpack.c.l.b16 %v7359
        %v7428 = vunpack.c.l.b16 %v7360
        %v7429 = vunpack.c.l.b16 %v7361
        %v7430 = vunpack.c.l.b16 %v7362
        %v7431 = vunpack.c.l.b16 %v7363
        %v7432 = vunpack.c.l.b16 %v7364
        %v7433 = vunpack.c.l.b16 %v7365
        %v7434 = vunpack.c.l.b16 %v7366
        %v7435 = vunpack.c.l.b16 %v7367
        %v7436 = vunpack.c.l.b16 %v7368
        %v7437 = vunpack.c.l.b16 %v7369
        %v7438 = vunpack.c.l.b16 %v7370
        %v7439 = vunpack.c.l.b16 %v7371
        %v7440 = vunpack.c.l.b16 %v7372
        %v7441 = vunpack.c.l.b16 %v7373
        %v7442 = vunpack.c.l.b16 %v7374
        %v7443 = vunpack.c.l.b16 %v7375
        %v7444 = vunpack.c.l.b16 %v7376
        %v7445 = vunpack.c.l.b16 %v7377
        %v7446 = vunpack.c.l.b16 %v7378
        %v7447 = vunpack.c.l.b16 %v7379
        %v7448 = vunpack.c.l.b16 %v7380
        %v7449 = vunpack.c.l.b16 %v7381
        %v7450 = vunpack.c.l.b16 %v7382
        %v7451 = vpack.c.b16 %v7420, %v7419
        %v7452 = vpack.c.b16 %v7422, %v7421
        %v7453 = vpack.c.b16 %v7424, %v7423
        %v7454 = vpack.c.b16 %v7426, %v7425
        %v7455 = vpack.c.b16 %v7428, %v7427
        %v7456 = vpack.c.b16 %v7430, %v7429
        %v7457 = vpack.c.b16 %v7432, %v7431
        %v7458 = vpack.c.b16 %v7434, %v7433
        %v7459 = vpack.c.b16 %v7436, %v7435
        %v7460 = vpack.c.b16 %v7438, %v7437
        %v7461 = vpack.c.b16 %v7440, %v7439
        %v7462 = vpack.c.b16 %v7442, %v7441
        %v7463 = vpack.c.b16 %v7444, %v7443
        %v7464 = vpack.c.b16 %v7446, %v7445
        %v7465 = vpack.c.b16 %v7448, %v7447
        %v7466 = vpack.c.b16 %v7450, %v7449
        %7483 = vmatpush.bf16.msra.mxu0 %v7458
        %7484 = vmatpush.bf16.msra.mxu0 %v7457
        %7485 = vmatpush.bf16.msra.mxu0 %v7456
        %7486 = vmatpush.bf16.msra.mxu0 %v7455
        %7487 = vmatpush.bf16.msra.mxu0 %v7454
        %7488 = vmatpush.bf16.msra.mxu0 %v7453
        %7489 = vmatpush.bf16.msra.mxu0 %v7452
        %7490 = vmatpush.bf16.msra.mxu0 %v7451
        %7491 = vmatmul.bf16.gmra.mxu0 %v7335
        %v7492 = vpop.f32.mrf.mxu0
        %v7493 = vadd.f32 %v7385, %v7492
        %v7494 = vpop.f32.mrf.mxu0
        %v7495 = vadd.f32 %v7385, %v7494
        %7496 = vmatmul.bf16.gmra.mxu0 %v7337
        %v7497 = vpop.f32.mrf.mxu0
        %v7498 = vadd.f32 %v7385, %v7497
        %v7499 = vpop.f32.mrf.mxu0
        %v7500 = vadd.f32 %v7385, %v7499
        %7501 = vmatmul.bf16.gmra.mxu0 %v7339
        %v7502 = vpop.f32.mrf.mxu0
        %v7503 = vadd.f32 %v7385, %v7502
        %v7504 = vpop.f32.mrf.mxu0
        %v7505 = vadd.f32 %v7385, %v7504
        %7506 = vmatmul.bf16.gmra.mxu0 %v7341
        %v7507 = vpop.f32.mrf.mxu0
        %v7508 = vadd.f32 %v7385, %v7507
        %v7509 = vpop.f32.mrf.mxu0
        %v7510 = vadd.f32 %v7385, %v7509
        %7511 = vmatmul.bf16.gmra.mxu0 %v7343
        %v7512 = vpop.f32.mrf.mxu0
        %v7513 = vadd.f32 %v7385, %v7512
        %v7514 = vpop.f32.mrf.mxu0
        %v7515 = vadd.f32 %v7385, %v7514
        %7516 = vmatmul.bf16.gmra.mxu0 %v7345
        %v7517 = vpop.f32.mrf.mxu0
        %v7518 = vadd.f32 %v7385, %v7517
        %v7519 = vpop.f32.mrf.mxu0
        %v7520 = vadd.f32 %v7385, %v7519
        %7521 = vmatmul.bf16.gmra.mxu0 %v7347
        %v7522 = vpop.f32.mrf.mxu0
        %v7523 = vadd.f32 %v7385, %v7522
        %v7524 = vpop.f32.mrf.mxu0
        %v7525 = vadd.f32 %v7385, %v7524
        %7526 = vmatmul.bf16.gmra.mxu0 %v7349
        %v7527 = vpop.f32.mrf.mxu0
        %v7528 = vadd.f32 %v7385, %v7527
        %v7529 = vpop.f32.mrf.mxu0
        %v7530 = vadd.f32 %v7385, %v7529
        %7531 = vdwg.mxu0
        %7532 = vmatpush.bf16.msra.mxu0 %v7466
        %7533 = vmatpush.bf16.msra.mxu0 %v7465
        %7534 = vmatpush.bf16.msra.mxu0 %v7464
        %7535 = vmatpush.bf16.msra.mxu0 %v7463
        %7536 = vmatpush.bf16.msra.mxu0 %v7462
        %7537 = vmatpush.bf16.msra.mxu0 %v7461
        %7538 = vmatpush.bf16.msra.mxu0 %v7460
        %7539 = vmatpush.bf16.msra.mxu0 %v7459
        %7540 = vmatmul.bf16.gmra.mxu0 %v7336
        %v7541 = vpop.f32.mrf.mxu0
        %v7542 = vadd.f32 %v7493, %v7541
        %v7543 = vpop.f32.mrf.mxu0
        %v7544 = vadd.f32 %v7495, %v7543
        %7545 = vmatmul.bf16.gmra.mxu0 %v7338
        %v7546 = vpop.f32.mrf.mxu0
        %v7547 = vadd.f32 %v7498, %v7546
        %v7548 = vpop.f32.mrf.mxu0
        %v7549 = vadd.f32 %v7500, %v7548
        %7550 = vmatmul.bf16.gmra.mxu0 %v7340
        %v7551 = vpop.f32.mrf.mxu0
        %v7552 = vadd.f32 %v7503, %v7551
        %v7553 = vpop.f32.mrf.mxu0
        %v7554 = vadd.f32 %v7505, %v7553
        %7555 = vmatmul.bf16.gmra.mxu0 %v7342
        %v7556 = vpop.f32.mrf.mxu0
        %v7557 = vadd.f32 %v7508, %v7556
        %v7558 = vpop.f32.mrf.mxu0
        %v7559 = vadd.f32 %v7510, %v7558
        %7560 = vmatmul.bf16.gmra.mxu0 %v7344
        %v7561 = vpop.f32.mrf.mxu0
        %v7562 = vadd.f32 %v7513, %v7561
        %v7563 = vpop.f32.mrf.mxu0
        %v7564 = vadd.f32 %v7515, %v7563
        %7565 = vmatmul.bf16.gmra.mxu0 %v7346
        %v7566 = vpop.f32.mrf.mxu0
        %v7567 = vadd.f32 %v7518, %v7566
        %v7568 = vpop.f32.mrf.mxu0
        %v7569 = vadd.f32 %v7520, %v7568
        %7570 = vmatmul.bf16.gmra.mxu0 %v7348
        %v7571 = vpop.f32.mrf.mxu0
        %v7572 = vadd.f32 %v7523, %v7571
        %v7573 = vpop.f32.mrf.mxu0
        %v7574 = vadd.f32 %v7525, %v7573
        %7575 = vmatmul.bf16.gmra.mxu0 %v7350
        %v7576 = vpop.f32.mrf.mxu0
        %v7577 = vadd.f32 %v7528, %v7576
        %v7578 = vpop.f32.mrf.mxu0
        %v7579 = vadd.f32 %v7530, %v7578
        %7580 = vdwg.mxu0
        %v7581 = vmax.f32 %v7542, 0.0
        %v7582 = vmax.f32 %v7544, 0.0
        %v7583 = vmax.f32 %v7547, 0.0
        %v7584 = vmax.f32 %v7549, 0.0
        %v7585 = vmax.f32 %v7552, 0.0
        %v7586 = vmax.f32 %v7554, 0.0
        %v7587 = vmax.f32 %v7557, 0.0
        %v7588 = vmax.f32 %v7559, 0.0
        %v7589 = vmax.f32 %v7562, 0.0
        %v7590 = vmax.f32 %v7564, 0.0
        %v7591 = vmax.f32 %v7567, 0.0
        %v7592 = vmax.f32 %v7569, 0.0
        %v7593 = vmax.f32 %v7572, 0.0
        %v7594 = vmax.f32 %v7574, 0.0
        %v7595 = vmax.f32 %v7577, 0.0
        %v7596 = vmax.f32 %v7579, 0.0
        %v7597 = vpack.c.bf16 %v7581, %v7581
        %v7598 = vpack.c.bf16 %v7582, %v7582
        %v7599 = vpack.c.bf16 %v7583, %v7583
        %v7600 = vpack.c.bf16 %v7584, %v7584
        %v7601 = vpack.c.bf16 %v7585, %v7585
        %v7602 = vpack.c.bf16 %v7586, %v7586
        %v7603 = vpack.c.bf16 %v7587, %v7587
        %v7604 = vpack.c.bf16 %v7588, %v7588
        %v7605 = vpack.c.bf16 %v7589, %v7589
        %v7606 = vpack.c.bf16 %v7590, %v7590
        %v7607 = vpack.c.bf16 %v7591, %v7591
        %v7608 = vpack.c.bf16 %v7592, %v7592
        %v7609 = vpack.c.bf16 %v7593, %v7593
        %v7610 = vpack.c.bf16 %v7594, %v7594
        %v7611 = vpack.c.bf16 %v7595, %v7595
        %v7612 = vpack.c.bf16 %v7596, %v7596
        %v7613 = vld [vmem:[%s5] sm:$0xff]
        %v7614 = vld [vmem:[%s5 + $0x8] sm:$0xf]
        %v7615 = vld [vmem:[%s5 + $0xc] sm:$0xff]
        %v7616 = vld [vmem:[%s5 + $0x14] sm:$0xf]
        %v7617 = vld [vmem:[%s5 + $0x18] sm:$0xff]
        %v7618 = vld [vmem:[%s5 + $0x20] sm:$0xf]
        %v7619 = vld [vmem:[%s5 + $0x24] sm:$0xff]
        %v7620 = vld [vmem:[%s5 + $0x2c] sm:$0xf]
        %v7621 = vld [vmem:[%s5 + $0x30] sm:$0xff]
        %v7622 = vld [vmem:[%s5 + $0x38] sm:$0xf]
        %v7623 = vld [vmem:[%s5 + $0x3c] sm:$0xff]
        %v7624 = vld [vmem:[%s5 + $0x44] sm:$0xf]
        %v7625 = vld [vmem:[%s5 + $0x48] sm:$0xff]
        %v7626 = vld [vmem:[%s5 + $0x50] sm:$0xf]
        %v7627 = vld [vmem:[%s5 + $0x54] sm:$0xff]
        %v7628 = vld [vmem:[%s5 + $0x5c] sm:$0xf]
        %v7629 = vld [vmem:[%s5 + $0x60] sm:$0xff]
        %v7630 = vld [vmem:[%s5 + $0x68] sm:$0xf]
        %v7631 = vld [vmem:[%s5 + $0x6c] sm:$0xff]
        %v7632 = vld [vmem:[%s5 + $0x74] sm:$0xf]
        %v7633 = vld [vmem:[%s5 + $0x78] sm:$0xff]
        %v7634 = vld [vmem:[%s5 + $0x80] sm:$0xf]
        %v7635 = vld [vmem:[%s5 + $0x84] sm:$0xff]
        %v7636 = vld [vmem:[%s5 + $0x8c] sm:$0xf]
        %v7637 = vld [vmem:[%s5 + $0x90] sm:$0xff]
        %v7638 = vld [vmem:[%s5 + $0x98] sm:$0xf]
        %v7639 = vld [vmem:[%s5 + $0x9c] sm:$0xff]
        %v7640 = vld [vmem:[%s5 + $0xa4] sm:$0xf]
        %v7641 = vld [vmem:[%s5 + $0xa8] sm:$0xff]
        %v7642 = vld [vmem:[%s5 + $0xb0] sm:$0xf]
        %v7643 = vld [vmem:[%s5 + $0xb4] sm:$0xff]
        %v7644 = vld [vmem:[%s5 + $0xbc] sm:$0xf]
        %s7645 = scalar_lea.vmem %s5, 192
        %v7646 = vld [vmem:[%s7645] sm:$0xff]
        %v7647 = vld [vmem:[%s7645 + $0x8] sm:$0xf]
        %v7648 = vld [vmem:[%s7645 + $0xc] sm:$0xff]
        %v7649 = vld [vmem:[%s7645 + $0x14] sm:$0xf]
        %v7650 = vld [vmem:[%s7645 + $0x18] sm:$0xff]
        %v7651 = vld [vmem:[%s7645 + $0x20] sm:$0xf]
        %v7652 = vld [vmem:[%s7645 + $0x24] sm:$0xff]
        %v7653 = vld [vmem:[%s7645 + $0x2c] sm:$0xf]
        %v7654 = vld [vmem:[%s7645 + $0x30] sm:$0xff]
        %v7655 = vld [vmem:[%s7645 + $0x38] sm:$0xf]
        %v7656 = vld [vmem:[%s7645 + $0x3c] sm:$0xff]
        %v7657 = vld [vmem:[%s7645 + $0x44] sm:$0xf]
        %v7658 = vld [vmem:[%s7645 + $0x48] sm:$0xff]
        %v7659 = vld [vmem:[%s7645 + $0x50] sm:$0xf]
        %v7660 = vld [vmem:[%s7645 + $0x54] sm:$0xff]
        %v7661 = vld [vmem:[%s7645 + $0x5c] sm:$0xf]
        %v7662 = vld [vmem:[%s7645 + $0x60] sm:$0xff]
        %v7663 = vld [vmem:[%s7645 + $0x68] sm:$0xf]
        %v7664 = vld [vmem:[%s7645 + $0x6c] sm:$0xff]
        %v7665 = vld [vmem:[%s7645 + $0x74] sm:$0xf]
        %v7666 = vld [vmem:[%s7645 + $0x78] sm:$0xff]
        %v7667 = vld [vmem:[%s7645 + $0x80] sm:$0xf]
        %v7668 = vld [vmem:[%s7645 + $0x84] sm:$0xff]
        %v7669 = vld [vmem:[%s7645 + $0x8c] sm:$0xf]
        %v7670 = vld [vmem:[%s7645 + $0x90] sm:$0xff]
        %v7671 = vld [vmem:[%s7645 + $0x98] sm:$0xf]
        %v7672 = vld [vmem:[%s7645 + $0x9c] sm:$0xff]
        %v7673 = vld [vmem:[%s7645 + $0xa4] sm:$0xf]
        %v7674 = vld [vmem:[%s7645 + $0xa8] sm:$0xff]
        %v7675 = vld [vmem:[%s7645 + $0xb0] sm:$0xf]
        %v7676 = vld [vmem:[%s7645 + $0xb4] sm:$0xff]
        %v7677 = vld [vmem:[%s7645 + $0xbc] sm:$0xf]
        %s7678 = scalar_lea.vmem %s5, 384
        %v7679 = vld [vmem:[%s7678] sm:$0xff]
        %v7680 = vld [vmem:[%s7678 + $0x8] sm:$0xf]
        %v7681 = vld [vmem:[%s7678 + $0xc] sm:$0xff]
        %v7682 = vld [vmem:[%s7678 + $0x14] sm:$0xf]
        %v7683 = vld [vmem:[%s7678 + $0x18] sm:$0xff]
        %v7684 = vld [vmem:[%s7678 + $0x20] sm:$0xf]
        %v7685 = vld [vmem:[%s7678 + $0x24] sm:$0xff]
        %v7686 = vld [vmem:[%s7678 + $0x2c] sm:$0xf]
        %v7687 = vld [vmem:[%s7678 + $0x30] sm:$0xff]
        %v7688 = vld [vmem:[%s7678 + $0x38] sm:$0xf]
        %v7689 = vld [vmem:[%s7678 + $0x3c] sm:$0xff]
        %v7690 = vld [vmem:[%s7678 + $0x44] sm:$0xf]
        %v7691 = vld [vmem:[%s7678 + $0x48] sm:$0xff]
        %v7692 = vld [vmem:[%s7678 + $0x50] sm:$0xf]
        %v7693 = vld [vmem:[%s7678 + $0x54] sm:$0xff]
        %v7694 = vld [vmem:[%s7678 + $0x5c] sm:$0xf]
        %v7695 = vld [vmem:[%s7678 + $0x60] sm:$0xff]
        %v7696 = vld [vmem:[%s7678 + $0x68] sm:$0xf]
        %v7697 = vld [vmem:[%s7678 + $0x6c] sm:$0xff]
        %v7698 = vld [vmem:[%s7678 + $0x74] sm:$0xf]
        %v7699 = vld [vmem:[%s7678 + $0x78] sm:$0xff]
        %v7700 = vld [vmem:[%s7678 + $0x80] sm:$0xf]
        %v7701 = vld [vmem:[%s7678 + $0x84] sm:$0xff]
        %v7702 = vld [vmem:[%s7678 + $0x8c] sm:$0xf]
        %v7703 = vld [vmem:[%s7678 + $0x90] sm:$0xff]
        %v7704 = vld [vmem:[%s7678 + $0x98] sm:$0xf]
        %v7705 = vld [vmem:[%s7678 + $0x9c] sm:$0xff]
        %v7706 = vld [vmem:[%s7678 + $0xa4] sm:$0xf]
        %v7707 = vld [vmem:[%s7678 + $0xa8] sm:$0xff]
        %v7708 = vld [vmem:[%s7678 + $0xb0] sm:$0xf]
        %v7709 = vld [vmem:[%s7678 + $0xb4] sm:$0xff]
        %v7710 = vld [vmem:[%s7678 + $0xbc] sm:$0xf]
        %v7713 = vunpack.c.l.b16 %v7601
        %v7714 = vunpack.c.l.b16 %v7602
        %v7715 = vpack.c.b16 %v7714, %v7713
        %v7749 = vunpack.c.l.b16 %v7679
        %v7750 = vunpack.c.h.b16 %v7679
        %v7751 = vunpack.c.l.b16 %v7680
        %v7752 = vunpack.c.l.b16 %v7681
        %v7753 = vunpack.c.h.b16 %v7681
        %v7754 = vunpack.c.l.b16 %v7682
        %v7755 = vunpack.c.l.b16 %v7683
        %v7756 = vunpack.c.h.b16 %v7683
        %v7757 = vunpack.c.l.b16 %v7684
        %v7758 = vunpack.c.l.b16 %v7685
        %v7759 = vunpack.c.h.b16 %v7685
        %v7760 = vunpack.c.l.b16 %v7686
        %v7761 = vunpack.c.l.b16 %v7687
        %v7762 = vunpack.c.h.b16 %v7687
        %v7763 = vunpack.c.l.b16 %v7688
        %v7764 = vunpack.c.l.b16 %v7689
        %v7765 = vunpack.c.h.b16 %v7689
        %v7766 = vunpack.c.l.b16 %v7690
        %v7767 = vunpack.c.l.b16 %v7691
        %v7768 = vunpack.c.h.b16 %v7691
        %v7769 = vunpack.c.l.b16 %v7692
        %v7770 = vunpack.c.l.b16 %v7693
        %v7771 = vunpack.c.h.b16 %v7693
        %v7772 = vunpack.c.l.b16 %v7694
        %v7773 = vunpack.c.l.b16 %v7695
        %v7774 = vunpack.c.h.b16 %v7695
        %v7775 = vunpack.c.l.b16 %v7696
        %v7776 = vunpack.c.l.b16 %v7697
        %v7777 = vunpack.c.h.b16 %v7697
        %v7778 = vunpack.c.l.b16 %v7698
        %v7779 = vunpack.c.l.b16 %v7699
        %v7780 = vunpack.c.h.b16 %v7699
        %v7781 = vunpack.c.l.b16 %v7700
        %v7782 = vunpack.c.l.b16 %v7701
        %v7783 = vunpack.c.h.b16 %v7701
        %v7784 = vunpack.c.l.b16 %v7702
        %v7785 = vunpack.c.l.b16 %v7703
        %v7786 = vunpack.c.h.b16 %v7703
        %v7787 = vunpack.c.l.b16 %v7704
        %v7788 = vunpack.c.l.b16 %v7705
        %v7789 = vunpack.c.h.b16 %v7705
        %v7790 = vunpack.c.l.b16 %v7706
        %v7791 = vunpack.c.l.b16 %v7707
        %v7792 = vunpack.c.h.b16 %v7707
        %v7793 = vunpack.c.l.b16 %v7708
        %v7794 = vunpack.c.l.b16 %v7709
        %v7795 = vunpack.c.h.b16 %v7709
        %v7796 = vunpack.c.l.b16 %v7710
        %v7797 = vpack.c.b16 %v7752, %v7749
        %v7798 = vpack.c.b16 %v7753, %v7750
        %v7799 = vpack.c.b16 %v7754, %v7751
        %v7800 = vpack.c.b16 %v7758, %v7755
        %v7801 = vpack.c.b16 %v7759, %v7756
        %v7802 = vpack.c.b16 %v7760, %v7757
        %v7803 = vpack.c.b16 %v7764, %v7761
        %v7804 = vpack.c.b16 %v7765, %v7762
        %v7805 = vpack.c.b16 %v7766, %v7763
        %v7806 = vpack.c.b16 %v7770, %v7767
        %v7807 = vpack.c.b16 %v7771, %v7768
        %v7808 = vpack.c.b16 %v7772, %v7769
        %v7809 = vpack.c.b16 %v7776, %v7773
        %v7810 = vpack.c.b16 %v7777, %v7774
        %v7811 = vpack.c.b16 %v7778, %v7775
        %v7812 = vpack.c.b16 %v7782, %v7779
        %v7813 = vpack.c.b16 %v7783, %v7780
        %v7814 = vpack.c.b16 %v7784, %v7781
        %v7815 = vpack.c.b16 %v7788, %v7785
        %v7816 = vpack.c.b16 %v7789, %v7786
        %v7817 = vpack.c.b16 %v7790, %v7787
        %v7818 = vpack.c.b16 %v7794, %v7791
        %v7819 = vpack.c.b16 %v7795, %v7792
        %v7820 = vpack.c.b16 %v7796, %v7793
        %7845 = vmatpush.bf16.msra.mxu0 %v7818
        %7846 = vmatpush.bf16.msra.mxu0 %v7815
        %7847 = vmatpush.bf16.msra.mxu0 %v7812
        %7848 = vmatpush.bf16.msra.mxu0 %v7809
        %7849 = vmatpush.bf16.msra.mxu0 %v7806
        %7850 = vmatpush.bf16.msra.mxu0 %v7803
        %7851 = vmatpush.bf16.msra.mxu0 %v7800
        %7852 = vmatpush.bf16.msra.mxu0 %v7797
        %7853 = vmatmul.bf16.gmra.mxu0 %v7715
        %v7854 = vpop.f32.mrf.mxu0
        %v7855 = vadd.f32 0.0, %v7854
        %v7856 = vpop.f32.mrf.mxu0
        %v7857 = vadd.f32 0.0, %v7856
        %7858 = vdwg.mxu0
        %7859 = vmatpush.bf16.msra.mxu0 %v7819
        %7860 = vmatpush.bf16.msra.mxu0 %v7816
        %7861 = vmatpush.bf16.msra.mxu0 %v7813
        %7862 = vmatpush.bf16.msra.mxu0 %v7810
        %7863 = vmatpush.bf16.msra.mxu0 %v7807
        %7864 = vmatpush.bf16.msra.mxu0 %v7804
        %7865 = vmatpush.bf16.msra.mxu0 %v7801
        %7866 = vmatpush.bf16.msra.mxu0 %v7798
        %7867 = vmatmul.bf16.gmra.mxu0 %v7715
        %v7868 = vpop.f32.mrf.mxu0
        %v7869 = vadd.f32 0.0, %v7868
        %v7870 = vpop.f32.mrf.mxu0
        %v7871 = vadd.f32 0.0, %v7870
        %7872 = vdwg.mxu0
        %7873 = vmatpush.bf16.msra.mxu0 %v7820
        %7874 = vmatpush.bf16.msra.mxu0 %v7817
        %7875 = vmatpush.bf16.msra.mxu0 %v7814
        %7876 = vmatpush.bf16.msra.mxu0 %v7811
        %7877 = vmatpush.bf16.msra.mxu0 %v7808
        %7878 = vmatpush.bf16.msra.mxu0 %v7805
        %7879 = vmatpush.bf16.msra.mxu0 %v7802
        %7880 = vmatpush.bf16.msra.mxu0 %v7799
        %7881 = vmatmul.bf16.gmra.mxu0 %v7715
        %v7882 = vpop.f32.mrf.mxu0
        %v7883 = vadd.f32 0.0, %v7882
        %v7884 = vpop.f32.mrf.mxu0
        %v7885 = vadd.f32 0.0, %v7884
        %7886 = vdwg.mxu0
        %v7889 = vunpack.c.l.b16 %v7597
        %v7890 = vunpack.c.l.b16 %v7598
        %v7891 = vpack.c.b16 %v7890, %v7889
        %v7925 = vunpack.c.l.b16 %v7613
        %v7926 = vunpack.c.h.b16 %v7613
        %v7927 = vunpack.c.l.b16 %v7614
        %v7928 = vunpack.c.l.b16 %v7615
        %v7929 = vunpack.c.h.b16 %v7615
        %v7930 = vunpack.c.l.b16 %v7616
        %v7931 = vunpack.c.l.b16 %v7617
        %v7932 = vunpack.c.h.b16 %v7617
        %v7933 = vunpack.c.l.b16 %v7618
        %v7934 = vunpack.c.l.b16 %v7619
        %v7935 = vunpack.c.h.b16 %v7619
        %v7936 = vunpack.c.l.b16 %v7620
        %v7937 = vunpack.c.l.b16 %v7621
        %v7938 = vunpack.c.h.b16 %v7621
        %v7939 = vunpack.c.l.b16 %v7622
        %v7940 = vunpack.c.l.b16 %v7623
        %v7941 = vunpack.c.h.b16 %v7623
        %v7942 = vunpack.c.l.b16 %v7624
        %v7943 = vunpack.c.l.b16 %v7625
        %v7944 = vunpack.c.h.b16 %v7625
        %v7945 = vunpack.c.l.b16 %v7626
        %v7946 = vunpack.c.l.b16 %v7627
        %v7947 = vunpack.c.h.b16 %v7627
        %v7948 = vunpack.c.l.b16 %v7628
        %v7949 = vunpack.c.l.b16 %v7629
        %v7950 = vunpack.c.h.b16 %v7629
        %v7951 = vunpack.c.l.b16 %v7630
        %v7952 = vunpack.c.l.b16 %v7631
        %v7953 = vunpack.c.h.b16 %v7631
        %v7954 = vunpack.c.l.b16 %v7632
        %v7955 = vunpack.c.l.b16 %v7633
        %v7956 = vunpack.c.h.b16 %v7633
        %v7957 = vunpack.c.l.b16 %v7634
        %v7958 = vunpack.c.l.b16 %v7635
        %v7959 = vunpack.c.h.b16 %v7635
        %v7960 = vunpack.c.l.b16 %v7636
        %v7961 = vunpack.c.l.b16 %v7637
        %v7962 = vunpack.c.h.b16 %v7637
        %v7963 = vunpack.c.l.b16 %v7638
        %v7964 = vunpack.c.l.b16 %v7639
        %v7965 = vunpack.c.h.b16 %v7639
        %v7966 = vunpack.c.l.b16 %v7640
        %v7967 = vunpack.c.l.b16 %v7641
        %v7968 = vunpack.c.h.b16 %v7641
        %v7969 = vunpack.c.l.b16 %v7642
        %v7970 = vunpack.c.l.b16 %v7643
        %v7971 = vunpack.c.h.b16 %v7643
        %v7972 = vunpack.c.l.b16 %v7644
        %v7973 = vpack.c.b16 %v7928, %v7925
        %v7974 = vpack.c.b16 %v7929, %v7926
        %v7975 = vpack.c.b16 %v7930, %v7927
        %v7976 = vpack.c.b16 %v7934, %v7931
        %v7977 = vpack.c.b16 %v7935, %v7932
        %v7978 = vpack.c.b16 %v7936, %v7933
        %v7979 = vpack.c.b16 %v7940, %v7937
        %v7980 = vpack.c.b16 %v7941, %v7938
        %v7981 = vpack.c.b16 %v7942, %v7939
        %v7982 = vpack.c.b16 %v7946, %v7943
        %v7983 = vpack.c.b16 %v7947, %v7944
        %v7984 = vpack.c.b16 %v7948, %v7945
        %v7985 = vpack.c.b16 %v7952, %v7949
        %v7986 = vpack.c.b16 %v7953, %v7950
        %v7987 = vpack.c.b16 %v7954, %v7951
        %v7988 = vpack.c.b16 %v7958, %v7955
        %v7989 = vpack.c.b16 %v7959, %v7956
        %v7990 = vpack.c.b16 %v7960, %v7957
        %v7991 = vpack.c.b16 %v7964, %v7961
        %v7992 = vpack.c.b16 %v7965, %v7962
        %v7993 = vpack.c.b16 %v7966, %v7963
        %v7994 = vpack.c.b16 %v7970, %v7967
        %v7995 = vpack.c.b16 %v7971, %v7968
        %v7996 = vpack.c.b16 %v7972, %v7969
        %8021 = vmatpush.bf16.msra.mxu0 %v7994
        %8022 = vmatpush.bf16.msra.mxu0 %v7991
        %8023 = vmatpush.bf16.msra.mxu0 %v7988
        %8024 = vmatpush.bf16.msra.mxu0 %v7985
        %8025 = vmatpush.bf16.msra.mxu0 %v7982
        %8026 = vmatpush.bf16.msra.mxu0 %v7979
        %8027 = vmatpush.bf16.msra.mxu0 %v7976
        %8028 = vmatpush.bf16.msra.mxu0 %v7973
        %8029 = vmatmul.bf16.gmra.mxu0 %v7891
        %v8030 = vpop.f32.mrf.mxu0
        %v8031 = vadd.f32 %v7855, %v8030
        %v8032 = vpop.f32.mrf.mxu0
        %v8033 = vadd.f32 %v7857, %v8032
        %8034 = vdwg.mxu0
        %8035 = vmatpush.bf16.msra.mxu0 %v7995
        %8036 = vmatpush.bf16.msra.mxu0 %v7992
        %8037 = vmatpush.bf16.msra.mxu0 %v7989
        %8038 = vmatpush.bf16.msra.mxu0 %v7986
        %8039 = vmatpush.bf16.msra.mxu0 %v7983
        %8040 = vmatpush.bf16.msra.mxu0 %v7980
        %8041 = vmatpush.bf16.msra.mxu0 %v7977
        %8042 = vmatpush.bf16.msra.mxu0 %v7974
        %8043 = vmatmul.bf16.gmra.mxu0 %v7891
        %v8044 = vpop.f32.mrf.mxu0
        %v8045 = vadd.f32 %v7869, %v8044
        %v8046 = vpop.f32.mrf.mxu0
        %v8047 = vadd.f32 %v7871, %v8046
        %8048 = vdwg.mxu0
        %8049 = vmatpush.bf16.msra.mxu0 %v7996
        %8050 = vmatpush.bf16.msra.mxu0 %v7993
        %8051 = vmatpush.bf16.msra.mxu0 %v7990
        %8052 = vmatpush.bf16.msra.mxu0 %v7987
        %8053 = vmatpush.bf16.msra.mxu0 %v7984
        %8054 = vmatpush.bf16.msra.mxu0 %v7981
        %8055 = vmatpush.bf16.msra.mxu0 %v7978
        %8056 = vmatpush.bf16.msra.mxu0 %v7975
        %8057 = vmatmul.bf16.gmra.mxu0 %v7891
        %v8058 = vpop.f32.mrf.mxu0
        %v8059 = vadd.f32 %v7883, %v8058
        %v8060 = vpop.f32.mrf.mxu0
        %v8061 = vadd.f32 %v7885, %v8060
        %8062 = vdwg.mxu0
        %s8063 = scalar_lea.vmem %s5, 576
        %v8064 = vld [vmem:[%s8063] sm:$0xff]
        %v8065 = vld [vmem:[%s8063 + $0x8] sm:$0xf]
        %v8066 = vld [vmem:[%s8063 + $0xc] sm:$0xff]
        %v8067 = vld [vmem:[%s8063 + $0x14] sm:$0xf]
        %v8068 = vld [vmem:[%s8063 + $0x18] sm:$0xff]
        %v8069 = vld [vmem:[%s8063 + $0x20] sm:$0xf]
        %v8070 = vld [vmem:[%s8063 + $0x24] sm:$0xff]
        %v8071 = vld [vmem:[%s8063 + $0x2c] sm:$0xf]
        %v8072 = vld [vmem:[%s8063 + $0x30] sm:$0xff]
        %v8073 = vld [vmem:[%s8063 + $0x38] sm:$0xf]
        %v8074 = vld [vmem:[%s8063 + $0x3c] sm:$0xff]
        %v8075 = vld [vmem:[%s8063 + $0x44] sm:$0xf]
        %v8076 = vld [vmem:[%s8063 + $0x48] sm:$0xff]
        %v8077 = vld [vmem:[%s8063 + $0x50] sm:$0xf]
        %v8078 = vld [vmem:[%s8063 + $0x54] sm:$0xff]
        %v8079 = vld [vmem:[%s8063 + $0x5c] sm:$0xf]
        %v8080 = vld [vmem:[%s8063 + $0x60] sm:$0xff]
        %v8081 = vld [vmem:[%s8063 + $0x68] sm:$0xf]
        %v8082 = vld [vmem:[%s8063 + $0x6c] sm:$0xff]
        %v8083 = vld [vmem:[%s8063 + $0x74] sm:$0xf]
        %v8084 = vld [vmem:[%s8063 + $0x78] sm:$0xff]
        %v8085 = vld [vmem:[%s8063 + $0x80] sm:$0xf]
        %v8086 = vld [vmem:[%s8063 + $0x84] sm:$0xff]
        %v8087 = vld [vmem:[%s8063 + $0x8c] sm:$0xf]
        %v8088 = vld [vmem:[%s8063 + $0x90] sm:$0xff]
        %v8089 = vld [vmem:[%s8063 + $0x98] sm:$0xf]
        %v8090 = vld [vmem:[%s8063 + $0x9c] sm:$0xff]
        %v8091 = vld [vmem:[%s8063 + $0xa4] sm:$0xf]
        %v8092 = vld [vmem:[%s8063 + $0xa8] sm:$0xff]
        %v8093 = vld [vmem:[%s8063 + $0xb0] sm:$0xf]
        %v8094 = vld [vmem:[%s8063 + $0xb4] sm:$0xff]
        %v8095 = vld [vmem:[%s8063 + $0xbc] sm:$0xf]
        %v8098 = vunpack.c.l.b16 %v7603
        %v8099 = vunpack.c.l.b16 %v7604
        %v8100 = vpack.c.b16 %v8099, %v8098
        %v8134 = vunpack.c.l.b16 %v8064
        %v8135 = vunpack.c.h.b16 %v8064
        %v8136 = vunpack.c.l.b16 %v8065
        %v8137 = vunpack.c.l.b16 %v8066
        %v8138 = vunpack.c.h.b16 %v8066
        %v8139 = vunpack.c.l.b16 %v8067
        %v8140 = vunpack.c.l.b16 %v8068
        %v8141 = vunpack.c.h.b16 %v8068
        %v8142 = vunpack.c.l.b16 %v8069
        %v8143 = vunpack.c.l.b16 %v8070
        %v8144 = vunpack.c.h.b16 %v8070
        %v8145 = vunpack.c.l.b16 %v8071
        %v8146 = vunpack.c.l.b16 %v8072
        %v8147 = vunpack.c.h.b16 %v8072
        %v8148 = vunpack.c.l.b16 %v8073
        %v8149 = vunpack.c.l.b16 %v8074
        %v8150 = vunpack.c.h.b16 %v8074
        %v8151 = vunpack.c.l.b16 %v8075
        %v8152 = vunpack.c.l.b16 %v8076
        %v8153 = vunpack.c.h.b16 %v8076
        %v8154 = vunpack.c.l.b16 %v8077
        %v8155 = vunpack.c.l.b16 %v8078
        %v8156 = vunpack.c.h.b16 %v8078
        %v8157 = vunpack.c.l.b16 %v8079
        %v8158 = vunpack.c.l.b16 %v8080
        %v8159 = vunpack.c.h.b16 %v8080
        %v8160 = vunpack.c.l.b16 %v8081
        %v8161 = vunpack.c.l.b16 %v8082
        %v8162 = vunpack.c.h.b16 %v8082
        %v8163 = vunpack.c.l.b16 %v8083
        %v8164 = vunpack.c.l.b16 %v8084
        %v8165 = vunpack.c.h.b16 %v8084
        %v8166 = vunpack.c.l.b16 %v8085
        %v8167 = vunpack.c.l.b16 %v8086
        %v8168 = vunpack.c.h.b16 %v8086
        %v8169 = vunpack.c.l.b16 %v8087
        %v8170 = vunpack.c.l.b16 %v8088
        %v8171 = vunpack.c.h.b16 %v8088
        %v8172 = vunpack.c.l.b16 %v8089
        %v8173 = vunpack.c.l.b16 %v8090
        %v8174 = vunpack.c.h.b16 %v8090
        %v8175 = vunpack.c.l.b16 %v8091
        %v8176 = vunpack.c.l.b16 %v8092
        %v8177 = vunpack.c.h.b16 %v8092
        %v8178 = vunpack.c.l.b16 %v8093
        %v8179 = vunpack.c.l.b16 %v8094
        %v8180 = vunpack.c.h.b16 %v8094
        %v8181 = vunpack.c.l.b16 %v8095
        %v8182 = vpack.c.b16 %v8137, %v8134
        %v8183 = vpack.c.b16 %v8138, %v8135
        %v8184 = vpack.c.b16 %v8139, %v8136
        %v8185 = vpack.c.b16 %v8143, %v8140
        %v8186 = vpack.c.b16 %v8144, %v8141
        %v8187 = vpack.c.b16 %v8145, %v8142
        %v8188 = vpack.c.b16 %v8149, %v8146
        %v8189 = vpack.c.b16 %v8150, %v8147
        %v8190 = vpack.c.b16 %v8151, %v8148
        %v8191 = vpack.c.b16 %v8155, %v8152
        %v8192 = vpack.c.b16 %v8156, %v8153
        %v8193 = vpack.c.b16 %v8157, %v8154
        %v8194 = vpack.c.b16 %v8161, %v8158
        %v8195 = vpack.c.b16 %v8162, %v8159
        %v8196 = vpack.c.b16 %v8163, %v8160
        %v8197 = vpack.c.b16 %v8167, %v8164
        %v8198 = vpack.c.b16 %v8168, %v8165
        %v8199 = vpack.c.b16 %v8169, %v8166
        %v8200 = vpack.c.b16 %v8173, %v8170
        %v8201 = vpack.c.b16 %v8174, %v8171
        %v8202 = vpack.c.b16 %v8175, %v8172
        %v8203 = vpack.c.b16 %v8179, %v8176
        %v8204 = vpack.c.b16 %v8180, %v8177
        %v8205 = vpack.c.b16 %v8181, %v8178
        %8230 = vmatpush.bf16.msra.mxu0 %v8203
        %8231 = vmatpush.bf16.msra.mxu0 %v8200
        %8232 = vmatpush.bf16.msra.mxu0 %v8197
        %8233 = vmatpush.bf16.msra.mxu0 %v8194
        %8234 = vmatpush.bf16.msra.mxu0 %v8191
        %8235 = vmatpush.bf16.msra.mxu0 %v8188
        %8236 = vmatpush.bf16.msra.mxu0 %v8185
        %8237 = vmatpush.bf16.msra.mxu0 %v8182
        %8238 = vmatmul.bf16.gmra.mxu0 %v8100
        %v8239 = vpop.f32.mrf.mxu0
        %v8240 = vadd.f32 0.0, %v8239
        %v8241 = vpop.f32.mrf.mxu0
        %v8242 = vadd.f32 0.0, %v8241
        %8243 = vdwg.mxu0
        %8244 = vmatpush.bf16.msra.mxu0 %v8204
        %8245 = vmatpush.bf16.msra.mxu0 %v8201
        %8246 = vmatpush.bf16.msra.mxu0 %v8198
        %8247 = vmatpush.bf16.msra.mxu0 %v8195
        %8248 = vmatpush.bf16.msra.mxu0 %v8192
        %8249 = vmatpush.bf16.msra.mxu0 %v8189
        %8250 = vmatpush.bf16.msra.mxu0 %v8186
        %8251 = vmatpush.bf16.msra.mxu0 %v8183
        %8252 = vmatmul.bf16.gmra.mxu0 %v8100
        %v8253 = vpop.f32.mrf.mxu0
        %v8254 = vadd.f32 0.0, %v8253
        %v8255 = vpop.f32.mrf.mxu0
        %v8256 = vadd.f32 0.0, %v8255
        %8257 = vdwg.mxu0
        %8258 = vmatpush.bf16.msra.mxu0 %v8205
        %8259 = vmatpush.bf16.msra.mxu0 %v8202
        %8260 = vmatpush.bf16.msra.mxu0 %v8199
        %8261 = vmatpush.bf16.msra.mxu0 %v8196
        %8262 = vmatpush.bf16.msra.mxu0 %v8193
        %8263 = vmatpush.bf16.msra.mxu0 %v8190
        %8264 = vmatpush.bf16.msra.mxu0 %v8187
        %8265 = vmatpush.bf16.msra.mxu0 %v8184
        %8266 = vmatmul.bf16.gmra.mxu0 %v8100
        %v8267 = vpop.f32.mrf.mxu0
        %v8268 = vadd.f32 0.0, %v8267
        %v8269 = vpop.f32.mrf.mxu0
        %v8270 = vadd.f32 0.0, %v8269
        %8271 = vdwg.mxu0
        %v8274 = vunpack.c.l.b16 %v7599
        %v8275 = vunpack.c.l.b16 %v7600
        %v8276 = vpack.c.b16 %v8275, %v8274
        %v8310 = vunpack.c.l.b16 %v7646
        %v8311 = vunpack.c.h.b16 %v7646
        %v8312 = vunpack.c.l.b16 %v7647
        %v8313 = vunpack.c.l.b16 %v7648
        %v8314 = vunpack.c.h.b16 %v7648
        %v8315 = vunpack.c.l.b16 %v7649
        %v8316 = vunpack.c.l.b16 %v7650
        %v8317 = vunpack.c.h.b16 %v7650
        %v8318 = vunpack.c.l.b16 %v7651
        %v8319 = vunpack.c.l.b16 %v7652
        %v8320 = vunpack.c.h.b16 %v7652
        %v8321 = vunpack.c.l.b16 %v7653
        %v8322 = vunpack.c.l.b16 %v7654
        %v8323 = vunpack.c.h.b16 %v7654
        %v8324 = vunpack.c.l.b16 %v7655
        %v8325 = vunpack.c.l.b16 %v7656
        %v8326 = vunpack.c.h.b16 %v7656
        %v8327 = vunpack.c.l.b16 %v7657
        %v8328 = vunpack.c.l.b16 %v7658
        %v8329 = vunpack.c.h.b16 %v7658
        %v8330 = vunpack.c.l.b16 %v7659
        %v8331 = vunpack.c.l.b16 %v7660
        %v8332 = vunpack.c.h.b16 %v7660
        %v8333 = vunpack.c.l.b16 %v7661
        %v8334 = vunpack.c.l.b16 %v7662
        %v8335 = vunpack.c.h.b16 %v7662
        %v8336 = vunpack.c.l.b16 %v7663
        %v8337 = vunpack.c.l.b16 %v7664
        %v8338 = vunpack.c.h.b16 %v7664
        %v8339 = vunpack.c.l.b16 %v7665
        %v8340 = vunpack.c.l.b16 %v7666
        %v8341 = vunpack.c.h.b16 %v7666
        %v8342 = vunpack.c.l.b16 %v7667
        %v8343 = vunpack.c.l.b16 %v7668
        %v8344 = vunpack.c.h.b16 %v7668
        %v8345 = vunpack.c.l.b16 %v7669
        %v8346 = vunpack.c.l.b16 %v7670
        %v8347 = vunpack.c.h.b16 %v7670
        %v8348 = vunpack.c.l.b16 %v7671
        %v8349 = vunpack.c.l.b16 %v7672
        %v8350 = vunpack.c.h.b16 %v7672
        %v8351 = vunpack.c.l.b16 %v7673
        %v8352 = vunpack.c.l.b16 %v7674
        %v8353 = vunpack.c.h.b16 %v7674
        %v8354 = vunpack.c.l.b16 %v7675
        %v8355 = vunpack.c.l.b16 %v7676
        %v8356 = vunpack.c.h.b16 %v7676
        %v8357 = vunpack.c.l.b16 %v7677
        %v8358 = vpack.c.b16 %v8313, %v8310
        %v8359 = vpack.c.b16 %v8314, %v8311
        %v8360 = vpack.c.b16 %v8315, %v8312
        %v8361 = vpack.c.b16 %v8319, %v8316
        %v8362 = vpack.c.b16 %v8320, %v8317
        %v8363 = vpack.c.b16 %v8321, %v8318
        %v8364 = vpack.c.b16 %v8325, %v8322
        %v8365 = vpack.c.b16 %v8326, %v8323
        %v8366 = vpack.c.b16 %v8327, %v8324
        %v8367 = vpack.c.b16 %v8331, %v8328
        %v8368 = vpack.c.b16 %v8332, %v8329
        %v8369 = vpack.c.b16 %v8333, %v8330
        %v8370 = vpack.c.b16 %v8337, %v8334
        %v8371 = vpack.c.b16 %v8338, %v8335
        %v8372 = vpack.c.b16 %v8339, %v8336
        %v8373 = vpack.c.b16 %v8343, %v8340
        %v8374 = vpack.c.b16 %v8344, %v8341
        %v8375 = vpack.c.b16 %v8345, %v8342
        %v8376 = vpack.c.b16 %v8349, %v8346
        %v8377 = vpack.c.b16 %v8350, %v8347
        %v8378 = vpack.c.b16 %v8351, %v8348
        %v8379 = vpack.c.b16 %v8355, %v8352
        %v8380 = vpack.c.b16 %v8356, %v8353
        %v8381 = vpack.c.b16 %v8357, %v8354
        %8406 = vmatpush.bf16.msra.mxu0 %v8379
        %8407 = vmatpush.bf16.msra.mxu0 %v8376
        %8408 = vmatpush.bf16.msra.mxu0 %v8373
        %8409 = vmatpush.bf16.msra.mxu0 %v8370
        %8410 = vmatpush.bf16.msra.mxu0 %v8367
        %8411 = vmatpush.bf16.msra.mxu0 %v8364
        %8412 = vmatpush.bf16.msra.mxu0 %v8361
        %8413 = vmatpush.bf16.msra.mxu0 %v8358
        %8414 = vmatmul.bf16.gmra.mxu0 %v8276
        %v8415 = vpop.f32.mrf.mxu0
        %v8416 = vadd.f32 %v8240, %v8415
        %v8417 = vpop.f32.mrf.mxu0
        %v8418 = vadd.f32 %v8242, %v8417
        %8419 = vdwg.mxu0
        %8420 = vmatpush.bf16.msra.mxu0 %v8380
        %8421 = vmatpush.bf16.msra.mxu0 %v8377
        %8422 = vmatpush.bf16.msra.mxu0 %v8374
        %8423 = vmatpush.bf16.msra.mxu0 %v8371
        %8424 = vmatpush.bf16.msra.mxu0 %v8368
        %8425 = vmatpush.bf16.msra.mxu0 %v8365
        %8426 = vmatpush.bf16.msra.mxu0 %v8362
        %8427 = vmatpush.bf16.msra.mxu0 %v8359
        %8428 = vmatmul.bf16.gmra.mxu0 %v8276
        %v8429 = vpop.f32.mrf.mxu0
        %v8430 = vadd.f32 %v8254, %v8429
        %v8431 = vpop.f32.mrf.mxu0
        %v8432 = vadd.f32 %v8256, %v8431
        %8433 = vdwg.mxu0
        %8434 = vmatpush.bf16.msra.mxu0 %v8381
        %8435 = vmatpush.bf16.msra.mxu0 %v8378
        %8436 = vmatpush.bf16.msra.mxu0 %v8375
        %8437 = vmatpush.bf16.msra.mxu0 %v8372
        %8438 = vmatpush.bf16.msra.mxu0 %v8369
        %8439 = vmatpush.bf16.msra.mxu0 %v8366
        %8440 = vmatpush.bf16.msra.mxu0 %v8363
        %8441 = vmatpush.bf16.msra.mxu0 %v8360
        %8442 = vmatmul.bf16.gmra.mxu0 %v8276
        %v8443 = vpop.f32.mrf.mxu0
        %v8444 = vadd.f32 %v8268, %v8443
        %v8445 = vpop.f32.mrf.mxu0
        %v8446 = vadd.f32 %v8270, %v8445
        %8447 = vdwg.mxu0
        %s8448 = scalar_lea.vmem %s5, 768
        %v8449 = vld [vmem:[%s8448] sm:$0xff]
        %v8450 = vld [vmem:[%s8448 + $0x8] sm:$0xf]
        %v8451 = vld [vmem:[%s8448 + $0xc] sm:$0xff]
        %v8452 = vld [vmem:[%s8448 + $0x14] sm:$0xf]
        %v8453 = vld [vmem:[%s8448 + $0x18] sm:$0xff]
        %v8454 = vld [vmem:[%s8448 + $0x20] sm:$0xf]
        %v8455 = vld [vmem:[%s8448 + $0x24] sm:$0xff]
        %v8456 = vld [vmem:[%s8448 + $0x2c] sm:$0xf]
        %v8457 = vld [vmem:[%s8448 + $0x30] sm:$0xff]
        %v8458 = vld [vmem:[%s8448 + $0x38] sm:$0xf]
        %v8459 = vld [vmem:[%s8448 + $0x3c] sm:$0xff]
        %v8460 = vld [vmem:[%s8448 + $0x44] sm:$0xf]
        %v8461 = vld [vmem:[%s8448 + $0x48] sm:$0xff]
        %v8462 = vld [vmem:[%s8448 + $0x50] sm:$0xf]
        %v8463 = vld [vmem:[%s8448 + $0x54] sm:$0xff]
        %v8464 = vld [vmem:[%s8448 + $0x5c] sm:$0xf]
        %v8465 = vld [vmem:[%s8448 + $0x60] sm:$0xff]
        %v8466 = vld [vmem:[%s8448 + $0x68] sm:$0xf]
        %v8467 = vld [vmem:[%s8448 + $0x6c] sm:$0xff]
        %v8468 = vld [vmem:[%s8448 + $0x74] sm:$0xf]
        %v8469 = vld [vmem:[%s8448 + $0x78] sm:$0xff]
        %v8470 = vld [vmem:[%s8448 + $0x80] sm:$0xf]
        %v8471 = vld [vmem:[%s8448 + $0x84] sm:$0xff]
        %v8472 = vld [vmem:[%s8448 + $0x8c] sm:$0xf]
        %v8473 = vld [vmem:[%s8448 + $0x90] sm:$0xff]
        %v8474 = vld [vmem:[%s8448 + $0x98] sm:$0xf]
        %v8475 = vld [vmem:[%s8448 + $0x9c] sm:$0xff]
        %v8476 = vld [vmem:[%s8448 + $0xa4] sm:$0xf]
        %v8477 = vld [vmem:[%s8448 + $0xa8] sm:$0xff]
        %v8478 = vld [vmem:[%s8448 + $0xb0] sm:$0xf]
        %v8479 = vld [vmem:[%s8448 + $0xb4] sm:$0xff]
        %v8480 = vld [vmem:[%s8448 + $0xbc] sm:$0xf]
        %v8483 = vunpack.c.l.b16 %v7605
        %v8484 = vunpack.c.l.b16 %v7606
        %v8485 = vpack.c.b16 %v8484, %v8483
        %v8519 = vunpack.c.l.b16 %v8449
        %v8520 = vunpack.c.h.b16 %v8449
        %v8521 = vunpack.c.l.b16 %v8450
        %v8522 = vunpack.c.l.b16 %v8451
        %v8523 = vunpack.c.h.b16 %v8451
        %v8524 = vunpack.c.l.b16 %v8452
        %v8525 = vunpack.c.l.b16 %v8453
        %v8526 = vunpack.c.h.b16 %v8453
        %v8527 = vunpack.c.l.b16 %v8454
        %v8528 = vunpack.c.l.b16 %v8455
        %v8529 = vunpack.c.h.b16 %v8455
        %v8530 = vunpack.c.l.b16 %v8456
        %v8531 = vunpack.c.l.b16 %v8457
        %v8532 = vunpack.c.h.b16 %v8457
        %v8533 = vunpack.c.l.b16 %v8458
        %v8534 = vunpack.c.l.b16 %v8459
        %v8535 = vunpack.c.h.b16 %v8459
        %v8536 = vunpack.c.l.b16 %v8460
        %v8537 = vunpack.c.l.b16 %v8461
        %v8538 = vunpack.c.h.b16 %v8461
        %v8539 = vunpack.c.l.b16 %v8462
        %v8540 = vunpack.c.l.b16 %v8463
        %v8541 = vunpack.c.h.b16 %v8463
        %v8542 = vunpack.c.l.b16 %v8464
        %v8543 = vunpack.c.l.b16 %v8465
        %v8544 = vunpack.c.h.b16 %v8465
        %v8545 = vunpack.c.l.b16 %v8466
        %v8546 = vunpack.c.l.b16 %v8467
        %v8547 = vunpack.c.h.b16 %v8467
        %v8548 = vunpack.c.l.b16 %v8468
        %v8549 = vunpack.c.l.b16 %v8469
        %v8550 = vunpack.c.h.b16 %v8469
        %v8551 = vunpack.c.l.b16 %v8470
        %v8552 = vunpack.c.l.b16 %v8471
        %v8553 = vunpack.c.h.b16 %v8471
        %v8554 = vunpack.c.l.b16 %v8472
        %v8555 = vunpack.c.l.b16 %v8473
        %v8556 = vunpack.c.h.b16 %v8473
        %v8557 = vunpack.c.l.b16 %v8474
        %v8558 = vunpack.c.l.b16 %v8475
        %v8559 = vunpack.c.h.b16 %v8475
        %v8560 = vunpack.c.l.b16 %v8476
        %v8561 = vunpack.c.l.b16 %v8477
        %v8562 = vunpack.c.h.b16 %v8477
        %v8563 = vunpack.c.l.b16 %v8478
        %v8564 = vunpack.c.l.b16 %v8479
        %v8565 = vunpack.c.h.b16 %v8479
        %v8566 = vunpack.c.l.b16 %v8480
        %v8567 = vpack.c.b16 %v8522, %v8519
        %v8568 = vpack.c.b16 %v8523, %v8520
        %v8569 = vpack.c.b16 %v8524, %v8521
        %v8570 = vpack.c.b16 %v8528, %v8525
        %v8571 = vpack.c.b16 %v8529, %v8526
        %v8572 = vpack.c.b16 %v8530, %v8527
        %v8573 = vpack.c.b16 %v8534, %v8531
        %v8574 = vpack.c.b16 %v8535, %v8532
        %v8575 = vpack.c.b16 %v8536, %v8533
        %v8576 = vpack.c.b16 %v8540, %v8537
        %v8577 = vpack.c.b16 %v8541, %v8538
        %v8578 = vpack.c.b16 %v8542, %v8539
        %v8579 = vpack.c.b16 %v8546, %v8543
        %v8580 = vpack.c.b16 %v8547, %v8544
        %v8581 = vpack.c.b16 %v8548, %v8545
        %v8582 = vpack.c.b16 %v8552, %v8549
        %v8583 = vpack.c.b16 %v8553, %v8550
        %v8584 = vpack.c.b16 %v8554, %v8551
        %v8585 = vpack.c.b16 %v8558, %v8555
        %v8586 = vpack.c.b16 %v8559, %v8556
        %v8587 = vpack.c.b16 %v8560, %v8557
        %v8588 = vpack.c.b16 %v8564, %v8561
        %v8589 = vpack.c.b16 %v8565, %v8562
        %v8590 = vpack.c.b16 %v8566, %v8563
        %8615 = vmatpush.bf16.msra.mxu0 %v8588
        %8616 = vmatpush.bf16.msra.mxu0 %v8585
        %8617 = vmatpush.bf16.msra.mxu0 %v8582
        %8618 = vmatpush.bf16.msra.mxu0 %v8579
        %8619 = vmatpush.bf16.msra.mxu0 %v8576
        %8620 = vmatpush.bf16.msra.mxu0 %v8573
        %8621 = vmatpush.bf16.msra.mxu0 %v8570
        %8622 = vmatpush.bf16.msra.mxu0 %v8567
        %8623 = vmatmul.bf16.gmra.mxu0 %v8485
        %v8624 = vpop.f32.mrf.mxu0
        %v8625 = vadd.f32 0.0, %v8624
        %v8626 = vpop.f32.mrf.mxu0
        %v8627 = vadd.f32 0.0, %v8626
        %8628 = vdwg.mxu0
        %8629 = vmatpush.bf16.msra.mxu0 %v8589
        %8630 = vmatpush.bf16.msra.mxu0 %v8586
        %8631 = vmatpush.bf16.msra.mxu0 %v8583
        %8632 = vmatpush.bf16.msra.mxu0 %v8580
        %8633 = vmatpush.bf16.msra.mxu0 %v8577
        %8634 = vmatpush.bf16.msra.mxu0 %v8574
        %8635 = vmatpush.bf16.msra.mxu0 %v8571
        %8636 = vmatpush.bf16.msra.mxu0 %v8568
        %8637 = vmatmul.bf16.gmra.mxu0 %v8485
        %v8638 = vpop.f32.mrf.mxu0
        %v8639 = vadd.f32 0.0, %v8638
        %v8640 = vpop.f32.mrf.mxu0
        %v8641 = vadd.f32 0.0, %v8640
        %8642 = vdwg.mxu0
        %8643 = vmatpush.bf16.msra.mxu0 %v8590
        %8644 = vmatpush.bf16.msra.mxu0 %v8587
        %8645 = vmatpush.bf16.msra.mxu0 %v8584
        %8646 = vmatpush.bf16.msra.mxu0 %v8581
        %8647 = vmatpush.bf16.msra.mxu0 %v8578
        %8648 = vmatpush.bf16.msra.mxu0 %v8575
        %8649 = vmatpush.bf16.msra.mxu0 %v8572
        %8650 = vmatpush.bf16.msra.mxu0 %v8569
        %8651 = vmatmul.bf16.gmra.mxu0 %v8485
        %v8652 = vpop.f32.mrf.mxu0
        %v8653 = vadd.f32 0.0, %v8652
        %v8654 = vpop.f32.mrf.mxu0
        %v8655 = vadd.f32 0.0, %v8654
        %8656 = vdwg.mxu0
        %v8657 = vadd.f32 %v8031, %v8625
        %v8658 = vadd.f32 %v8045, %v8639
        %v8659 = vadd.f32 %v8059, %v8653
        %v8660 = vadd.f32 %v8033, %v8627
        %v8661 = vadd.f32 %v8047, %v8641
        %v8662 = vadd.f32 %v8061, %v8655
        %s8663 = scalar_lea.vmem %s5, 960
        %v8664 = vld [vmem:[%s8663] sm:$0xff]
        %v8665 = vld [vmem:[%s8663 + $0x8] sm:$0xf]
        %v8666 = vld [vmem:[%s8663 + $0xc] sm:$0xff]
        %v8667 = vld [vmem:[%s8663 + $0x14] sm:$0xf]
        %v8668 = vld [vmem:[%s8663 + $0x18] sm:$0xff]
        %v8669 = vld [vmem:[%s8663 + $0x20] sm:$0xf]
        %v8670 = vld [vmem:[%s8663 + $0x24] sm:$0xff]
        %v8671 = vld [vmem:[%s8663 + $0x2c] sm:$0xf]
        %v8672 = vld [vmem:[%s8663 + $0x30] sm:$0xff]
        %v8673 = vld [vmem:[%s8663 + $0x38] sm:$0xf]
        %v8674 = vld [vmem:[%s8663 + $0x3c] sm:$0xff]
        %v8675 = vld [vmem:[%s8663 + $0x44] sm:$0xf]
        %v8676 = vld [vmem:[%s8663 + $0x48] sm:$0xff]
        %v8677 = vld [vmem:[%s8663 + $0x50] sm:$0xf]
        %v8678 = vld [vmem:[%s8663 + $0x54] sm:$0xff]
        %v8679 = vld [vmem:[%s8663 + $0x5c] sm:$0xf]
        %v8680 = vld [vmem:[%s8663 + $0x60] sm:$0xff]
        %v8681 = vld [vmem:[%s8663 + $0x68] sm:$0xf]
        %v8682 = vld [vmem:[%s8663 + $0x6c] sm:$0xff]
        %v8683 = vld [vmem:[%s8663 + $0x74] sm:$0xf]
        %v8684 = vld [vmem:[%s8663 + $0x78] sm:$0xff]
        %v8685 = vld [vmem:[%s8663 + $0x80] sm:$0xf]
        %v8686 = vld [vmem:[%s8663 + $0x84] sm:$0xff]
        %v8687 = vld [vmem:[%s8663 + $0x8c] sm:$0xf]
        %v8688 = vld [vmem:[%s8663 + $0x90] sm:$0xff]
        %v8689 = vld [vmem:[%s8663 + $0x98] sm:$0xf]
        %v8690 = vld [vmem:[%s8663 + $0x9c] sm:$0xff]
        %v8691 = vld [vmem:[%s8663 + $0xa4] sm:$0xf]
        %v8692 = vld [vmem:[%s8663 + $0xa8] sm:$0xff]
        %v8693 = vld [vmem:[%s8663 + $0xb0] sm:$0xf]
        %v8694 = vld [vmem:[%s8663 + $0xb4] sm:$0xff]
        %v8695 = vld [vmem:[%s8663 + $0xbc] sm:$0xf]
        %v8698 = vunpack.c.l.b16 %v7607
        %v8699 = vunpack.c.l.b16 %v7608
        %v8700 = vpack.c.b16 %v8699, %v8698
        %v8734 = vunpack.c.l.b16 %v8664
        %v8735 = vunpack.c.h.b16 %v8664
        %v8736 = vunpack.c.l.b16 %v8665
        %v8737 = vunpack.c.l.b16 %v8666
        %v8738 = vunpack.c.h.b16 %v8666
        %v8739 = vunpack.c.l.b16 %v8667
        %v8740 = vunpack.c.l.b16 %v8668
        %v8741 = vunpack.c.h.b16 %v8668
        %v8742 = vunpack.c.l.b16 %v8669
        %v8743 = vunpack.c.l.b16 %v8670
        %v8744 = vunpack.c.h.b16 %v8670
        %v8745 = vunpack.c.l.b16 %v8671
        %v8746 = vunpack.c.l.b16 %v8672
        %v8747 = vunpack.c.h.b16 %v8672
        %v8748 = vunpack.c.l.b16 %v8673
        %v8749 = vunpack.c.l.b16 %v8674
        %v8750 = vunpack.c.h.b16 %v8674
        %v8751 = vunpack.c.l.b16 %v8675
        %v8752 = vunpack.c.l.b16 %v8676
        %v8753 = vunpack.c.h.b16 %v8676
        %v8754 = vunpack.c.l.b16 %v8677
        %v8755 = vunpack.c.l.b16 %v8678
        %v8756 = vunpack.c.h.b16 %v8678
        %v8757 = vunpack.c.l.b16 %v8679
        %v8758 = vunpack.c.l.b16 %v8680
        %v8759 = vunpack.c.h.b16 %v8680
        %v8760 = vunpack.c.l.b16 %v8681
        %v8761 = vunpack.c.l.b16 %v8682
        %v8762 = vunpack.c.h.b16 %v8682
        %v8763 = vunpack.c.l.b16 %v8683
        %v8764 = vunpack.c.l.b16 %v8684
        %v8765 = vunpack.c.h.b16 %v8684
        %v8766 = vunpack.c.l.b16 %v8685
        %v8767 = vunpack.c.l.b16 %v8686
        %v8768 = vunpack.c.h.b16 %v8686
        %v8769 = vunpack.c.l.b16 %v8687
        %v8770 = vunpack.c.l.b16 %v8688
        %v8771 = vunpack.c.h.b16 %v8688
        %v8772 = vunpack.c.l.b16 %v8689
        %v8773 = vunpack.c.l.b16 %v8690
        %v8774 = vunpack.c.h.b16 %v8690
        %v8775 = vunpack.c.l.b16 %v8691
        %v8776 = vunpack.c.l.b16 %v8692
        %v8777 = vunpack.c.h.b16 %v8692
        %v8778 = vunpack.c.l.b16 %v8693
        %v8779 = vunpack.c.l.b16 %v8694
        %v8780 = vunpack.c.h.b16 %v8694
        %v8781 = vunpack.c.l.b16 %v8695
        %v8782 = vpack.c.b16 %v8737, %v8734
        %v8783 = vpack.c.b16 %v8738, %v8735
        %v8784 = vpack.c.b16 %v8739, %v8736
        %v8785 = vpack.c.b16 %v8743, %v8740
        %v8786 = vpack.c.b16 %v8744, %v8741
        %v8787 = vpack.c.b16 %v8745, %v8742
        %v8788 = vpack.c.b16 %v8749, %v8746
        %v8789 = vpack.c.b16 %v8750, %v8747
        %v8790 = vpack.c.b16 %v8751, %v8748
        %v8791 = vpack.c.b16 %v8755, %v8752
        %v8792 = vpack.c.b16 %v8756, %v8753
        %v8793 = vpack.c.b16 %v8757, %v8754
        %v8794 = vpack.c.b16 %v8761, %v8758
        %v8795 = vpack.c.b16 %v8762, %v8759
        %v8796 = vpack.c.b16 %v8763, %v8760
        %v8797 = vpack.c.b16 %v8767, %v8764
        %v8798 = vpack.c.b16 %v8768, %v8765
        %v8799 = vpack.c.b16 %v8769, %v8766
        %v8800 = vpack.c.b16 %v8773, %v8770
        %v8801 = vpack.c.b16 %v8774, %v8771
        %v8802 = vpack.c.b16 %v8775, %v8772
        %v8803 = vpack.c.b16 %v8779, %v8776
        %v8804 = vpack.c.b16 %v8780, %v8777
        %v8805 = vpack.c.b16 %v8781, %v8778
        %8830 = vmatpush.bf16.msra.mxu0 %v8803
        %8831 = vmatpush.bf16.msra.mxu0 %v8800
        %8832 = vmatpush.bf16.msra.mxu0 %v8797
        %8833 = vmatpush.bf16.msra.mxu0 %v8794
        %8834 = vmatpush.bf16.msra.mxu0 %v8791
        %8835 = vmatpush.bf16.msra.mxu0 %v8788
        %8836 = vmatpush.bf16.msra.mxu0 %v8785
        %8837 = vmatpush.bf16.msra.mxu0 %v8782
        %8838 = vmatmul.bf16.gmra.mxu0 %v8700
        %v8839 = vpop.f32.mrf.mxu0
        %v8840 = vadd.f32 0.0, %v8839
        %v8841 = vpop.f32.mrf.mxu0
        %v8842 = vadd.f32 0.0, %v8841
        %8843 = vdwg.mxu0
        %8844 = vmatpush.bf16.msra.mxu0 %v8804
        %8845 = vmatpush.bf16.msra.mxu0 %v8801
        %8846 = vmatpush.bf16.msra.mxu0 %v8798
        %8847 = vmatpush.bf16.msra.mxu0 %v8795
        %8848 = vmatpush.bf16.msra.mxu0 %v8792
        %8849 = vmatpush.bf16.msra.mxu0 %v8789
        %8850 = vmatpush.bf16.msra.mxu0 %v8786
        %8851 = vmatpush.bf16.msra.mxu0 %v8783
        %8852 = vmatmul.bf16.gmra.mxu0 %v8700
        %v8853 = vpop.f32.mrf.mxu0
        %v8854 = vadd.f32 0.0, %v8853
        %v8855 = vpop.f32.mrf.mxu0
        %v8856 = vadd.f32 0.0, %v8855
        %8857 = vdwg.mxu0
        %8858 = vmatpush.bf16.msra.mxu0 %v8805
        %8859 = vmatpush.bf16.msra.mxu0 %v8802
        %8860 = vmatpush.bf16.msra.mxu0 %v8799
        %8861 = vmatpush.bf16.msra.mxu0 %v8796
        %8862 = vmatpush.bf16.msra.mxu0 %v8793
        %8863 = vmatpush.bf16.msra.mxu0 %v8790
        %8864 = vmatpush.bf16.msra.mxu0 %v8787
        %8865 = vmatpush.bf16.msra.mxu0 %v8784
        %8866 = vmatmul.bf16.gmra.mxu0 %v8700
        %v8867 = vpop.f32.mrf.mxu0
        %v8868 = vadd.f32 0.0, %v8867
        %v8869 = vpop.f32.mrf.mxu0
        %v8870 = vadd.f32 0.0, %v8869
        %8871 = vdwg.mxu0
        %v8872 = vadd.f32 %v8416, %v8840
        %v8873 = vadd.f32 %v8430, %v8854
        %v8874 = vadd.f32 %v8444, %v8868
        %v8875 = vadd.f32 %v8418, %v8842
        %v8876 = vadd.f32 %v8432, %v8856
        %v8877 = vadd.f32 %v8446, %v8870
        %s8878 = scalar_lea.vmem %s5, 1152
        %v8879 = vld [vmem:[%s8878] sm:$0xff]
        %v8880 = vld [vmem:[%s8878 + $0x8] sm:$0xf]
        %v8881 = vld [vmem:[%s8878 + $0xc] sm:$0xff]
        %v8882 = vld [vmem:[%s8878 + $0x14] sm:$0xf]
        %v8883 = vld [vmem:[%s8878 + $0x18] sm:$0xff]
        %v8884 = vld [vmem:[%s8878 + $0x20] sm:$0xf]
        %v8885 = vld [vmem:[%s8878 + $0x24] sm:$0xff]
        %v8886 = vld [vmem:[%s8878 + $0x2c] sm:$0xf]
        %v8887 = vld [vmem:[%s8878 + $0x30] sm:$0xff]
        %v8888 = vld [vmem:[%s8878 + $0x38] sm:$0xf]
        %v8889 = vld [vmem:[%s8878 + $0x3c] sm:$0xff]
        %v8890 = vld [vmem:[%s8878 + $0x44] sm:$0xf]
        %v8891 = vld [vmem:[%s8878 + $0x48] sm:$0xff]
        %v8892 = vld [vmem:[%s8878 + $0x50] sm:$0xf]
        %v8893 = vld [vmem:[%s8878 + $0x54] sm:$0xff]
        %v8894 = vld [vmem:[%s8878 + $0x5c] sm:$0xf]
        %v8895 = vld [vmem:[%s8878 + $0x60] sm:$0xff]
        %v8896 = vld [vmem:[%s8878 + $0x68] sm:$0xf]
        %v8897 = vld [vmem:[%s8878 + $0x6c] sm:$0xff]
        %v8898 = vld [vmem:[%s8878 + $0x74] sm:$0xf]
        %v8899 = vld [vmem:[%s8878 + $0x78] sm:$0xff]
        %v8900 = vld [vmem:[%s8878 + $0x80] sm:$0xf]
        %v8901 = vld [vmem:[%s8878 + $0x84] sm:$0xff]
        %v8902 = vld [vmem:[%s8878 + $0x8c] sm:$0xf]
        %v8903 = vld [vmem:[%s8878 + $0x90] sm:$0xff]
        %v8904 = vld [vmem:[%s8878 + $0x98] sm:$0xf]
        %v8905 = vld [vmem:[%s8878 + $0x9c] sm:$0xff]
        %v8906 = vld [vmem:[%s8878 + $0xa4] sm:$0xf]
        %v8907 = vld [vmem:[%s8878 + $0xa8] sm:$0xff]
        %v8908 = vld [vmem:[%s8878 + $0xb0] sm:$0xf]
        %v8909 = vld [vmem:[%s8878 + $0xb4] sm:$0xff]
        %v8910 = vld [vmem:[%s8878 + $0xbc] sm:$0xf]
        %v8913 = vunpack.c.l.b16 %v7609
        %v8914 = vunpack.c.l.b16 %v7610
        %v8915 = vpack.c.b16 %v8914, %v8913
        %v8949 = vunpack.c.l.b16 %v8879
        %v8950 = vunpack.c.h.b16 %v8879
        %v8951 = vunpack.c.l.b16 %v8880
        %v8952 = vunpack.c.l.b16 %v8881
        %v8953 = vunpack.c.h.b16 %v8881
        %v8954 = vunpack.c.l.b16 %v8882
        %v8955 = vunpack.c.l.b16 %v8883
        %v8956 = vunpack.c.h.b16 %v8883
        %v8957 = vunpack.c.l.b16 %v8884
        %v8958 = vunpack.c.l.b16 %v8885
        %v8959 = vunpack.c.h.b16 %v8885
        %v8960 = vunpack.c.l.b16 %v8886
        %v8961 = vunpack.c.l.b16 %v8887
        %v8962 = vunpack.c.h.b16 %v8887
        %v8963 = vunpack.c.l.b16 %v8888
        %v8964 = vunpack.c.l.b16 %v8889
        %v8965 = vunpack.c.h.b16 %v8889
        %v8966 = vunpack.c.l.b16 %v8890
        %v8967 = vunpack.c.l.b16 %v8891
        %v8968 = vunpack.c.h.b16 %v8891
        %v8969 = vunpack.c.l.b16 %v8892
        %v8970 = vunpack.c.l.b16 %v8893
        %v8971 = vunpack.c.h.b16 %v8893
        %v8972 = vunpack.c.l.b16 %v8894
        %v8973 = vunpack.c.l.b16 %v8895
        %v8974 = vunpack.c.h.b16 %v8895
        %v8975 = vunpack.c.l.b16 %v8896
        %v8976 = vunpack.c.l.b16 %v8897
        %v8977 = vunpack.c.h.b16 %v8897
        %v8978 = vunpack.c.l.b16 %v8898
        %v8979 = vunpack.c.l.b16 %v8899
        %v8980 = vunpack.c.h.b16 %v8899
        %v8981 = vunpack.c.l.b16 %v8900
        %v8982 = vunpack.c.l.b16 %v8901
        %v8983 = vunpack.c.h.b16 %v8901
        %v8984 = vunpack.c.l.b16 %v8902
        %v8985 = vunpack.c.l.b16 %v8903
        %v8986 = vunpack.c.h.b16 %v8903
        %v8987 = vunpack.c.l.b16 %v8904
        %v8988 = vunpack.c.l.b16 %v8905
        %v8989 = vunpack.c.h.b16 %v8905
        %v8990 = vunpack.c.l.b16 %v8906
        %v8991 = vunpack.c.l.b16 %v8907
        %v8992 = vunpack.c.h.b16 %v8907
        %v8993 = vunpack.c.l.b16 %v8908
        %v8994 = vunpack.c.l.b16 %v8909
        %v8995 = vunpack.c.h.b16 %v8909
        %v8996 = vunpack.c.l.b16 %v8910
        %v8997 = vpack.c.b16 %v8952, %v8949
        %v8998 = vpack.c.b16 %v8953, %v8950
        %v8999 = vpack.c.b16 %v8954, %v8951
        %v9000 = vpack.c.b16 %v8958, %v8955
        %v9001 = vpack.c.b16 %v8959, %v8956
        %v9002 = vpack.c.b16 %v8960, %v8957
        %v9003 = vpack.c.b16 %v8964, %v8961
        %v9004 = vpack.c.b16 %v8965, %v8962
        %v9005 = vpack.c.b16 %v8966, %v8963
        %v9006 = vpack.c.b16 %v8970, %v8967
        %v9007 = vpack.c.b16 %v8971, %v8968
        %v9008 = vpack.c.b16 %v8972, %v8969
        %v9009 = vpack.c.b16 %v8976, %v8973
        %v9010 = vpack.c.b16 %v8977, %v8974
        %v9011 = vpack.c.b16 %v8978, %v8975
        %v9012 = vpack.c.b16 %v8982, %v8979
        %v9013 = vpack.c.b16 %v8983, %v8980
        %v9014 = vpack.c.b16 %v8984, %v8981
        %v9015 = vpack.c.b16 %v8988, %v8985
        %v9016 = vpack.c.b16 %v8989, %v8986
        %v9017 = vpack.c.b16 %v8990, %v8987
        %v9018 = vpack.c.b16 %v8994, %v8991
        %v9019 = vpack.c.b16 %v8995, %v8992
        %v9020 = vpack.c.b16 %v8996, %v8993
        %9045 = vmatpush.bf16.msra.mxu0 %v9018
        %9046 = vmatpush.bf16.msra.mxu0 %v9015
        %9047 = vmatpush.bf16.msra.mxu0 %v9012
        %9048 = vmatpush.bf16.msra.mxu0 %v9009
        %9049 = vmatpush.bf16.msra.mxu0 %v9006
        %9050 = vmatpush.bf16.msra.mxu0 %v9003
        %9051 = vmatpush.bf16.msra.mxu0 %v9000
        %9052 = vmatpush.bf16.msra.mxu0 %v8997
        %9053 = vmatmul.bf16.gmra.mxu0 %v8915
        %v9054 = vpop.f32.mrf.mxu0
        %v9055 = vadd.f32 0.0, %v9054
        %v9056 = vpop.f32.mrf.mxu0
        %v9057 = vadd.f32 0.0, %v9056
        %9058 = vdwg.mxu0
        %9059 = vmatpush.bf16.msra.mxu0 %v9019
        %9060 = vmatpush.bf16.msra.mxu0 %v9016
        %9061 = vmatpush.bf16.msra.mxu0 %v9013
        %9062 = vmatpush.bf16.msra.mxu0 %v9010
        %9063 = vmatpush.bf16.msra.mxu0 %v9007
        %9064 = vmatpush.bf16.msra.mxu0 %v9004
        %9065 = vmatpush.bf16.msra.mxu0 %v9001
        %9066 = vmatpush.bf16.msra.mxu0 %v8998
        %9067 = vmatmul.bf16.gmra.mxu0 %v8915
        %v9068 = vpop.f32.mrf.mxu0
        %v9069 = vadd.f32 0.0, %v9068
        %v9070 = vpop.f32.mrf.mxu0
        %v9071 = vadd.f32 0.0, %v9070
        %9072 = vdwg.mxu0
        %9073 = vmatpush.bf16.msra.mxu0 %v9020
        %9074 = vmatpush.bf16.msra.mxu0 %v9017
        %9075 = vmatpush.bf16.msra.mxu0 %v9014
        %9076 = vmatpush.bf16.msra.mxu0 %v9011
        %9077 = vmatpush.bf16.msra.mxu0 %v9008
        %9078 = vmatpush.bf16.msra.mxu0 %v9005
        %9079 = vmatpush.bf16.msra.mxu0 %v9002
        %9080 = vmatpush.bf16.msra.mxu0 %v8999
        %9081 = vmatmul.bf16.gmra.mxu0 %v8915
        %v9082 = vpop.f32.mrf.mxu0
        %v9083 = vadd.f32 0.0, %v9082
        %v9084 = vpop.f32.mrf.mxu0
        %v9085 = vadd.f32 0.0, %v9084
        %9086 = vdwg.mxu0
        %v9087 = vadd.f32 %v8657, %v9055
        %v9088 = vadd.f32 %v8658, %v9069
        %v9089 = vadd.f32 %v8659, %v9083
        %v9090 = vadd.f32 %v8660, %v9057
        %v9091 = vadd.f32 %v8661, %v9071
        %v9092 = vadd.f32 %v8662, %v9085
        %s9093 = scalar_lea.vmem %s5, 1344
        %v9094 = vld [vmem:[%s9093] sm:$0xff]
        %v9095 = vld [vmem:[%s9093 + $0x8] sm:$0xf]
        %v9096 = vld [vmem:[%s9093 + $0xc] sm:$0xff]
        %v9097 = vld [vmem:[%s9093 + $0x14] sm:$0xf]
        %v9098 = vld [vmem:[%s9093 + $0x18] sm:$0xff]
        %v9099 = vld [vmem:[%s9093 + $0x20] sm:$0xf]
        %v9100 = vld [vmem:[%s9093 + $0x24] sm:$0xff]
        %v9101 = vld [vmem:[%s9093 + $0x2c] sm:$0xf]
        %v9102 = vld [vmem:[%s9093 + $0x30] sm:$0xff]
        %v9103 = vld [vmem:[%s9093 + $0x38] sm:$0xf]
        %v9104 = vld [vmem:[%s9093 + $0x3c] sm:$0xff]
        %v9105 = vld [vmem:[%s9093 + $0x44] sm:$0xf]
        %v9106 = vld [vmem:[%s9093 + $0x48] sm:$0xff]
        %v9107 = vld [vmem:[%s9093 + $0x50] sm:$0xf]
        %v9108 = vld [vmem:[%s9093 + $0x54] sm:$0xff]
        %v9109 = vld [vmem:[%s9093 + $0x5c] sm:$0xf]
        %v9110 = vld [vmem:[%s9093 + $0x60] sm:$0xff]
        %v9111 = vld [vmem:[%s9093 + $0x68] sm:$0xf]
        %v9112 = vld [vmem:[%s9093 + $0x6c] sm:$0xff]
        %v9113 = vld [vmem:[%s9093 + $0x74] sm:$0xf]
        %v9114 = vld [vmem:[%s9093 + $0x78] sm:$0xff]
        %v9115 = vld [vmem:[%s9093 + $0x80] sm:$0xf]
        %v9116 = vld [vmem:[%s9093 + $0x84] sm:$0xff]
        %v9117 = vld [vmem:[%s9093 + $0x8c] sm:$0xf]
        %v9118 = vld [vmem:[%s9093 + $0x90] sm:$0xff]
        %v9119 = vld [vmem:[%s9093 + $0x98] sm:$0xf]
        %v9120 = vld [vmem:[%s9093 + $0x9c] sm:$0xff]
        %v9121 = vld [vmem:[%s9093 + $0xa4] sm:$0xf]
        %v9122 = vld [vmem:[%s9093 + $0xa8] sm:$0xff]
        %v9123 = vld [vmem:[%s9093 + $0xb0] sm:$0xf]
        %v9124 = vld [vmem:[%s9093 + $0xb4] sm:$0xff]
        %v9125 = vld [vmem:[%s9093 + $0xbc] sm:$0xf]
        %v9128 = vunpack.c.l.b16 %v7611
        %v9129 = vunpack.c.l.b16 %v7612
        %v9130 = vpack.c.b16 %v9129, %v9128
        %v9164 = vunpack.c.l.b16 %v9094
        %v9165 = vunpack.c.h.b16 %v9094
        %v9166 = vunpack.c.l.b16 %v9095
        %v9167 = vunpack.c.l.b16 %v9096
        %v9168 = vunpack.c.h.b16 %v9096
        %v9169 = vunpack.c.l.b16 %v9097
        %v9170 = vunpack.c.l.b16 %v9098
        %v9171 = vunpack.c.h.b16 %v9098
        %v9172 = vunpack.c.l.b16 %v9099
        %v9173 = vunpack.c.l.b16 %v9100
        %v9174 = vunpack.c.h.b16 %v9100
        %v9175 = vunpack.c.l.b16 %v9101
        %v9176 = vunpack.c.l.b16 %v9102
        %v9177 = vunpack.c.h.b16 %v9102
        %v9178 = vunpack.c.l.b16 %v9103
        %v9179 = vunpack.c.l.b16 %v9104
        %v9180 = vunpack.c.h.b16 %v9104
        %v9181 = vunpack.c.l.b16 %v9105
        %v9182 = vunpack.c.l.b16 %v9106
        %v9183 = vunpack.c.h.b16 %v9106
        %v9184 = vunpack.c.l.b16 %v9107
        %v9185 = vunpack.c.l.b16 %v9108
        %v9186 = vunpack.c.h.b16 %v9108
        %v9187 = vunpack.c.l.b16 %v9109
        %v9188 = vunpack.c.l.b16 %v9110
        %v9189 = vunpack.c.h.b16 %v9110
        %v9190 = vunpack.c.l.b16 %v9111
        %v9191 = vunpack.c.l.b16 %v9112
        %v9192 = vunpack.c.h.b16 %v9112
        %v9193 = vunpack.c.l.b16 %v9113
        %v9194 = vunpack.c.l.b16 %v9114
        %v9195 = vunpack.c.h.b16 %v9114
        %v9196 = vunpack.c.l.b16 %v9115
        %v9197 = vunpack.c.l.b16 %v9116
        %v9198 = vunpack.c.h.b16 %v9116
        %v9199 = vunpack.c.l.b16 %v9117
        %v9200 = vunpack.c.l.b16 %v9118
        %v9201 = vunpack.c.h.b16 %v9118
        %v9202 = vunpack.c.l.b16 %v9119
        %v9203 = vunpack.c.l.b16 %v9120
        %v9204 = vunpack.c.h.b16 %v9120
        %v9205 = vunpack.c.l.b16 %v9121
        %v9206 = vunpack.c.l.b16 %v9122
        %v9207 = vunpack.c.h.b16 %v9122
        %v9208 = vunpack.c.l.b16 %v9123
        %v9209 = vunpack.c.l.b16 %v9124
        %v9210 = vunpack.c.h.b16 %v9124
        %v9211 = vunpack.c.l.b16 %v9125
        %v9212 = vpack.c.b16 %v9167, %v9164
        %v9213 = vpack.c.b16 %v9168, %v9165
        %v9214 = vpack.c.b16 %v9169, %v9166
        %v9215 = vpack.c.b16 %v9173, %v9170
        %v9216 = vpack.c.b16 %v9174, %v9171
        %v9217 = vpack.c.b16 %v9175, %v9172
        %v9218 = vpack.c.b16 %v9179, %v9176
        %v9219 = vpack.c.b16 %v9180, %v9177
        %v9220 = vpack.c.b16 %v9181, %v9178
        %v9221 = vpack.c.b16 %v9185, %v9182
        %v9222 = vpack.c.b16 %v9186, %v9183
        %v9223 = vpack.c.b16 %v9187, %v9184
        %v9224 = vpack.c.b16 %v9191, %v9188
        %v9225 = vpack.c.b16 %v9192, %v9189
        %v9226 = vpack.c.b16 %v9193, %v9190
        %v9227 = vpack.c.b16 %v9197, %v9194
        %v9228 = vpack.c.b16 %v9198, %v9195
        %v9229 = vpack.c.b16 %v9199, %v9196
        %v9230 = vpack.c.b16 %v9203, %v9200
        %v9231 = vpack.c.b16 %v9204, %v9201
        %v9232 = vpack.c.b16 %v9205, %v9202
        %v9233 = vpack.c.b16 %v9209, %v9206
        %v9234 = vpack.c.b16 %v9210, %v9207
        %v9235 = vpack.c.b16 %v9211, %v9208
        %9260 = vmatpush.bf16.msra.mxu0 %v9233
        %9261 = vmatpush.bf16.msra.mxu0 %v9230
        %9262 = vmatpush.bf16.msra.mxu0 %v9227
        %9263 = vmatpush.bf16.msra.mxu0 %v9224
        %9264 = vmatpush.bf16.msra.mxu0 %v9221
        %9265 = vmatpush.bf16.msra.mxu0 %v9218
        %9266 = vmatpush.bf16.msra.mxu0 %v9215
        %9267 = vmatpush.bf16.msra.mxu0 %v9212
        %9268 = vmatmul.bf16.gmra.mxu0 %v9130
        %v9269 = vpop.f32.mrf.mxu0
        %v9270 = vadd.f32 0.0, %v9269
        %v9271 = vpop.f32.mrf.mxu0
        %v9272 = vadd.f32 0.0, %v9271
        %9273 = vdwg.mxu0
        %9274 = vmatpush.bf16.msra.mxu0 %v9234
        %9275 = vmatpush.bf16.msra.mxu0 %v9231
        %9276 = vmatpush.bf16.msra.mxu0 %v9228
        %9277 = vmatpush.bf16.msra.mxu0 %v9225
        %9278 = vmatpush.bf16.msra.mxu0 %v9222
        %9279 = vmatpush.bf16.msra.mxu0 %v9219
        %9280 = vmatpush.bf16.msra.mxu0 %v9216
        %9281 = vmatpush.bf16.msra.mxu0 %v9213
        %9282 = vmatmul.bf16.gmra.mxu0 %v9130
        %v9283 = vpop.f32.mrf.mxu0
        %v9284 = vadd.f32 0.0, %v9283
        %v9285 = vpop.f32.mrf.mxu0
        %v9286 = vadd.f32 0.0, %v9285
        %9287 = vdwg.mxu0
        %9288 = vmatpush.bf16.msra.mxu0 %v9235
        %9289 = vmatpush.bf16.msra.mxu0 %v9232
        %9290 = vmatpush.bf16.msra.mxu0 %v9229
        %9291 = vmatpush.bf16.msra.mxu0 %v9226
        %9292 = vmatpush.bf16.msra.mxu0 %v9223
        %9293 = vmatpush.bf16.msra.mxu0 %v9220
        %9294 = vmatpush.bf16.msra.mxu0 %v9217
        %9295 = vmatpush.bf16.msra.mxu0 %v9214
        %9296 = vmatmul.bf16.gmra.mxu0 %v9130
        %v9297 = vpop.f32.mrf.mxu0
        %v9298 = vadd.f32 0.0, %v9297
        %v9299 = vpop.f32.mrf.mxu0
        %v9300 = vadd.f32 0.0, %v9299
        %9301 = vdwg.mxu0
        %v9302 = vadd.f32 %v8872, %v9270
        %v9303 = vadd.f32 %v8873, %v9284
        %v9304 = vadd.f32 %v8874, %v9298
        %v9305 = vadd.f32 %v8875, %v9272
        %v9306 = vadd.f32 %v8876, %v9286
        %v9307 = vadd.f32 %v8877, %v9300
        %v9308 = vadd.f32 %v9087, %v9302
        %v9309 = vadd.f32 %v9088, %v9303
        %v9310 = vadd.f32 %v9089, %v9304
        %v9311 = vadd.f32 %v9090, %v9305
        %v9312 = vadd.f32 %v9091, %v9306
        %v9313 = vadd.f32 %v9092, %v9307
        %v9314 = vld [vmem:[%s6] sm:$0x7]
        %v9316 = vperm.slane %v9314, 0
        %v9317 = vperm.slane %v9314, 1
        %v9318 = vperm.slane %v9314, 2
        %v9322 = vadd.f32 %v9308, %v9316
        %v9323 = vadd.f32 %v9309, %v9317
        %v9324 = vadd.f32 %v9310, %v9318
        %v9325 = vadd.f32 %v9311, %v9316
        %v9326 = vadd.f32 %v9312, %v9317
        %v9327 = vadd.f32 %v9313, %v9318
        %9328 = vst [vmem:[%s356] sm:$0xff] %v9322
        %9329 = vst [vmem:[%s356 + $0x8] sm:$0xff] %v9325
        %v9330 = vmax.f32 %v9323, 0.0
        %v9331 = vmax.f32 %v9324, 0.0
        %v9332 = vmax.f32 %v9326, 0.0
        %v9333 = vmax.f32 %v9327, 0.0
        %v9334 = vld [vmem:[%s7] sm:$0xff]
        %v9335 = vld [vmem:[%s7 + $0x8] sm:$0xff]
        %v9336 = vld [vmem:[%s7 + $0x10] sm:$0xff]
        %v9337 = vld [vmem:[%s7 + $0x18] sm:$0xff]
        %v9338 = vld [vmem:[%s7 + $0x20] sm:$0xff]
        %v9339 = vld [vmem:[%s7 + $0x28] sm:$0xff]
        %v9340 = vld [vmem:[%s7 + $0x30] sm:$0xff]
        %v9341 = vld [vmem:[%s7 + $0x38] sm:$0xff]
        %v9342 = vld [vmem:[%s7 + $0x40] sm:$0xff]
        %v9343 = vld [vmem:[%s7 + $0x48] sm:$0xff]
        %v9344 = vld [vmem:[%s7 + $0x50] sm:$0xff]
        %v9345 = vld [vmem:[%s7 + $0x58] sm:$0xff]
        %v9346 = vld [vmem:[%s7 + $0x60] sm:$0xff]
        %v9347 = vld [vmem:[%s7 + $0x68] sm:$0xff]
        %v9348 = vld [vmem:[%s7 + $0x70] sm:$0xff]
        %v9349 = vld [vmem:[%s7 + $0x78] sm:$0xff]
        %v9350 = vld [vmem:[%s7 + $0x80] sm:$0xff]
        %v9351 = vld [vmem:[%s7 + $0x88] sm:$0xff]
        %v9352 = vld [vmem:[%s7 + $0x90] sm:$0xff]
        %v9353 = vld [vmem:[%s7 + $0x98] sm:$0xff]
        %v9354 = vld [vmem:[%s7 + $0xa0] sm:$0xff]
        %v9355 = vld [vmem:[%s7 + $0xa8] sm:$0xff]
        %v9356 = vld [vmem:[%s7 + $0xb0] sm:$0xff]
        %v9357 = vld [vmem:[%s7 + $0xb8] sm:$0xff]
        %v9358 = vld [vmem:[%s7 + $0xc0] sm:$0xff]
        %v9359 = vld [vmem:[%s7 + $0xc8] sm:$0xff]
        %v9360 = vld [vmem:[%s7 + $0xd0] sm:$0xff]
        %v9361 = vld [vmem:[%s7 + $0xd8] sm:$0xff]
        %v9362 = vld [vmem:[%s7 + $0xe0] sm:$0xff]
        %v9363 = vld [vmem:[%s7 + $0xe8] sm:$0xff]
        %v9364 = vld [vmem:[%s7 + $0xf0] sm:$0xff]
        %v9365 = vld [vmem:[%s7 + $0xf8] sm:$0xff]
        %v9366 = vld [vmem:[%s8] sm:$0x1]
        %v9368 = vperm.slane %v9366, 0
        %9370 = vmatpush.msra.mxu0 %v9349
        %9371 = vmatpush.msra.mxu0 %v9348
        %9372 = vmatpush.msra.mxu0 %v9347
        %9373 = vmatpush.msra.mxu0 %v9346
        %9374 = vmatpush.msra.mxu0 %v9345
        %9375 = vmatpush.msra.mxu0 %v9344
        %9376 = vmatpush.msra.mxu0 %v9343
        %9377 = vmatpush.msra.mxu0 %v9342
        %9378 = vmatpush.msra.mxu0 %v9341
        %9379 = vmatpush.msra.mxu0 %v9340
        %9380 = vmatpush.msra.mxu0 %v9339
        %9381 = vmatpush.msra.mxu0 %v9338
        %9382 = vmatpush.msra.mxu0 %v9337
        %9383 = vmatpush.msra.mxu0 %v9336
        %9384 = vmatpush.msra.mxu0 %v9335
        %9385 = vmatpush.msra.mxu0 %v9334
        %9386 = vmatmul.f32.gmra.mxu0 %v9330
        %v9387 = vpop.f32.mrf.mxu0
        %v9388 = vadd.f32 %v9368, %v9387
        %9389 = vmatmul.f32.gmra.mxu0 %v9332
        %v9390 = vpop.f32.mrf.mxu0
        %v9391 = vadd.f32 %v9368, %v9390
        %9392 = vdwg.mxu0
        %9393 = vmatpush.msra.mxu0 %v9365
        %9394 = vmatpush.msra.mxu0 %v9364
        %9395 = vmatpush.msra.mxu0 %v9363
        %9396 = vmatpush.msra.mxu0 %v9362
        %9397 = vmatpush.msra.mxu0 %v9361
        %9398 = vmatpush.msra.mxu0 %v9360
        %9399 = vmatpush.msra.mxu0 %v9359
        %9400 = vmatpush.msra.mxu0 %v9358
        %9401 = vmatpush.msra.mxu0 %v9357
        %9402 = vmatpush.msra.mxu0 %v9356
        %9403 = vmatpush.msra.mxu0 %v9355
        %9404 = vmatpush.msra.mxu0 %v9354
        %9405 = vmatpush.msra.mxu0 %v9353
        %9406 = vmatpush.msra.mxu0 %v9352
        %9407 = vmatpush.msra.mxu0 %v9351
        %9408 = vmatpush.msra.mxu0 %v9350
        %9409 = vmatmul.f32.gmra.mxu0 %v9331
        %v9410 = vpop.f32.mrf.mxu0
        %v9411 = vadd.f32 %v9388, %v9410
        %9412 = vmatmul.f32.gmra.mxu0 %v9333
        %v9413 = vpop.f32.mrf.mxu0
        %v9414 = vadd.f32 %v9391, %v9413
        %9415 = vdwg.mxu0
        %v9416 = vtanh.pop %v9411
        %v9417 = vtanh.pop %v9414
        %9418 = vst [vmem:[%s376] sm:$0xff] %v9416
        %9419 = vst [vmem:[%s376 + $0x8] sm:$0xff] %v9417
        %s9420 = sand.u32 %s227, 1
        %s9421 = scalar_lea.sflag [#allocation3], %s9420
        %s9422 = sand.u32 %s227, 1
        %s9423 = smul.addr %s9422, 16
        %s9424 = scalar_lea.vmem [#allocation2], %s9423
        %s9425 = smul.u32 2, %s25
        %p9426 = scmp.lt.s32.totalorder %s9425, 3
        %s9427 = scalar_select %p9426, %s9425, 3
        %s9428 = smul.addr %s9427, 8
        %s9429 = scalar_lea.vmem %s10, %s9428
        // Predicated region
        $region57: #{network_forward.1} parent=55 // pred_check
          %p9430 = pneg %p237
        $region58: #{network_forward.1} parent=55 // pred_check_branch
          %9432 = sbr.rel (%p9430) target = $region60
        $region59: #{network_forward.1} parent=55 // pred_region
          %s9433 = smul.u32 2, %s25
          %9435 = vsyncadd %s9421, 0
          %s9436 = smul.addr %s9433, 8
          %s9437 = scalar_lea.hbm %s9, %s9436
          %s9438 = sshll.u32 %s9424, 4
          %s9439 = int_to_ptr.vmem [resolvable:$true] %s9438
          %s9440 = sshll.u32 %s9437, 4
          %s9441 = int_to_ptr.hbm [resolvable:$true] %s9440
          %9446 = dma.vmem_to_hbm [thread:$0]  %s9439, 256, %s9441, %s9421, 128, 128, 8
        $region60: #{network_forward.1} parent=55 // pred_fallthru
          _
        // Predicated region
        $region61: #{network_forward.1} parent=55 // pred_check
          %p9447 = pneg %p263
        $region62: #{network_forward.1} parent=55 // pred_check_branch
          %9449 = sbr.rel (%p9447) target = $region64
        $region63: #{network_forward.1} parent=55 // pred_region
          %s9450 = smul.u32 2, %s25
        $region64: #{network_forward.1} parent=55 // pred_fallthru
          _
      $region56: #{network_forward.1} parent=5 // pred_fallthru
        _
      %p9451 = scmp.le.s32.totalorder 2, %s20
      // Predicated region
      $region65: #{network_forward.1} parent=5 // pred_check
        %p9452 = pneg %p9451
      $region66: #{network_forward.1} parent=5 // pred_check_branch
        %9454 = sbr.rel (%p9452) target = $region68
      $region67: #{network_forward.1} parent=5 // pred_region
        %s9455 = ssub.s32 %s20, 2
        // Predicated region
        $region69: #{network_forward.1} parent=67 // pred_check
          %p9456 = pneg %p243
        $region70: #{network_forward.1} parent=67 // pred_check_branch
          %9458 = sbr.rel (%p9456) target = $region72
        $region71: #{network_forward.1} parent=67 // pred_region
          %s9459 = sand.u32 %s228, 1
          %s9460 = scalar_lea.sflag [#allocation3], %s9459
          %s9461 = sand.u32 %s228, 1
          %s9462 = smul.addr %s9461, 16
          %s9463 = scalar_lea.vmem [#allocation2], %s9462
          %9465 = dma.done %s9460, 256
        $region72: #{network_forward.1} parent=67 // pred_fallthru
          _
        // Predicated region
        $region73: #{network_forward.1} parent=67 // pred_check
          %p9466 = pneg %p269
        $region74: #{network_forward.1} parent=67 // pred_check_branch
          %9468 = sbr.rel (%p9466) target = $region76
        $region75: #{network_forward.1} parent=67 // pred_region
          %s9469 = smul.u32 2, %s26
          %p9470 = scmp.lt.s32.totalorder %s9469, 3
          %s9471 = scalar_select %p9470, %s9469, 3
          %s9472 = smul.addr %s9471, 8
          %s9473 = scalar_lea.vmem %s10, %s9472
        $region76: #{network_forward.1} parent=67 // pred_fallthru
          _
      $region68: #{network_forward.1} parent=5 // pred_fallthru
        _
    $region6: #{network_forward.1} parent=1 // loop_footer
      %s24 = sadd.s32 1, %s20
    $region7: #{network_forward.1} parent=1 // loop_footer_branch
      %19 = sbr.rel target = $region3
    $region8: #{network_forward.1} parent=1 // loop_exit
      _
    %9474 = vsyncpa [#allocation3], 1
    %s9475 = scalar_lea.sflag [#allocation3], 1
    %9476 = vsyncpa %s9475, 1

</llo_original>
